<compile_context>
chip_gen: v6e
topology: v6e:2x2x1
jax: 0.10.0
libtpu: 0.0.40
codegen_flags: <defaults>
</compile_context>

<pallas_src>
import functools

import jax
import jax.numpy as jnp
from jax import lax
from jax.experimental import pallas as pl
from jax.experimental.pallas import tpu as pltpu

block_size = 256
n_embd = 512


# ---------------------------------------------------------------------------
# Fused kernel: QKV projection + causal attention (all heads) + out projection
# grid = (B, num_q_tiles); each program handles one (batch, query-tile) pair.
# ---------------------------------------------------------------------------
def _mha_fused_kernel(x_ref, wq_ref, wkv_ref, wproj_ref, bproj_ref, o_ref, *,
                      n_heads, head_size, q_tile, matmul_dtype):
    if matmul_dtype is None:
        cast = lambda a: a
    else:
        cast = lambda a: a.astype(matmul_dtype)

    T = x_ref.shape[1]
    H = head_size
    C = n_heads * H
    tq = q_tile

    qi = pl.program_id(1)
    q_start = pl.multiple_of(qi * tq, tq)

    x = x_ref[0]                                    # (T, C), bf16 on fast path
    xq = x_ref[0, pl.ds(q_start, tq), :]            # (tq, C) query rows only

    # --- K/V projection for the whole sequence: one wide-N (N = 2C) matmul.
    # Weights are pre-cast in the wrapper; accumulation in f32.
    kv = jnp.dot(cast(x), wkv_ref[...],
                 preferred_element_type=jnp.float32)            # (T, 2C)
    k = kv[:, :C]
    v = kv[:, C:]

    # --- Q projection for this query tile only; 1/sqrt(n_embd) already folded
    # into wq in the wrapper.
    q = jnp.dot(cast(xq), wq_ref[...],
                preferred_element_type=jnp.float32)             # (tq, C)

    # causal mask (offset by the query-tile start), shared by all heads
    rows = lax.broadcasted_iota(jnp.int32, (tq, T), 0) + q_start
    cols = lax.broadcasted_iota(jnp.int32, (tq, T), 1)
    causal = cols <= rows
    neg_big = jnp.float32(-1e30)   # large finite; exp() underflows to exactly 0

    head_outs = []
    for h in range(n_heads):        # static unroll; n_heads is small
        qh = q[:, h * H:(h + 1) * H]                # (tq, H)
        kh = k[:, h * H:(h + 1) * H]                # (T, H)
        vh = v[:, h * H:(h + 1) * H]                # (T, H)

        # q @ k^T without materializing a transpose: contract last dims
        s = lax.dot_general(cast(qh), cast(kh),
                            dimension_numbers=(((1,), (1,)), ((), ())),
                            preferred_element_type=jnp.float32)  # (tq, T)
        s = jnp.where(causal, s, neg_big)

        # softmax in f32; normalization deferred past the p@v matmul (EUP recip)
        m = jnp.max(s, axis=-1, keepdims=True)
        p = jnp.exp(s - m)
        inv = pl.reciprocal(jnp.sum(p, axis=-1, keepdims=True), approx=True)

        oh = jnp.dot(cast(p), cast(vh),
                     preferred_element_type=jnp.float32) * inv   # (tq, H)
        head_outs.append(oh)

    # one full-depth (K = C = 512) projection matmul instead of 8 K=64 ones;
    # the concat stays in VMEM (no HBM round trip of the per-head outputs)
    concat = jnp.concatenate(head_outs, axis=-1)                 # (tq, C)
    y = jnp.dot(cast(concat), wproj_ref[...],
                preferred_element_type=jnp.float32)              # (tq, C)
    y = y + bproj_ref[...]                       # (1, C) f32 bias broadcasts
    o_ref[0] = y.astype(o_ref.dtype)             # lane-dense (tq, C) store


# ---------------------------------------------------------------------------
# Wrapper
# ---------------------------------------------------------------------------
def multi_head_attention(x, params, *, matmul_dtype=jnp.bfloat16, q_tile=128):
    """Equivalent to MultiHeadAttention.forward in eval mode.

    x: (B, T, C); params holds per-head wq/wk/wv (n_heads, C, H),
    w_proj (C, C), b_proj (1, C).  matmul_dtype=bf16 (default) runs MXU
    operands in bf16 with f32 accumulation; matmul_dtype=None is pure f32.
    """
    B, T, C = x.shape
    wq, wk, wv = params["wq"], params["wk"], params["wv"]
    n_heads, _, H = wq.shape
    assert n_heads * H == C
    scale = float(C) ** (-0.5)        # reference: C ** -0.5 with C = n_embd

    tq = min(q_tile, T)
    assert T % tq == 0 and tq % 8 == 0, (T, tq)
    nq = T // tq

    # stack per-head weights head-major: (nh, C, H) -> (C, nh*H)
    def stack(w):
        return jnp.transpose(w, (1, 0, 2)).reshape(C, n_heads * H)

    wq_s = stack(wq) * scale                              # scale folded into Q
    wkv = jnp.concatenate([stack(wk), stack(wv)], axis=1)  # (C, 2C)
    w_proj = params["w_proj"]
    b_proj = params["b_proj"].astype(jnp.float32)          # bias added in f32

    x_in = x
    if matmul_dtype is not None:
        # pre-cast once in the wrapper: halves weight/x DMA + VMEM footprint
        # and removes per-grid-step VPU cast ops inside the kernel
        wq_s = wq_s.astype(matmul_dtype)
        wkv = wkv.astype(matmul_dtype)
        w_proj = w_proj.astype(matmul_dtype)
        x_in = x.astype(matmul_dtype)

    kernel = functools.partial(_mha_fused_kernel, n_heads=n_heads,
                               head_size=H, q_tile=tq,
                               matmul_dtype=matmul_dtype)

    grid_spec = pl.GridSpec(
        grid=(B, nq),
        in_specs=[
            pl.BlockSpec((1, T, C), lambda b, qi: (b, 0, 0)),      # x (constant over qi)
            pl.BlockSpec((C, C), lambda b, qi: (0, 0)),            # wq (scaled)
            pl.BlockSpec((C, 2 * C), lambda b, qi: (0, 0)),        # wkv
            pl.BlockSpec((C, C), lambda b, qi: (0, 0)),            # w_proj
            pl.BlockSpec((1, C), lambda b, qi: (0, 0)),            # b_proj
        ],
        out_specs=pl.BlockSpec((1, tq, C), lambda b, qi: (b, qi, 0)),
    )

    return pl.pallas_call(
        kernel,
        out_shape=jax.ShapeDtypeStruct((B, T, C), x.dtype),
        grid_spec=grid_spec,
        compiler_params=pltpu.CompilerParams(
            dimension_semantics=("parallel", "parallel")),
    )(x_in, wq_s, wkv, w_proj, b_proj)


# ---------------------------------------------------------------------------
# Pure-JAX reference (for in-script correctness check)
# ---------------------------------------------------------------------------
def multi_head_attention_ref(x, params):
    B, T, C = x.shape
    wq, wk, wv = params["wq"], params["wk"], params["wv"]
    nh, _, H = wq.shape
    q = jnp.einsum("btc,hcd->bhtd", x, wq)
    k = jnp.einsum("btc,hcd->bhtd", x, wk)
    v = jnp.einsum("btc,hcd->bhtd", x, wv)
    s = jnp.einsum("bhtd,bhsd->bhts", q, k) * (float(C) ** -0.5)
    mask = jnp.tril(jnp.ones((T, T), dtype=bool))
    s = jnp.where(mask, s, -jnp.inf)
    p = jax.nn.softmax(s, axis=-1)
    o = jnp.einsum("bhts,bhsd->bhtd", p, v)
    concat = jnp.transpose(o, (0, 2, 1, 3)).reshape(B, T, nh * H)
    return concat @ params["w_proj"] + params["b_proj"]


def init_params(key, n_heads, head_size, dtype=jnp.float32):
    k1, k2, k3, k4, k5 = jax.random.split(key, 5)
    s = 0.02
    return {
        # per-head weights stored as (n_heads, in, out) so x @ W reproduces
        # nn.Linear(n_embd, head_size, bias=False)
        "wq": (s * jax.random.normal(k1, (n_heads, n_embd, head_size))).astype(dtype),
        "wk": (s * jax.random.normal(k2, (n_heads, n_embd, head_size))).astype(dtype),
        "wv": (s * jax.random.normal(k3, (n_heads, n_embd, head_size))).astype(dtype),
        # proj stored as (in, out) so x @ W + b == nn.Linear(n_embd, n_embd)
        "w_proj": (s * jax.random.normal(k4, (n_embd, n_embd))).astype(dtype),
        "b_proj": (s * jax.random.normal(k5, (1, n_embd))).astype(dtype),
    }


if __name__ == "__main__":
    B, T = 2, 128               # T <= block_size; TPU-friendly small shape
    n_heads, head_size = 8, 64  # n_heads * head_size == n_embd == 512

    key = jax.random.PRNGKey(0)
    kx, kp = jax.random.split(key)
    x = jax.random.normal(kx, (B, T, n_embd), dtype=jnp.float32)
    params = init_params(kp, n_heads, head_size)

    out = jax.jit(multi_head_attention)(x, params)   # default bf16 MXU fast path
    out = jax.block_until_ready(out)

    assert out.shape == (B, T, n_embd), out.shape
    assert bool(jnp.all(jnp.isfinite(out)))

    ref = multi_head_attention_ref(x, params)
    max_err = float(jnp.max(jnp.abs(out - ref)))
    assert jnp.allclose(out, ref, rtol=1e-2, atol=1e-2), max_err

    print("KERNEL_OK")
</pallas_src>

<mosaic_0001>
module attributes {stable_mosaic.version = 11 : i64} {
  func.func @_mha_fused_kernel(%arg0: i32, %arg1: i32, %arg2: memref<1x128x512xbf16, #tpu.memory_space<vmem>>, %arg3: memref<512x512xbf16, #tpu.memory_space<vmem>>, %arg4: memref<512x1024xbf16, #tpu.memory_space<vmem>>, %arg5: memref<512x512xbf16, #tpu.memory_space<vmem>>, %arg6: memref<1x512xf32, #tpu.memory_space<vmem>>, %arg7: memref<1x128x512xf32, #tpu.memory_space<vmem>>) attributes {dimension_semantics = [#tpu.dimension_semantics<parallel>, #tpu.dimension_semantics<parallel>], iteration_bounds = array<i64: 2, 1>, scalar_prefetch = 0 : i64, scratch_operands = 0 : i64, tpu.core_type = #tpu.core_type<tc>, window_params = [{transform_indices = @transform_0, window_bounds = array<i64: 1, 128, 512>}, {pipeline_mode = #tpu.pipeline_mode<synchronous>, transform_indices = @transform_1, window_bounds = array<i64: 512, 512>}, {pipeline_mode = #tpu.pipeline_mode<synchronous>, transform_indices = @transform_2, window_bounds = array<i64: 512, 1024>}, {pipeline_mode = #tpu.pipeline_mode<synchronous>, transform_indices = @transform_3, window_bounds = array<i64: 512, 512>}, {pipeline_mode = #tpu.pipeline_mode<synchronous>, transform_indices = @transform_4, window_bounds = array<i64: 1, 512>}, {transform_indices = @transform_5, window_bounds = array<i64: 1, 128, 512>}]} {
    %c128_i32 = arith.constant 128 : i32
    %0 = arith.muli %arg1, %c128_i32 : i32
    %1 = tpu.assume_multiple %0, 128 : i32
    %c0 = arith.constant 0 : index
    %c0_0 = arith.constant 0 : index
    %c0_1 = arith.constant 0 : index
    %2 = vector.load %arg2[%c0, %c0_0, %c0_1] : memref<1x128x512xbf16, #tpu.memory_space<vmem>>, vector<1x128x512xbf16>
    %3 = vector.shape_cast %2 : vector<1x128x512xbf16> to vector<128x512xbf16>
    %c0_2 = arith.constant 0 : index
    %4 = arith.index_cast %1 : i32 to index
    %c0_3 = arith.constant 0 : index
    %5 = vector.load %arg2[%c0_2, %4, %c0_3] : memref<1x128x512xbf16, #tpu.memory_space<vmem>>, vector<1x128x512xbf16>
    %6 = vector.shape_cast %5 : vector<1x128x512xbf16> to vector<128x512xbf16>
    %c0_4 = arith.constant 0 : index
    %c0_5 = arith.constant 0 : index
    %7 = vector.load %arg4[%c0_4, %c0_5] : memref<512x1024xbf16, #tpu.memory_space<vmem>>, vector<512x1024xbf16>
    %cst = arith.constant dense<0.000000e+00> : vector<128x1024xf32>
    %8 = tpu.matmul %3, %7, %cst {dimension_numbers = #tpu.dot_dimension_numbers<[1], [0], [0], [1], [0, 0, 1, 1], [], []>} : vector<128x512xbf16>, vector<512x1024xbf16>, vector<128x1024xf32> -> vector<128x1024xf32>
    %9 = vector.extract_strided_slice %8 {offsets = [0, 0], sizes = [128, 512], strides = [1, 1]} : vector<128x1024xf32> to vector<128x512xf32>
    %10 = vector.extract_strided_slice %8 {offsets = [0, 512], sizes = [128, 512], strides = [1, 1]} : vector<128x1024xf32> to vector<128x512xf32>
    %c0_6 = arith.constant 0 : index
    %c0_7 = arith.constant 0 : index
    %11 = vector.load %arg3[%c0_6, %c0_7] : memref<512x512xbf16, #tpu.memory_space<vmem>>, vector<512x512xbf16>
    %cst_8 = arith.constant dense<0.000000e+00> : vector<128x512xf32>
    %12 = tpu.matmul %6, %11, %cst_8 {dimension_numbers = #tpu.dot_dimension_numbers<[1], [0], [0], [1], [0, 0, 1, 1], [], []>} : vector<128x512xbf16>, vector<512x512xbf16>, vector<128x512xf32> -> vector<128x512xf32>
    %13 = tpu.iota {dimensions = array<i32: 0>} : vector<128x128xi32>
    %14 = vector.broadcast %1 : i32 to vector<128x128xi32>
    %15 = arith.addi %13, %14 : vector<128x128xi32>
    %16 = tpu.iota {dimensions = array<i32: 1>} : vector<128x128xi32>
    %17 = arith.cmpi sle, %16, %15 : vector<128x128xi32>
    %18 = vector.extract_strided_slice %12 {offsets = [0, 0], sizes = [128, 64], strides = [1, 1]} : vector<128x512xf32> to vector<128x64xf32>
    %19 = vector.extract_strided_slice %9 {offsets = [0, 0], sizes = [128, 64], strides = [1, 1]} : vector<128x512xf32> to vector<128x64xf32>
    %20 = vector.extract_strided_slice %10 {offsets = [0, 0], sizes = [128, 64], strides = [1, 1]} : vector<128x512xf32> to vector<128x64xf32>
    %21 = arith.truncf %18 : vector<128x64xf32> to vector<128x64xbf16>
    %22 = arith.truncf %19 : vector<128x64xf32> to vector<128x64xbf16>
    %cst_9 = arith.constant dense<0.000000e+00> : vector<128x128xf32>
    %23 = tpu.matmul %21, %22, %cst_9 {dimension_numbers = #tpu.dot_dimension_numbers<[1], [1], [0], [0], [0, 0, 1, 0], [], []>} : vector<128x64xbf16>, vector<128x64xbf16>, vector<128x128xf32> -> vector<128x128xf32>
    %cst_10 = arith.constant -1.000000e+30 : f32
    %24 = vector.broadcast %cst_10 : f32 to vector<128x128xf32>
    %25 = arith.select %17, %23, %24 : vector<128x128xi1>, vector<128x128xf32>
    %cst_11 = arith.constant dense<0xFF800000> : vector<128xf32>
    %26 = vector.multi_reduction <maximumf>, %25, %cst_11 [1] : vector<128x128xf32> to vector<128xf32>
    %27 = vector.shape_cast %26 : vector<128xf32> to vector<128x1xf32>
    %28 = vector.broadcast %27 : vector<128x1xf32> to vector<128x128xf32>
    %29 = arith.subf %25, %28 : vector<128x128xf32>
    %30 = math.exp %29 : vector<128x128xf32>
    %cst_12 = arith.constant dense<0.000000e+00> : vector<128xf32>
    %31 = vector.multi_reduction <add>, %30, %cst_12 [1] : vector<128x128xf32> to vector<128xf32>
    %32 = vector.shape_cast %31 : vector<128xf32> to vector<128x1xf32>
    %33 = tpu.reciprocal %32 {approx = true} : vector<128x1xf32> -> vector<128x1xf32>
    %34 = arith.truncf %30 : vector<128x128xf32> to vector<128x128xbf16>
    %35 = arith.truncf %20 : vector<128x64xf32> to vector<128x64xbf16>
    %cst_13 = arith.constant dense<0.000000e+00> : vector<128x64xf32>
    %36 = tpu.matmul %34, %35, %cst_13 {dimension_numbers = #tpu.dot_dimension_numbers<[1], [0], [0], [1], [0, 0, 1, 1], [], []>} : vector<128x128xbf16>, vector<128x64xbf16>, vector<128x64xf32> -> vector<128x64xf32>
    %37 = vector.broadcast %33 : vector<128x1xf32> to vector<128x64xf32>
    %38 = arith.mulf %36, %37 : vector<128x64xf32>
    %39 = vector.extract_strided_slice %12 {offsets = [0, 64], sizes = [128, 64], strides = [1, 1]} : vector<128x512xf32> to vector<128x64xf32>
    %40 = vector.extract_strided_slice %9 {offsets = [0, 64], sizes = [128, 64], strides = [1, 1]} : vector<128x512xf32> to vector<128x64xf32>
    %41 = vector.extract_strided_slice %10 {offsets = [0, 64], sizes = [128, 64], strides = [1, 1]} : vector<128x512xf32> to vector<128x64xf32>
    %42 = arith.truncf %39 : vector<128x64xf32> to vector<128x64xbf16>
    %43 = arith.truncf %40 : vector<128x64xf32> to vector<128x64xbf16>
    %cst_14 = arith.constant dense<0.000000e+00> : vector<128x128xf32>
    %44 = tpu.matmul %42, %43, %cst_14 {dimension_numbers = #tpu.dot_dimension_numbers<[1], [1], [0], [0], [0, 0, 1, 0], [], []>} : vector<128x64xbf16>, vector<128x64xbf16>, vector<128x128xf32> -> vector<128x128xf32>
    %cst_15 = arith.constant -1.000000e+30 : f32
    %45 = vector.broadcast %cst_15 : f32 to vector<128x128xf32>
    %46 = arith.select %17, %44, %45 : vector<128x128xi1>, vector<128x128xf32>
    %cst_16 = arith.constant dense<0xFF800000> : vector<128xf32>
    %47 = vector.multi_reduction <maximumf>, %46, %cst_16 [1] : vector<128x128xf32> to vector<128xf32>
    %48 = vector.shape_cast %47 : vector<128xf32> to vector<128x1xf32>
    %49 = vector.broadcast %48 : vector<128x1xf32> to vector<128x128xf32>
    %50 = arith.subf %46, %49 : vector<128x128xf32>
    %51 = math.exp %50 : vector<128x128xf32>
    %cst_17 = arith.constant dense<0.000000e+00> : vector<128xf32>
    %52 = vector.multi_reduction <add>, %51, %cst_17 [1] : vector<128x128xf32> to vector<128xf32>
    %53 = vector.shape_cast %52 : vector<128xf32> to vector<128x1xf32>
    %54 = tpu.reciprocal %53 {approx = true} : vector<128x1xf32> -> vector<128x1xf32>
    %55 = arith.truncf %51 : vector<128x128xf32> to vector<128x128xbf16>
    %56 = arith.truncf %41 : vector<128x64xf32> to vector<128x64xbf16>
    %cst_18 = arith.constant dense<0.000000e+00> : vector<128x64xf32>
    %57 = tpu.matmul %55, %56, %cst_18 {dimension_numbers = #tpu.dot_dimension_numbers<[1], [0], [0], [1], [0, 0, 1, 1], [], []>} : vector<128x128xbf16>, vector<128x64xbf16>, vector<128x64xf32> -> vector<128x64xf32>
    %58 = vector.broadcast %54 : vector<128x1xf32> to vector<128x64xf32>
    %59 = arith.mulf %57, %58 : vector<128x64xf32>
    %60 = vector.extract_strided_slice %12 {offsets = [0, 128], sizes = [128, 64], strides = [1, 1]} : vector<128x512xf32> to vector<128x64xf32>
    %61 = vector.extract_strided_slice %9 {offsets = [0, 128], sizes = [128, 64], strides = [1, 1]} : vector<128x512xf32> to vector<128x64xf32>
    %62 = vector.extract_strided_slice %10 {offsets = [0, 128], sizes = [128, 64], strides = [1, 1]} : vector<128x512xf32> to vector<128x64xf32>
    %63 = arith.truncf %60 : vector<128x64xf32> to vector<128x64xbf16>
    %64 = arith.truncf %61 : vector<128x64xf32> to vector<128x64xbf16>
    %cst_19 = arith.constant dense<0.000000e+00> : vector<128x128xf32>
    %65 = tpu.matmul %63, %64, %cst_19 {dimension_numbers = #tpu.dot_dimension_numbers<[1], [1], [0], [0], [0, 0, 1, 0], [], []>} : vector<128x64xbf16>, vector<128x64xbf16>, vector<128x128xf32> -> vector<128x128xf32>
    %cst_20 = arith.constant -1.000000e+30 : f32
    %66 = vector.broadcast %cst_20 : f32 to vector<128x128xf32>
    %67 = arith.select %17, %65, %66 : vector<128x128xi1>, vector<128x128xf32>
    %cst_21 = arith.constant dense<0xFF800000> : vector<128xf32>
    %68 = vector.multi_reduction <maximumf>, %67, %cst_21 [1] : vector<128x128xf32> to vector<128xf32>
    %69 = vector.shape_cast %68 : vector<128xf32> to vector<128x1xf32>
    %70 = vector.broadcast %69 : vector<128x1xf32> to vector<128x128xf32>
    %71 = arith.subf %67, %70 : vector<128x128xf32>
    %72 = math.exp %71 : vector<128x128xf32>
    %cst_22 = arith.constant dense<0.000000e+00> : vector<128xf32>
    %73 = vector.multi_reduction <add>, %72, %cst_22 [1] : vector<128x128xf32> to vector<128xf32>
    %74 = vector.shape_cast %73 : vector<128xf32> to vector<128x1xf32>
    %75 = tpu.reciprocal %74 {approx = true} : vector<128x1xf32> -> vector<128x1xf32>
    %76 = arith.truncf %72 : vector<128x128xf32> to vector<128x128xbf16>
    %77 = arith.truncf %62 : vector<128x64xf32> to vector<128x64xbf16>
    %cst_23 = arith.constant dense<0.000000e+00> : vector<128x64xf32>
    %78 = tpu.matmul %76, %77, %cst_23 {dimension_numbers = #tpu.dot_dimension_numbers<[1], [0], [0], [1], [0, 0, 1, 1], [], []>} : vector<128x128xbf16>, vector<128x64xbf16>, vector<128x64xf32> -> vector<128x64xf32>
    %79 = vector.broadcast %75 : vector<128x1xf32> to vector<128x64xf32>
    %80 = arith.mulf %78, %79 : vector<128x64xf32>
    %81 = vector.extract_strided_slice %12 {offsets = [0, 192], sizes = [128, 64], strides = [1, 1]} : vector<128x512xf32> to vector<128x64xf32>
    %82 = vector.extract_strided_slice %9 {offsets = [0, 192], sizes = [128, 64], strides = [1, 1]} : vector<128x512xf32> to vector<128x64xf32>
    %83 = vector.extract_strided_slice %10 {offsets = [0, 192], sizes = [128, 64], strides = [1, 1]} : vector<128x512xf32> to vector<128x64xf32>
    %84 = arith.truncf %81 : vector<128x64xf32> to vector<128x64xbf16>
    %85 = arith.truncf %82 : vector<128x64xf32> to vector<128x64xbf16>
    %cst_24 = arith.constant dense<0.000000e+00> : vector<128x128xf32>
    %86 = tpu.matmul %84, %85, %cst_24 {dimension_numbers = #tpu.dot_dimension_numbers<[1], [1], [0], [0], [0, 0, 1, 0], [], []>} : vector<128x64xbf16>, vector<128x64xbf16>, vector<128x128xf32> -> vector<128x128xf32>
    %cst_25 = arith.constant -1.000000e+30 : f32
    %87 = vector.broadcast %cst_25 : f32 to vector<128x128xf32>
    %88 = arith.select %17, %86, %87 : vector<128x128xi1>, vector<128x128xf32>
    %cst_26 = arith.constant dense<0xFF800000> : vector<128xf32>
    %89 = vector.multi_reduction <maximumf>, %88, %cst_26 [1] : vector<128x128xf32> to vector<128xf32>
    %90 = vector.shape_cast %89 : vector<128xf32> to vector<128x1xf32>
    %91 = vector.broadcast %90 : vector<128x1xf32> to vector<128x128xf32>
    %92 = arith.subf %88, %91 : vector<128x128xf32>
    %93 = math.exp %92 : vector<128x128xf32>
    %cst_27 = arith.constant dense<0.000000e+00> : vector<128xf32>
    %94 = vector.multi_reduction <add>, %93, %cst_27 [1] : vector<128x128xf32> to vector<128xf32>
    %95 = vector.shape_cast %94 : vector<128xf32> to vector<128x1xf32>
    %96 = tpu.reciprocal %95 {approx = true} : vector<128x1xf32> -> vector<128x1xf32>
    %97 = arith.truncf %93 : vector<128x128xf32> to vector<128x128xbf16>
    %98 = arith.truncf %83 : vector<128x64xf32> to vector<128x64xbf16>
    %cst_28 = arith.constant dense<0.000000e+00> : vector<128x64xf32>
    %99 = tpu.matmul %97, %98, %cst_28 {dimension_numbers = #tpu.dot_dimension_numbers<[1], [0], [0], [1], [0, 0, 1, 1], [], []>} : vector<128x128xbf16>, vector<128x64xbf16>, vector<128x64xf32> -> vector<128x64xf32>
    %100 = vector.broadcast %96 : vector<128x1xf32> to vector<128x64xf32>
    %101 = arith.mulf %99, %100 : vector<128x64xf32>
    %102 = vector.extract_strided_slice %12 {offsets = [0, 256], sizes = [128, 64], strides = [1, 1]} : vector<128x512xf32> to vector<128x64xf32>
    %103 = vector.extract_strided_slice %9 {offsets = [0, 256], sizes = [128, 64], strides = [1, 1]} : vector<128x512xf32> to vector<128x64xf32>
    %104 = vector.extract_strided_slice %10 {offsets = [0, 256], sizes = [128, 64], strides = [1, 1]} : vector<128x512xf32> to vector<128x64xf32>
    %105 = arith.truncf %102 : vector<128x64xf32> to vector<128x64xbf16>
    %106 = arith.truncf %103 : vector<128x64xf32> to vector<128x64xbf16>
    %cst_29 = arith.constant dense<0.000000e+00> : vector<128x128xf32>
    %107 = tpu.matmul %105, %106, %cst_29 {dimension_numbers = #tpu.dot_dimension_numbers<[1], [1], [0], [0], [0, 0, 1, 0], [], []>} : vector<128x64xbf16>, vector<128x64xbf16>, vector<128x128xf32> -> vector<128x128xf32>
    %cst_30 = arith.constant -1.000000e+30 : f32
    %108 = vector.broadcast %cst_30 : f32 to vector<128x128xf32>
    %109 = arith.select %17, %107, %108 : vector<128x128xi1>, vector<128x128xf32>
    %cst_31 = arith.constant dense<0xFF800000> : vector<128xf32>
    %110 = vector.multi_reduction <maximumf>, %109, %cst_31 [1] : vector<128x128xf32> to vector<128xf32>
    %111 = vector.shape_cast %110 : vector<128xf32> to vector<128x1xf32>
    %112 = vector.broadcast %111 : vector<128x1xf32> to vector<128x128xf32>
    %113 = arith.subf %109, %112 : vector<128x128xf32>
    %114 = math.exp %113 : vector<128x128xf32>
    %cst_32 = arith.constant dense<0.000000e+00> : vector<128xf32>
    %115 = vector.multi_reduction <add>, %114, %cst_32 [1] : vector<128x128xf32> to vector<128xf32>
    %116 = vector.shape_cast %115 : vector<128xf32> to vector<128x1xf32>
    %117 = tpu.reciprocal %116 {approx = true} : vector<128x1xf32> -> vector<128x1xf32>
    %118 = arith.truncf %114 : vector<128x128xf32> to vector<128x128xbf16>
    %119 = arith.truncf %104 : vector<128x64xf32> to vector<128x64xbf16>
    %cst_33 = arith.constant dense<0.000000e+00> : vector<128x64xf32>
    %120 = tpu.matmul %118, %119, %cst_33 {dimension_numbers = #tpu.dot_dimension_numbers<[1], [0], [0], [1], [0, 0, 1, 1], [], []>} : vector<128x128xbf16>, vector<128x64xbf16>, vector<128x64xf32> -> vector<128x64xf32>
    %121 = vector.broadcast %117 : vector<128x1xf32> to vector<128x64xf32>
    %122 = arith.mulf %120, %121 : vector<128x64xf32>
    %123 = vector.extract_strided_slice %12 {offsets = [0, 320], sizes = [128, 64], strides = [1, 1]} : vector<128x512xf32> to vector<128x64xf32>
    %124 = vector.extract_strided_slice %9 {offsets = [0, 320], sizes = [128, 64], strides = [1, 1]} : vector<128x512xf32> to vector<128x64xf32>
    %125 = vector.extract_strided_slice %10 {offsets = [0, 320], sizes = [128, 64], strides = [1, 1]} : vector<128x512xf32> to vector<128x64xf32>
    %126 = arith.truncf %123 : vector<128x64xf32> to vector<128x64xbf16>
    %127 = arith.truncf %124 : vector<128x64xf32> to vector<128x64xbf16>
    %cst_34 = arith.constant dense<0.000000e+00> : vector<128x128xf32>
    %128 = tpu.matmul %126, %127, %cst_34 {dimension_numbers = #tpu.dot_dimension_numbers<[1], [1], [0], [0], [0, 0, 1, 0], [], []>} : vector<128x64xbf16>, vector<128x64xbf16>, vector<128x128xf32> -> vector<128x128xf32>
    %cst_35 = arith.constant -1.000000e+30 : f32
    %129 = vector.broadcast %cst_35 : f32 to vector<128x128xf32>
    %130 = arith.select %17, %128, %129 : vector<128x128xi1>, vector<128x128xf32>
    %cst_36 = arith.constant dense<0xFF800000> : vector<128xf32>
    %131 = vector.multi_reduction <maximumf>, %130, %cst_36 [1] : vector<128x128xf32> to vector<128xf32>
    %132 = vector.shape_cast %131 : vector<128xf32> to vector<128x1xf32>
    %133 = vector.broadcast %132 : vector<128x1xf32> to vector<128x128xf32>
    %134 = arith.subf %130, %133 : vector<128x128xf32>
    %135 = math.exp %134 : vector<128x128xf32>
    %cst_37 = arith.constant dense<0.000000e+00> : vector<128xf32>
    %136 = vector.multi_reduction <add>, %135, %cst_37 [1] : vector<128x128xf32> to vector<128xf32>
    %137 = vector.shape_cast %136 : vector<128xf32> to vector<128x1xf32>
    %138 = tpu.reciprocal %137 {approx = true} : vector<128x1xf32> -> vector<128x1xf32>
    %139 = arith.truncf %135 : vector<128x128xf32> to vector<128x128xbf16>
    %140 = arith.truncf %125 : vector<128x64xf32> to vector<128x64xbf16>
    %cst_38 = arith.constant dense<0.000000e+00> : vector<128x64xf32>
    %141 = tpu.matmul %139, %140, %cst_38 {dimension_numbers = #tpu.dot_dimension_numbers<[1], [0], [0], [1], [0, 0, 1, 1], [], []>} : vector<128x128xbf16>, vector<128x64xbf16>, vector<128x64xf32> -> vector<128x64xf32>
    %142 = vector.broadcast %138 : vector<128x1xf32> to vector<128x64xf32>
    %143 = arith.mulf %141, %142 : vector<128x64xf32>
    %144 = vector.extract_strided_slice %12 {offsets = [0, 384], sizes = [128, 64], strides = [1, 1]} : vector<128x512xf32> to vector<128x64xf32>
    %145 = vector.extract_strided_slice %9 {offsets = [0, 384], sizes = [128, 64], strides = [1, 1]} : vector<128x512xf32> to vector<128x64xf32>
    %146 = vector.extract_strided_slice %10 {offsets = [0, 384], sizes = [128, 64], strides = [1, 1]} : vector<128x512xf32> to vector<128x64xf32>
    %147 = arith.truncf %144 : vector<128x64xf32> to vector<128x64xbf16>
    %148 = arith.truncf %145 : vector<128x64xf32> to vector<128x64xbf16>
    %cst_39 = arith.constant dense<0.000000e+00> : vector<128x128xf32>
    %149 = tpu.matmul %147, %148, %cst_39 {dimension_numbers = #tpu.dot_dimension_numbers<[1], [1], [0], [0], [0, 0, 1, 0], [], []>} : vector<128x64xbf16>, vector<128x64xbf16>, vector<128x128xf32> -> vector<128x128xf32>
    %cst_40 = arith.constant -1.000000e+30 : f32
    %150 = vector.broadcast %cst_40 : f32 to vector<128x128xf32>
    %151 = arith.select %17, %149, %150 : vector<128x128xi1>, vector<128x128xf32>
    %cst_41 = arith.constant dense<0xFF800000> : vector<128xf32>
    %152 = vector.multi_reduction <maximumf>, %151, %cst_41 [1] : vector<128x128xf32> to vector<128xf32>
    %153 = vector.shape_cast %152 : vector<128xf32> to vector<128x1xf32>
    %154 = vector.broadcast %153 : vector<128x1xf32> to vector<128x128xf32>
    %155 = arith.subf %151, %154 : vector<128x128xf32>
    %156 = math.exp %155 : vector<128x128xf32>
    %cst_42 = arith.constant dense<0.000000e+00> : vector<128xf32>
    %157 = vector.multi_reduction <add>, %156, %cst_42 [1] : vector<128x128xf32> to vector<128xf32>
    %158 = vector.shape_cast %157 : vector<128xf32> to vector<128x1xf32>
    %159 = tpu.reciprocal %158 {approx = true} : vector<128x1xf32> -> vector<128x1xf32>
    %160 = arith.truncf %156 : vector<128x128xf32> to vector<128x128xbf16>
    %161 = arith.truncf %146 : vector<128x64xf32> to vector<128x64xbf16>
    %cst_43 = arith.constant dense<0.000000e+00> : vector<128x64xf32>
    %162 = tpu.matmul %160, %161, %cst_43 {dimension_numbers = #tpu.dot_dimension_numbers<[1], [0], [0], [1], [0, 0, 1, 1], [], []>} : vector<128x128xbf16>, vector<128x64xbf16>, vector<128x64xf32> -> vector<128x64xf32>
    %163 = vector.broadcast %159 : vector<128x1xf32> to vector<128x64xf32>
    %164 = arith.mulf %162, %163 : vector<128x64xf32>
    %165 = vector.extract_strided_slice %12 {offsets = [0, 448], sizes = [128, 64], strides = [1, 1]} : vector<128x512xf32> to vector<128x64xf32>
    %166 = vector.extract_strided_slice %9 {offsets = [0, 448], sizes = [128, 64], strides = [1, 1]} : vector<128x512xf32> to vector<128x64xf32>
    %167 = vector.extract_strided_slice %10 {offsets = [0, 448], sizes = [128, 64], strides = [1, 1]} : vector<128x512xf32> to vector<128x64xf32>
    %168 = arith.truncf %165 : vector<128x64xf32> to vector<128x64xbf16>
    %169 = arith.truncf %166 : vector<128x64xf32> to vector<128x64xbf16>
    %cst_44 = arith.constant dense<0.000000e+00> : vector<128x128xf32>
    %170 = tpu.matmul %168, %169, %cst_44 {dimension_numbers = #tpu.dot_dimension_numbers<[1], [1], [0], [0], [0, 0, 1, 0], [], []>} : vector<128x64xbf16>, vector<128x64xbf16>, vector<128x128xf32> -> vector<128x128xf32>
    %cst_45 = arith.constant -1.000000e+30 : f32
    %171 = vector.broadcast %cst_45 : f32 to vector<128x128xf32>
    %172 = arith.select %17, %170, %171 : vector<128x128xi1>, vector<128x128xf32>
    %cst_46 = arith.constant dense<0xFF800000> : vector<128xf32>
    %173 = vector.multi_reduction <maximumf>, %172, %cst_46 [1] : vector<128x128xf32> to vector<128xf32>
    %174 = vector.shape_cast %173 : vector<128xf32> to vector<128x1xf32>
    %175 = vector.broadcast %174 : vector<128x1xf32> to vector<128x128xf32>
    %176 = arith.subf %172, %175 : vector<128x128xf32>
    %177 = math.exp %176 : vector<128x128xf32>
    %cst_47 = arith.constant dense<0.000000e+00> : vector<128xf32>
    %178 = vector.multi_reduction <add>, %177, %cst_47 [1] : vector<128x128xf32> to vector<128xf32>
    %179 = vector.shape_cast %178 : vector<128xf32> to vector<128x1xf32>
    %180 = tpu.reciprocal %179 {approx = true} : vector<128x1xf32> -> vector<128x1xf32>
    %181 = arith.truncf %177 : vector<128x128xf32> to vector<128x128xbf16>
    %182 = arith.truncf %167 : vector<128x64xf32> to vector<128x64xbf16>
    %cst_48 = arith.constant dense<0.000000e+00> : vector<128x64xf32>
    %183 = tpu.matmul %181, %182, %cst_48 {dimension_numbers = #tpu.dot_dimension_numbers<[1], [0], [0], [1], [0, 0, 1, 1], [], []>} : vector<128x128xbf16>, vector<128x64xbf16>, vector<128x64xf32> -> vector<128x64xf32>
    %184 = vector.broadcast %180 : vector<128x1xf32> to vector<128x64xf32>
    %185 = arith.mulf %183, %184 : vector<128x64xf32>
    %186 = tpu.concatenate %38, %59, %80, %101, %122, %143, %164, %185 in 1 : vector<128x64xf32>, vector<128x64xf32>, vector<128x64xf32>, vector<128x64xf32>, vector<128x64xf32>, vector<128x64xf32>, vector<128x64xf32>, vector<128x64xf32> -> vector<128x512xf32>
    %187 = arith.truncf %186 : vector<128x512xf32> to vector<128x512xbf16>
    %c0_49 = arith.constant 0 : index
    %c0_50 = arith.constant 0 : index
    %188 = vector.load %arg5[%c0_49, %c0_50] : memref<512x512xbf16, #tpu.memory_space<vmem>>, vector<512x512xbf16>
    %cst_51 = arith.constant dense<0.000000e+00> : vector<128x512xf32>
    %189 = tpu.matmul %187, %188, %cst_51 {dimension_numbers = #tpu.dot_dimension_numbers<[1], [0], [0], [1], [0, 0, 1, 1], [], []>} : vector<128x512xbf16>, vector<512x512xbf16>, vector<128x512xf32> -> vector<128x512xf32>
    %c0_52 = arith.constant 0 : index
    %c0_53 = arith.constant 0 : index
    %190 = vector.load %arg6[%c0_52, %c0_53] : memref<1x512xf32, #tpu.memory_space<vmem>>, vector<1x512xf32>
    %191 = vector.broadcast %190 : vector<1x512xf32> to vector<128x512xf32>
    %192 = arith.addf %189, %191 : vector<128x512xf32>
    %c0_54 = arith.constant 0 : index
    %c0_55 = arith.constant 0 : index
    %c0_56 = arith.constant 0 : index
    %193 = vector.load %arg7[%c0_54, %c0_55, %c0_56] : memref<1x128x512xf32, #tpu.memory_space<vmem>>, vector<1x128x512xf32>
    %194 = vector.shape_cast %193 : vector<1x128x512xf32> to vector<128x512xf32>
    %195 = vector.shape_cast %192 : vector<128x512xf32> to vector<1x128x512xf32>
    tpu.vector_store %arg7[%c0_54, %c0_55, %c0_56], %195 {strides = array<i32>} : memref<1x128x512xf32, #tpu.memory_space<vmem>>, vector<1x128x512xf32>,
    return
  }
  func.func @transform_0(%arg0: i32, %arg1: i32) -> (i32, i32, i32) {
    %c0_i32 = arith.constant 0 : i32
    %c0_i32_0 = arith.constant 0 : i32
    %c0_i32_1 = arith.constant 0 : i32
    return %arg0, %c0_i32, %c0_i32_0 : i32, i32, i32
  }
  func.func @transform_1(%arg0: i32, %arg1: i32) -> (i32, i32) {
    %c0_i32 = arith.constant 0 : i32
    %c0_i32_0 = arith.constant 0 : i32
    %c0_i32_1 = arith.constant 0 : i32
    return %c0_i32, %c0_i32_0 : i32, i32
  }
  func.func @transform_2(%arg0: i32, %arg1: i32) -> (i32, i32) {
    %c0_i32 = arith.constant 0 : i32
    %c0_i32_0 = arith.constant 0 : i32
    %c0_i32_1 = arith.constant 0 : i32
    return %c0_i32, %c0_i32_0 : i32, i32
  }
  func.func @transform_3(%arg0: i32, %arg1: i32) -> (i32, i32) {
    %c0_i32 = arith.constant 0 : i32
    %c0_i32_0 = arith.constant 0 : i32
    %c0_i32_1 = arith.constant 0 : i32
    return %c0_i32, %c0_i32_0 : i32, i32
  }
  func.func @transform_4(%arg0: i32, %arg1: i32) -> (i32, i32) {
    %c0_i32 = arith.constant 0 : i32
    %c0_i32_0 = arith.constant 0 : i32
    %c0_i32_1 = arith.constant 0 : i32
    return %c0_i32, %c0_i32_0 : i32, i32
  }
  func.func @transform_5(%arg0: i32, %arg1: i32) -> (i32, i32, i32) {
    %c0_i32 = arith.constant 0 : i32
    %c0_i32_0 = arith.constant 0 : i32
    return %arg0, %arg1, %c0_i32 : i32, i32, i32
  }
}

</mosaic_0001>

<llo_original>
// kernel: multi_head_attention.1
$region0: #{multi_head_attention.1}
  #allocation0 [shape = 'u32[]', space=smem, size = 0x4, offset = 0x4, fixed_abs, tag = 'smem constant byte address 0x4 - core index']
  #allocation1 [shape = 'u32[144,128]{1,0:T(1,128)}', space=vmem, size = 0x12000, scoped, tag = 'internal scratch']
  %s0 = inlined_call_operand.vmem [shape: bf16[2,128,512], index: 0, kind: input, shape index: {}]
  %s1 = inlined_call_operand.vmem [shape: bf16[512,512], index: 1, kind: input, shape index: {}]
  %s2 = inlined_call_operand.vmem [shape: bf16[512,1024], index: 2, kind: input, shape index: {}]
  %s3 = inlined_call_operand.vmem [shape: bf16[512,512], index: 3, kind: input, shape index: {}]
  %s4 = inlined_call_operand.vmem [shape: f32[1,512], index: 4, kind: input, shape index: {}]
  %s5 = inlined_call_operand.hbm [shape: f32[2,128,512], index: 5, kind: output, shape index: {}]
  %s6 = sld [smem:[#allocation0]]
  $region53: #{multi_head_attention.1} parent=0
    _
  %s8 = ssub.s32 1, %s6
  %s9 = scalar_select 0, %s8, %s6
  $region1: #{multi_head_attention.1} parent=0
    #allocation2 [shape = 'u8[524288]{0}', space=vmem, size = 0x80000, scoped, tag = 'output window, operand 0']
    #allocation3 [shape = 's32[2]{0}', space=sflag, size = 0x8, scoped, tag = 'scoped memory for multi_head_attention.1']
    %10 = vsyncpa [#allocation3], 0
    %s11 = scalar_lea.sflag [#allocation3], 1
    %12 = vsyncpa %s11, 0
    loop: start=0, step=1, limit=4
    $region2: #{multi_head_attention.1} parent=1 // loop_pre_header
      _
    $region3: #{multi_head_attention.1} parent=1 // loop_header
      %s14 = sphi 0, %s18
      %p15 = scmp.ge.s32.totalorder %s14, 4
      %s21 = sphi 0, %s33
      %s22 = sphi 0, %s29
      %s23 = sphi 0, %s21
      %s24 = sphi 0, %s22
      %s25 = sphi 0, %s23
      %s26 = sphi 0, %s24
      %s36 = sphi 0, %s38
      %s39 = sphi 0, %s36
      %s40 = sphi 0, %s39
      %s56 = sphi 0, %s40
      %s60 = sphi 0, %s60
      %s62 = sphi 0, %s60
      %s63 = sphi 0, %s62
      %s77 = sphi 0, %s63
      %s81 = sphi 0, %s81
      %s83 = sphi 0, %s81
      %s84 = sphi 0, %s83
      %s98 = sphi 0, %s84
      %s102 = sphi 0, %s102
      %s104 = sphi 0, %s102
      %s105 = sphi 0, %s104
      %s119 = sphi 0, %s105
      %s123 = sphi 0, %s123
      %s125 = sphi 0, %s123
      %s126 = sphi 0, %s125
      %s140 = sphi 0, %s126
      %s148 = sphi 0, %s150
      %s151 = sphi 0, %s148
      %s152 = sphi 0, %s151
      %s168 = sphi 0, %s152
    $region4: #{multi_head_attention.1} parent=1 // loop_header_branch
      %17 = sbr.rel (%p15) target = $region8
    $region5: #{multi_head_attention.1} parent=1 // loop_body
      %s19 = ssub.s32 %s14, 1
      %s20 = ssub.s32 %s14, 2
      %s27 = sadd.s32 1, %s22
      %p28 = scmp.ge.s32.totalorder %s27, 1
      %s29 = scalar_select %p28, 0, %s27
      %s30 = sadd.s32 1, %s21
      %s31 = scalar_select %p28, %s30, %s21
      %p32 = scmp.ge.s32.totalorder %s31, 2
      %s33 = scalar_select %p32, 0, %s31
      %s34 = ssub.s32 %s21, %s33
      %p35 = scmp.eq.s32.totalorder %s34, 0
      %s37 = sadd.s32 %s36, 1
      %s38 = scalar_select %p35, %s36, %s37
      %p41 = pneg %p35
      %p42 = scmp.eq.s32.totalorder %s14, 1
      %p43 = por %p41, %p42
      %p44 = scmp.ne.s32.totalorder %s36, %s39
      %p45 = scmp.eq.s32.totalorder %s14, 0
      %p46 = por %p44, %p45
      %p47 = scmp.ne.s32.totalorder %s36, %s39
      %p48 = scmp.eq.s32.totalorder %s19, 1
      %p49 = por %p47, %p48
      %p50 = scmp.ne.s32.totalorder %s39, %s40
      %p51 = scmp.eq.s32.totalorder %s19, 0
      %p52 = por %p50, %p51
      %p53 = scmp.ne.s32.totalorder %s39, %s40
      %p54 = scmp.eq.s32.totalorder %s20, 1
      %p55 = por %p53, %p54
      %p57 = scmp.ne.s32.totalorder %s40, %s56
      %p58 = scmp.eq.s32.totalorder %s20, 0
      %p59 = por %p57, %p58
      %s61 = sadd.s32 %s60, 1
      %p64 = scmp.eq.s32.totalorder %s14, 1
      %p65 = scmp.ne.s32.totalorder %s60, %s62
      %p66 = scmp.eq.s32.totalorder %s14, 0
      %p67 = por %p65, %p66
      %p68 = scmp.ne.s32.totalorder %s60, %s62
      %p69 = scmp.eq.s32.totalorder %s19, 1
      %p70 = por %p68, %p69
      %p71 = scmp.ne.s32.totalorder %s62, %s63
      %p72 = scmp.eq.s32.totalorder %s19, 0
      %p73 = por %p71, %p72
      %p74 = scmp.ne.s32.totalorder %s62, %s63
      %p75 = scmp.eq.s32.totalorder %s20, 1
      %p76 = por %p74, %p75
      %p78 = scmp.ne.s32.totalorder %s63, %s77
      %p79 = scmp.eq.s32.totalorder %s20, 0
      %p80 = por %p78, %p79
      %s82 = sadd.s32 %s81, 1
      %p85 = scmp.eq.s32.totalorder %s14, 1
      %p86 = scmp.ne.s32.totalorder %s81, %s83
      %p87 = scmp.eq.s32.totalorder %s14, 0
      %p88 = por %p86, %p87
      %p89 = scmp.ne.s32.totalorder %s81, %s83
      %p90 = scmp.eq.s32.totalorder %s19, 1
      %p91 = por %p89, %p90
      %p92 = scmp.ne.s32.totalorder %s83, %s84
      %p93 = scmp.eq.s32.totalorder %s19, 0
      %p94 = por %p92, %p93
      %p95 = scmp.ne.s32.totalorder %s83, %s84
      %p96 = scmp.eq.s32.totalorder %s20, 1
      %p97 = por %p95, %p96
      %p99 = scmp.ne.s32.totalorder %s84, %s98
      %p100 = scmp.eq.s32.totalorder %s20, 0
      %p101 = por %p99, %p100
      %s103 = sadd.s32 %s102, 1
      %p106 = scmp.eq.s32.totalorder %s14, 1
      %p107 = scmp.ne.s32.totalorder %s102, %s104
      %p108 = scmp.eq.s32.totalorder %s14, 0
      %p109 = por %p107, %p108
      %p110 = scmp.ne.s32.totalorder %s102, %s104
      %p111 = scmp.eq.s32.totalorder %s19, 1
      %p112 = por %p110, %p111
      %p113 = scmp.ne.s32.totalorder %s104, %s105
      %p114 = scmp.eq.s32.totalorder %s19, 0
      %p115 = por %p113, %p114
      %p116 = scmp.ne.s32.totalorder %s104, %s105
      %p117 = scmp.eq.s32.totalorder %s20, 1
      %p118 = por %p116, %p117
      %p120 = scmp.ne.s32.totalorder %s105, %s119
      %p121 = scmp.eq.s32.totalorder %s20, 0
      %p122 = por %p120, %p121
      %s124 = sadd.s32 %s123, 1
      %p127 = scmp.eq.s32.totalorder %s14, 1
      %p128 = scmp.ne.s32.totalorder %s123, %s125
      %p129 = scmp.eq.s32.totalorder %s14, 0
      %p130 = por %p128, %p129
      %p131 = scmp.ne.s32.totalorder %s123, %s125
      %p132 = scmp.eq.s32.totalorder %s19, 1
      %p133 = por %p131, %p132
      %p134 = scmp.ne.s32.totalorder %s125, %s126
      %p135 = scmp.eq.s32.totalorder %s19, 0
      %p136 = por %p134, %p135
      %p137 = scmp.ne.s32.totalorder %s125, %s126
      %p138 = scmp.eq.s32.totalorder %s20, 1
      %p139 = por %p137, %p138
      %p141 = scmp.ne.s32.totalorder %s126, %s140
      %p142 = scmp.eq.s32.totalorder %s20, 0
      %p143 = por %p141, %p142
      %s144 = ssub.s32 %s21, %s33
      %s145 = ssub.s32 %s22, %s29
      %s146 = sor.u32 %s144, %s145
      %p147 = scmp.eq.s32.totalorder %s146, 0
      %s149 = sadd.s32 %s148, 1
      %s150 = scalar_select %p147, %s148, %s149
      %p153 = pneg %p147
      %p154 = scmp.eq.s32.totalorder %s14, 1
      %p155 = por %p153, %p154
      %p156 = scmp.ne.s32.totalorder %s148, %s151
      %p157 = scmp.eq.s32.totalorder %s14, 0
      %p158 = por %p156, %p157
      %p159 = scmp.ne.s32.totalorder %s148, %s151
      %p160 = scmp.eq.s32.totalorder %s19, 1
      %p161 = por %p159, %p160
      %p162 = scmp.ne.s32.totalorder %s151, %s152
      %p163 = scmp.eq.s32.totalorder %s19, 0
      %p164 = por %p162, %p163
      %p165 = scmp.ne.s32.totalorder %s151, %s152
      %p166 = scmp.eq.s32.totalorder %s20, 1
      %p167 = por %p165, %p166
      %p169 = scmp.ne.s32.totalorder %s152, %s168
      %p170 = scmp.eq.s32.totalorder %s20, 0
      %p171 = por %p169, %p170
      %p172 = scmp.le.s32.totalorder 1, %s14
      %p173 = scmp.lt.s32.totalorder %s14, 3
      %p174 = pnand %p172, %p173
      %p175 = pneg %p174
      // Predicated region
      $region9: #{multi_head_attention.1} parent=5 // pred_check
        _
      $region10: #{multi_head_attention.1} parent=5 // pred_check_branch
        %177 = sbr.rel (%p174) target = $region12
      $region11: #{multi_head_attention.1} parent=5 // pred_region
        %s178 = ssub.s32 %s14, 1
        // Predicated region
        $region13: #{multi_head_attention.1} parent=11 // pred_check
          %p179 = pneg %p73
        $region14: #{multi_head_attention.1} parent=11 // pred_check_branch
          %181 = sbr.rel (%p179) target = $region16
        $region15: #{multi_head_attention.1} parent=11 // pred_region
          _
        $region16: #{multi_head_attention.1} parent=11 // pred_fallthru
          _
        // Predicated region
        $region17: #{multi_head_attention.1} parent=11 // pred_check
          %p182 = pneg %p94
        $region18: #{multi_head_attention.1} parent=11 // pred_check_branch
          %184 = sbr.rel (%p182) target = $region20
        $region19: #{multi_head_attention.1} parent=11 // pred_region
          _
        $region20: #{multi_head_attention.1} parent=11 // pred_fallthru
          _
        // Predicated region
        $region21: #{multi_head_attention.1} parent=11 // pred_check
          %p185 = pneg %p115
        $region22: #{multi_head_attention.1} parent=11 // pred_check_branch
          %187 = sbr.rel (%p185) target = $region24
        $region23: #{multi_head_attention.1} parent=11 // pred_region
          _
        $region24: #{multi_head_attention.1} parent=11 // pred_fallthru
          _
        // Predicated region
        $region25: #{multi_head_attention.1} parent=11 // pred_check
          %p188 = pneg %p136
        $region26: #{multi_head_attention.1} parent=11 // pred_check_branch
          %190 = sbr.rel (%p188) target = $region28
        $region27: #{multi_head_attention.1} parent=11 // pred_region
          _
        $region28: #{multi_head_attention.1} parent=11 // pred_fallthru
          _
      $region12: #{multi_head_attention.1} parent=5 // pred_fallthru
        _
      %p191 = scmp.lt.s32.totalorder %s14, 2
      // Predicated region
      $region29: #{multi_head_attention.1} parent=5 // pred_check
        %p192 = pneg %p191
      $region30: #{multi_head_attention.1} parent=5 // pred_check_branch
        %194 = sbr.rel (%p192) target = $region32
      $region31: #{multi_head_attention.1} parent=5 // pred_region
        // Predicated region
        $region33: #{multi_head_attention.1} parent=31 // pred_check
          %p195 = pneg %p46
        $region34: #{multi_head_attention.1} parent=31 // pred_check_branch
          %197 = sbr.rel (%p195) target = $region36
        $region35: #{multi_head_attention.1} parent=31 // pred_region
          %p198 = scmp.lt.s32.totalorder %s21, 1
          %s199 = scalar_select %p198, %s21, 1
          %s200 = smul.addr %s199, 64
          %s201 = smul.addr %s200, 4
          %s202 = scalar_lea.vmem %s0, %s201
        $region36: #{multi_head_attention.1} parent=31 // pred_fallthru
          _
      $region32: #{multi_head_attention.1} parent=5 // pred_fallthru
        _
      %p203 = scmp.le.s32.totalorder 1, %s14
      %p204 = scmp.lt.s32.totalorder %s14, 3
      %p205 = pnand %p203, %p204
      %p206 = pneg %p205
      // Predicated region
      $region37: #{multi_head_attention.1} parent=5 // pred_check
        _
      $region38: #{multi_head_attention.1} parent=5 // pred_check_branch
        %208 = sbr.rel (%p205) target = $region40
      $region39: #{multi_head_attention.1} parent=5 // pred_region
        %s209 = ssub.s32 %s14, 1
        %p210 = scmp.lt.s32.totalorder %s23, 1
        %s211 = scalar_select %p210, %s23, 1
        %s212 = smul.addr %s211, 64
        %s213 = smul.addr %s212, 4
        %s214 = scalar_lea.vmem %s0, %s213
        %p215 = pneg %p52
        %p216 = pneg %p49
        %p217 = pneg %p73
        %p218 = pneg %p70
        %p219 = pneg %p94
        %p220 = pneg %p91
        %p221 = pneg %p115
        %p222 = pneg %p112
        %p223 = pneg %p136
        %p224 = pneg %p133
        %p225 = pneg %p164
        %p226 = pneg %p161
        %s227 = sand.u32 %s151, 1
        %s228 = scalar_lea.sflag [#allocation3], %s227
        %s229 = sand.u32 %s151, 1
        %s230 = smul.addr %s229, 512
        %s231 = scalar_lea.vmem [#allocation2], %s230
        %p232 = scmp.lt.s32.totalorder %s23, 1
        %s233 = scalar_select %p232, %s23, 1
        %s234 = smul.addr %s233, 64
        %s235 = smul.addr %s234, 4
        %s236 = scalar_lea.vmem %s0, %s235
        %s237 = smul.u32 16, %s24
        %s239 = smul.u32 %s24, 128
        %v240 = vld [vmem:[%s236] sm:$0xff]
        %v241 = vld [vmem:[%s236 + $0x8] sm:$0xff]
        %v242 = vld [vmem:[%s236 + $0x10] sm:$0xff]
        %v243 = vld [vmem:[%s236 + $0x18] sm:$0xff]
        %v244 = vld [vmem:[%s236 + $0x20] sm:$0xff]
        %v245 = vld [vmem:[%s236 + $0x28] sm:$0xff]
        %v246 = vld [vmem:[%s236 + $0x30] sm:$0xff]
        %v247 = vld [vmem:[%s236 + $0x38] sm:$0xff]
        %v248 = vld [vmem:[%s236 + $0x40] sm:$0xff]
        %v249 = vld [vmem:[%s236 + $0x48] sm:$0xff]
        %v250 = vld [vmem:[%s236 + $0x50] sm:$0xff]
        %v251 = vld [vmem:[%s236 + $0x58] sm:$0xff]
        %v252 = vld [vmem:[%s236 + $0x60] sm:$0xff]
        %v253 = vld [vmem:[%s236 + $0x68] sm:$0xff]
        %v254 = vld [vmem:[%s236 + $0x70] sm:$0xff]
        %v255 = vld [vmem:[%s236 + $0x78] sm:$0xff]
        %v256 = vld [vmem:[%s236 + $0x80] sm:$0xff]
        %v257 = vld [vmem:[%s236 + $0x88] sm:$0xff]
        %v258 = vld [vmem:[%s236 + $0x90] sm:$0xff]
        %v259 = vld [vmem:[%s236 + $0x98] sm:$0xff]
        %v260 = vld [vmem:[%s236 + $0xa0] sm:$0xff]
        %v261 = vld [vmem:[%s236 + $0xa8] sm:$0xff]
        %v262 = vld [vmem:[%s236 + $0xb0] sm:$0xff]
        %v263 = vld [vmem:[%s236 + $0xb8] sm:$0xff]
        %v264 = vld [vmem:[%s236 + $0xc0] sm:$0xff]
        %v265 = vld [vmem:[%s236 + $0xc8] sm:$0xff]
        %v266 = vld [vmem:[%s236 + $0xd0] sm:$0xff]
        %v267 = vld [vmem:[%s236 + $0xd8] sm:$0xff]
        %v268 = vld [vmem:[%s236 + $0xe0] sm:$0xff]
        %v269 = vld [vmem:[%s236 + $0xe8] sm:$0xff]
        %v270 = vld [vmem:[%s236 + $0xf0] sm:$0xff]
        %v271 = vld [vmem:[%s236 + $0xf8] sm:$0xff]
        %s272 = sshra.s32 %s239, 3
        %s273 = sand.u32 %s239, 7
        %s274 = smul.u32 %s272, 4
        %s275 = smul.addr %s274, 4
        %s276 = scalar_lea.vmem %s236, %s275
        %v277 = vld [vmem:[%s276] sm:$0xff]
        %v278 = vld [vmem:[%s276 + $0x8] sm:$0xff]
        %v279 = vld [vmem:[%s276 + $0x10] sm:$0xff]
        %v280 = vld [vmem:[%s276 + $0x18] sm:$0xff]
        %v281 = vld [vmem:[%s276 + $0x20] sm:$0xff]
        %v282 = vld [vmem:[%s276 + $0x28] sm:$0xff]
        %v283 = vld [vmem:[%s276 + $0x30] sm:$0xff]
        %v284 = vld [vmem:[%s276 + $0x38] sm:$0xff]
        %v285 = vld [vmem:[%s276 + $0x40] sm:$0xff]
        %v286 = vld [vmem:[%s276 + $0x48] sm:$0xff]
        %v287 = vld [vmem:[%s276 + $0x50] sm:$0xff]
        %v288 = vld [vmem:[%s276 + $0x58] sm:$0xff]
        %v289 = vld [vmem:[%s276 + $0x60] sm:$0xff]
        %v290 = vld [vmem:[%s276 + $0x68] sm:$0xff]
        %v291 = vld [vmem:[%s276 + $0x70] sm:$0xff]
        %v292 = vld [vmem:[%s276 + $0x78] sm:$0xff]
        %v293 = vld [vmem:[%s276 + $0x80] sm:$0xff]
        %v294 = vld [vmem:[%s276 + $0x88] sm:$0xff]
        %v295 = vld [vmem:[%s276 + $0x90] sm:$0xff]
        %v296 = vld [vmem:[%s276 + $0x98] sm:$0xff]
        %v297 = vld [vmem:[%s276 + $0xa0] sm:$0xff]
        %v298 = vld [vmem:[%s276 + $0xa8] sm:$0xff]
        %v299 = vld [vmem:[%s276 + $0xb0] sm:$0xff]
        %v300 = vld [vmem:[%s276 + $0xb8] sm:$0xff]
        %v301 = vld [vmem:[%s276 + $0xc0] sm:$0xff]
        %v302 = vld [vmem:[%s276 + $0xc8] sm:$0xff]
        %v303 = vld [vmem:[%s276 + $0xd0] sm:$0xff]
        %v304 = vld [vmem:[%s276 + $0xd8] sm:$0xff]
        %v305 = vld [vmem:[%s276 + $0xe0] sm:$0xff]
        %v306 = vld [vmem:[%s276 + $0xe8] sm:$0xff]
        %v307 = vld [vmem:[%s276 + $0xf0] sm:$0xff]
        %v308 = vld [vmem:[%s276 + $0xf8] sm:$0xff]
        %v309 = vld [vmem:[%s2] sm:$0xff]
        %v310 = vld [vmem:[%s2 + $0x8] sm:$0xff]
        %v311 = vld [vmem:[%s2 + $0x10] sm:$0xff]
        %v312 = vld [vmem:[%s2 + $0x18] sm:$0xff]
        %v313 = vld [vmem:[%s2 + $0x20] sm:$0xff]
        %v314 = vld [vmem:[%s2 + $0x28] sm:$0xff]
        %v315 = vld [vmem:[%s2 + $0x30] sm:$0xff]
        %v316 = vld [vmem:[%s2 + $0x38] sm:$0xff]
        %v317 = vld [vmem:[%s2 + $0x40] sm:$0xff]
        %v318 = vld [vmem:[%s2 + $0x48] sm:$0xff]
        %v319 = vld [vmem:[%s2 + $0x50] sm:$0xff]
        %v320 = vld [vmem:[%s2 + $0x58] sm:$0xff]
        %v321 = vld [vmem:[%s2 + $0x60] sm:$0xff]
        %v322 = vld [vmem:[%s2 + $0x68] sm:$0xff]
        %v323 = vld [vmem:[%s2 + $0x70] sm:$0xff]
        %v324 = vld [vmem:[%s2 + $0x78] sm:$0xff]
        %v325 = vld [vmem:[%s2 + $0x80] sm:$0xff]
        %v326 = vld [vmem:[%s2 + $0x88] sm:$0xff]
        %v327 = vld [vmem:[%s2 + $0x90] sm:$0xff]
        %v328 = vld [vmem:[%s2 + $0x98] sm:$0xff]
        %v329 = vld [vmem:[%s2 + $0xa0] sm:$0xff]
        %v330 = vld [vmem:[%s2 + $0xa8] sm:$0xff]
        %v331 = vld [vmem:[%s2 + $0xb0] sm:$0xff]
        %v332 = vld [vmem:[%s2 + $0xb8] sm:$0xff]
        %v333 = vld [vmem:[%s2 + $0xc0] sm:$0xff]
        %v334 = vld [vmem:[%s2 + $0xc8] sm:$0xff]
        %v335 = vld [vmem:[%s2 + $0xd0] sm:$0xff]
        %v336 = vld [vmem:[%s2 + $0xd8] sm:$0xff]
        %v337 = vld [vmem:[%s2 + $0xe0] sm:$0xff]
        %v338 = vld [vmem:[%s2 + $0xe8] sm:$0xff]
        %v339 = vld [vmem:[%s2 + $0xf0] sm:$0xff]
        %v340 = vld [vmem:[%s2 + $0xf8] sm:$0xff]
        %v341 = vld [vmem:[%s2 + $0x100] sm:$0xff]
        %v342 = vld [vmem:[%s2 + $0x108] sm:$0xff]
        %v343 = vld [vmem:[%s2 + $0x110] sm:$0xff]
        %v344 = vld [vmem:[%s2 + $0x118] sm:$0xff]
        %v345 = vld [vmem:[%s2 + $0x120] sm:$0xff]
        %v346 = vld [vmem:[%s2 + $0x128] sm:$0xff]
        %v347 = vld [vmem:[%s2 + $0x130] sm:$0xff]
        %v348 = vld [vmem:[%s2 + $0x138] sm:$0xff]
        %v349 = vld [vmem:[%s2 + $0x140] sm:$0xff]
        %v350 = vld [vmem:[%s2 + $0x148] sm:$0xff]
        %v351 = vld [vmem:[%s2 + $0x150] sm:$0xff]
        %v352 = vld [vmem:[%s2 + $0x158] sm:$0xff]
        %v353 = vld [vmem:[%s2 + $0x160] sm:$0xff]
        %v354 = vld [vmem:[%s2 + $0x168] sm:$0xff]
        %v355 = vld [vmem:[%s2 + $0x170] sm:$0xff]
        %v356 = vld [vmem:[%s2 + $0x178] sm:$0xff]
        %v357 = vld [vmem:[%s2 + $0x180] sm:$0xff]
        %v358 = vld [vmem:[%s2 + $0x188] sm:$0xff]
        %v359 = vld [vmem:[%s2 + $0x190] sm:$0xff]
        %v360 = vld [vmem:[%s2 + $0x198] sm:$0xff]
        %v361 = vld [vmem:[%s2 + $0x1a0] sm:$0xff]
        %v362 = vld [vmem:[%s2 + $0x1a8] sm:$0xff]
        %v363 = vld [vmem:[%s2 + $0x1b0] sm:$0xff]
        %v364 = vld [vmem:[%s2 + $0x1b8] sm:$0xff]
        %v365 = vld [vmem:[%s2 + $0x1c0] sm:$0xff]
        %v366 = vld [vmem:[%s2 + $0x1c8] sm:$0xff]
        %v367 = vld [vmem:[%s2 + $0x1d0] sm:$0xff]
        %v368 = vld [vmem:[%s2 + $0x1d8] sm:$0xff]
        %v369 = vld [vmem:[%s2 + $0x1e0] sm:$0xff]
        %v370 = vld [vmem:[%s2 + $0x1e8] sm:$0xff]
        %v371 = vld [vmem:[%s2 + $0x1f0] sm:$0xff]
        %v372 = vld [vmem:[%s2 + $0x1f8] sm:$0xff]
        %v373 = vld [vmem:[%s2 + $0x200] sm:$0xff]
        %v374 = vld [vmem:[%s2 + $0x208] sm:$0xff]
        %v375 = vld [vmem:[%s2 + $0x210] sm:$0xff]
        %v376 = vld [vmem:[%s2 + $0x218] sm:$0xff]
        %v377 = vld [vmem:[%s2 + $0x220] sm:$0xff]
        %v378 = vld [vmem:[%s2 + $0x228] sm:$0xff]
        %v379 = vld [vmem:[%s2 + $0x230] sm:$0xff]
        %v380 = vld [vmem:[%s2 + $0x238] sm:$0xff]
        %v381 = vld [vmem:[%s2 + $0x240] sm:$0xff]
        %v382 = vld [vmem:[%s2 + $0x248] sm:$0xff]
        %v383 = vld [vmem:[%s2 + $0x250] sm:$0xff]
        %v384 = vld [vmem:[%s2 + $0x258] sm:$0xff]
        %v385 = vld [vmem:[%s2 + $0x260] sm:$0xff]
        %v386 = vld [vmem:[%s2 + $0x268] sm:$0xff]
        %v387 = vld [vmem:[%s2 + $0x270] sm:$0xff]
        %v388 = vld [vmem:[%s2 + $0x278] sm:$0xff]
        %v389 = vld [vmem:[%s2 + $0x280] sm:$0xff]
        %v390 = vld [vmem:[%s2 + $0x288] sm:$0xff]
        %v391 = vld [vmem:[%s2 + $0x290] sm:$0xff]
        %v392 = vld [vmem:[%s2 + $0x298] sm:$0xff]
        %v393 = vld [vmem:[%s2 + $0x2a0] sm:$0xff]
        %v394 = vld [vmem:[%s2 + $0x2a8] sm:$0xff]
        %v395 = vld [vmem:[%s2 + $0x2b0] sm:$0xff]
        %v396 = vld [vmem:[%s2 + $0x2b8] sm:$0xff]
        %v397 = vld [vmem:[%s2 + $0x2c0] sm:$0xff]
        %v398 = vld [vmem:[%s2 + $0x2c8] sm:$0xff]
        %v399 = vld [vmem:[%s2 + $0x2d0] sm:$0xff]
        %v400 = vld [vmem:[%s2 + $0x2d8] sm:$0xff]
        %v401 = vld [vmem:[%s2 + $0x2e0] sm:$0xff]
        %v402 = vld [vmem:[%s2 + $0x2e8] sm:$0xff]
        %v403 = vld [vmem:[%s2 + $0x2f0] sm:$0xff]
        %v404 = vld [vmem:[%s2 + $0x2f8] sm:$0xff]
        %v405 = vld [vmem:[%s2 + $0x300] sm:$0xff]
        %v406 = vld [vmem:[%s2 + $0x308] sm:$0xff]
        %v407 = vld [vmem:[%s2 + $0x310] sm:$0xff]
        %v408 = vld [vmem:[%s2 + $0x318] sm:$0xff]
        %v409 = vld [vmem:[%s2 + $0x320] sm:$0xff]
        %v410 = vld [vmem:[%s2 + $0x328] sm:$0xff]
        %v411 = vld [vmem:[%s2 + $0x330] sm:$0xff]
        %v412 = vld [vmem:[%s2 + $0x338] sm:$0xff]
        %v413 = vld [vmem:[%s2 + $0x340] sm:$0xff]
        %v414 = vld [vmem:[%s2 + $0x348] sm:$0xff]
        %v415 = vld [vmem:[%s2 + $0x350] sm:$0xff]
        %v416 = vld [vmem:[%s2 + $0x358] sm:$0xff]
        %v417 = vld [vmem:[%s2 + $0x360] sm:$0xff]
        %v418 = vld [vmem:[%s2 + $0x368] sm:$0xff]
        %v419 = vld [vmem:[%s2 + $0x370] sm:$0xff]
        %v420 = vld [vmem:[%s2 + $0x378] sm:$0xff]
        %v421 = vld [vmem:[%s2 + $0x380] sm:$0xff]
        %v422 = vld [vmem:[%s2 + $0x388] sm:$0xff]
        %v423 = vld [vmem:[%s2 + $0x390] sm:$0xff]
        %v424 = vld [vmem:[%s2 + $0x398] sm:$0xff]
        %v425 = vld [vmem:[%s2 + $0x3a0] sm:$0xff]
        %v426 = vld [vmem:[%s2 + $0x3a8] sm:$0xff]
        %v427 = vld [vmem:[%s2 + $0x3b0] sm:$0xff]
        %v428 = vld [vmem:[%s2 + $0x3b8] sm:$0xff]
        %v429 = vld [vmem:[%s2 + $0x3c0] sm:$0xff]
        %v430 = vld [vmem:[%s2 + $0x3c8] sm:$0xff]
        %v431 = vld [vmem:[%s2 + $0x3d0] sm:$0xff]
        %v432 = vld [vmem:[%s2 + $0x3d8] sm:$0xff]
        %v433 = vld [vmem:[%s2 + $0x3e0] sm:$0xff]
        %v434 = vld [vmem:[%s2 + $0x3e8] sm:$0xff]
        %v435 = vld [vmem:[%s2 + $0x3f0] sm:$0xff]
        %v436 = vld [vmem:[%s2 + $0x3f8] sm:$0xff]
        %v437 = vld [vmem:[%s2 + $0x400] sm:$0xff]
        %v438 = vld [vmem:[%s2 + $0x408] sm:$0xff]
        %v439 = vld [vmem:[%s2 + $0x410] sm:$0xff]
        %v440 = vld [vmem:[%s2 + $0x418] sm:$0xff]
        %v441 = vld [vmem:[%s2 + $0x420] sm:$0xff]
        %v442 = vld [vmem:[%s2 + $0x428] sm:$0xff]
        %v443 = vld [vmem:[%s2 + $0x430] sm:$0xff]
        %v444 = vld [vmem:[%s2 + $0x438] sm:$0xff]
        %v445 = vld [vmem:[%s2 + $0x440] sm:$0xff]
        %v446 = vld [vmem:[%s2 + $0x448] sm:$0xff]
        %v447 = vld [vmem:[%s2 + $0x450] sm:$0xff]
        %v448 = vld [vmem:[%s2 + $0x458] sm:$0xff]
        %v449 = vld [vmem:[%s2 + $0x460] sm:$0xff]
        %v450 = vld [vmem:[%s2 + $0x468] sm:$0xff]
        %v451 = vld [vmem:[%s2 + $0x470] sm:$0xff]
        %v452 = vld [vmem:[%s2 + $0x478] sm:$0xff]
        %v453 = vld [vmem:[%s2 + $0x480] sm:$0xff]
        %v454 = vld [vmem:[%s2 + $0x488] sm:$0xff]
        %v455 = vld [vmem:[%s2 + $0x490] sm:$0xff]
        %v456 = vld [vmem:[%s2 + $0x498] sm:$0xff]
        %v457 = vld [vmem:[%s2 + $0x4a0] sm:$0xff]
        %v458 = vld [vmem:[%s2 + $0x4a8] sm:$0xff]
        %v459 = vld [vmem:[%s2 + $0x4b0] sm:$0xff]
        %v460 = vld [vmem:[%s2 + $0x4b8] sm:$0xff]
        %v461 = vld [vmem:[%s2 + $0x4c0] sm:$0xff]
        %v462 = vld [vmem:[%s2 + $0x4c8] sm:$0xff]
        %v463 = vld [vmem:[%s2 + $0x4d0] sm:$0xff]
        %v464 = vld [vmem:[%s2 + $0x4d8] sm:$0xff]
        %v465 = vld [vmem:[%s2 + $0x4e0] sm:$0xff]
        %v466 = vld [vmem:[%s2 + $0x4e8] sm:$0xff]
        %v467 = vld [vmem:[%s2 + $0x4f0] sm:$0xff]
        %v468 = vld [vmem:[%s2 + $0x4f8] sm:$0xff]
        %v469 = vld [vmem:[%s2 + $0x500] sm:$0xff]
        %v470 = vld [vmem:[%s2 + $0x508] sm:$0xff]
        %v471 = vld [vmem:[%s2 + $0x510] sm:$0xff]
        %v472 = vld [vmem:[%s2 + $0x518] sm:$0xff]
        %v473 = vld [vmem:[%s2 + $0x520] sm:$0xff]
        %v474 = vld [vmem:[%s2 + $0x528] sm:$0xff]
        %v475 = vld [vmem:[%s2 + $0x530] sm:$0xff]
        %v476 = vld [vmem:[%s2 + $0x538] sm:$0xff]
        %v477 = vld [vmem:[%s2 + $0x540] sm:$0xff]
        %v478 = vld [vmem:[%s2 + $0x548] sm:$0xff]
        %v479 = vld [vmem:[%s2 + $0x550] sm:$0xff]
        %v480 = vld [vmem:[%s2 + $0x558] sm:$0xff]
        %v481 = vld [vmem:[%s2 + $0x560] sm:$0xff]
        %v482 = vld [vmem:[%s2 + $0x568] sm:$0xff]
        %v483 = vld [vmem:[%s2 + $0x570] sm:$0xff]
        %v484 = vld [vmem:[%s2 + $0x578] sm:$0xff]
        %v485 = vld [vmem:[%s2 + $0x580] sm:$0xff]
        %v486 = vld [vmem:[%s2 + $0x588] sm:$0xff]
        %v487 = vld [vmem:[%s2 + $0x590] sm:$0xff]
        %v488 = vld [vmem:[%s2 + $0x598] sm:$0xff]
        %v489 = vld [vmem:[%s2 + $0x5a0] sm:$0xff]
        %v490 = vld [vmem:[%s2 + $0x5a8] sm:$0xff]
        %v491 = vld [vmem:[%s2 + $0x5b0] sm:$0xff]
        %v492 = vld [vmem:[%s2 + $0x5b8] sm:$0xff]
        %v493 = vld [vmem:[%s2 + $0x5c0] sm:$0xff]
        %v494 = vld [vmem:[%s2 + $0x5c8] sm:$0xff]
        %v495 = vld [vmem:[%s2 + $0x5d0] sm:$0xff]
        %v496 = vld [vmem:[%s2 + $0x5d8] sm:$0xff]
        %v497 = vld [vmem:[%s2 + $0x5e0] sm:$0xff]
        %v498 = vld [vmem:[%s2 + $0x5e8] sm:$0xff]
        %v499 = vld [vmem:[%s2 + $0x5f0] sm:$0xff]
        %v500 = vld [vmem:[%s2 + $0x5f8] sm:$0xff]
        %v501 = vld [vmem:[%s2 + $0x600] sm:$0xff]
        %v502 = vld [vmem:[%s2 + $0x608] sm:$0xff]
        %v503 = vld [vmem:[%s2 + $0x610] sm:$0xff]
        %v504 = vld [vmem:[%s2 + $0x618] sm:$0xff]
        %v505 = vld [vmem:[%s2 + $0x620] sm:$0xff]
        %v506 = vld [vmem:[%s2 + $0x628] sm:$0xff]
        %v507 = vld [vmem:[%s2 + $0x630] sm:$0xff]
        %v508 = vld [vmem:[%s2 + $0x638] sm:$0xff]
        %v509 = vld [vmem:[%s2 + $0x640] sm:$0xff]
        %v510 = vld [vmem:[%s2 + $0x648] sm:$0xff]
        %v511 = vld [vmem:[%s2 + $0x650] sm:$0xff]
        %v512 = vld [vmem:[%s2 + $0x658] sm:$0xff]
        %v513 = vld [vmem:[%s2 + $0x660] sm:$0xff]
        %v514 = vld [vmem:[%s2 + $0x668] sm:$0xff]
        %v515 = vld [vmem:[%s2 + $0x670] sm:$0xff]
        %v516 = vld [vmem:[%s2 + $0x678] sm:$0xff]
        %v517 = vld [vmem:[%s2 + $0x680] sm:$0xff]
        %v518 = vld [vmem:[%s2 + $0x688] sm:$0xff]
        %v519 = vld [vmem:[%s2 + $0x690] sm:$0xff]
        %v520 = vld [vmem:[%s2 + $0x698] sm:$0xff]
        %v521 = vld [vmem:[%s2 + $0x6a0] sm:$0xff]
        %v522 = vld [vmem:[%s2 + $0x6a8] sm:$0xff]
        %v523 = vld [vmem:[%s2 + $0x6b0] sm:$0xff]
        %v524 = vld [vmem:[%s2 + $0x6b8] sm:$0xff]
        %v525 = vld [vmem:[%s2 + $0x6c0] sm:$0xff]
        %v526 = vld [vmem:[%s2 + $0x6c8] sm:$0xff]
        %v527 = vld [vmem:[%s2 + $0x6d0] sm:$0xff]
        %v528 = vld [vmem:[%s2 + $0x6d8] sm:$0xff]
        %v529 = vld [vmem:[%s2 + $0x6e0] sm:$0xff]
        %v530 = vld [vmem:[%s2 + $0x6e8] sm:$0xff]
        %v531 = vld [vmem:[%s2 + $0x6f0] sm:$0xff]
        %v532 = vld [vmem:[%s2 + $0x6f8] sm:$0xff]
        %v533 = vld [vmem:[%s2 + $0x700] sm:$0xff]
        %v534 = vld [vmem:[%s2 + $0x708] sm:$0xff]
        %v535 = vld [vmem:[%s2 + $0x710] sm:$0xff]
        %v536 = vld [vmem:[%s2 + $0x718] sm:$0xff]
        %v537 = vld [vmem:[%s2 + $0x720] sm:$0xff]
        %v538 = vld [vmem:[%s2 + $0x728] sm:$0xff]
        %v539 = vld [vmem:[%s2 + $0x730] sm:$0xff]
        %v540 = vld [vmem:[%s2 + $0x738] sm:$0xff]
        %v541 = vld [vmem:[%s2 + $0x740] sm:$0xff]
        %v542 = vld [vmem:[%s2 + $0x748] sm:$0xff]
        %v543 = vld [vmem:[%s2 + $0x750] sm:$0xff]
        %v544 = vld [vmem:[%s2 + $0x758] sm:$0xff]
        %v545 = vld [vmem:[%s2 + $0x760] sm:$0xff]
        %v546 = vld [vmem:[%s2 + $0x768] sm:$0xff]
        %v547 = vld [vmem:[%s2 + $0x770] sm:$0xff]
        %v548 = vld [vmem:[%s2 + $0x778] sm:$0xff]
        %v549 = vld [vmem:[%s2 + $0x780] sm:$0xff]
        %v550 = vld [vmem:[%s2 + $0x788] sm:$0xff]
        %v551 = vld [vmem:[%s2 + $0x790] sm:$0xff]
        %v552 = vld [vmem:[%s2 + $0x798] sm:$0xff]
        %v553 = vld [vmem:[%s2 + $0x7a0] sm:$0xff]
        %v554 = vld [vmem:[%s2 + $0x7a8] sm:$0xff]
        %v555 = vld [vmem:[%s2 + $0x7b0] sm:$0xff]
        %v556 = vld [vmem:[%s2 + $0x7b8] sm:$0xff]
        %v557 = vld [vmem:[%s2 + $0x7c0] sm:$0xff]
        %v558 = vld [vmem:[%s2 + $0x7c8] sm:$0xff]
        %v559 = vld [vmem:[%s2 + $0x7d0] sm:$0xff]
        %v560 = vld [vmem:[%s2 + $0x7d8] sm:$0xff]
        %v561 = vld [vmem:[%s2 + $0x7e0] sm:$0xff]
        %v562 = vld [vmem:[%s2 + $0x7e8] sm:$0xff]
        %v563 = vld [vmem:[%s2 + $0x7f0] sm:$0xff]
        %v564 = vld [vmem:[%s2 + $0x7f8] sm:$0xff]
        %v597 = vunpack.c.l.b16 %v240
        %v598 = vunpack.c.h.b16 %v240
        %v599 = vunpack.c.l.b16 %v241
        %v600 = vunpack.c.h.b16 %v241
        %v601 = vunpack.c.l.b16 %v242
        %v602 = vunpack.c.h.b16 %v242
        %v603 = vunpack.c.l.b16 %v243
        %v604 = vunpack.c.h.b16 %v243
        %v605 = vunpack.c.l.b16 %v244
        %v606 = vunpack.c.h.b16 %v244
        %v607 = vunpack.c.l.b16 %v245
        %v608 = vunpack.c.h.b16 %v245
        %v609 = vunpack.c.l.b16 %v246
        %v610 = vunpack.c.h.b16 %v246
        %v611 = vunpack.c.l.b16 %v247
        %v612 = vunpack.c.h.b16 %v247
        %v613 = vunpack.c.l.b16 %v248
        %v614 = vunpack.c.h.b16 %v248
        %v615 = vunpack.c.l.b16 %v249
        %v616 = vunpack.c.h.b16 %v249
        %v617 = vunpack.c.l.b16 %v250
        %v618 = vunpack.c.h.b16 %v250
        %v619 = vunpack.c.l.b16 %v251
        %v620 = vunpack.c.h.b16 %v251
        %v621 = vunpack.c.l.b16 %v252
        %v622 = vunpack.c.h.b16 %v252
        %v623 = vunpack.c.l.b16 %v253
        %v624 = vunpack.c.h.b16 %v253
        %v625 = vunpack.c.l.b16 %v254
        %v626 = vunpack.c.h.b16 %v254
        %v627 = vunpack.c.l.b16 %v255
        %v628 = vunpack.c.h.b16 %v255
        %v629 = vunpack.c.l.b16 %v256
        %v630 = vunpack.c.h.b16 %v256
        %v631 = vunpack.c.l.b16 %v257
        %v632 = vunpack.c.h.b16 %v257
        %v633 = vunpack.c.l.b16 %v258
        %v634 = vunpack.c.h.b16 %v258
        %v635 = vunpack.c.l.b16 %v259
        %v636 = vunpack.c.h.b16 %v259
        %v637 = vunpack.c.l.b16 %v260
        %v638 = vunpack.c.h.b16 %v260
        %v639 = vunpack.c.l.b16 %v261
        %v640 = vunpack.c.h.b16 %v261
        %v641 = vunpack.c.l.b16 %v262
        %v642 = vunpack.c.h.b16 %v262
        %v643 = vunpack.c.l.b16 %v263
        %v644 = vunpack.c.h.b16 %v263
        %v645 = vunpack.c.l.b16 %v264
        %v646 = vunpack.c.h.b16 %v264
        %v647 = vunpack.c.l.b16 %v265
        %v648 = vunpack.c.h.b16 %v265
        %v649 = vunpack.c.l.b16 %v266
        %v650 = vunpack.c.h.b16 %v266
        %v651 = vunpack.c.l.b16 %v267
        %v652 = vunpack.c.h.b16 %v267
        %v653 = vunpack.c.l.b16 %v268
        %v654 = vunpack.c.h.b16 %v268
        %v655 = vunpack.c.l.b16 %v269
        %v656 = vunpack.c.h.b16 %v269
        %v657 = vunpack.c.l.b16 %v270
        %v658 = vunpack.c.h.b16 %v270
        %v659 = vunpack.c.l.b16 %v271
        %v660 = vunpack.c.h.b16 %v271
        %v661 = vpack.c.b16 %v601, %v597
        %v662 = vpack.c.b16 %v602, %v598
        %v663 = vpack.c.b16 %v603, %v599
        %v664 = vpack.c.b16 %v604, %v600
        %v665 = vpack.c.b16 %v609, %v605
        %v666 = vpack.c.b16 %v610, %v606
        %v667 = vpack.c.b16 %v611, %v607
        %v668 = vpack.c.b16 %v612, %v608
        %v669 = vpack.c.b16 %v617, %v613
        %v670 = vpack.c.b16 %v618, %v614
        %v671 = vpack.c.b16 %v619, %v615
        %v672 = vpack.c.b16 %v620, %v616
        %v673 = vpack.c.b16 %v625, %v621
        %v674 = vpack.c.b16 %v626, %v622
        %v675 = vpack.c.b16 %v627, %v623
        %v676 = vpack.c.b16 %v628, %v624
        %v677 = vpack.c.b16 %v633, %v629
        %v678 = vpack.c.b16 %v634, %v630
        %v679 = vpack.c.b16 %v635, %v631
        %v680 = vpack.c.b16 %v636, %v632
        %v681 = vpack.c.b16 %v641, %v637
        %v682 = vpack.c.b16 %v642, %v638
        %v683 = vpack.c.b16 %v643, %v639
        %v684 = vpack.c.b16 %v644, %v640
        %v685 = vpack.c.b16 %v649, %v645
        %v686 = vpack.c.b16 %v650, %v646
        %v687 = vpack.c.b16 %v651, %v647
        %v688 = vpack.c.b16 %v652, %v648
        %v689 = vpack.c.b16 %v657, %v653
        %v690 = vpack.c.b16 %v658, %v654
        %v691 = vpack.c.b16 %v659, %v655
        %v692 = vpack.c.b16 %v660, %v656
        %v981 = vunpack.c.l.b16 %v309
        %v982 = vunpack.c.h.b16 %v309
        %v983 = vunpack.c.l.b16 %v310
        %v984 = vunpack.c.h.b16 %v310
        %v985 = vunpack.c.l.b16 %v311
        %v986 = vunpack.c.h.b16 %v311
        %v987 = vunpack.c.l.b16 %v312
        %v988 = vunpack.c.h.b16 %v312
        %v989 = vunpack.c.l.b16 %v313
        %v990 = vunpack.c.h.b16 %v313
        %v991 = vunpack.c.l.b16 %v314
        %v992 = vunpack.c.h.b16 %v314
        %v993 = vunpack.c.l.b16 %v315
        %v994 = vunpack.c.h.b16 %v315
        %v995 = vunpack.c.l.b16 %v316
        %v996 = vunpack.c.h.b16 %v316
        %v997 = vunpack.c.l.b16 %v317
        %v998 = vunpack.c.h.b16 %v317
        %v999 = vunpack.c.l.b16 %v318
        %v1000 = vunpack.c.h.b16 %v318
        %v1001 = vunpack.c.l.b16 %v319
        %v1002 = vunpack.c.h.b16 %v319
        %v1003 = vunpack.c.l.b16 %v320
        %v1004 = vunpack.c.h.b16 %v320
        %v1005 = vunpack.c.l.b16 %v321
        %v1006 = vunpack.c.h.b16 %v321
        %v1007 = vunpack.c.l.b16 %v322
        %v1008 = vunpack.c.h.b16 %v322
        %v1009 = vunpack.c.l.b16 %v323
        %v1010 = vunpack.c.h.b16 %v323
        %v1011 = vunpack.c.l.b16 %v324
        %v1012 = vunpack.c.h.b16 %v324
        %v1013 = vunpack.c.l.b16 %v325
        %v1014 = vunpack.c.h.b16 %v325
        %v1015 = vunpack.c.l.b16 %v326
        %v1016 = vunpack.c.h.b16 %v326
        %v1017 = vunpack.c.l.b16 %v327
        %v1018 = vunpack.c.h.b16 %v327
        %v1019 = vunpack.c.l.b16 %v328
        %v1020 = vunpack.c.h.b16 %v328
        %v1021 = vunpack.c.l.b16 %v329
        %v1022 = vunpack.c.h.b16 %v329
        %v1023 = vunpack.c.l.b16 %v330
        %v1024 = vunpack.c.h.b16 %v330
        %v1025 = vunpack.c.l.b16 %v331
        %v1026 = vunpack.c.h.b16 %v331
        %v1027 = vunpack.c.l.b16 %v332
        %v1028 = vunpack.c.h.b16 %v332
        %v1029 = vunpack.c.l.b16 %v333
        %v1030 = vunpack.c.h.b16 %v333
        %v1031 = vunpack.c.l.b16 %v334
        %v1032 = vunpack.c.h.b16 %v334
        %v1033 = vunpack.c.l.b16 %v335
        %v1034 = vunpack.c.h.b16 %v335
        %v1035 = vunpack.c.l.b16 %v336
        %v1036 = vunpack.c.h.b16 %v336
        %v1037 = vunpack.c.l.b16 %v337
        %v1038 = vunpack.c.h.b16 %v337
        %v1039 = vunpack.c.l.b16 %v338
        %v1040 = vunpack.c.h.b16 %v338
        %v1041 = vunpack.c.l.b16 %v339
        %v1042 = vunpack.c.h.b16 %v339
        %v1043 = vunpack.c.l.b16 %v340
        %v1044 = vunpack.c.h.b16 %v340
        %v1045 = vunpack.c.l.b16 %v341
        %v1046 = vunpack.c.h.b16 %v341
        %v1047 = vunpack.c.l.b16 %v342
        %v1048 = vunpack.c.h.b16 %v342
        %v1049 = vunpack.c.l.b16 %v343
        %v1050 = vunpack.c.h.b16 %v343
        %v1051 = vunpack.c.l.b16 %v344
        %v1052 = vunpack.c.h.b16 %v344
        %v1053 = vunpack.c.l.b16 %v345
        %v1054 = vunpack.c.h.b16 %v345
        %v1055 = vunpack.c.l.b16 %v346
        %v1056 = vunpack.c.h.b16 %v346
        %v1057 = vunpack.c.l.b16 %v347
        %v1058 = vunpack.c.h.b16 %v347
        %v1059 = vunpack.c.l.b16 %v348
        %v1060 = vunpack.c.h.b16 %v348
        %v1061 = vunpack.c.l.b16 %v349
        %v1062 = vunpack.c.h.b16 %v349
        %v1063 = vunpack.c.l.b16 %v350
        %v1064 = vunpack.c.h.b16 %v350
        %v1065 = vunpack.c.l.b16 %v351
        %v1066 = vunpack.c.h.b16 %v351
        %v1067 = vunpack.c.l.b16 %v352
        %v1068 = vunpack.c.h.b16 %v352
        %v1069 = vunpack.c.l.b16 %v353
        %v1070 = vunpack.c.h.b16 %v353
        %v1071 = vunpack.c.l.b16 %v354
        %v1072 = vunpack.c.h.b16 %v354
        %v1073 = vunpack.c.l.b16 %v355
        %v1074 = vunpack.c.h.b16 %v355
        %v1075 = vunpack.c.l.b16 %v356
        %v1076 = vunpack.c.h.b16 %v356
        %v1077 = vunpack.c.l.b16 %v357
        %v1078 = vunpack.c.h.b16 %v357
        %v1079 = vunpack.c.l.b16 %v358
        %v1080 = vunpack.c.h.b16 %v358
        %v1081 = vunpack.c.l.b16 %v359
        %v1082 = vunpack.c.h.b16 %v359
        %v1083 = vunpack.c.l.b16 %v360
        %v1084 = vunpack.c.h.b16 %v360
        %v1085 = vunpack.c.l.b16 %v361
        %v1086 = vunpack.c.h.b16 %v361
        %v1087 = vunpack.c.l.b16 %v362
        %v1088 = vunpack.c.h.b16 %v362
        %v1089 = vunpack.c.l.b16 %v363
        %v1090 = vunpack.c.h.b16 %v363
        %v1091 = vunpack.c.l.b16 %v364
        %v1092 = vunpack.c.h.b16 %v364
        %v1093 = vunpack.c.l.b16 %v365
        %v1094 = vunpack.c.h.b16 %v365
        %v1095 = vunpack.c.l.b16 %v366
        %v1096 = vunpack.c.h.b16 %v366
        %v1097 = vunpack.c.l.b16 %v367
        %v1098 = vunpack.c.h.b16 %v367
        %v1099 = vunpack.c.l.b16 %v368
        %v1100 = vunpack.c.h.b16 %v368
        %v1101 = vunpack.c.l.b16 %v369
        %v1102 = vunpack.c.h.b16 %v369
        %v1103 = vunpack.c.l.b16 %v370
        %v1104 = vunpack.c.h.b16 %v370
        %v1105 = vunpack.c.l.b16 %v371
        %v1106 = vunpack.c.h.b16 %v371
        %v1107 = vunpack.c.l.b16 %v372
        %v1108 = vunpack.c.h.b16 %v372
        %v1109 = vunpack.c.l.b16 %v373
        %v1110 = vunpack.c.h.b16 %v373
        %v1111 = vunpack.c.l.b16 %v374
        %v1112 = vunpack.c.h.b16 %v374
        %v1113 = vunpack.c.l.b16 %v375
        %v1114 = vunpack.c.h.b16 %v375
        %v1115 = vunpack.c.l.b16 %v376
        %v1116 = vunpack.c.h.b16 %v376
        %v1117 = vunpack.c.l.b16 %v377
        %v1118 = vunpack.c.h.b16 %v377
        %v1119 = vunpack.c.l.b16 %v378
        %v1120 = vunpack.c.h.b16 %v378
        %v1121 = vunpack.c.l.b16 %v379
        %v1122 = vunpack.c.h.b16 %v379
        %v1123 = vunpack.c.l.b16 %v380
        %v1124 = vunpack.c.h.b16 %v380
        %v1125 = vunpack.c.l.b16 %v381
        %v1126 = vunpack.c.h.b16 %v381
        %v1127 = vunpack.c.l.b16 %v382
        %v1128 = vunpack.c.h.b16 %v382
        %v1129 = vunpack.c.l.b16 %v383
        %v1130 = vunpack.c.h.b16 %v383
        %v1131 = vunpack.c.l.b16 %v384
        %v1132 = vunpack.c.h.b16 %v384
        %v1133 = vunpack.c.l.b16 %v385
        %v1134 = vunpack.c.h.b16 %v385
        %v1135 = vunpack.c.l.b16 %v386
        %v1136 = vunpack.c.h.b16 %v386
        %v1137 = vunpack.c.l.b16 %v387
        %v1138 = vunpack.c.h.b16 %v387
        %v1139 = vunpack.c.l.b16 %v388
        %v1140 = vunpack.c.h.b16 %v388
        %v1141 = vunpack.c.l.b16 %v389
        %v1142 = vunpack.c.h.b16 %v389
        %v1143 = vunpack.c.l.b16 %v390
        %v1144 = vunpack.c.h.b16 %v390
        %v1145 = vunpack.c.l.b16 %v391
        %v1146 = vunpack.c.h.b16 %v391
        %v1147 = vunpack.c.l.b16 %v392
        %v1148 = vunpack.c.h.b16 %v392
        %v1149 = vunpack.c.l.b16 %v393
        %v1150 = vunpack.c.h.b16 %v393
        %v1151 = vunpack.c.l.b16 %v394
        %v1152 = vunpack.c.h.b16 %v394
        %v1153 = vunpack.c.l.b16 %v395
        %v1154 = vunpack.c.h.b16 %v395
        %v1155 = vunpack.c.l.b16 %v396
        %v1156 = vunpack.c.h.b16 %v396
        %v1157 = vunpack.c.l.b16 %v397
        %v1158 = vunpack.c.h.b16 %v397
        %v1159 = vunpack.c.l.b16 %v398
        %v1160 = vunpack.c.h.b16 %v398
        %v1161 = vunpack.c.l.b16 %v399
        %v1162 = vunpack.c.h.b16 %v399
        %v1163 = vunpack.c.l.b16 %v400
        %v1164 = vunpack.c.h.b16 %v400
        %v1165 = vunpack.c.l.b16 %v401
        %v1166 = vunpack.c.h.b16 %v401
        %v1167 = vunpack.c.l.b16 %v402
        %v1168 = vunpack.c.h.b16 %v402
        %v1169 = vunpack.c.l.b16 %v403
        %v1170 = vunpack.c.h.b16 %v403
        %v1171 = vunpack.c.l.b16 %v404
        %v1172 = vunpack.c.h.b16 %v404
        %v1173 = vunpack.c.l.b16 %v405
        %v1174 = vunpack.c.h.b16 %v405
        %v1175 = vunpack.c.l.b16 %v406
        %v1176 = vunpack.c.h.b16 %v406
        %v1177 = vunpack.c.l.b16 %v407
        %v1178 = vunpack.c.h.b16 %v407
        %v1179 = vunpack.c.l.b16 %v408
        %v1180 = vunpack.c.h.b16 %v408
        %v1181 = vunpack.c.l.b16 %v409
        %v1182 = vunpack.c.h.b16 %v409
        %v1183 = vunpack.c.l.b16 %v410
        %v1184 = vunpack.c.h.b16 %v410
        %v1185 = vunpack.c.l.b16 %v411
        %v1186 = vunpack.c.h.b16 %v411
        %v1187 = vunpack.c.l.b16 %v412
        %v1188 = vunpack.c.h.b16 %v412
        %v1189 = vunpack.c.l.b16 %v413
        %v1190 = vunpack.c.h.b16 %v413
        %v1191 = vunpack.c.l.b16 %v414
        %v1192 = vunpack.c.h.b16 %v414
        %v1193 = vunpack.c.l.b16 %v415
        %v1194 = vunpack.c.h.b16 %v415
        %v1195 = vunpack.c.l.b16 %v416
        %v1196 = vunpack.c.h.b16 %v416
        %v1197 = vunpack.c.l.b16 %v417
        %v1198 = vunpack.c.h.b16 %v417
        %v1199 = vunpack.c.l.b16 %v418
        %v1200 = vunpack.c.h.b16 %v418
        %v1201 = vunpack.c.l.b16 %v419
        %v1202 = vunpack.c.h.b16 %v419
        %v1203 = vunpack.c.l.b16 %v420
        %v1204 = vunpack.c.h.b16 %v420
        %v1205 = vunpack.c.l.b16 %v421
        %v1206 = vunpack.c.h.b16 %v421
        %v1207 = vunpack.c.l.b16 %v422
        %v1208 = vunpack.c.h.b16 %v422
        %v1209 = vunpack.c.l.b16 %v423
        %v1210 = vunpack.c.h.b16 %v423
        %v1211 = vunpack.c.l.b16 %v424
        %v1212 = vunpack.c.h.b16 %v424
        %v1213 = vunpack.c.l.b16 %v425
        %v1214 = vunpack.c.h.b16 %v425
        %v1215 = vunpack.c.l.b16 %v426
        %v1216 = vunpack.c.h.b16 %v426
        %v1217 = vunpack.c.l.b16 %v427
        %v1218 = vunpack.c.h.b16 %v427
        %v1219 = vunpack.c.l.b16 %v428
        %v1220 = vunpack.c.h.b16 %v428
        %v1221 = vunpack.c.l.b16 %v429
        %v1222 = vunpack.c.h.b16 %v429
        %v1223 = vunpack.c.l.b16 %v430
        %v1224 = vunpack.c.h.b16 %v430
        %v1225 = vunpack.c.l.b16 %v431
        %v1226 = vunpack.c.h.b16 %v431
        %v1227 = vunpack.c.l.b16 %v432
        %v1228 = vunpack.c.h.b16 %v432
        %v1229 = vunpack.c.l.b16 %v433
        %v1230 = vunpack.c.h.b16 %v433
        %v1231 = vunpack.c.l.b16 %v434
        %v1232 = vunpack.c.h.b16 %v434
        %v1233 = vunpack.c.l.b16 %v435
        %v1234 = vunpack.c.h.b16 %v435
        %v1235 = vunpack.c.l.b16 %v436
        %v1236 = vunpack.c.h.b16 %v436
        %v1237 = vunpack.c.l.b16 %v437
        %v1238 = vunpack.c.h.b16 %v437
        %v1239 = vunpack.c.l.b16 %v438
        %v1240 = vunpack.c.h.b16 %v438
        %v1241 = vunpack.c.l.b16 %v439
        %v1242 = vunpack.c.h.b16 %v439
        %v1243 = vunpack.c.l.b16 %v440
        %v1244 = vunpack.c.h.b16 %v440
        %v1245 = vunpack.c.l.b16 %v441
        %v1246 = vunpack.c.h.b16 %v441
        %v1247 = vunpack.c.l.b16 %v442
        %v1248 = vunpack.c.h.b16 %v442
        %v1249 = vunpack.c.l.b16 %v443
        %v1250 = vunpack.c.h.b16 %v443
        %v1251 = vunpack.c.l.b16 %v444
        %v1252 = vunpack.c.h.b16 %v444
        %v1253 = vunpack.c.l.b16 %v445
        %v1254 = vunpack.c.h.b16 %v445
        %v1255 = vunpack.c.l.b16 %v446
        %v1256 = vunpack.c.h.b16 %v446
        %v1257 = vunpack.c.l.b16 %v447
        %v1258 = vunpack.c.h.b16 %v447
        %v1259 = vunpack.c.l.b16 %v448
        %v1260 = vunpack.c.h.b16 %v448
        %v1261 = vunpack.c.l.b16 %v449
        %v1262 = vunpack.c.h.b16 %v449
        %v1263 = vunpack.c.l.b16 %v450
        %v1264 = vunpack.c.h.b16 %v450
        %v1265 = vunpack.c.l.b16 %v451
        %v1266 = vunpack.c.h.b16 %v451
        %v1267 = vunpack.c.l.b16 %v452
        %v1268 = vunpack.c.h.b16 %v452
        %v1269 = vunpack.c.l.b16 %v453
        %v1270 = vunpack.c.h.b16 %v453
        %v1271 = vunpack.c.l.b16 %v454
        %v1272 = vunpack.c.h.b16 %v454
        %v1273 = vunpack.c.l.b16 %v455
        %v1274 = vunpack.c.h.b16 %v455
        %v1275 = vunpack.c.l.b16 %v456
        %v1276 = vunpack.c.h.b16 %v456
        %v1277 = vunpack.c.l.b16 %v457
        %v1278 = vunpack.c.h.b16 %v457
        %v1279 = vunpack.c.l.b16 %v458
        %v1280 = vunpack.c.h.b16 %v458
        %v1281 = vunpack.c.l.b16 %v459
        %v1282 = vunpack.c.h.b16 %v459
        %v1283 = vunpack.c.l.b16 %v460
        %v1284 = vunpack.c.h.b16 %v460
        %v1285 = vunpack.c.l.b16 %v461
        %v1286 = vunpack.c.h.b16 %v461
        %v1287 = vunpack.c.l.b16 %v462
        %v1288 = vunpack.c.h.b16 %v462
        %v1289 = vunpack.c.l.b16 %v463
        %v1290 = vunpack.c.h.b16 %v463
        %v1291 = vunpack.c.l.b16 %v464
        %v1292 = vunpack.c.h.b16 %v464
        %v1293 = vunpack.c.l.b16 %v465
        %v1294 = vunpack.c.h.b16 %v465
        %v1295 = vunpack.c.l.b16 %v466
        %v1296 = vunpack.c.h.b16 %v466
        %v1297 = vunpack.c.l.b16 %v467
        %v1298 = vunpack.c.h.b16 %v467
        %v1299 = vunpack.c.l.b16 %v468
        %v1300 = vunpack.c.h.b16 %v468
        %v1301 = vunpack.c.l.b16 %v469
        %v1302 = vunpack.c.h.b16 %v469
        %v1303 = vunpack.c.l.b16 %v470
        %v1304 = vunpack.c.h.b16 %v470
        %v1305 = vunpack.c.l.b16 %v471
        %v1306 = vunpack.c.h.b16 %v471
        %v1307 = vunpack.c.l.b16 %v472
        %v1308 = vunpack.c.h.b16 %v472
        %v1309 = vunpack.c.l.b16 %v473
        %v1310 = vunpack.c.h.b16 %v473
        %v1311 = vunpack.c.l.b16 %v474
        %v1312 = vunpack.c.h.b16 %v474
        %v1313 = vunpack.c.l.b16 %v475
        %v1314 = vunpack.c.h.b16 %v475
        %v1315 = vunpack.c.l.b16 %v476
        %v1316 = vunpack.c.h.b16 %v476
        %v1317 = vunpack.c.l.b16 %v477
        %v1318 = vunpack.c.h.b16 %v477
        %v1319 = vunpack.c.l.b16 %v478
        %v1320 = vunpack.c.h.b16 %v478
        %v1321 = vunpack.c.l.b16 %v479
        %v1322 = vunpack.c.h.b16 %v479
        %v1323 = vunpack.c.l.b16 %v480
        %v1324 = vunpack.c.h.b16 %v480
        %v1325 = vunpack.c.l.b16 %v481
        %v1326 = vunpack.c.h.b16 %v481
        %v1327 = vunpack.c.l.b16 %v482
        %v1328 = vunpack.c.h.b16 %v482
        %v1329 = vunpack.c.l.b16 %v483
        %v1330 = vunpack.c.h.b16 %v483
        %v1331 = vunpack.c.l.b16 %v484
        %v1332 = vunpack.c.h.b16 %v484
        %v1333 = vunpack.c.l.b16 %v485
        %v1334 = vunpack.c.h.b16 %v485
        %v1335 = vunpack.c.l.b16 %v486
        %v1336 = vunpack.c.h.b16 %v486
        %v1337 = vunpack.c.l.b16 %v487
        %v1338 = vunpack.c.h.b16 %v487
        %v1339 = vunpack.c.l.b16 %v488
        %v1340 = vunpack.c.h.b16 %v488
        %v1341 = vunpack.c.l.b16 %v489
        %v1342 = vunpack.c.h.b16 %v489
        %v1343 = vunpack.c.l.b16 %v490
        %v1344 = vunpack.c.h.b16 %v490
        %v1345 = vunpack.c.l.b16 %v491
        %v1346 = vunpack.c.h.b16 %v491
        %v1347 = vunpack.c.l.b16 %v492
        %v1348 = vunpack.c.h.b16 %v492
        %v1349 = vunpack.c.l.b16 %v493
        %v1350 = vunpack.c.h.b16 %v493
        %v1351 = vunpack.c.l.b16 %v494
        %v1352 = vunpack.c.h.b16 %v494
        %v1353 = vunpack.c.l.b16 %v495
        %v1354 = vunpack.c.h.b16 %v495
        %v1355 = vunpack.c.l.b16 %v496
        %v1356 = vunpack.c.h.b16 %v496
        %v1357 = vunpack.c.l.b16 %v497
        %v1358 = vunpack.c.h.b16 %v497
        %v1359 = vunpack.c.l.b16 %v498
        %v1360 = vunpack.c.h.b16 %v498
        %v1361 = vunpack.c.l.b16 %v499
        %v1362 = vunpack.c.h.b16 %v499
        %v1363 = vunpack.c.l.b16 %v500
        %v1364 = vunpack.c.h.b16 %v500
        %v1365 = vunpack.c.l.b16 %v501
        %v1366 = vunpack.c.h.b16 %v501
        %v1367 = vunpack.c.l.b16 %v502
        %v1368 = vunpack.c.h.b16 %v502
        %v1369 = vunpack.c.l.b16 %v503
        %v1370 = vunpack.c.h.b16 %v503
        %v1371 = vunpack.c.l.b16 %v504
        %v1372 = vunpack.c.h.b16 %v504
        %v1373 = vunpack.c.l.b16 %v505
        %v1374 = vunpack.c.h.b16 %v505
        %v1375 = vunpack.c.l.b16 %v506
        %v1376 = vunpack.c.h.b16 %v506
        %v1377 = vunpack.c.l.b16 %v507
        %v1378 = vunpack.c.h.b16 %v507
        %v1379 = vunpack.c.l.b16 %v508
        %v1380 = vunpack.c.h.b16 %v508
        %v1381 = vunpack.c.l.b16 %v509
        %v1382 = vunpack.c.h.b16 %v509
        %v1383 = vunpack.c.l.b16 %v510
        %v1384 = vunpack.c.h.b16 %v510
        %v1385 = vunpack.c.l.b16 %v511
        %v1386 = vunpack.c.h.b16 %v511
        %v1387 = vunpack.c.l.b16 %v512
        %v1388 = vunpack.c.h.b16 %v512
        %v1389 = vunpack.c.l.b16 %v513
        %v1390 = vunpack.c.h.b16 %v513
        %v1391 = vunpack.c.l.b16 %v514
        %v1392 = vunpack.c.h.b16 %v514
        %v1393 = vunpack.c.l.b16 %v515
        %v1394 = vunpack.c.h.b16 %v515
        %v1395 = vunpack.c.l.b16 %v516
        %v1396 = vunpack.c.h.b16 %v516
        %v1397 = vunpack.c.l.b16 %v517
        %v1398 = vunpack.c.h.b16 %v517
        %v1399 = vunpack.c.l.b16 %v518
        %v1400 = vunpack.c.h.b16 %v518
        %v1401 = vunpack.c.l.b16 %v519
        %v1402 = vunpack.c.h.b16 %v519
        %v1403 = vunpack.c.l.b16 %v520
        %v1404 = vunpack.c.h.b16 %v520
        %v1405 = vunpack.c.l.b16 %v521
        %v1406 = vunpack.c.h.b16 %v521
        %v1407 = vunpack.c.l.b16 %v522
        %v1408 = vunpack.c.h.b16 %v522
        %v1409 = vunpack.c.l.b16 %v523
        %v1410 = vunpack.c.h.b16 %v523
        %v1411 = vunpack.c.l.b16 %v524
        %v1412 = vunpack.c.h.b16 %v524
        %v1413 = vunpack.c.l.b16 %v525
        %v1414 = vunpack.c.h.b16 %v525
        %v1415 = vunpack.c.l.b16 %v526
        %v1416 = vunpack.c.h.b16 %v526
        %v1417 = vunpack.c.l.b16 %v527
        %v1418 = vunpack.c.h.b16 %v527
        %v1419 = vunpack.c.l.b16 %v528
        %v1420 = vunpack.c.h.b16 %v528
        %v1421 = vunpack.c.l.b16 %v529
        %v1422 = vunpack.c.h.b16 %v529
        %v1423 = vunpack.c.l.b16 %v530
        %v1424 = vunpack.c.h.b16 %v530
        %v1425 = vunpack.c.l.b16 %v531
        %v1426 = vunpack.c.h.b16 %v531
        %v1427 = vunpack.c.l.b16 %v532
        %v1428 = vunpack.c.h.b16 %v532
        %v1429 = vunpack.c.l.b16 %v533
        %v1430 = vunpack.c.h.b16 %v533
        %v1431 = vunpack.c.l.b16 %v534
        %v1432 = vunpack.c.h.b16 %v534
        %v1433 = vunpack.c.l.b16 %v535
        %v1434 = vunpack.c.h.b16 %v535
        %v1435 = vunpack.c.l.b16 %v536
        %v1436 = vunpack.c.h.b16 %v536
        %v1437 = vunpack.c.l.b16 %v537
        %v1438 = vunpack.c.h.b16 %v537
        %v1439 = vunpack.c.l.b16 %v538
        %v1440 = vunpack.c.h.b16 %v538
        %v1441 = vunpack.c.l.b16 %v539
        %v1442 = vunpack.c.h.b16 %v539
        %v1443 = vunpack.c.l.b16 %v540
        %v1444 = vunpack.c.h.b16 %v540
        %v1445 = vunpack.c.l.b16 %v541
        %v1446 = vunpack.c.h.b16 %v541
        %v1447 = vunpack.c.l.b16 %v542
        %v1448 = vunpack.c.h.b16 %v542
        %v1449 = vunpack.c.l.b16 %v543
        %v1450 = vunpack.c.h.b16 %v543
        %v1451 = vunpack.c.l.b16 %v544
        %v1452 = vunpack.c.h.b16 %v544
        %v1453 = vunpack.c.l.b16 %v545
        %v1454 = vunpack.c.h.b16 %v545
        %v1455 = vunpack.c.l.b16 %v546
        %v1456 = vunpack.c.h.b16 %v546
        %v1457 = vunpack.c.l.b16 %v547
        %v1458 = vunpack.c.h.b16 %v547
        %v1459 = vunpack.c.l.b16 %v548
        %v1460 = vunpack.c.h.b16 %v548
        %v1461 = vunpack.c.l.b16 %v549
        %v1462 = vunpack.c.h.b16 %v549
        %v1463 = vunpack.c.l.b16 %v550
        %v1464 = vunpack.c.h.b16 %v550
        %v1465 = vunpack.c.l.b16 %v551
        %v1466 = vunpack.c.h.b16 %v551
        %v1467 = vunpack.c.l.b16 %v552
        %v1468 = vunpack.c.h.b16 %v552
        %v1469 = vunpack.c.l.b16 %v553
        %v1470 = vunpack.c.h.b16 %v553
        %v1471 = vunpack.c.l.b16 %v554
        %v1472 = vunpack.c.h.b16 %v554
        %v1473 = vunpack.c.l.b16 %v555
        %v1474 = vunpack.c.h.b16 %v555
        %v1475 = vunpack.c.l.b16 %v556
        %v1476 = vunpack.c.h.b16 %v556
        %v1477 = vunpack.c.l.b16 %v557
        %v1478 = vunpack.c.h.b16 %v557
        %v1479 = vunpack.c.l.b16 %v558
        %v1480 = vunpack.c.h.b16 %v558
        %v1481 = vunpack.c.l.b16 %v559
        %v1482 = vunpack.c.h.b16 %v559
        %v1483 = vunpack.c.l.b16 %v560
        %v1484 = vunpack.c.h.b16 %v560
        %v1485 = vunpack.c.l.b16 %v561
        %v1486 = vunpack.c.h.b16 %v561
        %v1487 = vunpack.c.l.b16 %v562
        %v1488 = vunpack.c.h.b16 %v562
        %v1489 = vunpack.c.l.b16 %v563
        %v1490 = vunpack.c.h.b16 %v563
        %v1491 = vunpack.c.l.b16 %v564
        %v1492 = vunpack.c.h.b16 %v564
        %v1493 = vpack.c.b16 %v989, %v981
        %v1494 = vpack.c.b16 %v990, %v982
        %v1495 = vpack.c.b16 %v991, %v983
        %v1496 = vpack.c.b16 %v992, %v984
        %v1497 = vpack.c.b16 %v993, %v985
        %v1498 = vpack.c.b16 %v994, %v986
        %v1499 = vpack.c.b16 %v995, %v987
        %v1500 = vpack.c.b16 %v996, %v988
        %v1501 = vpack.c.b16 %v1005, %v997
        %v1502 = vpack.c.b16 %v1006, %v998
        %v1503 = vpack.c.b16 %v1007, %v999
        %v1504 = vpack.c.b16 %v1008, %v1000
        %v1505 = vpack.c.b16 %v1009, %v1001
        %v1506 = vpack.c.b16 %v1010, %v1002
        %v1507 = vpack.c.b16 %v1011, %v1003
        %v1508 = vpack.c.b16 %v1012, %v1004
        %v1509 = vpack.c.b16 %v1021, %v1013
        %v1510 = vpack.c.b16 %v1022, %v1014
        %v1511 = vpack.c.b16 %v1023, %v1015
        %v1512 = vpack.c.b16 %v1024, %v1016
        %v1513 = vpack.c.b16 %v1025, %v1017
        %v1514 = vpack.c.b16 %v1026, %v1018
        %v1515 = vpack.c.b16 %v1027, %v1019
        %v1516 = vpack.c.b16 %v1028, %v1020
        %v1517 = vpack.c.b16 %v1037, %v1029
        %v1518 = vpack.c.b16 %v1038, %v1030
        %v1519 = vpack.c.b16 %v1039, %v1031
        %v1520 = vpack.c.b16 %v1040, %v1032
        %v1521 = vpack.c.b16 %v1041, %v1033
        %v1522 = vpack.c.b16 %v1042, %v1034
        %v1523 = vpack.c.b16 %v1043, %v1035
        %v1524 = vpack.c.b16 %v1044, %v1036
        %v1525 = vpack.c.b16 %v1053, %v1045
        %v1526 = vpack.c.b16 %v1054, %v1046
        %v1527 = vpack.c.b16 %v1055, %v1047
        %v1528 = vpack.c.b16 %v1056, %v1048
        %v1529 = vpack.c.b16 %v1057, %v1049
        %v1530 = vpack.c.b16 %v1058, %v1050
        %v1531 = vpack.c.b16 %v1059, %v1051
        %v1532 = vpack.c.b16 %v1060, %v1052
        %v1533 = vpack.c.b16 %v1069, %v1061
        %v1534 = vpack.c.b16 %v1070, %v1062
        %v1535 = vpack.c.b16 %v1071, %v1063
        %v1536 = vpack.c.b16 %v1072, %v1064
        %v1537 = vpack.c.b16 %v1073, %v1065
        %v1538 = vpack.c.b16 %v1074, %v1066
        %v1539 = vpack.c.b16 %v1075, %v1067
        %v1540 = vpack.c.b16 %v1076, %v1068
        %v1541 = vpack.c.b16 %v1085, %v1077
        %v1542 = vpack.c.b16 %v1086, %v1078
        %v1543 = vpack.c.b16 %v1087, %v1079
        %v1544 = vpack.c.b16 %v1088, %v1080
        %v1545 = vpack.c.b16 %v1089, %v1081
        %v1546 = vpack.c.b16 %v1090, %v1082
        %v1547 = vpack.c.b16 %v1091, %v1083
        %v1548 = vpack.c.b16 %v1092, %v1084
        %v1549 = vpack.c.b16 %v1101, %v1093
        %v1550 = vpack.c.b16 %v1102, %v1094
        %v1551 = vpack.c.b16 %v1103, %v1095
        %v1552 = vpack.c.b16 %v1104, %v1096
        %v1553 = vpack.c.b16 %v1105, %v1097
        %v1554 = vpack.c.b16 %v1106, %v1098
        %v1555 = vpack.c.b16 %v1107, %v1099
        %v1556 = vpack.c.b16 %v1108, %v1100
        %v1557 = vpack.c.b16 %v1117, %v1109
        %v1558 = vpack.c.b16 %v1118, %v1110
        %v1559 = vpack.c.b16 %v1119, %v1111
        %v1560 = vpack.c.b16 %v1120, %v1112
        %v1561 = vpack.c.b16 %v1121, %v1113
        %v1562 = vpack.c.b16 %v1122, %v1114
        %v1563 = vpack.c.b16 %v1123, %v1115
        %v1564 = vpack.c.b16 %v1124, %v1116
        %v1565 = vpack.c.b16 %v1133, %v1125
        %v1566 = vpack.c.b16 %v1134, %v1126
        %v1567 = vpack.c.b16 %v1135, %v1127
        %v1568 = vpack.c.b16 %v1136, %v1128
        %v1569 = vpack.c.b16 %v1137, %v1129
        %v1570 = vpack.c.b16 %v1138, %v1130
        %v1571 = vpack.c.b16 %v1139, %v1131
        %v1572 = vpack.c.b16 %v1140, %v1132
        %v1573 = vpack.c.b16 %v1149, %v1141
        %v1574 = vpack.c.b16 %v1150, %v1142
        %v1575 = vpack.c.b16 %v1151, %v1143
        %v1576 = vpack.c.b16 %v1152, %v1144
        %v1577 = vpack.c.b16 %v1153, %v1145
        %v1578 = vpack.c.b16 %v1154, %v1146
        %v1579 = vpack.c.b16 %v1155, %v1147
        %v1580 = vpack.c.b16 %v1156, %v1148
        %v1581 = vpack.c.b16 %v1165, %v1157
        %v1582 = vpack.c.b16 %v1166, %v1158
        %v1583 = vpack.c.b16 %v1167, %v1159
        %v1584 = vpack.c.b16 %v1168, %v1160
        %v1585 = vpack.c.b16 %v1169, %v1161
        %v1586 = vpack.c.b16 %v1170, %v1162
        %v1587 = vpack.c.b16 %v1171, %v1163
        %v1588 = vpack.c.b16 %v1172, %v1164
        %v1589 = vpack.c.b16 %v1181, %v1173
        %v1590 = vpack.c.b16 %v1182, %v1174
        %v1591 = vpack.c.b16 %v1183, %v1175
        %v1592 = vpack.c.b16 %v1184, %v1176
        %v1593 = vpack.c.b16 %v1185, %v1177
        %v1594 = vpack.c.b16 %v1186, %v1178
        %v1595 = vpack.c.b16 %v1187, %v1179
        %v1596 = vpack.c.b16 %v1188, %v1180
        %v1597 = vpack.c.b16 %v1197, %v1189
        %v1598 = vpack.c.b16 %v1198, %v1190
        %v1599 = vpack.c.b16 %v1199, %v1191
        %v1600 = vpack.c.b16 %v1200, %v1192
        %v1601 = vpack.c.b16 %v1201, %v1193
        %v1602 = vpack.c.b16 %v1202, %v1194
        %v1603 = vpack.c.b16 %v1203, %v1195
        %v1604 = vpack.c.b16 %v1204, %v1196
        %v1605 = vpack.c.b16 %v1213, %v1205
        %v1606 = vpack.c.b16 %v1214, %v1206
        %v1607 = vpack.c.b16 %v1215, %v1207
        %v1608 = vpack.c.b16 %v1216, %v1208
        %v1609 = vpack.c.b16 %v1217, %v1209
        %v1610 = vpack.c.b16 %v1218, %v1210
        %v1611 = vpack.c.b16 %v1219, %v1211
        %v1612 = vpack.c.b16 %v1220, %v1212
        %v1613 = vpack.c.b16 %v1229, %v1221
        %v1614 = vpack.c.b16 %v1230, %v1222
        %v1615 = vpack.c.b16 %v1231, %v1223
        %v1616 = vpack.c.b16 %v1232, %v1224
        %v1617 = vpack.c.b16 %v1233, %v1225
        %v1618 = vpack.c.b16 %v1234, %v1226
        %v1619 = vpack.c.b16 %v1235, %v1227
        %v1620 = vpack.c.b16 %v1236, %v1228
        %v1621 = vpack.c.b16 %v1245, %v1237
        %v1622 = vpack.c.b16 %v1246, %v1238
        %v1623 = vpack.c.b16 %v1247, %v1239
        %v1624 = vpack.c.b16 %v1248, %v1240
        %v1625 = vpack.c.b16 %v1249, %v1241
        %v1626 = vpack.c.b16 %v1250, %v1242
        %v1627 = vpack.c.b16 %v1251, %v1243
        %v1628 = vpack.c.b16 %v1252, %v1244
        %v1629 = vpack.c.b16 %v1261, %v1253
        %v1630 = vpack.c.b16 %v1262, %v1254
        %v1631 = vpack.c.b16 %v1263, %v1255
        %v1632 = vpack.c.b16 %v1264, %v1256
        %v1633 = vpack.c.b16 %v1265, %v1257
        %v1634 = vpack.c.b16 %v1266, %v1258
        %v1635 = vpack.c.b16 %v1267, %v1259
        %v1636 = vpack.c.b16 %v1268, %v1260
        %v1637 = vpack.c.b16 %v1277, %v1269
        %v1638 = vpack.c.b16 %v1278, %v1270
        %v1639 = vpack.c.b16 %v1279, %v1271
        %v1640 = vpack.c.b16 %v1280, %v1272
        %v1641 = vpack.c.b16 %v1281, %v1273
        %v1642 = vpack.c.b16 %v1282, %v1274
        %v1643 = vpack.c.b16 %v1283, %v1275
        %v1644 = vpack.c.b16 %v1284, %v1276
        %v1645 = vpack.c.b16 %v1293, %v1285
        %v1646 = vpack.c.b16 %v1294, %v1286
        %v1647 = vpack.c.b16 %v1295, %v1287
        %v1648 = vpack.c.b16 %v1296, %v1288
        %v1649 = vpack.c.b16 %v1297, %v1289
        %v1650 = vpack.c.b16 %v1298, %v1290
        %v1651 = vpack.c.b16 %v1299, %v1291
        %v1652 = vpack.c.b16 %v1300, %v1292
        %v1653 = vpack.c.b16 %v1309, %v1301
        %v1654 = vpack.c.b16 %v1310, %v1302
        %v1655 = vpack.c.b16 %v1311, %v1303
        %v1656 = vpack.c.b16 %v1312, %v1304
        %v1657 = vpack.c.b16 %v1313, %v1305
        %v1658 = vpack.c.b16 %v1314, %v1306
        %v1659 = vpack.c.b16 %v1315, %v1307
        %v1660 = vpack.c.b16 %v1316, %v1308
        %v1661 = vpack.c.b16 %v1325, %v1317
        %v1662 = vpack.c.b16 %v1326, %v1318
        %v1663 = vpack.c.b16 %v1327, %v1319
        %v1664 = vpack.c.b16 %v1328, %v1320
        %v1665 = vpack.c.b16 %v1329, %v1321
        %v1666 = vpack.c.b16 %v1330, %v1322
        %v1667 = vpack.c.b16 %v1331, %v1323
        %v1668 = vpack.c.b16 %v1332, %v1324
        %v1669 = vpack.c.b16 %v1341, %v1333
        %v1670 = vpack.c.b16 %v1342, %v1334
        %v1671 = vpack.c.b16 %v1343, %v1335
        %v1672 = vpack.c.b16 %v1344, %v1336
        %v1673 = vpack.c.b16 %v1345, %v1337
        %v1674 = vpack.c.b16 %v1346, %v1338
        %v1675 = vpack.c.b16 %v1347, %v1339
        %v1676 = vpack.c.b16 %v1348, %v1340
        %v1677 = vpack.c.b16 %v1357, %v1349
        %v1678 = vpack.c.b16 %v1358, %v1350
        %v1679 = vpack.c.b16 %v1359, %v1351
        %v1680 = vpack.c.b16 %v1360, %v1352
        %v1681 = vpack.c.b16 %v1361, %v1353
        %v1682 = vpack.c.b16 %v1362, %v1354
        %v1683 = vpack.c.b16 %v1363, %v1355
        %v1684 = vpack.c.b16 %v1364, %v1356
        %v1685 = vpack.c.b16 %v1373, %v1365
        %v1686 = vpack.c.b16 %v1374, %v1366
        %v1687 = vpack.c.b16 %v1375, %v1367
        %v1688 = vpack.c.b16 %v1376, %v1368
        %v1689 = vpack.c.b16 %v1377, %v1369
        %v1690 = vpack.c.b16 %v1378, %v1370
        %v1691 = vpack.c.b16 %v1379, %v1371
        %v1692 = vpack.c.b16 %v1380, %v1372
        %v1693 = vpack.c.b16 %v1389, %v1381
        %v1694 = vpack.c.b16 %v1390, %v1382
        %v1695 = vpack.c.b16 %v1391, %v1383
        %v1696 = vpack.c.b16 %v1392, %v1384
        %v1697 = vpack.c.b16 %v1393, %v1385
        %v1698 = vpack.c.b16 %v1394, %v1386
        %v1699 = vpack.c.b16 %v1395, %v1387
        %v1700 = vpack.c.b16 %v1396, %v1388
        %v1701 = vpack.c.b16 %v1405, %v1397
        %v1702 = vpack.c.b16 %v1406, %v1398
        %v1703 = vpack.c.b16 %v1407, %v1399
        %v1704 = vpack.c.b16 %v1408, %v1400
        %v1705 = vpack.c.b16 %v1409, %v1401
        %v1706 = vpack.c.b16 %v1410, %v1402
        %v1707 = vpack.c.b16 %v1411, %v1403
        %v1708 = vpack.c.b16 %v1412, %v1404
        %v1709 = vpack.c.b16 %v1421, %v1413
        %v1710 = vpack.c.b16 %v1422, %v1414
        %v1711 = vpack.c.b16 %v1423, %v1415
        %v1712 = vpack.c.b16 %v1424, %v1416
        %v1713 = vpack.c.b16 %v1425, %v1417
        %v1714 = vpack.c.b16 %v1426, %v1418
        %v1715 = vpack.c.b16 %v1427, %v1419
        %v1716 = vpack.c.b16 %v1428, %v1420
        %v1717 = vpack.c.b16 %v1437, %v1429
        %v1718 = vpack.c.b16 %v1438, %v1430
        %v1719 = vpack.c.b16 %v1439, %v1431
        %v1720 = vpack.c.b16 %v1440, %v1432
        %v1721 = vpack.c.b16 %v1441, %v1433
        %v1722 = vpack.c.b16 %v1442, %v1434
        %v1723 = vpack.c.b16 %v1443, %v1435
        %v1724 = vpack.c.b16 %v1444, %v1436
        %v1725 = vpack.c.b16 %v1453, %v1445
        %v1726 = vpack.c.b16 %v1454, %v1446
        %v1727 = vpack.c.b16 %v1455, %v1447
        %v1728 = vpack.c.b16 %v1456, %v1448
        %v1729 = vpack.c.b16 %v1457, %v1449
        %v1730 = vpack.c.b16 %v1458, %v1450
        %v1731 = vpack.c.b16 %v1459, %v1451
        %v1732 = vpack.c.b16 %v1460, %v1452
        %v1733 = vpack.c.b16 %v1469, %v1461
        %v1734 = vpack.c.b16 %v1470, %v1462
        %v1735 = vpack.c.b16 %v1471, %v1463
        %v1736 = vpack.c.b16 %v1472, %v1464
        %v1737 = vpack.c.b16 %v1473, %v1465
        %v1738 = vpack.c.b16 %v1474, %v1466
        %v1739 = vpack.c.b16 %v1475, %v1467
        %v1740 = vpack.c.b16 %v1476, %v1468
        %v1741 = vpack.c.b16 %v1485, %v1477
        %v1742 = vpack.c.b16 %v1486, %v1478
        %v1743 = vpack.c.b16 %v1487, %v1479
        %v1744 = vpack.c.b16 %v1488, %v1480
        %v1745 = vpack.c.b16 %v1489, %v1481
        %v1746 = vpack.c.b16 %v1490, %v1482
        %v1747 = vpack.c.b16 %v1491, %v1483
        %v1748 = vpack.c.b16 %v1492, %v1484
        %2005 = vmatprep.subr.bf16.mxu0 %v1550
        %2006 = vmatpush1.bf16.msra.mxu0 %v1549
        %2007 = vmatprep.subr.bf16.mxu0 %v1542
        %2008 = vmatpush1.bf16.msra.mxu0 %v1541
        %2009 = vmatprep.subr.bf16.mxu0 %v1534
        %2010 = vmatpush1.bf16.msra.mxu0 %v1533
        %2011 = vmatprep.subr.bf16.mxu0 %v1526
        %2012 = vmatpush1.bf16.msra.mxu0 %v1525
        %2013 = vmatprep.subr.bf16.mxu0 %v1518
        %2014 = vmatpush1.bf16.msra.mxu0 %v1517
        %2015 = vmatprep.subr.bf16.mxu0 %v1510
        %2016 = vmatpush1.bf16.msra.mxu0 %v1509
        %2017 = vmatprep.subr.bf16.mxu0 %v1502
        %2018 = vmatpush1.bf16.msra.mxu0 %v1501
        %2019 = vmatprep.subr.bf16.mxu0 %v1494
        %2020 = vmatpush1.bf16.msra.mxu0 %v1493
        %2021 = vmatprep.subr.bf16.mxu0 %v1614
        %2022 = vmatpush2.bf16.msra.mxu0 %v1613
        %2023 = vmatprep.subr.bf16.mxu0 %v1606
        %2024 = vmatpush2.bf16.msra.mxu0 %v1605
        %2025 = vmatprep.subr.bf16.mxu0 %v1598
        %2026 = vmatpush2.bf16.msra.mxu0 %v1597
        %2027 = vmatprep.subr.bf16.mxu0 %v1590
        %2028 = vmatpush2.bf16.msra.mxu0 %v1589
        %2029 = vmatprep.subr.bf16.mxu0 %v1582
        %2030 = vmatpush2.bf16.msra.mxu0 %v1581
        %2031 = vmatprep.subr.bf16.mxu0 %v1574
        %2032 = vmatpush2.bf16.msra.mxu0 %v1573
        %2033 = vmatprep.subr.bf16.mxu0 %v1566
        %2034 = vmatpush2.bf16.msra.mxu0 %v1565
        %2035 = vmatprep.subr.bf16.mxu0 %v1558
        %2036 = vmatpush2.bf16.msra.mxu0 %v1557
        %2037 = vmatprep.mubr.bf16.mxu0 %v662
        %2038 = vmatmul.mubr.bf16.gmra.mxu0 %v661
        %v2039 = vpop.f32.mrf.mxu0
        %v2040 = vadd.f32 0.0, %v2039
        %v2041 = vpop.f32.mrf.mxu0
        %v2042 = vadd.f32 0.0, %v2041
        %v2043 = vpop.f32.mrf.mxu0
        %v2044 = vadd.f32 0.0, %v2043
        %v2045 = vpop.f32.mrf.mxu0
        %v2046 = vadd.f32 0.0, %v2045
        %2047 = vmatprep.mubr.bf16.mxu0 %v666
        %2048 = vmatmul.mubr.bf16.gmra.mxu0 %v665
        %v2049 = vpop.f32.mrf.mxu0
        %v2050 = vadd.f32 0.0, %v2049
        %v2051 = vpop.f32.mrf.mxu0
        %v2052 = vadd.f32 0.0, %v2051
        %v2053 = vpop.f32.mrf.mxu0
        %v2054 = vadd.f32 0.0, %v2053
        %v2055 = vpop.f32.mrf.mxu0
        %v2056 = vadd.f32 0.0, %v2055
        %2057 = vmatprep.mubr.bf16.mxu0 %v670
        %2058 = vmatmul.mubr.bf16.gmra.mxu0 %v669
        %v2059 = vpop.f32.mrf.mxu0
        %v2060 = vadd.f32 0.0, %v2059
        %v2061 = vpop.f32.mrf.mxu0
        %v2062 = vadd.f32 0.0, %v2061
        %v2063 = vpop.f32.mrf.mxu0
        %v2064 = vadd.f32 0.0, %v2063
        %v2065 = vpop.f32.mrf.mxu0
        %v2066 = vadd.f32 0.0, %v2065
        %2067 = vmatprep.mubr.bf16.mxu0 %v674
        %2068 = vmatmul.mubr.bf16.gmra.mxu0 %v673
        %v2069 = vpop.f32.mrf.mxu0
        %v2070 = vadd.f32 0.0, %v2069
        %v2071 = vpop.f32.mrf.mxu0
        %v2072 = vadd.f32 0.0, %v2071
        %v2073 = vpop.f32.mrf.mxu0
        %v2074 = vadd.f32 0.0, %v2073
        %v2075 = vpop.f32.mrf.mxu0
        %v2076 = vadd.f32 0.0, %v2075
        %2077 = vmatprep.mubr.bf16.mxu0 %v678
        %2078 = vmatmul.mubr.bf16.gmra.mxu0 %v677
        %v2079 = vpop.f32.mrf.mxu0
        %v2080 = vadd.f32 0.0, %v2079
        %v2081 = vpop.f32.mrf.mxu0
        %v2082 = vadd.f32 0.0, %v2081
        %v2083 = vpop.f32.mrf.mxu0
        %v2084 = vadd.f32 0.0, %v2083
        %v2085 = vpop.f32.mrf.mxu0
        %v2086 = vadd.f32 0.0, %v2085
        %2087 = vmatprep.mubr.bf16.mxu0 %v682
        %2088 = vmatmul.mubr.bf16.gmra.mxu0 %v681
        %v2089 = vpop.f32.mrf.mxu0
        %v2090 = vadd.f32 0.0, %v2089
        %v2091 = vpop.f32.mrf.mxu0
        %v2092 = vadd.f32 0.0, %v2091
        %v2093 = vpop.f32.mrf.mxu0
        %v2094 = vadd.f32 0.0, %v2093
        %v2095 = vpop.f32.mrf.mxu0
        %v2096 = vadd.f32 0.0, %v2095
        %2097 = vmatprep.mubr.bf16.mxu0 %v686
        %2098 = vmatmul.mubr.bf16.gmra.mxu0 %v685
        %v2099 = vpop.f32.mrf.mxu0
        %v2100 = vadd.f32 0.0, %v2099
        %v2101 = vpop.f32.mrf.mxu0
        %v2102 = vadd.f32 0.0, %v2101
        %v2103 = vpop.f32.mrf.mxu0
        %v2104 = vadd.f32 0.0, %v2103
        %v2105 = vpop.f32.mrf.mxu0
        %v2106 = vadd.f32 0.0, %v2105
        %2107 = vmatprep.mubr.bf16.mxu0 %v690
        %2108 = vmatmul.mubr.bf16.gmra.mxu0 %v689
        %v2109 = vpop.f32.mrf.mxu0
        %v2110 = vadd.f32 0.0, %v2109
        %v2111 = vpop.f32.mrf.mxu0
        %v2112 = vadd.f32 0.0, %v2111
        %v2113 = vpop.f32.mrf.mxu0
        %v2114 = vadd.f32 0.0, %v2113
        %v2115 = vpop.f32.mrf.mxu0
        %v2116 = vadd.f32 0.0, %v2115
        %2117 = vdwg.mxu0
        %2118 = vmatprep.subr.bf16.mxu0 %v1678
        %2119 = vmatpush1.bf16.msra.mxu0 %v1677
        %2120 = vmatprep.subr.bf16.mxu0 %v1670
        %2121 = vmatpush1.bf16.msra.mxu0 %v1669
        %2122 = vmatprep.subr.bf16.mxu0 %v1662
        %2123 = vmatpush1.bf16.msra.mxu0 %v1661
        %2124 = vmatprep.subr.bf16.mxu0 %v1654
        %2125 = vmatpush1.bf16.msra.mxu0 %v1653
        %2126 = vmatprep.subr.bf16.mxu0 %v1646
        %2127 = vmatpush1.bf16.msra.mxu0 %v1645
        %2128 = vmatprep.subr.bf16.mxu0 %v1638
        %2129 = vmatpush1.bf16.msra.mxu0 %v1637
        %2130 = vmatprep.subr.bf16.mxu0 %v1630
        %2131 = vmatpush1.bf16.msra.mxu0 %v1629
        %2132 = vmatprep.subr.bf16.mxu0 %v1622
        %2133 = vmatpush1.bf16.msra.mxu0 %v1621
        %2134 = vmatprep.subr.bf16.mxu0 %v1742
        %2135 = vmatpush2.bf16.msra.mxu0 %v1741
        %2136 = vmatprep.subr.bf16.mxu0 %v1734
        %2137 = vmatpush2.bf16.msra.mxu0 %v1733
        %2138 = vmatprep.subr.bf16.mxu0 %v1726
        %2139 = vmatpush2.bf16.msra.mxu0 %v1725
        %2140 = vmatprep.subr.bf16.mxu0 %v1718
        %2141 = vmatpush2.bf16.msra.mxu0 %v1717
        %2142 = vmatprep.subr.bf16.mxu0 %v1710
        %2143 = vmatpush2.bf16.msra.mxu0 %v1709
        %2144 = vmatprep.subr.bf16.mxu0 %v1702
        %2145 = vmatpush2.bf16.msra.mxu0 %v1701
        %2146 = vmatprep.subr.bf16.mxu0 %v1694
        %2147 = vmatpush2.bf16.msra.mxu0 %v1693
        %2148 = vmatprep.subr.bf16.mxu0 %v1686
        %2149 = vmatpush2.bf16.msra.mxu0 %v1685
        %2150 = vmatprep.mubr.bf16.mxu0 %v664
        %2151 = vmatmul.mubr.bf16.gmra.mxu0 %v663
        %v2152 = vpop.f32.mrf.mxu0
        %v2153 = vadd.f32 %v2040, %v2152
        %v2154 = vpop.f32.mrf.mxu0
        %v2155 = vadd.f32 %v2042, %v2154
        %v2156 = vpop.f32.mrf.mxu0
        %v2157 = vadd.f32 %v2044, %v2156
        %v2158 = vpop.f32.mrf.mxu0
        %v2159 = vadd.f32 %v2046, %v2158
        %2160 = vmatprep.mubr.bf16.mxu0 %v668
        %2161 = vmatmul.mubr.bf16.gmra.mxu0 %v667
        %v2162 = vpop.f32.mrf.mxu0
        %v2163 = vadd.f32 %v2050, %v2162
        %v2164 = vpop.f32.mrf.mxu0
        %v2165 = vadd.f32 %v2052, %v2164
        %v2166 = vpop.f32.mrf.mxu0
        %v2167 = vadd.f32 %v2054, %v2166
        %v2168 = vpop.f32.mrf.mxu0
        %v2169 = vadd.f32 %v2056, %v2168
        %2170 = vmatprep.mubr.bf16.mxu0 %v672
        %2171 = vmatmul.mubr.bf16.gmra.mxu0 %v671
        %v2172 = vpop.f32.mrf.mxu0
        %v2173 = vadd.f32 %v2060, %v2172
        %v2174 = vpop.f32.mrf.mxu0
        %v2175 = vadd.f32 %v2062, %v2174
        %v2176 = vpop.f32.mrf.mxu0
        %v2177 = vadd.f32 %v2064, %v2176
        %v2178 = vpop.f32.mrf.mxu0
        %v2179 = vadd.f32 %v2066, %v2178
        %2180 = vmatprep.mubr.bf16.mxu0 %v676
        %2181 = vmatmul.mubr.bf16.gmra.mxu0 %v675
        %v2182 = vpop.f32.mrf.mxu0
        %v2183 = vadd.f32 %v2070, %v2182
        %v2184 = vpop.f32.mrf.mxu0
        %v2185 = vadd.f32 %v2072, %v2184
        %v2186 = vpop.f32.mrf.mxu0
        %v2187 = vadd.f32 %v2074, %v2186
        %v2188 = vpop.f32.mrf.mxu0
        %v2189 = vadd.f32 %v2076, %v2188
        %2190 = vmatprep.mubr.bf16.mxu0 %v680
        %2191 = vmatmul.mubr.bf16.gmra.mxu0 %v679
        %v2192 = vpop.f32.mrf.mxu0
        %v2193 = vadd.f32 %v2080, %v2192
        %v2194 = vpop.f32.mrf.mxu0
        %v2195 = vadd.f32 %v2082, %v2194
        %v2196 = vpop.f32.mrf.mxu0
        %v2197 = vadd.f32 %v2084, %v2196
        %v2198 = vpop.f32.mrf.mxu0
        %v2199 = vadd.f32 %v2086, %v2198
        %2200 = vmatprep.mubr.bf16.mxu0 %v684
        %2201 = vmatmul.mubr.bf16.gmra.mxu0 %v683
        %v2202 = vpop.f32.mrf.mxu0
        %v2203 = vadd.f32 %v2090, %v2202
        %v2204 = vpop.f32.mrf.mxu0
        %v2205 = vadd.f32 %v2092, %v2204
        %v2206 = vpop.f32.mrf.mxu0
        %v2207 = vadd.f32 %v2094, %v2206
        %v2208 = vpop.f32.mrf.mxu0
        %v2209 = vadd.f32 %v2096, %v2208
        %2210 = vmatprep.mubr.bf16.mxu0 %v688
        %2211 = vmatmul.mubr.bf16.gmra.mxu0 %v687
        %v2212 = vpop.f32.mrf.mxu0
        %v2213 = vadd.f32 %v2100, %v2212
        %v2214 = vpop.f32.mrf.mxu0
        %v2215 = vadd.f32 %v2102, %v2214
        %v2216 = vpop.f32.mrf.mxu0
        %v2217 = vadd.f32 %v2104, %v2216
        %v2218 = vpop.f32.mrf.mxu0
        %v2219 = vadd.f32 %v2106, %v2218
        %2220 = vmatprep.mubr.bf16.mxu0 %v692
        %2221 = vmatmul.mubr.bf16.gmra.mxu0 %v691
        %v2222 = vpop.f32.mrf.mxu0
        %v2223 = vadd.f32 %v2110, %v2222
        %v2224 = vpop.f32.mrf.mxu0
        %v2225 = vadd.f32 %v2112, %v2224
        %v2226 = vpop.f32.mrf.mxu0
        %v2227 = vadd.f32 %v2114, %v2226
        %v2228 = vpop.f32.mrf.mxu0
        %v2229 = vadd.f32 %v2116, %v2228
        %2230 = vdwg.mxu0
        %2231 = vmatprep.subr.bf16.mxu0 %v1552
        %2232 = vmatpush1.bf16.msra.mxu0 %v1551
        %2233 = vmatprep.subr.bf16.mxu0 %v1544
        %2234 = vmatpush1.bf16.msra.mxu0 %v1543
        %2235 = vmatprep.subr.bf16.mxu0 %v1536
        %2236 = vmatpush1.bf16.msra.mxu0 %v1535
        %2237 = vmatprep.subr.bf16.mxu0 %v1528
        %2238 = vmatpush1.bf16.msra.mxu0 %v1527
        %2239 = vmatprep.subr.bf16.mxu0 %v1520
        %2240 = vmatpush1.bf16.msra.mxu0 %v1519
        %2241 = vmatprep.subr.bf16.mxu0 %v1512
        %2242 = vmatpush1.bf16.msra.mxu0 %v1511
        %2243 = vmatprep.subr.bf16.mxu0 %v1504
        %2244 = vmatpush1.bf16.msra.mxu0 %v1503
        %2245 = vmatprep.subr.bf16.mxu0 %v1496
        %2246 = vmatpush1.bf16.msra.mxu0 %v1495
        %2247 = vmatprep.subr.bf16.mxu0 %v1616
        %2248 = vmatpush2.bf16.msra.mxu0 %v1615
        %2249 = vmatprep.subr.bf16.mxu0 %v1608
        %2250 = vmatpush2.bf16.msra.mxu0 %v1607
        %2251 = vmatprep.subr.bf16.mxu0 %v1600
        %2252 = vmatpush2.bf16.msra.mxu0 %v1599
        %2253 = vmatprep.subr.bf16.mxu0 %v1592
        %2254 = vmatpush2.bf16.msra.mxu0 %v1591
        %2255 = vmatprep.subr.bf16.mxu0 %v1584
        %2256 = vmatpush2.bf16.msra.mxu0 %v1583
        %2257 = vmatprep.subr.bf16.mxu0 %v1576
        %2258 = vmatpush2.bf16.msra.mxu0 %v1575
        %2259 = vmatprep.subr.bf16.mxu0 %v1568
        %2260 = vmatpush2.bf16.msra.mxu0 %v1567
        %2261 = vmatprep.subr.bf16.mxu0 %v1560
        %2262 = vmatpush2.bf16.msra.mxu0 %v1559
        %2263 = vmatprep.mubr.bf16.mxu0 %v662
        %2264 = vmatmul.mubr.bf16.gmra.mxu0 %v661
        %v2265 = vpop.f32.mrf.mxu0
        %v2266 = vadd.f32 0.0, %v2265
        %v2267 = vpop.f32.mrf.mxu0
        %v2268 = vadd.f32 0.0, %v2267
        %v2269 = vpop.f32.mrf.mxu0
        %v2270 = vadd.f32 0.0, %v2269
        %v2271 = vpop.f32.mrf.mxu0
        %v2272 = vadd.f32 0.0, %v2271
        %2273 = vmatprep.mubr.bf16.mxu0 %v666
        %2274 = vmatmul.mubr.bf16.gmra.mxu0 %v665
        %v2275 = vpop.f32.mrf.mxu0
        %v2276 = vadd.f32 0.0, %v2275
        %v2277 = vpop.f32.mrf.mxu0
        %v2278 = vadd.f32 0.0, %v2277
        %v2279 = vpop.f32.mrf.mxu0
        %v2280 = vadd.f32 0.0, %v2279
        %v2281 = vpop.f32.mrf.mxu0
        %v2282 = vadd.f32 0.0, %v2281
        %2283 = vmatprep.mubr.bf16.mxu0 %v670
        %2284 = vmatmul.mubr.bf16.gmra.mxu0 %v669
        %v2285 = vpop.f32.mrf.mxu0
        %v2286 = vadd.f32 0.0, %v2285
        %v2287 = vpop.f32.mrf.mxu0
        %v2288 = vadd.f32 0.0, %v2287
        %v2289 = vpop.f32.mrf.mxu0
        %v2290 = vadd.f32 0.0, %v2289
        %v2291 = vpop.f32.mrf.mxu0
        %v2292 = vadd.f32 0.0, %v2291
        %2293 = vmatprep.mubr.bf16.mxu0 %v674
        %2294 = vmatmul.mubr.bf16.gmra.mxu0 %v673
        %v2295 = vpop.f32.mrf.mxu0
        %v2296 = vadd.f32 0.0, %v2295
        %v2297 = vpop.f32.mrf.mxu0
        %v2298 = vadd.f32 0.0, %v2297
        %v2299 = vpop.f32.mrf.mxu0
        %v2300 = vadd.f32 0.0, %v2299
        %v2301 = vpop.f32.mrf.mxu0
        %v2302 = vadd.f32 0.0, %v2301
        %2303 = vmatprep.mubr.bf16.mxu0 %v678
        %2304 = vmatmul.mubr.bf16.gmra.mxu0 %v677
        %v2305 = vpop.f32.mrf.mxu0
        %v2306 = vadd.f32 0.0, %v2305
        %v2307 = vpop.f32.mrf.mxu0
        %v2308 = vadd.f32 0.0, %v2307
        %v2309 = vpop.f32.mrf.mxu0
        %v2310 = vadd.f32 0.0, %v2309
        %v2311 = vpop.f32.mrf.mxu0
        %v2312 = vadd.f32 0.0, %v2311
        %2313 = vmatprep.mubr.bf16.mxu0 %v682
        %2314 = vmatmul.mubr.bf16.gmra.mxu0 %v681
        %v2315 = vpop.f32.mrf.mxu0
        %v2316 = vadd.f32 0.0, %v2315
        %v2317 = vpop.f32.mrf.mxu0
        %v2318 = vadd.f32 0.0, %v2317
        %v2319 = vpop.f32.mrf.mxu0
        %v2320 = vadd.f32 0.0, %v2319
        %v2321 = vpop.f32.mrf.mxu0
        %v2322 = vadd.f32 0.0, %v2321
        %2323 = vmatprep.mubr.bf16.mxu0 %v686
        %2324 = vmatmul.mubr.bf16.gmra.mxu0 %v685
        %v2325 = vpop.f32.mrf.mxu0
        %v2326 = vadd.f32 0.0, %v2325
        %v2327 = vpop.f32.mrf.mxu0
        %v2328 = vadd.f32 0.0, %v2327
        %v2329 = vpop.f32.mrf.mxu0
        %v2330 = vadd.f32 0.0, %v2329
        %v2331 = vpop.f32.mrf.mxu0
        %v2332 = vadd.f32 0.0, %v2331
        %2333 = vmatprep.mubr.bf16.mxu0 %v690
        %2334 = vmatmul.mubr.bf16.gmra.mxu0 %v689
        %v2335 = vpop.f32.mrf.mxu0
        %v2336 = vadd.f32 0.0, %v2335
        %v2337 = vpop.f32.mrf.mxu0
        %v2338 = vadd.f32 0.0, %v2337
        %v2339 = vpop.f32.mrf.mxu0
        %v2340 = vadd.f32 0.0, %v2339
        %v2341 = vpop.f32.mrf.mxu0
        %v2342 = vadd.f32 0.0, %v2341
        %2343 = vdwg.mxu0
        %2344 = vmatprep.subr.bf16.mxu0 %v1680
        %2345 = vmatpush1.bf16.msra.mxu0 %v1679
        %2346 = vmatprep.subr.bf16.mxu0 %v1672
        %2347 = vmatpush1.bf16.msra.mxu0 %v1671
        %2348 = vmatprep.subr.bf16.mxu0 %v1664
        %2349 = vmatpush1.bf16.msra.mxu0 %v1663
        %2350 = vmatprep.subr.bf16.mxu0 %v1656
        %2351 = vmatpush1.bf16.msra.mxu0 %v1655
        %2352 = vmatprep.subr.bf16.mxu0 %v1648
        %2353 = vmatpush1.bf16.msra.mxu0 %v1647
        %2354 = vmatprep.subr.bf16.mxu0 %v1640
        %2355 = vmatpush1.bf16.msra.mxu0 %v1639
        %2356 = vmatprep.subr.bf16.mxu0 %v1632
        %2357 = vmatpush1.bf16.msra.mxu0 %v1631
        %2358 = vmatprep.subr.bf16.mxu0 %v1624
        %2359 = vmatpush1.bf16.msra.mxu0 %v1623
        %2360 = vmatprep.subr.bf16.mxu0 %v1744
        %2361 = vmatpush2.bf16.msra.mxu0 %v1743
        %2362 = vmatprep.subr.bf16.mxu0 %v1736
        %2363 = vmatpush2.bf16.msra.mxu0 %v1735
        %2364 = vmatprep.subr.bf16.mxu0 %v1728
        %2365 = vmatpush2.bf16.msra.mxu0 %v1727
        %2366 = vmatprep.subr.bf16.mxu0 %v1720
        %2367 = vmatpush2.bf16.msra.mxu0 %v1719
        %2368 = vmatprep.subr.bf16.mxu0 %v1712
        %2369 = vmatpush2.bf16.msra.mxu0 %v1711
        %2370 = vmatprep.subr.bf16.mxu0 %v1704
        %2371 = vmatpush2.bf16.msra.mxu0 %v1703
        %2372 = vmatprep.subr.bf16.mxu0 %v1696
        %2373 = vmatpush2.bf16.msra.mxu0 %v1695
        %2374 = vmatprep.subr.bf16.mxu0 %v1688
        %2375 = vmatpush2.bf16.msra.mxu0 %v1687
        %2376 = vmatprep.mubr.bf16.mxu0 %v664
        %2377 = vmatmul.mubr.bf16.gmra.mxu0 %v663
        %v2378 = vpop.f32.mrf.mxu0
        %v2379 = vadd.f32 %v2266, %v2378
        %v2380 = vpop.f32.mrf.mxu0
        %v2381 = vadd.f32 %v2268, %v2380
        %v2382 = vpop.f32.mrf.mxu0
        %v2383 = vadd.f32 %v2270, %v2382
        %v2384 = vpop.f32.mrf.mxu0
        %v2385 = vadd.f32 %v2272, %v2384
        %2386 = vmatprep.mubr.bf16.mxu0 %v668
        %2387 = vmatmul.mubr.bf16.gmra.mxu0 %v667
        %v2388 = vpop.f32.mrf.mxu0
        %v2389 = vadd.f32 %v2276, %v2388
        %v2390 = vpop.f32.mrf.mxu0
        %v2391 = vadd.f32 %v2278, %v2390
        %v2392 = vpop.f32.mrf.mxu0
        %v2393 = vadd.f32 %v2280, %v2392
        %v2394 = vpop.f32.mrf.mxu0
        %v2395 = vadd.f32 %v2282, %v2394
        %2396 = vmatprep.mubr.bf16.mxu0 %v672
        %2397 = vmatmul.mubr.bf16.gmra.mxu0 %v671
        %v2398 = vpop.f32.mrf.mxu0
        %v2399 = vadd.f32 %v2286, %v2398
        %v2400 = vpop.f32.mrf.mxu0
        %v2401 = vadd.f32 %v2288, %v2400
        %v2402 = vpop.f32.mrf.mxu0
        %v2403 = vadd.f32 %v2290, %v2402
        %v2404 = vpop.f32.mrf.mxu0
        %v2405 = vadd.f32 %v2292, %v2404
        %2406 = vmatprep.mubr.bf16.mxu0 %v676
        %2407 = vmatmul.mubr.bf16.gmra.mxu0 %v675
        %v2408 = vpop.f32.mrf.mxu0
        %v2409 = vadd.f32 %v2296, %v2408
        %v2410 = vpop.f32.mrf.mxu0
        %v2411 = vadd.f32 %v2298, %v2410
        %v2412 = vpop.f32.mrf.mxu0
        %v2413 = vadd.f32 %v2300, %v2412
        %v2414 = vpop.f32.mrf.mxu0
        %v2415 = vadd.f32 %v2302, %v2414
        %2416 = vmatprep.mubr.bf16.mxu0 %v680
        %2417 = vmatmul.mubr.bf16.gmra.mxu0 %v679
        %v2418 = vpop.f32.mrf.mxu0
        %v2419 = vadd.f32 %v2306, %v2418
        %v2420 = vpop.f32.mrf.mxu0
        %v2421 = vadd.f32 %v2308, %v2420
        %v2422 = vpop.f32.mrf.mxu0
        %v2423 = vadd.f32 %v2310, %v2422
        %v2424 = vpop.f32.mrf.mxu0
        %v2425 = vadd.f32 %v2312, %v2424
        %2426 = vmatprep.mubr.bf16.mxu0 %v684
        %2427 = vmatmul.mubr.bf16.gmra.mxu0 %v683
        %v2428 = vpop.f32.mrf.mxu0
        %v2429 = vadd.f32 %v2316, %v2428
        %v2430 = vpop.f32.mrf.mxu0
        %v2431 = vadd.f32 %v2318, %v2430
        %v2432 = vpop.f32.mrf.mxu0
        %v2433 = vadd.f32 %v2320, %v2432
        %v2434 = vpop.f32.mrf.mxu0
        %v2435 = vadd.f32 %v2322, %v2434
        %2436 = vmatprep.mubr.bf16.mxu0 %v688
        %2437 = vmatmul.mubr.bf16.gmra.mxu0 %v687
        %v2438 = vpop.f32.mrf.mxu0
        %v2439 = vadd.f32 %v2326, %v2438
        %v2440 = vpop.f32.mrf.mxu0
        %v2441 = vadd.f32 %v2328, %v2440
        %v2442 = vpop.f32.mrf.mxu0
        %v2443 = vadd.f32 %v2330, %v2442
        %v2444 = vpop.f32.mrf.mxu0
        %v2445 = vadd.f32 %v2332, %v2444
        %2446 = vmatprep.mubr.bf16.mxu0 %v692
        %2447 = vmatmul.mubr.bf16.gmra.mxu0 %v691
        %v2448 = vpop.f32.mrf.mxu0
        %v2449 = vadd.f32 %v2336, %v2448
        %v2450 = vpop.f32.mrf.mxu0
        %v2451 = vadd.f32 %v2338, %v2450
        %v2452 = vpop.f32.mrf.mxu0
        %v2453 = vadd.f32 %v2340, %v2452
        %v2454 = vpop.f32.mrf.mxu0
        %v2455 = vadd.f32 %v2342, %v2454
        %2456 = vdwg.mxu0
        %2457 = vmatprep.subr.bf16.mxu0 %v1554
        %2458 = vmatpush1.bf16.msra.mxu0 %v1553
        %2459 = vmatprep.subr.bf16.mxu0 %v1546
        %2460 = vmatpush1.bf16.msra.mxu0 %v1545
        %2461 = vmatprep.subr.bf16.mxu0 %v1538
        %2462 = vmatpush1.bf16.msra.mxu0 %v1537
        %2463 = vmatprep.subr.bf16.mxu0 %v1530
        %2464 = vmatpush1.bf16.msra.mxu0 %v1529
        %2465 = vmatprep.subr.bf16.mxu0 %v1522
        %2466 = vmatpush1.bf16.msra.mxu0 %v1521
        %2467 = vmatprep.subr.bf16.mxu0 %v1514
        %2468 = vmatpush1.bf16.msra.mxu0 %v1513
        %2469 = vmatprep.subr.bf16.mxu0 %v1506
        %2470 = vmatpush1.bf16.msra.mxu0 %v1505
        %2471 = vmatprep.subr.bf16.mxu0 %v1498
        %2472 = vmatpush1.bf16.msra.mxu0 %v1497
        %2473 = vmatprep.subr.bf16.mxu0 %v1618
        %2474 = vmatpush2.bf16.msra.mxu0 %v1617
        %2475 = vmatprep.subr.bf16.mxu0 %v1610
        %2476 = vmatpush2.bf16.msra.mxu0 %v1609
        %2477 = vmatprep.subr.bf16.mxu0 %v1602
        %2478 = vmatpush2.bf16.msra.mxu0 %v1601
        %2479 = vmatprep.subr.bf16.mxu0 %v1594
        %2480 = vmatpush2.bf16.msra.mxu0 %v1593
        %2481 = vmatprep.subr.bf16.mxu0 %v1586
        %2482 = vmatpush2.bf16.msra.mxu0 %v1585
        %2483 = vmatprep.subr.bf16.mxu0 %v1578
        %2484 = vmatpush2.bf16.msra.mxu0 %v1577
        %2485 = vmatprep.subr.bf16.mxu0 %v1570
        %2486 = vmatpush2.bf16.msra.mxu0 %v1569
        %2487 = vmatprep.subr.bf16.mxu0 %v1562
        %2488 = vmatpush2.bf16.msra.mxu0 %v1561
        %2489 = vmatprep.mubr.bf16.mxu0 %v662
        %2490 = vmatmul.mubr.bf16.gmra.mxu0 %v661
        %v2491 = vpop.f32.mrf.mxu0
        %v2492 = vadd.f32 0.0, %v2491
        %v2493 = vpop.f32.mrf.mxu0
        %v2494 = vadd.f32 0.0, %v2493
        %v2495 = vpop.f32.mrf.mxu0
        %v2496 = vadd.f32 0.0, %v2495
        %v2497 = vpop.f32.mrf.mxu0
        %v2498 = vadd.f32 0.0, %v2497
        %2499 = vmatprep.mubr.bf16.mxu0 %v666
        %2500 = vmatmul.mubr.bf16.gmra.mxu0 %v665
        %v2501 = vpop.f32.mrf.mxu0
        %v2502 = vadd.f32 0.0, %v2501
        %v2503 = vpop.f32.mrf.mxu0
        %v2504 = vadd.f32 0.0, %v2503
        %v2505 = vpop.f32.mrf.mxu0
        %v2506 = vadd.f32 0.0, %v2505
        %v2507 = vpop.f32.mrf.mxu0
        %v2508 = vadd.f32 0.0, %v2507
        %2509 = vmatprep.mubr.bf16.mxu0 %v670
        %2510 = vmatmul.mubr.bf16.gmra.mxu0 %v669
        %v2511 = vpop.f32.mrf.mxu0
        %v2512 = vadd.f32 0.0, %v2511
        %v2513 = vpop.f32.mrf.mxu0
        %v2514 = vadd.f32 0.0, %v2513
        %v2515 = vpop.f32.mrf.mxu0
        %v2516 = vadd.f32 0.0, %v2515
        %v2517 = vpop.f32.mrf.mxu0
        %v2518 = vadd.f32 0.0, %v2517
        %2519 = vmatprep.mubr.bf16.mxu0 %v674
        %2520 = vmatmul.mubr.bf16.gmra.mxu0 %v673
        %v2521 = vpop.f32.mrf.mxu0
        %v2522 = vadd.f32 0.0, %v2521
        %v2523 = vpop.f32.mrf.mxu0
        %v2524 = vadd.f32 0.0, %v2523
        %v2525 = vpop.f32.mrf.mxu0
        %v2526 = vadd.f32 0.0, %v2525
        %v2527 = vpop.f32.mrf.mxu0
        %v2528 = vadd.f32 0.0, %v2527
        %2529 = vmatprep.mubr.bf16.mxu0 %v678
        %2530 = vmatmul.mubr.bf16.gmra.mxu0 %v677
        %v2531 = vpop.f32.mrf.mxu0
        %v2532 = vadd.f32 0.0, %v2531
        %v2533 = vpop.f32.mrf.mxu0
        %v2534 = vadd.f32 0.0, %v2533
        %v2535 = vpop.f32.mrf.mxu0
        %v2536 = vadd.f32 0.0, %v2535
        %v2537 = vpop.f32.mrf.mxu0
        %v2538 = vadd.f32 0.0, %v2537
        %2539 = vmatprep.mubr.bf16.mxu0 %v682
        %2540 = vmatmul.mubr.bf16.gmra.mxu0 %v681
        %v2541 = vpop.f32.mrf.mxu0
        %v2542 = vadd.f32 0.0, %v2541
        %v2543 = vpop.f32.mrf.mxu0
        %v2544 = vadd.f32 0.0, %v2543
        %v2545 = vpop.f32.mrf.mxu0
        %v2546 = vadd.f32 0.0, %v2545
        %v2547 = vpop.f32.mrf.mxu0
        %v2548 = vadd.f32 0.0, %v2547
        %2549 = vmatprep.mubr.bf16.mxu0 %v686
        %2550 = vmatmul.mubr.bf16.gmra.mxu0 %v685
        %v2551 = vpop.f32.mrf.mxu0
        %v2552 = vadd.f32 0.0, %v2551
        %v2553 = vpop.f32.mrf.mxu0
        %v2554 = vadd.f32 0.0, %v2553
        %v2555 = vpop.f32.mrf.mxu0
        %v2556 = vadd.f32 0.0, %v2555
        %v2557 = vpop.f32.mrf.mxu0
        %v2558 = vadd.f32 0.0, %v2557
        %2559 = vmatprep.mubr.bf16.mxu0 %v690
        %2560 = vmatmul.mubr.bf16.gmra.mxu0 %v689
        %v2561 = vpop.f32.mrf.mxu0
        %v2562 = vadd.f32 0.0, %v2561
        %v2563 = vpop.f32.mrf.mxu0
        %v2564 = vadd.f32 0.0, %v2563
        %v2565 = vpop.f32.mrf.mxu0
        %v2566 = vadd.f32 0.0, %v2565
        %v2567 = vpop.f32.mrf.mxu0
        %v2568 = vadd.f32 0.0, %v2567
        %2569 = vdwg.mxu0
        %2570 = vmatprep.subr.bf16.mxu0 %v1682
        %2571 = vmatpush1.bf16.msra.mxu0 %v1681
        %2572 = vmatprep.subr.bf16.mxu0 %v1674
        %2573 = vmatpush1.bf16.msra.mxu0 %v1673
        %2574 = vmatprep.subr.bf16.mxu0 %v1666
        %2575 = vmatpush1.bf16.msra.mxu0 %v1665
        %2576 = vmatprep.subr.bf16.mxu0 %v1658
        %2577 = vmatpush1.bf16.msra.mxu0 %v1657
        %2578 = vmatprep.subr.bf16.mxu0 %v1650
        %2579 = vmatpush1.bf16.msra.mxu0 %v1649
        %2580 = vmatprep.subr.bf16.mxu0 %v1642
        %2581 = vmatpush1.bf16.msra.mxu0 %v1641
        %2582 = vmatprep.subr.bf16.mxu0 %v1634
        %2583 = vmatpush1.bf16.msra.mxu0 %v1633
        %2584 = vmatprep.subr.bf16.mxu0 %v1626
        %2585 = vmatpush1.bf16.msra.mxu0 %v1625
        %2586 = vmatprep.subr.bf16.mxu0 %v1746
        %2587 = vmatpush2.bf16.msra.mxu0 %v1745
        %2588 = vmatprep.subr.bf16.mxu0 %v1738
        %2589 = vmatpush2.bf16.msra.mxu0 %v1737
        %2590 = vmatprep.subr.bf16.mxu0 %v1730
        %2591 = vmatpush2.bf16.msra.mxu0 %v1729
        %2592 = vmatprep.subr.bf16.mxu0 %v1722
        %2593 = vmatpush2.bf16.msra.mxu0 %v1721
        %2594 = vmatprep.subr.bf16.mxu0 %v1714
        %2595 = vmatpush2.bf16.msra.mxu0 %v1713
        %2596 = vmatprep.subr.bf16.mxu0 %v1706
        %2597 = vmatpush2.bf16.msra.mxu0 %v1705
        %2598 = vmatprep.subr.bf16.mxu0 %v1698
        %2599 = vmatpush2.bf16.msra.mxu0 %v1697
        %2600 = vmatprep.subr.bf16.mxu0 %v1690
        %2601 = vmatpush2.bf16.msra.mxu0 %v1689
        %2602 = vmatprep.mubr.bf16.mxu0 %v664
        %2603 = vmatmul.mubr.bf16.gmra.mxu0 %v663
        %v2604 = vpop.f32.mrf.mxu0
        %v2605 = vadd.f32 %v2492, %v2604
        %v2606 = vpop.f32.mrf.mxu0
        %v2607 = vadd.f32 %v2494, %v2606
        %v2608 = vpop.f32.mrf.mxu0
        %v2609 = vadd.f32 %v2496, %v2608
        %v2610 = vpop.f32.mrf.mxu0
        %v2611 = vadd.f32 %v2498, %v2610
        %2612 = vmatprep.mubr.bf16.mxu0 %v668
        %2613 = vmatmul.mubr.bf16.gmra.mxu0 %v667
        %v2614 = vpop.f32.mrf.mxu0
        %v2615 = vadd.f32 %v2502, %v2614
        %v2616 = vpop.f32.mrf.mxu0
        %v2617 = vadd.f32 %v2504, %v2616
        %v2618 = vpop.f32.mrf.mxu0
        %v2619 = vadd.f32 %v2506, %v2618
        %v2620 = vpop.f32.mrf.mxu0
        %v2621 = vadd.f32 %v2508, %v2620
        %2622 = vmatprep.mubr.bf16.mxu0 %v672
        %2623 = vmatmul.mubr.bf16.gmra.mxu0 %v671
        %v2624 = vpop.f32.mrf.mxu0
        %v2625 = vadd.f32 %v2512, %v2624
        %v2626 = vpop.f32.mrf.mxu0
        %v2627 = vadd.f32 %v2514, %v2626
        %v2628 = vpop.f32.mrf.mxu0
        %v2629 = vadd.f32 %v2516, %v2628
        %v2630 = vpop.f32.mrf.mxu0
        %v2631 = vadd.f32 %v2518, %v2630
        %2632 = vmatprep.mubr.bf16.mxu0 %v676
        %2633 = vmatmul.mubr.bf16.gmra.mxu0 %v675
        %v2634 = vpop.f32.mrf.mxu0
        %v2635 = vadd.f32 %v2522, %v2634
        %v2636 = vpop.f32.mrf.mxu0
        %v2637 = vadd.f32 %v2524, %v2636
        %v2638 = vpop.f32.mrf.mxu0
        %v2639 = vadd.f32 %v2526, %v2638
        %v2640 = vpop.f32.mrf.mxu0
        %v2641 = vadd.f32 %v2528, %v2640
        %2642 = vmatprep.mubr.bf16.mxu0 %v680
        %2643 = vmatmul.mubr.bf16.gmra.mxu0 %v679
        %v2644 = vpop.f32.mrf.mxu0
        %v2645 = vadd.f32 %v2532, %v2644
        %v2646 = vpop.f32.mrf.mxu0
        %v2647 = vadd.f32 %v2534, %v2646
        %v2648 = vpop.f32.mrf.mxu0
        %v2649 = vadd.f32 %v2536, %v2648
        %v2650 = vpop.f32.mrf.mxu0
        %v2651 = vadd.f32 %v2538, %v2650
        %2652 = vmatprep.mubr.bf16.mxu0 %v684
        %2653 = vmatmul.mubr.bf16.gmra.mxu0 %v683
        %v2654 = vpop.f32.mrf.mxu0
        %v2655 = vadd.f32 %v2542, %v2654
        %v2656 = vpop.f32.mrf.mxu0
        %v2657 = vadd.f32 %v2544, %v2656
        %v2658 = vpop.f32.mrf.mxu0
        %v2659 = vadd.f32 %v2546, %v2658
        %v2660 = vpop.f32.mrf.mxu0
        %v2661 = vadd.f32 %v2548, %v2660
        %2662 = vmatprep.mubr.bf16.mxu0 %v688
        %2663 = vmatmul.mubr.bf16.gmra.mxu0 %v687
        %v2664 = vpop.f32.mrf.mxu0
        %v2665 = vadd.f32 %v2552, %v2664
        %v2666 = vpop.f32.mrf.mxu0
        %v2667 = vadd.f32 %v2554, %v2666
        %v2668 = vpop.f32.mrf.mxu0
        %v2669 = vadd.f32 %v2556, %v2668
        %v2670 = vpop.f32.mrf.mxu0
        %v2671 = vadd.f32 %v2558, %v2670
        %2672 = vmatprep.mubr.bf16.mxu0 %v692
        %2673 = vmatmul.mubr.bf16.gmra.mxu0 %v691
        %v2674 = vpop.f32.mrf.mxu0
        %v2675 = vadd.f32 %v2562, %v2674
        %v2676 = vpop.f32.mrf.mxu0
        %v2677 = vadd.f32 %v2564, %v2676
        %v2678 = vpop.f32.mrf.mxu0
        %v2679 = vadd.f32 %v2566, %v2678
        %v2680 = vpop.f32.mrf.mxu0
        %v2681 = vadd.f32 %v2568, %v2680
        %2682 = vdwg.mxu0
        %2683 = vmatprep.subr.bf16.mxu0 %v1556
        %2684 = vmatpush1.bf16.msra.mxu0 %v1555
        %2685 = vmatprep.subr.bf16.mxu0 %v1548
        %2686 = vmatpush1.bf16.msra.mxu0 %v1547
        %2687 = vmatprep.subr.bf16.mxu0 %v1540
        %2688 = vmatpush1.bf16.msra.mxu0 %v1539
        %2689 = vmatprep.subr.bf16.mxu0 %v1532
        %2690 = vmatpush1.bf16.msra.mxu0 %v1531
        %2691 = vmatprep.subr.bf16.mxu0 %v1524
        %2692 = vmatpush1.bf16.msra.mxu0 %v1523
        %2693 = vmatprep.subr.bf16.mxu0 %v1516
        %2694 = vmatpush1.bf16.msra.mxu0 %v1515
        %2695 = vmatprep.subr.bf16.mxu0 %v1508
        %2696 = vmatpush1.bf16.msra.mxu0 %v1507
        %2697 = vmatprep.subr.bf16.mxu0 %v1500
        %2698 = vmatpush1.bf16.msra.mxu0 %v1499
        %2699 = vmatprep.subr.bf16.mxu0 %v1620
        %2700 = vmatpush2.bf16.msra.mxu0 %v1619
        %2701 = vmatprep.subr.bf16.mxu0 %v1612
        %2702 = vmatpush2.bf16.msra.mxu0 %v1611
        %2703 = vmatprep.subr.bf16.mxu0 %v1604
        %2704 = vmatpush2.bf16.msra.mxu0 %v1603
        %2705 = vmatprep.subr.bf16.mxu0 %v1596
        %2706 = vmatpush2.bf16.msra.mxu0 %v1595
        %2707 = vmatprep.subr.bf16.mxu0 %v1588
        %2708 = vmatpush2.bf16.msra.mxu0 %v1587
        %2709 = vmatprep.subr.bf16.mxu0 %v1580
        %2710 = vmatpush2.bf16.msra.mxu0 %v1579
        %2711 = vmatprep.subr.bf16.mxu0 %v1572
        %2712 = vmatpush2.bf16.msra.mxu0 %v1571
        %2713 = vmatprep.subr.bf16.mxu0 %v1564
        %2714 = vmatpush2.bf16.msra.mxu0 %v1563
        %2715 = vmatprep.mubr.bf16.mxu0 %v662
        %2716 = vmatmul.mubr.bf16.gmra.mxu0 %v661
        %v2717 = vpop.f32.mrf.mxu0
        %v2718 = vadd.f32 0.0, %v2717
        %v2719 = vpop.f32.mrf.mxu0
        %v2720 = vadd.f32 0.0, %v2719
        %v2721 = vpop.f32.mrf.mxu0
        %v2722 = vadd.f32 0.0, %v2721
        %v2723 = vpop.f32.mrf.mxu0
        %v2724 = vadd.f32 0.0, %v2723
        %2725 = vmatprep.mubr.bf16.mxu0 %v666
        %2726 = vmatmul.mubr.bf16.gmra.mxu0 %v665
        %v2727 = vpop.f32.mrf.mxu0
        %v2728 = vadd.f32 0.0, %v2727
        %v2729 = vpop.f32.mrf.mxu0
        %v2730 = vadd.f32 0.0, %v2729
        %v2731 = vpop.f32.mrf.mxu0
        %v2732 = vadd.f32 0.0, %v2731
        %v2733 = vpop.f32.mrf.mxu0
        %v2734 = vadd.f32 0.0, %v2733
        %2735 = vmatprep.mubr.bf16.mxu0 %v670
        %2736 = vmatmul.mubr.bf16.gmra.mxu0 %v669
        %v2737 = vpop.f32.mrf.mxu0
        %v2738 = vadd.f32 0.0, %v2737
        %v2739 = vpop.f32.mrf.mxu0
        %v2740 = vadd.f32 0.0, %v2739
        %v2741 = vpop.f32.mrf.mxu0
        %v2742 = vadd.f32 0.0, %v2741
        %v2743 = vpop.f32.mrf.mxu0
        %v2744 = vadd.f32 0.0, %v2743
        %2745 = vmatprep.mubr.bf16.mxu0 %v674
        %2746 = vmatmul.mubr.bf16.gmra.mxu0 %v673
        %v2747 = vpop.f32.mrf.mxu0
        %v2748 = vadd.f32 0.0, %v2747
        %v2749 = vpop.f32.mrf.mxu0
        %v2750 = vadd.f32 0.0, %v2749
        %v2751 = vpop.f32.mrf.mxu0
        %v2752 = vadd.f32 0.0, %v2751
        %v2753 = vpop.f32.mrf.mxu0
        %v2754 = vadd.f32 0.0, %v2753
        %2755 = vmatprep.mubr.bf16.mxu0 %v678
        %2756 = vmatmul.mubr.bf16.gmra.mxu0 %v677
        %v2757 = vpop.f32.mrf.mxu0
        %v2758 = vadd.f32 0.0, %v2757
        %v2759 = vpop.f32.mrf.mxu0
        %v2760 = vadd.f32 0.0, %v2759
        %v2761 = vpop.f32.mrf.mxu0
        %v2762 = vadd.f32 0.0, %v2761
        %v2763 = vpop.f32.mrf.mxu0
        %v2764 = vadd.f32 0.0, %v2763
        %2765 = vmatprep.mubr.bf16.mxu0 %v682
        %2766 = vmatmul.mubr.bf16.gmra.mxu0 %v681
        %v2767 = vpop.f32.mrf.mxu0
        %v2768 = vadd.f32 0.0, %v2767
        %v2769 = vpop.f32.mrf.mxu0
        %v2770 = vadd.f32 0.0, %v2769
        %v2771 = vpop.f32.mrf.mxu0
        %v2772 = vadd.f32 0.0, %v2771
        %v2773 = vpop.f32.mrf.mxu0
        %v2774 = vadd.f32 0.0, %v2773
        %2775 = vmatprep.mubr.bf16.mxu0 %v686
        %2776 = vmatmul.mubr.bf16.gmra.mxu0 %v685
        %v2777 = vpop.f32.mrf.mxu0
        %v2778 = vadd.f32 0.0, %v2777
        %v2779 = vpop.f32.mrf.mxu0
        %v2780 = vadd.f32 0.0, %v2779
        %v2781 = vpop.f32.mrf.mxu0
        %v2782 = vadd.f32 0.0, %v2781
        %v2783 = vpop.f32.mrf.mxu0
        %v2784 = vadd.f32 0.0, %v2783
        %2785 = vmatprep.mubr.bf16.mxu0 %v690
        %2786 = vmatmul.mubr.bf16.gmra.mxu0 %v689
        %v2787 = vpop.f32.mrf.mxu0
        %v2788 = vadd.f32 0.0, %v2787
        %v2789 = vpop.f32.mrf.mxu0
        %v2790 = vadd.f32 0.0, %v2789
        %v2791 = vpop.f32.mrf.mxu0
        %v2792 = vadd.f32 0.0, %v2791
        %v2793 = vpop.f32.mrf.mxu0
        %v2794 = vadd.f32 0.0, %v2793
        %2795 = vdwg.mxu0
        %2796 = vmatprep.subr.bf16.mxu0 %v1684
        %2797 = vmatpush1.bf16.msra.mxu0 %v1683
        %2798 = vmatprep.subr.bf16.mxu0 %v1676
        %2799 = vmatpush1.bf16.msra.mxu0 %v1675
        %2800 = vmatprep.subr.bf16.mxu0 %v1668
        %2801 = vmatpush1.bf16.msra.mxu0 %v1667
        %2802 = vmatprep.subr.bf16.mxu0 %v1660
        %2803 = vmatpush1.bf16.msra.mxu0 %v1659
        %2804 = vmatprep.subr.bf16.mxu0 %v1652
        %2805 = vmatpush1.bf16.msra.mxu0 %v1651
        %2806 = vmatprep.subr.bf16.mxu0 %v1644
        %2807 = vmatpush1.bf16.msra.mxu0 %v1643
        %2808 = vmatprep.subr.bf16.mxu0 %v1636
        %2809 = vmatpush1.bf16.msra.mxu0 %v1635
        %2810 = vmatprep.subr.bf16.mxu0 %v1628
        %2811 = vmatpush1.bf16.msra.mxu0 %v1627
        %2812 = vmatprep.subr.bf16.mxu0 %v1748
        %2813 = vmatpush2.bf16.msra.mxu0 %v1747
        %2814 = vmatprep.subr.bf16.mxu0 %v1740
        %2815 = vmatpush2.bf16.msra.mxu0 %v1739
        %2816 = vmatprep.subr.bf16.mxu0 %v1732
        %2817 = vmatpush2.bf16.msra.mxu0 %v1731
        %2818 = vmatprep.subr.bf16.mxu0 %v1724
        %2819 = vmatpush2.bf16.msra.mxu0 %v1723
        %2820 = vmatprep.subr.bf16.mxu0 %v1716
        %2821 = vmatpush2.bf16.msra.mxu0 %v1715
        %2822 = vmatprep.subr.bf16.mxu0 %v1708
        %2823 = vmatpush2.bf16.msra.mxu0 %v1707
        %2824 = vmatprep.subr.bf16.mxu0 %v1700
        %2825 = vmatpush2.bf16.msra.mxu0 %v1699
        %2826 = vmatprep.subr.bf16.mxu0 %v1692
        %2827 = vmatpush2.bf16.msra.mxu0 %v1691
        %2828 = vmatprep.mubr.bf16.mxu0 %v664
        %2829 = vmatmul.mubr.bf16.gmra.mxu0 %v663
        %v2830 = vpop.f32.mrf.mxu0
        %v2831 = vadd.f32 %v2718, %v2830
        %v2832 = vpop.f32.mrf.mxu0
        %v2833 = vadd.f32 %v2720, %v2832
        %v2834 = vpop.f32.mrf.mxu0
        %v2835 = vadd.f32 %v2722, %v2834
        %v2836 = vpop.f32.mrf.mxu0
        %v2837 = vadd.f32 %v2724, %v2836
        %2838 = vmatprep.mubr.bf16.mxu0 %v668
        %2839 = vmatmul.mubr.bf16.gmra.mxu0 %v667
        %v2840 = vpop.f32.mrf.mxu0
        %v2841 = vadd.f32 %v2728, %v2840
        %v2842 = vpop.f32.mrf.mxu0
        %v2843 = vadd.f32 %v2730, %v2842
        %v2844 = vpop.f32.mrf.mxu0
        %v2845 = vadd.f32 %v2732, %v2844
        %v2846 = vpop.f32.mrf.mxu0
        %v2847 = vadd.f32 %v2734, %v2846
        %2848 = vmatprep.mubr.bf16.mxu0 %v672
        %2849 = vmatmul.mubr.bf16.gmra.mxu0 %v671
        %v2850 = vpop.f32.mrf.mxu0
        %v2851 = vadd.f32 %v2738, %v2850
        %v2852 = vpop.f32.mrf.mxu0
        %v2853 = vadd.f32 %v2740, %v2852
        %v2854 = vpop.f32.mrf.mxu0
        %v2855 = vadd.f32 %v2742, %v2854
        %v2856 = vpop.f32.mrf.mxu0
        %v2857 = vadd.f32 %v2744, %v2856
        %2858 = vmatprep.mubr.bf16.mxu0 %v676
        %2859 = vmatmul.mubr.bf16.gmra.mxu0 %v675
        %v2860 = vpop.f32.mrf.mxu0
        %v2861 = vadd.f32 %v2748, %v2860
        %v2862 = vpop.f32.mrf.mxu0
        %v2863 = vadd.f32 %v2750, %v2862
        %v2864 = vpop.f32.mrf.mxu0
        %v2865 = vadd.f32 %v2752, %v2864
        %v2866 = vpop.f32.mrf.mxu0
        %v2867 = vadd.f32 %v2754, %v2866
        %2868 = vmatprep.mubr.bf16.mxu0 %v680
        %2869 = vmatmul.mubr.bf16.gmra.mxu0 %v679
        %v2870 = vpop.f32.mrf.mxu0
        %v2871 = vadd.f32 %v2758, %v2870
        %v2872 = vpop.f32.mrf.mxu0
        %v2873 = vadd.f32 %v2760, %v2872
        %v2874 = vpop.f32.mrf.mxu0
        %v2875 = vadd.f32 %v2762, %v2874
        %v2876 = vpop.f32.mrf.mxu0
        %v2877 = vadd.f32 %v2764, %v2876
        %2878 = vmatprep.mubr.bf16.mxu0 %v684
        %2879 = vmatmul.mubr.bf16.gmra.mxu0 %v683
        %v2880 = vpop.f32.mrf.mxu0
        %v2881 = vadd.f32 %v2768, %v2880
        %v2882 = vpop.f32.mrf.mxu0
        %v2883 = vadd.f32 %v2770, %v2882
        %v2884 = vpop.f32.mrf.mxu0
        %v2885 = vadd.f32 %v2772, %v2884
        %v2886 = vpop.f32.mrf.mxu0
        %v2887 = vadd.f32 %v2774, %v2886
        %2888 = vmatprep.mubr.bf16.mxu0 %v688
        %2889 = vmatmul.mubr.bf16.gmra.mxu0 %v687
        %v2890 = vpop.f32.mrf.mxu0
        %v2891 = vadd.f32 %v2778, %v2890
        %v2892 = vpop.f32.mrf.mxu0
        %v2893 = vadd.f32 %v2780, %v2892
        %v2894 = vpop.f32.mrf.mxu0
        %v2895 = vadd.f32 %v2782, %v2894
        %v2896 = vpop.f32.mrf.mxu0
        %v2897 = vadd.f32 %v2784, %v2896
        %2898 = vmatprep.mubr.bf16.mxu0 %v692
        %2899 = vmatmul.mubr.bf16.gmra.mxu0 %v691
        %v2900 = vpop.f32.mrf.mxu0
        %v2901 = vadd.f32 %v2788, %v2900
        %v2902 = vpop.f32.mrf.mxu0
        %v2903 = vadd.f32 %v2790, %v2902
        %v2904 = vpop.f32.mrf.mxu0
        %v2905 = vadd.f32 %v2792, %v2904
        %v2906 = vpop.f32.mrf.mxu0
        %v2907 = vadd.f32 %v2794, %v2906
        %2908 = vdwg.mxu0
        %v2909 = vld [vmem:[%s1] sm:$0xff]
        %v2910 = vld [vmem:[%s1 + $0x8] sm:$0xff]
        %v2911 = vld [vmem:[%s1 + $0x10] sm:$0xff]
        %v2912 = vld [vmem:[%s1 + $0x18] sm:$0xff]
        %v2913 = vld [vmem:[%s1 + $0x20] sm:$0xff]
        %v2914 = vld [vmem:[%s1 + $0x28] sm:$0xff]
        %v2915 = vld [vmem:[%s1 + $0x30] sm:$0xff]
        %v2916 = vld [vmem:[%s1 + $0x38] sm:$0xff]
        %v2917 = vld [vmem:[%s1 + $0x40] sm:$0xff]
        %v2918 = vld [vmem:[%s1 + $0x48] sm:$0xff]
        %v2919 = vld [vmem:[%s1 + $0x50] sm:$0xff]
        %v2920 = vld [vmem:[%s1 + $0x58] sm:$0xff]
        %v2921 = vld [vmem:[%s1 + $0x60] sm:$0xff]
        %v2922 = vld [vmem:[%s1 + $0x68] sm:$0xff]
        %v2923 = vld [vmem:[%s1 + $0x70] sm:$0xff]
        %v2924 = vld [vmem:[%s1 + $0x78] sm:$0xff]
        %v2925 = vld [vmem:[%s1 + $0x80] sm:$0xff]
        %v2926 = vld [vmem:[%s1 + $0x88] sm:$0xff]
        %v2927 = vld [vmem:[%s1 + $0x90] sm:$0xff]
        %v2928 = vld [vmem:[%s1 + $0x98] sm:$0xff]
        %v2929 = vld [vmem:[%s1 + $0xa0] sm:$0xff]
        %v2930 = vld [vmem:[%s1 + $0xa8] sm:$0xff]
        %v2931 = vld [vmem:[%s1 + $0xb0] sm:$0xff]
        %v2932 = vld [vmem:[%s1 + $0xb8] sm:$0xff]
        %v2933 = vld [vmem:[%s1 + $0xc0] sm:$0xff]
        %v2934 = vld [vmem:[%s1 + $0xc8] sm:$0xff]
        %v2935 = vld [vmem:[%s1 + $0xd0] sm:$0xff]
        %v2936 = vld [vmem:[%s1 + $0xd8] sm:$0xff]
        %v2937 = vld [vmem:[%s1 + $0xe0] sm:$0xff]
        %v2938 = vld [vmem:[%s1 + $0xe8] sm:$0xff]
        %v2939 = vld [vmem:[%s1 + $0xf0] sm:$0xff]
        %v2940 = vld [vmem:[%s1 + $0xf8] sm:$0xff]
        %v2941 = vld [vmem:[%s1 + $0x100] sm:$0xff]
        %v2942 = vld [vmem:[%s1 + $0x108] sm:$0xff]
        %v2943 = vld [vmem:[%s1 + $0x110] sm:$0xff]
        %v2944 = vld [vmem:[%s1 + $0x118] sm:$0xff]
        %v2945 = vld [vmem:[%s1 + $0x120] sm:$0xff]
        %v2946 = vld [vmem:[%s1 + $0x128] sm:$0xff]
        %v2947 = vld [vmem:[%s1 + $0x130] sm:$0xff]
        %v2948 = vld [vmem:[%s1 + $0x138] sm:$0xff]
        %v2949 = vld [vmem:[%s1 + $0x140] sm:$0xff]
        %v2950 = vld [vmem:[%s1 + $0x148] sm:$0xff]
        %v2951 = vld [vmem:[%s1 + $0x150] sm:$0xff]
        %v2952 = vld [vmem:[%s1 + $0x158] sm:$0xff]
        %v2953 = vld [vmem:[%s1 + $0x160] sm:$0xff]
        %v2954 = vld [vmem:[%s1 + $0x168] sm:$0xff]
        %v2955 = vld [vmem:[%s1 + $0x170] sm:$0xff]
        %v2956 = vld [vmem:[%s1 + $0x178] sm:$0xff]
        %v2957 = vld [vmem:[%s1 + $0x180] sm:$0xff]
        %v2958 = vld [vmem:[%s1 + $0x188] sm:$0xff]
        %v2959 = vld [vmem:[%s1 + $0x190] sm:$0xff]
        %v2960 = vld [vmem:[%s1 + $0x198] sm:$0xff]
        %v2961 = vld [vmem:[%s1 + $0x1a0] sm:$0xff]
        %v2962 = vld [vmem:[%s1 + $0x1a8] sm:$0xff]
        %v2963 = vld [vmem:[%s1 + $0x1b0] sm:$0xff]
        %v2964 = vld [vmem:[%s1 + $0x1b8] sm:$0xff]
        %v2965 = vld [vmem:[%s1 + $0x1c0] sm:$0xff]
        %v2966 = vld [vmem:[%s1 + $0x1c8] sm:$0xff]
        %v2967 = vld [vmem:[%s1 + $0x1d0] sm:$0xff]
        %v2968 = vld [vmem:[%s1 + $0x1d8] sm:$0xff]
        %v2969 = vld [vmem:[%s1 + $0x1e0] sm:$0xff]
        %v2970 = vld [vmem:[%s1 + $0x1e8] sm:$0xff]
        %v2971 = vld [vmem:[%s1 + $0x1f0] sm:$0xff]
        %v2972 = vld [vmem:[%s1 + $0x1f8] sm:$0xff]
        %v2973 = vld [vmem:[%s1 + $0x200] sm:$0xff]
        %v2974 = vld [vmem:[%s1 + $0x208] sm:$0xff]
        %v2975 = vld [vmem:[%s1 + $0x210] sm:$0xff]
        %v2976 = vld [vmem:[%s1 + $0x218] sm:$0xff]
        %v2977 = vld [vmem:[%s1 + $0x220] sm:$0xff]
        %v2978 = vld [vmem:[%s1 + $0x228] sm:$0xff]
        %v2979 = vld [vmem:[%s1 + $0x230] sm:$0xff]
        %v2980 = vld [vmem:[%s1 + $0x238] sm:$0xff]
        %v2981 = vld [vmem:[%s1 + $0x240] sm:$0xff]
        %v2982 = vld [vmem:[%s1 + $0x248] sm:$0xff]
        %v2983 = vld [vmem:[%s1 + $0x250] sm:$0xff]
        %v2984 = vld [vmem:[%s1 + $0x258] sm:$0xff]
        %v2985 = vld [vmem:[%s1 + $0x260] sm:$0xff]
        %v2986 = vld [vmem:[%s1 + $0x268] sm:$0xff]
        %v2987 = vld [vmem:[%s1 + $0x270] sm:$0xff]
        %v2988 = vld [vmem:[%s1 + $0x278] sm:$0xff]
        %v2989 = vld [vmem:[%s1 + $0x280] sm:$0xff]
        %v2990 = vld [vmem:[%s1 + $0x288] sm:$0xff]
        %v2991 = vld [vmem:[%s1 + $0x290] sm:$0xff]
        %v2992 = vld [vmem:[%s1 + $0x298] sm:$0xff]
        %v2993 = vld [vmem:[%s1 + $0x2a0] sm:$0xff]
        %v2994 = vld [vmem:[%s1 + $0x2a8] sm:$0xff]
        %v2995 = vld [vmem:[%s1 + $0x2b0] sm:$0xff]
        %v2996 = vld [vmem:[%s1 + $0x2b8] sm:$0xff]
        %v2997 = vld [vmem:[%s1 + $0x2c0] sm:$0xff]
        %v2998 = vld [vmem:[%s1 + $0x2c8] sm:$0xff]
        %v2999 = vld [vmem:[%s1 + $0x2d0] sm:$0xff]
        %v3000 = vld [vmem:[%s1 + $0x2d8] sm:$0xff]
        %v3001 = vld [vmem:[%s1 + $0x2e0] sm:$0xff]
        %v3002 = vld [vmem:[%s1 + $0x2e8] sm:$0xff]
        %v3003 = vld [vmem:[%s1 + $0x2f0] sm:$0xff]
        %v3004 = vld [vmem:[%s1 + $0x2f8] sm:$0xff]
        %v3005 = vld [vmem:[%s1 + $0x300] sm:$0xff]
        %v3006 = vld [vmem:[%s1 + $0x308] sm:$0xff]
        %v3007 = vld [vmem:[%s1 + $0x310] sm:$0xff]
        %v3008 = vld [vmem:[%s1 + $0x318] sm:$0xff]
        %v3009 = vld [vmem:[%s1 + $0x320] sm:$0xff]
        %v3010 = vld [vmem:[%s1 + $0x328] sm:$0xff]
        %v3011 = vld [vmem:[%s1 + $0x330] sm:$0xff]
        %v3012 = vld [vmem:[%s1 + $0x338] sm:$0xff]
        %v3013 = vld [vmem:[%s1 + $0x340] sm:$0xff]
        %v3014 = vld [vmem:[%s1 + $0x348] sm:$0xff]
        %v3015 = vld [vmem:[%s1 + $0x350] sm:$0xff]
        %v3016 = vld [vmem:[%s1 + $0x358] sm:$0xff]
        %v3017 = vld [vmem:[%s1 + $0x360] sm:$0xff]
        %v3018 = vld [vmem:[%s1 + $0x368] sm:$0xff]
        %v3019 = vld [vmem:[%s1 + $0x370] sm:$0xff]
        %v3020 = vld [vmem:[%s1 + $0x378] sm:$0xff]
        %v3021 = vld [vmem:[%s1 + $0x380] sm:$0xff]
        %v3022 = vld [vmem:[%s1 + $0x388] sm:$0xff]
        %v3023 = vld [vmem:[%s1 + $0x390] sm:$0xff]
        %v3024 = vld [vmem:[%s1 + $0x398] sm:$0xff]
        %v3025 = vld [vmem:[%s1 + $0x3a0] sm:$0xff]
        %v3026 = vld [vmem:[%s1 + $0x3a8] sm:$0xff]
        %v3027 = vld [vmem:[%s1 + $0x3b0] sm:$0xff]
        %v3028 = vld [vmem:[%s1 + $0x3b8] sm:$0xff]
        %v3029 = vld [vmem:[%s1 + $0x3c0] sm:$0xff]
        %v3030 = vld [vmem:[%s1 + $0x3c8] sm:$0xff]
        %v3031 = vld [vmem:[%s1 + $0x3d0] sm:$0xff]
        %v3032 = vld [vmem:[%s1 + $0x3d8] sm:$0xff]
        %v3033 = vld [vmem:[%s1 + $0x3e0] sm:$0xff]
        %v3034 = vld [vmem:[%s1 + $0x3e8] sm:$0xff]
        %v3035 = vld [vmem:[%s1 + $0x3f0] sm:$0xff]
        %v3036 = vld [vmem:[%s1 + $0x3f8] sm:$0xff]
        %v3069 = vunpack.c.l.b16 %v277
        %v3070 = vunpack.c.h.b16 %v277
        %v3071 = vunpack.c.l.b16 %v278
        %v3072 = vunpack.c.h.b16 %v278
        %v3073 = vunpack.c.l.b16 %v279
        %v3074 = vunpack.c.h.b16 %v279
        %v3075 = vunpack.c.l.b16 %v280
        %v3076 = vunpack.c.h.b16 %v280
        %v3077 = vunpack.c.l.b16 %v281
        %v3078 = vunpack.c.h.b16 %v281
        %v3079 = vunpack.c.l.b16 %v282
        %v3080 = vunpack.c.h.b16 %v282
        %v3081 = vunpack.c.l.b16 %v283
        %v3082 = vunpack.c.h.b16 %v283
        %v3083 = vunpack.c.l.b16 %v284
        %v3084 = vunpack.c.h.b16 %v284
        %v3085 = vunpack.c.l.b16 %v285
        %v3086 = vunpack.c.h.b16 %v285
        %v3087 = vunpack.c.l.b16 %v286
        %v3088 = vunpack.c.h.b16 %v286
        %v3089 = vunpack.c.l.b16 %v287
        %v3090 = vunpack.c.h.b16 %v287
        %v3091 = vunpack.c.l.b16 %v288
        %v3092 = vunpack.c.h.b16 %v288
        %v3093 = vunpack.c.l.b16 %v289
        %v3094 = vunpack.c.h.b16 %v289
        %v3095 = vunpack.c.l.b16 %v290
        %v3096 = vunpack.c.h.b16 %v290
        %v3097 = vunpack.c.l.b16 %v291
        %v3098 = vunpack.c.h.b16 %v291
        %v3099 = vunpack.c.l.b16 %v292
        %v3100 = vunpack.c.h.b16 %v292
        %v3101 = vunpack.c.l.b16 %v293
        %v3102 = vunpack.c.h.b16 %v293
        %v3103 = vunpack.c.l.b16 %v294
        %v3104 = vunpack.c.h.b16 %v294
        %v3105 = vunpack.c.l.b16 %v295
        %v3106 = vunpack.c.h.b16 %v295
        %v3107 = vunpack.c.l.b16 %v296
        %v3108 = vunpack.c.h.b16 %v296
        %v3109 = vunpack.c.l.b16 %v297
        %v3110 = vunpack.c.h.b16 %v297
        %v3111 = vunpack.c.l.b16 %v298
        %v3112 = vunpack.c.h.b16 %v298
        %v3113 = vunpack.c.l.b16 %v299
        %v3114 = vunpack.c.h.b16 %v299
        %v3115 = vunpack.c.l.b16 %v300
        %v3116 = vunpack.c.h.b16 %v300
        %v3117 = vunpack.c.l.b16 %v301
        %v3118 = vunpack.c.h.b16 %v301
        %v3119 = vunpack.c.l.b16 %v302
        %v3120 = vunpack.c.h.b16 %v302
        %v3121 = vunpack.c.l.b16 %v303
        %v3122 = vunpack.c.h.b16 %v303
        %v3123 = vunpack.c.l.b16 %v304
        %v3124 = vunpack.c.h.b16 %v304
        %v3125 = vunpack.c.l.b16 %v305
        %v3126 = vunpack.c.h.b16 %v305
        %v3127 = vunpack.c.l.b16 %v306
        %v3128 = vunpack.c.h.b16 %v306
        %v3129 = vunpack.c.l.b16 %v307
        %v3130 = vunpack.c.h.b16 %v307
        %v3131 = vunpack.c.l.b16 %v308
        %v3132 = vunpack.c.h.b16 %v308
        %v3133 = vpack.c.b16 %v3073, %v3069
        %v3134 = vpack.c.b16 %v3074, %v3070
        %v3135 = vpack.c.b16 %v3075, %v3071
        %v3136 = vpack.c.b16 %v3076, %v3072
        %v3137 = vpack.c.b16 %v3081, %v3077
        %v3138 = vpack.c.b16 %v3082, %v3078
        %v3139 = vpack.c.b16 %v3083, %v3079
        %v3140 = vpack.c.b16 %v3084, %v3080
        %v3141 = vpack.c.b16 %v3089, %v3085
        %v3142 = vpack.c.b16 %v3090, %v3086
        %v3143 = vpack.c.b16 %v3091, %v3087
        %v3144 = vpack.c.b16 %v3092, %v3088
        %v3145 = vpack.c.b16 %v3097, %v3093
        %v3146 = vpack.c.b16 %v3098, %v3094
        %v3147 = vpack.c.b16 %v3099, %v3095
        %v3148 = vpack.c.b16 %v3100, %v3096
        %v3149 = vpack.c.b16 %v3105, %v3101
        %v3150 = vpack.c.b16 %v3106, %v3102
        %v3151 = vpack.c.b16 %v3107, %v3103
        %v3152 = vpack.c.b16 %v3108, %v3104
        %v3153 = vpack.c.b16 %v3113, %v3109
        %v3154 = vpack.c.b16 %v3114, %v3110
        %v3155 = vpack.c.b16 %v3115, %v3111
        %v3156 = vpack.c.b16 %v3116, %v3112
        %v3157 = vpack.c.b16 %v3121, %v3117
        %v3158 = vpack.c.b16 %v3122, %v3118
        %v3159 = vpack.c.b16 %v3123, %v3119
        %v3160 = vpack.c.b16 %v3124, %v3120
        %v3161 = vpack.c.b16 %v3129, %v3125
        %v3162 = vpack.c.b16 %v3130, %v3126
        %v3163 = vpack.c.b16 %v3131, %v3127
        %v3164 = vpack.c.b16 %v3132, %v3128
        %v3325 = vunpack.c.l.b16 %v2909
        %v3326 = vunpack.c.h.b16 %v2909
        %v3327 = vunpack.c.l.b16 %v2910
        %v3328 = vunpack.c.h.b16 %v2910
        %v3329 = vunpack.c.l.b16 %v2911
        %v3330 = vunpack.c.h.b16 %v2911
        %v3331 = vunpack.c.l.b16 %v2912
        %v3332 = vunpack.c.h.b16 %v2912
        %v3333 = vunpack.c.l.b16 %v2913
        %v3334 = vunpack.c.h.b16 %v2913
        %v3335 = vunpack.c.l.b16 %v2914
        %v3336 = vunpack.c.h.b16 %v2914
        %v3337 = vunpack.c.l.b16 %v2915
        %v3338 = vunpack.c.h.b16 %v2915
        %v3339 = vunpack.c.l.b16 %v2916
        %v3340 = vunpack.c.h.b16 %v2916
        %v3341 = vunpack.c.l.b16 %v2917
        %v3342 = vunpack.c.h.b16 %v2917
        %v3343 = vunpack.c.l.b16 %v2918
        %v3344 = vunpack.c.h.b16 %v2918
        %v3345 = vunpack.c.l.b16 %v2919
        %v3346 = vunpack.c.h.b16 %v2919
        %v3347 = vunpack.c.l.b16 %v2920
        %v3348 = vunpack.c.h.b16 %v2920
        %v3349 = vunpack.c.l.b16 %v2921
        %v3350 = vunpack.c.h.b16 %v2921
        %v3351 = vunpack.c.l.b16 %v2922
        %v3352 = vunpack.c.h.b16 %v2922
        %v3353 = vunpack.c.l.b16 %v2923
        %v3354 = vunpack.c.h.b16 %v2923
        %v3355 = vunpack.c.l.b16 %v2924
        %v3356 = vunpack.c.h.b16 %v2924
        %v3357 = vunpack.c.l.b16 %v2925
        %v3358 = vunpack.c.h.b16 %v2925
        %v3359 = vunpack.c.l.b16 %v2926
        %v3360 = vunpack.c.h.b16 %v2926
        %v3361 = vunpack.c.l.b16 %v2927
        %v3362 = vunpack.c.h.b16 %v2927
        %v3363 = vunpack.c.l.b16 %v2928
        %v3364 = vunpack.c.h.b16 %v2928
        %v3365 = vunpack.c.l.b16 %v2929
        %v3366 = vunpack.c.h.b16 %v2929
        %v3367 = vunpack.c.l.b16 %v2930
        %v3368 = vunpack.c.h.b16 %v2930
        %v3369 = vunpack.c.l.b16 %v2931
        %v3370 = vunpack.c.h.b16 %v2931
        %v3371 = vunpack.c.l.b16 %v2932
        %v3372 = vunpack.c.h.b16 %v2932
        %v3373 = vunpack.c.l.b16 %v2933
        %v3374 = vunpack.c.h.b16 %v2933
        %v3375 = vunpack.c.l.b16 %v2934
        %v3376 = vunpack.c.h.b16 %v2934
        %v3377 = vunpack.c.l.b16 %v2935
        %v3378 = vunpack.c.h.b16 %v2935
        %v3379 = vunpack.c.l.b16 %v2936
        %v3380 = vunpack.c.h.b16 %v2936
        %v3381 = vunpack.c.l.b16 %v2937
        %v3382 = vunpack.c.h.b16 %v2937
        %v3383 = vunpack.c.l.b16 %v2938
        %v3384 = vunpack.c.h.b16 %v2938
        %v3385 = vunpack.c.l.b16 %v2939
        %v3386 = vunpack.c.h.b16 %v2939
        %v3387 = vunpack.c.l.b16 %v2940
        %v3388 = vunpack.c.h.b16 %v2940
        %v3389 = vunpack.c.l.b16 %v2941
        %v3390 = vunpack.c.h.b16 %v2941
        %v3391 = vunpack.c.l.b16 %v2942
        %v3392 = vunpack.c.h.b16 %v2942
        %v3393 = vunpack.c.l.b16 %v2943
        %v3394 = vunpack.c.h.b16 %v2943
        %v3395 = vunpack.c.l.b16 %v2944
        %v3396 = vunpack.c.h.b16 %v2944
        %v3397 = vunpack.c.l.b16 %v2945
        %v3398 = vunpack.c.h.b16 %v2945
        %v3399 = vunpack.c.l.b16 %v2946
        %v3400 = vunpack.c.h.b16 %v2946
        %v3401 = vunpack.c.l.b16 %v2947
        %v3402 = vunpack.c.h.b16 %v2947
        %v3403 = vunpack.c.l.b16 %v2948
        %v3404 = vunpack.c.h.b16 %v2948
        %v3405 = vunpack.c.l.b16 %v2949
        %v3406 = vunpack.c.h.b16 %v2949
        %v3407 = vunpack.c.l.b16 %v2950
        %v3408 = vunpack.c.h.b16 %v2950
        %v3409 = vunpack.c.l.b16 %v2951
        %v3410 = vunpack.c.h.b16 %v2951
        %v3411 = vunpack.c.l.b16 %v2952
        %v3412 = vunpack.c.h.b16 %v2952
        %v3413 = vunpack.c.l.b16 %v2953
        %v3414 = vunpack.c.h.b16 %v2953
        %v3415 = vunpack.c.l.b16 %v2954
        %v3416 = vunpack.c.h.b16 %v2954
        %v3417 = vunpack.c.l.b16 %v2955
        %v3418 = vunpack.c.h.b16 %v2955
        %v3419 = vunpack.c.l.b16 %v2956
        %v3420 = vunpack.c.h.b16 %v2956
        %v3421 = vunpack.c.l.b16 %v2957
        %v3422 = vunpack.c.h.b16 %v2957
        %v3423 = vunpack.c.l.b16 %v2958
        %v3424 = vunpack.c.h.b16 %v2958
        %v3425 = vunpack.c.l.b16 %v2959
        %v3426 = vunpack.c.h.b16 %v2959
        %v3427 = vunpack.c.l.b16 %v2960
        %v3428 = vunpack.c.h.b16 %v2960
        %v3429 = vunpack.c.l.b16 %v2961
        %v3430 = vunpack.c.h.b16 %v2961
        %v3431 = vunpack.c.l.b16 %v2962
        %v3432 = vunpack.c.h.b16 %v2962
        %v3433 = vunpack.c.l.b16 %v2963
        %v3434 = vunpack.c.h.b16 %v2963
        %v3435 = vunpack.c.l.b16 %v2964
        %v3436 = vunpack.c.h.b16 %v2964
        %v3437 = vunpack.c.l.b16 %v2965
        %v3438 = vunpack.c.h.b16 %v2965
        %v3439 = vunpack.c.l.b16 %v2966
        %v3440 = vunpack.c.h.b16 %v2966
        %v3441 = vunpack.c.l.b16 %v2967
        %v3442 = vunpack.c.h.b16 %v2967
        %v3443 = vunpack.c.l.b16 %v2968
        %v3444 = vunpack.c.h.b16 %v2968
        %v3445 = vunpack.c.l.b16 %v2969
        %v3446 = vunpack.c.h.b16 %v2969
        %v3447 = vunpack.c.l.b16 %v2970
        %v3448 = vunpack.c.h.b16 %v2970
        %v3449 = vunpack.c.l.b16 %v2971
        %v3450 = vunpack.c.h.b16 %v2971
        %v3451 = vunpack.c.l.b16 %v2972
        %v3452 = vunpack.c.h.b16 %v2972
        %v3453 = vunpack.c.l.b16 %v2973
        %v3454 = vunpack.c.h.b16 %v2973
        %v3455 = vunpack.c.l.b16 %v2974
        %v3456 = vunpack.c.h.b16 %v2974
        %v3457 = vunpack.c.l.b16 %v2975
        %v3458 = vunpack.c.h.b16 %v2975
        %v3459 = vunpack.c.l.b16 %v2976
        %v3460 = vunpack.c.h.b16 %v2976
        %v3461 = vunpack.c.l.b16 %v2977
        %v3462 = vunpack.c.h.b16 %v2977
        %v3463 = vunpack.c.l.b16 %v2978
        %v3464 = vunpack.c.h.b16 %v2978
        %v3465 = vunpack.c.l.b16 %v2979
        %v3466 = vunpack.c.h.b16 %v2979
        %v3467 = vunpack.c.l.b16 %v2980
        %v3468 = vunpack.c.h.b16 %v2980
        %v3469 = vunpack.c.l.b16 %v2981
        %v3470 = vunpack.c.h.b16 %v2981
        %v3471 = vunpack.c.l.b16 %v2982
        %v3472 = vunpack.c.h.b16 %v2982
        %v3473 = vunpack.c.l.b16 %v2983
        %v3474 = vunpack.c.h.b16 %v2983
        %v3475 = vunpack.c.l.b16 %v2984
        %v3476 = vunpack.c.h.b16 %v2984
        %v3477 = vunpack.c.l.b16 %v2985
        %v3478 = vunpack.c.h.b16 %v2985
        %v3479 = vunpack.c.l.b16 %v2986
        %v3480 = vunpack.c.h.b16 %v2986
        %v3481 = vunpack.c.l.b16 %v2987
        %v3482 = vunpack.c.h.b16 %v2987
        %v3483 = vunpack.c.l.b16 %v2988
        %v3484 = vunpack.c.h.b16 %v2988
        %v3485 = vunpack.c.l.b16 %v2989
        %v3486 = vunpack.c.h.b16 %v2989
        %v3487 = vunpack.c.l.b16 %v2990
        %v3488 = vunpack.c.h.b16 %v2990
        %v3489 = vunpack.c.l.b16 %v2991
        %v3490 = vunpack.c.h.b16 %v2991
        %v3491 = vunpack.c.l.b16 %v2992
        %v3492 = vunpack.c.h.b16 %v2992
        %v3493 = vunpack.c.l.b16 %v2993
        %v3494 = vunpack.c.h.b16 %v2993
        %v3495 = vunpack.c.l.b16 %v2994
        %v3496 = vunpack.c.h.b16 %v2994
        %v3497 = vunpack.c.l.b16 %v2995
        %v3498 = vunpack.c.h.b16 %v2995
        %v3499 = vunpack.c.l.b16 %v2996
        %v3500 = vunpack.c.h.b16 %v2996
        %v3501 = vunpack.c.l.b16 %v2997
        %v3502 = vunpack.c.h.b16 %v2997
        %v3503 = vunpack.c.l.b16 %v2998
        %v3504 = vunpack.c.h.b16 %v2998
        %v3505 = vunpack.c.l.b16 %v2999
        %v3506 = vunpack.c.h.b16 %v2999
        %v3507 = vunpack.c.l.b16 %v3000
        %v3508 = vunpack.c.h.b16 %v3000
        %v3509 = vunpack.c.l.b16 %v3001
        %v3510 = vunpack.c.h.b16 %v3001
        %v3511 = vunpack.c.l.b16 %v3002
        %v3512 = vunpack.c.h.b16 %v3002
        %v3513 = vunpack.c.l.b16 %v3003
        %v3514 = vunpack.c.h.b16 %v3003
        %v3515 = vunpack.c.l.b16 %v3004
        %v3516 = vunpack.c.h.b16 %v3004
        %v3517 = vunpack.c.l.b16 %v3005
        %v3518 = vunpack.c.h.b16 %v3005
        %v3519 = vunpack.c.l.b16 %v3006
        %v3520 = vunpack.c.h.b16 %v3006
        %v3521 = vunpack.c.l.b16 %v3007
        %v3522 = vunpack.c.h.b16 %v3007
        %v3523 = vunpack.c.l.b16 %v3008
        %v3524 = vunpack.c.h.b16 %v3008
        %v3525 = vunpack.c.l.b16 %v3009
        %v3526 = vunpack.c.h.b16 %v3009
        %v3527 = vunpack.c.l.b16 %v3010
        %v3528 = vunpack.c.h.b16 %v3010
        %v3529 = vunpack.c.l.b16 %v3011
        %v3530 = vunpack.c.h.b16 %v3011
        %v3531 = vunpack.c.l.b16 %v3012
        %v3532 = vunpack.c.h.b16 %v3012
        %v3533 = vunpack.c.l.b16 %v3013
        %v3534 = vunpack.c.h.b16 %v3013
        %v3535 = vunpack.c.l.b16 %v3014
        %v3536 = vunpack.c.h.b16 %v3014
        %v3537 = vunpack.c.l.b16 %v3015
        %v3538 = vunpack.c.h.b16 %v3015
        %v3539 = vunpack.c.l.b16 %v3016
        %v3540 = vunpack.c.h.b16 %v3016
        %v3541 = vunpack.c.l.b16 %v3017
        %v3542 = vunpack.c.h.b16 %v3017
        %v3543 = vunpack.c.l.b16 %v3018
        %v3544 = vunpack.c.h.b16 %v3018
        %v3545 = vunpack.c.l.b16 %v3019
        %v3546 = vunpack.c.h.b16 %v3019
        %v3547 = vunpack.c.l.b16 %v3020
        %v3548 = vunpack.c.h.b16 %v3020
        %v3549 = vunpack.c.l.b16 %v3021
        %v3550 = vunpack.c.h.b16 %v3021
        %v3551 = vunpack.c.l.b16 %v3022
        %v3552 = vunpack.c.h.b16 %v3022
        %v3553 = vunpack.c.l.b16 %v3023
        %v3554 = vunpack.c.h.b16 %v3023
        %v3555 = vunpack.c.l.b16 %v3024
        %v3556 = vunpack.c.h.b16 %v3024
        %v3557 = vunpack.c.l.b16 %v3025
        %v3558 = vunpack.c.h.b16 %v3025
        %v3559 = vunpack.c.l.b16 %v3026
        %v3560 = vunpack.c.h.b16 %v3026
        %v3561 = vunpack.c.l.b16 %v3027
        %v3562 = vunpack.c.h.b16 %v3027
        %v3563 = vunpack.c.l.b16 %v3028
        %v3564 = vunpack.c.h.b16 %v3028
        %v3565 = vunpack.c.l.b16 %v3029
        %v3566 = vunpack.c.h.b16 %v3029
        %v3567 = vunpack.c.l.b16 %v3030
        %v3568 = vunpack.c.h.b16 %v3030
        %v3569 = vunpack.c.l.b16 %v3031
        %v3570 = vunpack.c.h.b16 %v3031
        %v3571 = vunpack.c.l.b16 %v3032
        %v3572 = vunpack.c.h.b16 %v3032
        %v3573 = vunpack.c.l.b16 %v3033
        %v3574 = vunpack.c.h.b16 %v3033
        %v3575 = vunpack.c.l.b16 %v3034
        %v3576 = vunpack.c.h.b16 %v3034
        %v3577 = vunpack.c.l.b16 %v3035
        %v3578 = vunpack.c.h.b16 %v3035
        %v3579 = vunpack.c.l.b16 %v3036
        %v3580 = vunpack.c.h.b16 %v3036
        %v3581 = vpack.c.b16 %v3329, %v3325
        %v3582 = vpack.c.b16 %v3330, %v3326
        %v3583 = vpack.c.b16 %v3331, %v3327
        %v3584 = vpack.c.b16 %v3332, %v3328
        %v3585 = vpack.c.b16 %v3337, %v3333
        %v3586 = vpack.c.b16 %v3338, %v3334
        %v3587 = vpack.c.b16 %v3339, %v3335
        %v3588 = vpack.c.b16 %v3340, %v3336
        %v3589 = vpack.c.b16 %v3345, %v3341
        %v3590 = vpack.c.b16 %v3346, %v3342
        %v3591 = vpack.c.b16 %v3347, %v3343
        %v3592 = vpack.c.b16 %v3348, %v3344
        %v3593 = vpack.c.b16 %v3353, %v3349
        %v3594 = vpack.c.b16 %v3354, %v3350
        %v3595 = vpack.c.b16 %v3355, %v3351
        %v3596 = vpack.c.b16 %v3356, %v3352
        %v3597 = vpack.c.b16 %v3361, %v3357
        %v3598 = vpack.c.b16 %v3362, %v3358
        %v3599 = vpack.c.b16 %v3363, %v3359
        %v3600 = vpack.c.b16 %v3364, %v3360
        %v3601 = vpack.c.b16 %v3369, %v3365
        %v3602 = vpack.c.b16 %v3370, %v3366
        %v3603 = vpack.c.b16 %v3371, %v3367
        %v3604 = vpack.c.b16 %v3372, %v3368
        %v3605 = vpack.c.b16 %v3377, %v3373
        %v3606 = vpack.c.b16 %v3378, %v3374
        %v3607 = vpack.c.b16 %v3379, %v3375
        %v3608 = vpack.c.b16 %v3380, %v3376
        %v3609 = vpack.c.b16 %v3385, %v3381
        %v3610 = vpack.c.b16 %v3386, %v3382
        %v3611 = vpack.c.b16 %v3387, %v3383
        %v3612 = vpack.c.b16 %v3388, %v3384
        %v3613 = vpack.c.b16 %v3393, %v3389
        %v3614 = vpack.c.b16 %v3394, %v3390
        %v3615 = vpack.c.b16 %v3395, %v3391
        %v3616 = vpack.c.b16 %v3396, %v3392
        %v3617 = vpack.c.b16 %v3401, %v3397
        %v3618 = vpack.c.b16 %v3402, %v3398
        %v3619 = vpack.c.b16 %v3403, %v3399
        %v3620 = vpack.c.b16 %v3404, %v3400
        %v3621 = vpack.c.b16 %v3409, %v3405
        %v3622 = vpack.c.b16 %v3410, %v3406
        %v3623 = vpack.c.b16 %v3411, %v3407
        %v3624 = vpack.c.b16 %v3412, %v3408
        %v3625 = vpack.c.b16 %v3417, %v3413
        %v3626 = vpack.c.b16 %v3418, %v3414
        %v3627 = vpack.c.b16 %v3419, %v3415
        %v3628 = vpack.c.b16 %v3420, %v3416
        %v3629 = vpack.c.b16 %v3425, %v3421
        %v3630 = vpack.c.b16 %v3426, %v3422
        %v3631 = vpack.c.b16 %v3427, %v3423
        %v3632 = vpack.c.b16 %v3428, %v3424
        %v3633 = vpack.c.b16 %v3433, %v3429
        %v3634 = vpack.c.b16 %v3434, %v3430
        %v3635 = vpack.c.b16 %v3435, %v3431
        %v3636 = vpack.c.b16 %v3436, %v3432
        %v3637 = vpack.c.b16 %v3441, %v3437
        %v3638 = vpack.c.b16 %v3442, %v3438
        %v3639 = vpack.c.b16 %v3443, %v3439
        %v3640 = vpack.c.b16 %v3444, %v3440
        %v3641 = vpack.c.b16 %v3449, %v3445
        %v3642 = vpack.c.b16 %v3450, %v3446
        %v3643 = vpack.c.b16 %v3451, %v3447
        %v3644 = vpack.c.b16 %v3452, %v3448
        %v3645 = vpack.c.b16 %v3457, %v3453
        %v3646 = vpack.c.b16 %v3458, %v3454
        %v3647 = vpack.c.b16 %v3459, %v3455
        %v3648 = vpack.c.b16 %v3460, %v3456
        %v3649 = vpack.c.b16 %v3465, %v3461
        %v3650 = vpack.c.b16 %v3466, %v3462
        %v3651 = vpack.c.b16 %v3467, %v3463
        %v3652 = vpack.c.b16 %v3468, %v3464
        %v3653 = vpack.c.b16 %v3473, %v3469
        %v3654 = vpack.c.b16 %v3474, %v3470
        %v3655 = vpack.c.b16 %v3475, %v3471
        %v3656 = vpack.c.b16 %v3476, %v3472
        %v3657 = vpack.c.b16 %v3481, %v3477
        %v3658 = vpack.c.b16 %v3482, %v3478
        %v3659 = vpack.c.b16 %v3483, %v3479
        %v3660 = vpack.c.b16 %v3484, %v3480
        %v3661 = vpack.c.b16 %v3489, %v3485
        %v3662 = vpack.c.b16 %v3490, %v3486
        %v3663 = vpack.c.b16 %v3491, %v3487
        %v3664 = vpack.c.b16 %v3492, %v3488
        %v3665 = vpack.c.b16 %v3497, %v3493
        %v3666 = vpack.c.b16 %v3498, %v3494
        %v3667 = vpack.c.b16 %v3499, %v3495
        %v3668 = vpack.c.b16 %v3500, %v3496
        %v3669 = vpack.c.b16 %v3505, %v3501
        %v3670 = vpack.c.b16 %v3506, %v3502
        %v3671 = vpack.c.b16 %v3507, %v3503
        %v3672 = vpack.c.b16 %v3508, %v3504
        %v3673 = vpack.c.b16 %v3513, %v3509
        %v3674 = vpack.c.b16 %v3514, %v3510
        %v3675 = vpack.c.b16 %v3515, %v3511
        %v3676 = vpack.c.b16 %v3516, %v3512
        %v3677 = vpack.c.b16 %v3521, %v3517
        %v3678 = vpack.c.b16 %v3522, %v3518
        %v3679 = vpack.c.b16 %v3523, %v3519
        %v3680 = vpack.c.b16 %v3524, %v3520
        %v3681 = vpack.c.b16 %v3529, %v3525
        %v3682 = vpack.c.b16 %v3530, %v3526
        %v3683 = vpack.c.b16 %v3531, %v3527
        %v3684 = vpack.c.b16 %v3532, %v3528
        %v3685 = vpack.c.b16 %v3537, %v3533
        %v3686 = vpack.c.b16 %v3538, %v3534
        %v3687 = vpack.c.b16 %v3539, %v3535
        %v3688 = vpack.c.b16 %v3540, %v3536
        %v3689 = vpack.c.b16 %v3545, %v3541
        %v3690 = vpack.c.b16 %v3546, %v3542
        %v3691 = vpack.c.b16 %v3547, %v3543
        %v3692 = vpack.c.b16 %v3548, %v3544
        %v3693 = vpack.c.b16 %v3553, %v3549
        %v3694 = vpack.c.b16 %v3554, %v3550
        %v3695 = vpack.c.b16 %v3555, %v3551
        %v3696 = vpack.c.b16 %v3556, %v3552
        %v3697 = vpack.c.b16 %v3561, %v3557
        %v3698 = vpack.c.b16 %v3562, %v3558
        %v3699 = vpack.c.b16 %v3563, %v3559
        %v3700 = vpack.c.b16 %v3564, %v3560
        %v3701 = vpack.c.b16 %v3569, %v3565
        %v3702 = vpack.c.b16 %v3570, %v3566
        %v3703 = vpack.c.b16 %v3571, %v3567
        %v3704 = vpack.c.b16 %v3572, %v3568
        %v3705 = vpack.c.b16 %v3577, %v3573
        %v3706 = vpack.c.b16 %v3578, %v3574
        %v3707 = vpack.c.b16 %v3579, %v3575
        %v3708 = vpack.c.b16 %v3580, %v3576
        %3837 = vmatprep.subr.bf16.mxu0 %v3610
        %3838 = vmatpush1.bf16.msra.mxu0 %v3609
        %3839 = vmatprep.subr.bf16.mxu0 %v3606
        %3840 = vmatpush1.bf16.msra.mxu0 %v3605
        %3841 = vmatprep.subr.bf16.mxu0 %v3602
        %3842 = vmatpush1.bf16.msra.mxu0 %v3601
        %3843 = vmatprep.subr.bf16.mxu0 %v3598
        %3844 = vmatpush1.bf16.msra.mxu0 %v3597
        %3845 = vmatprep.subr.bf16.mxu0 %v3594
        %3846 = vmatpush1.bf16.msra.mxu0 %v3593
        %3847 = vmatprep.subr.bf16.mxu0 %v3590
        %3848 = vmatpush1.bf16.msra.mxu0 %v3589
        %3849 = vmatprep.subr.bf16.mxu0 %v3586
        %3850 = vmatpush1.bf16.msra.mxu0 %v3585
        %3851 = vmatprep.subr.bf16.mxu0 %v3582
        %3852 = vmatpush1.bf16.msra.mxu0 %v3581
        %3853 = vmatprep.subr.bf16.mxu0 %v3642
        %3854 = vmatpush2.bf16.msra.mxu0 %v3641
        %3855 = vmatprep.subr.bf16.mxu0 %v3638
        %3856 = vmatpush2.bf16.msra.mxu0 %v3637
        %3857 = vmatprep.subr.bf16.mxu0 %v3634
        %3858 = vmatpush2.bf16.msra.mxu0 %v3633
        %3859 = vmatprep.subr.bf16.mxu0 %v3630
        %3860 = vmatpush2.bf16.msra.mxu0 %v3629
        %3861 = vmatprep.subr.bf16.mxu0 %v3626
        %3862 = vmatpush2.bf16.msra.mxu0 %v3625
        %3863 = vmatprep.subr.bf16.mxu0 %v3622
        %3864 = vmatpush2.bf16.msra.mxu0 %v3621
        %3865 = vmatprep.subr.bf16.mxu0 %v3618
        %3866 = vmatpush2.bf16.msra.mxu0 %v3617
        %3867 = vmatprep.subr.bf16.mxu0 %v3614
        %3868 = vmatpush2.bf16.msra.mxu0 %v3613
        %3869 = vmatprep.mubr.bf16.mxu0 %v3134
        %3870 = vmatmul.mubr.bf16.gmra.mxu0 %v3133
        %v3871 = vpop.f32.mrf.mxu0
        %v3872 = vadd.f32 0.0, %v3871
        %v3873 = vpop.f32.mrf.mxu0
        %v3874 = vadd.f32 0.0, %v3873
        %v3875 = vpop.f32.mrf.mxu0
        %v3876 = vadd.f32 0.0, %v3875
        %v3877 = vpop.f32.mrf.mxu0
        %v3878 = vadd.f32 0.0, %v3877
        %3879 = vmatprep.mubr.bf16.mxu0 %v3138
        %3880 = vmatmul.mubr.bf16.gmra.mxu0 %v3137
        %v3881 = vpop.f32.mrf.mxu0
        %v3882 = vadd.f32 0.0, %v3881
        %v3883 = vpop.f32.mrf.mxu0
        %v3884 = vadd.f32 0.0, %v3883
        %v3885 = vpop.f32.mrf.mxu0
        %v3886 = vadd.f32 0.0, %v3885
        %v3887 = vpop.f32.mrf.mxu0
        %v3888 = vadd.f32 0.0, %v3887
        %3889 = vmatprep.mubr.bf16.mxu0 %v3142
        %3890 = vmatmul.mubr.bf16.gmra.mxu0 %v3141
        %v3891 = vpop.f32.mrf.mxu0
        %v3892 = vadd.f32 0.0, %v3891
        %v3893 = vpop.f32.mrf.mxu0
        %v3894 = vadd.f32 0.0, %v3893
        %v3895 = vpop.f32.mrf.mxu0
        %v3896 = vadd.f32 0.0, %v3895
        %v3897 = vpop.f32.mrf.mxu0
        %v3898 = vadd.f32 0.0, %v3897
        %3899 = vmatprep.mubr.bf16.mxu0 %v3146
        %3900 = vmatmul.mubr.bf16.gmra.mxu0 %v3145
        %v3901 = vpop.f32.mrf.mxu0
        %v3902 = vadd.f32 0.0, %v3901
        %v3903 = vpop.f32.mrf.mxu0
        %v3904 = vadd.f32 0.0, %v3903
        %v3905 = vpop.f32.mrf.mxu0
        %v3906 = vadd.f32 0.0, %v3905
        %v3907 = vpop.f32.mrf.mxu0
        %v3908 = vadd.f32 0.0, %v3907
        %3909 = vmatprep.mubr.bf16.mxu0 %v3150
        %3910 = vmatmul.mubr.bf16.gmra.mxu0 %v3149
        %v3911 = vpop.f32.mrf.mxu0
        %v3912 = vadd.f32 0.0, %v3911
        %v3913 = vpop.f32.mrf.mxu0
        %v3914 = vadd.f32 0.0, %v3913
        %v3915 = vpop.f32.mrf.mxu0
        %v3916 = vadd.f32 0.0, %v3915
        %v3917 = vpop.f32.mrf.mxu0
        %v3918 = vadd.f32 0.0, %v3917
        %3919 = vmatprep.mubr.bf16.mxu0 %v3154
        %3920 = vmatmul.mubr.bf16.gmra.mxu0 %v3153
        %v3921 = vpop.f32.mrf.mxu0
        %v3922 = vadd.f32 0.0, %v3921
        %v3923 = vpop.f32.mrf.mxu0
        %v3924 = vadd.f32 0.0, %v3923
        %v3925 = vpop.f32.mrf.mxu0
        %v3926 = vadd.f32 0.0, %v3925
        %v3927 = vpop.f32.mrf.mxu0
        %v3928 = vadd.f32 0.0, %v3927
        %3929 = vmatprep.mubr.bf16.mxu0 %v3158
        %3930 = vmatmul.mubr.bf16.gmra.mxu0 %v3157
        %v3931 = vpop.f32.mrf.mxu0
        %v3932 = vadd.f32 0.0, %v3931
        %v3933 = vpop.f32.mrf.mxu0
        %v3934 = vadd.f32 0.0, %v3933
        %v3935 = vpop.f32.mrf.mxu0
        %v3936 = vadd.f32 0.0, %v3935
        %v3937 = vpop.f32.mrf.mxu0
        %v3938 = vadd.f32 0.0, %v3937
        %3939 = vmatprep.mubr.bf16.mxu0 %v3162
        %3940 = vmatmul.mubr.bf16.gmra.mxu0 %v3161
        %v3941 = vpop.f32.mrf.mxu0
        %v3942 = vadd.f32 0.0, %v3941
        %v3943 = vpop.f32.mrf.mxu0
        %v3944 = vadd.f32 0.0, %v3943
        %v3945 = vpop.f32.mrf.mxu0
        %v3946 = vadd.f32 0.0, %v3945
        %v3947 = vpop.f32.mrf.mxu0
        %v3948 = vadd.f32 0.0, %v3947
        %3949 = vdwg.mxu0
        %3950 = vmatprep.subr.bf16.mxu0 %v3674
        %3951 = vmatpush1.bf16.msra.mxu0 %v3673
        %3952 = vmatprep.subr.bf16.mxu0 %v3670
        %3953 = vmatpush1.bf16.msra.mxu0 %v3669
        %3954 = vmatprep.subr.bf16.mxu0 %v3666
        %3955 = vmatpush1.bf16.msra.mxu0 %v3665
        %3956 = vmatprep.subr.bf16.mxu0 %v3662
        %3957 = vmatpush1.bf16.msra.mxu0 %v3661
        %3958 = vmatprep.subr.bf16.mxu0 %v3658
        %3959 = vmatpush1.bf16.msra.mxu0 %v3657
        %3960 = vmatprep.subr.bf16.mxu0 %v3654
        %3961 = vmatpush1.bf16.msra.mxu0 %v3653
        %3962 = vmatprep.subr.bf16.mxu0 %v3650
        %3963 = vmatpush1.bf16.msra.mxu0 %v3649
        %3964 = vmatprep.subr.bf16.mxu0 %v3646
        %3965 = vmatpush1.bf16.msra.mxu0 %v3645
        %3966 = vmatprep.subr.bf16.mxu0 %v3706
        %3967 = vmatpush2.bf16.msra.mxu0 %v3705
        %3968 = vmatprep.subr.bf16.mxu0 %v3702
        %3969 = vmatpush2.bf16.msra.mxu0 %v3701
        %3970 = vmatprep.subr.bf16.mxu0 %v3698
        %3971 = vmatpush2.bf16.msra.mxu0 %v3697
        %3972 = vmatprep.subr.bf16.mxu0 %v3694
        %3973 = vmatpush2.bf16.msra.mxu0 %v3693
        %3974 = vmatprep.subr.bf16.mxu0 %v3690
        %3975 = vmatpush2.bf16.msra.mxu0 %v3689
        %3976 = vmatprep.subr.bf16.mxu0 %v3686
        %3977 = vmatpush2.bf16.msra.mxu0 %v3685
        %3978 = vmatprep.subr.bf16.mxu0 %v3682
        %3979 = vmatpush2.bf16.msra.mxu0 %v3681
        %3980 = vmatprep.subr.bf16.mxu0 %v3678
        %3981 = vmatpush2.bf16.msra.mxu0 %v3677
        %3982 = vmatprep.mubr.bf16.mxu0 %v3136
        %3983 = vmatmul.mubr.bf16.gmra.mxu0 %v3135
        %v3984 = vpop.f32.mrf.mxu0
        %v3985 = vadd.f32 %v3872, %v3984
        %v3986 = vpop.f32.mrf.mxu0
        %v3987 = vadd.f32 %v3874, %v3986
        %v3988 = vpop.f32.mrf.mxu0
        %v3989 = vadd.f32 %v3876, %v3988
        %v3990 = vpop.f32.mrf.mxu0
        %v3991 = vadd.f32 %v3878, %v3990
        %3992 = vmatprep.mubr.bf16.mxu0 %v3140
        %3993 = vmatmul.mubr.bf16.gmra.mxu0 %v3139
        %v3994 = vpop.f32.mrf.mxu0
        %v3995 = vadd.f32 %v3882, %v3994
        %v3996 = vpop.f32.mrf.mxu0
        %v3997 = vadd.f32 %v3884, %v3996
        %v3998 = vpop.f32.mrf.mxu0
        %v3999 = vadd.f32 %v3886, %v3998
        %v4000 = vpop.f32.mrf.mxu0
        %v4001 = vadd.f32 %v3888, %v4000
        %4002 = vmatprep.mubr.bf16.mxu0 %v3144
        %4003 = vmatmul.mubr.bf16.gmra.mxu0 %v3143
        %v4004 = vpop.f32.mrf.mxu0
        %v4005 = vadd.f32 %v3892, %v4004
        %v4006 = vpop.f32.mrf.mxu0
        %v4007 = vadd.f32 %v3894, %v4006
        %v4008 = vpop.f32.mrf.mxu0
        %v4009 = vadd.f32 %v3896, %v4008
        %v4010 = vpop.f32.mrf.mxu0
        %v4011 = vadd.f32 %v3898, %v4010
        %4012 = vmatprep.mubr.bf16.mxu0 %v3148
        %4013 = vmatmul.mubr.bf16.gmra.mxu0 %v3147
        %v4014 = vpop.f32.mrf.mxu0
        %v4015 = vadd.f32 %v3902, %v4014
        %v4016 = vpop.f32.mrf.mxu0
        %v4017 = vadd.f32 %v3904, %v4016
        %v4018 = vpop.f32.mrf.mxu0
        %v4019 = vadd.f32 %v3906, %v4018
        %v4020 = vpop.f32.mrf.mxu0
        %v4021 = vadd.f32 %v3908, %v4020
        %4022 = vmatprep.mubr.bf16.mxu0 %v3152
        %4023 = vmatmul.mubr.bf16.gmra.mxu0 %v3151
        %v4024 = vpop.f32.mrf.mxu0
        %v4025 = vadd.f32 %v3912, %v4024
        %v4026 = vpop.f32.mrf.mxu0
        %v4027 = vadd.f32 %v3914, %v4026
        %v4028 = vpop.f32.mrf.mxu0
        %v4029 = vadd.f32 %v3916, %v4028
        %v4030 = vpop.f32.mrf.mxu0
        %v4031 = vadd.f32 %v3918, %v4030
        %4032 = vmatprep.mubr.bf16.mxu0 %v3156
        %4033 = vmatmul.mubr.bf16.gmra.mxu0 %v3155
        %v4034 = vpop.f32.mrf.mxu0
        %v4035 = vadd.f32 %v3922, %v4034
        %v4036 = vpop.f32.mrf.mxu0
        %v4037 = vadd.f32 %v3924, %v4036
        %v4038 = vpop.f32.mrf.mxu0
        %v4039 = vadd.f32 %v3926, %v4038
        %v4040 = vpop.f32.mrf.mxu0
        %v4041 = vadd.f32 %v3928, %v4040
        %4042 = vmatprep.mubr.bf16.mxu0 %v3160
        %4043 = vmatmul.mubr.bf16.gmra.mxu0 %v3159
        %v4044 = vpop.f32.mrf.mxu0
        %v4045 = vadd.f32 %v3932, %v4044
        %v4046 = vpop.f32.mrf.mxu0
        %v4047 = vadd.f32 %v3934, %v4046
        %v4048 = vpop.f32.mrf.mxu0
        %v4049 = vadd.f32 %v3936, %v4048
        %v4050 = vpop.f32.mrf.mxu0
        %v4051 = vadd.f32 %v3938, %v4050
        %4052 = vmatprep.mubr.bf16.mxu0 %v3164
        %4053 = vmatmul.mubr.bf16.gmra.mxu0 %v3163
        %v4054 = vpop.f32.mrf.mxu0
        %v4055 = vadd.f32 %v3942, %v4054
        %v4056 = vpop.f32.mrf.mxu0
        %v4057 = vadd.f32 %v3944, %v4056
        %v4058 = vpop.f32.mrf.mxu0
        %v4059 = vadd.f32 %v3946, %v4058
        %v4060 = vpop.f32.mrf.mxu0
        %v4061 = vadd.f32 %v3948, %v4060
        %4062 = vdwg.mxu0
        %4063 = vmatprep.subr.bf16.mxu0 %v3612
        %4064 = vmatpush1.bf16.msra.mxu0 %v3611
        %4065 = vmatprep.subr.bf16.mxu0 %v3608
        %4066 = vmatpush1.bf16.msra.mxu0 %v3607
        %4067 = vmatprep.subr.bf16.mxu0 %v3604
        %4068 = vmatpush1.bf16.msra.mxu0 %v3603
        %4069 = vmatprep.subr.bf16.mxu0 %v3600
        %4070 = vmatpush1.bf16.msra.mxu0 %v3599
        %4071 = vmatprep.subr.bf16.mxu0 %v3596
        %4072 = vmatpush1.bf16.msra.mxu0 %v3595
        %4073 = vmatprep.subr.bf16.mxu0 %v3592
        %4074 = vmatpush1.bf16.msra.mxu0 %v3591
        %4075 = vmatprep.subr.bf16.mxu0 %v3588
        %4076 = vmatpush1.bf16.msra.mxu0 %v3587
        %4077 = vmatprep.subr.bf16.mxu0 %v3584
        %4078 = vmatpush1.bf16.msra.mxu0 %v3583
        %4079 = vmatprep.subr.bf16.mxu0 %v3644
        %4080 = vmatpush2.bf16.msra.mxu0 %v3643
        %4081 = vmatprep.subr.bf16.mxu0 %v3640
        %4082 = vmatpush2.bf16.msra.mxu0 %v3639
        %4083 = vmatprep.subr.bf16.mxu0 %v3636
        %4084 = vmatpush2.bf16.msra.mxu0 %v3635
        %4085 = vmatprep.subr.bf16.mxu0 %v3632
        %4086 = vmatpush2.bf16.msra.mxu0 %v3631
        %4087 = vmatprep.subr.bf16.mxu0 %v3628
        %4088 = vmatpush2.bf16.msra.mxu0 %v3627
        %4089 = vmatprep.subr.bf16.mxu0 %v3624
        %4090 = vmatpush2.bf16.msra.mxu0 %v3623
        %4091 = vmatprep.subr.bf16.mxu0 %v3620
        %4092 = vmatpush2.bf16.msra.mxu0 %v3619
        %4093 = vmatprep.subr.bf16.mxu0 %v3616
        %4094 = vmatpush2.bf16.msra.mxu0 %v3615
        %4095 = vmatprep.mubr.bf16.mxu0 %v3134
        %4096 = vmatmul.mubr.bf16.gmra.mxu0 %v3133
        %v4097 = vpop.f32.mrf.mxu0
        %v4098 = vadd.f32 0.0, %v4097
        %v4099 = vpop.f32.mrf.mxu0
        %v4100 = vadd.f32 0.0, %v4099
        %v4101 = vpop.f32.mrf.mxu0
        %v4102 = vadd.f32 0.0, %v4101
        %v4103 = vpop.f32.mrf.mxu0
        %v4104 = vadd.f32 0.0, %v4103
        %4105 = vmatprep.mubr.bf16.mxu0 %v3138
        %4106 = vmatmul.mubr.bf16.gmra.mxu0 %v3137
        %v4107 = vpop.f32.mrf.mxu0
        %v4108 = vadd.f32 0.0, %v4107
        %v4109 = vpop.f32.mrf.mxu0
        %v4110 = vadd.f32 0.0, %v4109
        %v4111 = vpop.f32.mrf.mxu0
        %v4112 = vadd.f32 0.0, %v4111
        %v4113 = vpop.f32.mrf.mxu0
        %v4114 = vadd.f32 0.0, %v4113
        %4115 = vmatprep.mubr.bf16.mxu0 %v3142
        %4116 = vmatmul.mubr.bf16.gmra.mxu0 %v3141
        %v4117 = vpop.f32.mrf.mxu0
        %v4118 = vadd.f32 0.0, %v4117
        %v4119 = vpop.f32.mrf.mxu0
        %v4120 = vadd.f32 0.0, %v4119
        %v4121 = vpop.f32.mrf.mxu0
        %v4122 = vadd.f32 0.0, %v4121
        %v4123 = vpop.f32.mrf.mxu0
        %v4124 = vadd.f32 0.0, %v4123
        %4125 = vmatprep.mubr.bf16.mxu0 %v3146
        %4126 = vmatmul.mubr.bf16.gmra.mxu0 %v3145
        %v4127 = vpop.f32.mrf.mxu0
        %v4128 = vadd.f32 0.0, %v4127
        %v4129 = vpop.f32.mrf.mxu0
        %v4130 = vadd.f32 0.0, %v4129
        %v4131 = vpop.f32.mrf.mxu0
        %v4132 = vadd.f32 0.0, %v4131
        %v4133 = vpop.f32.mrf.mxu0
        %v4134 = vadd.f32 0.0, %v4133
        %4135 = vmatprep.mubr.bf16.mxu0 %v3150
        %4136 = vmatmul.mubr.bf16.gmra.mxu0 %v3149
        %v4137 = vpop.f32.mrf.mxu0
        %v4138 = vadd.f32 0.0, %v4137
        %v4139 = vpop.f32.mrf.mxu0
        %v4140 = vadd.f32 0.0, %v4139
        %v4141 = vpop.f32.mrf.mxu0
        %v4142 = vadd.f32 0.0, %v4141
        %v4143 = vpop.f32.mrf.mxu0
        %v4144 = vadd.f32 0.0, %v4143
        %4145 = vmatprep.mubr.bf16.mxu0 %v3154
        %4146 = vmatmul.mubr.bf16.gmra.mxu0 %v3153
        %v4147 = vpop.f32.mrf.mxu0
        %v4148 = vadd.f32 0.0, %v4147
        %v4149 = vpop.f32.mrf.mxu0
        %v4150 = vadd.f32 0.0, %v4149
        %v4151 = vpop.f32.mrf.mxu0
        %v4152 = vadd.f32 0.0, %v4151
        %v4153 = vpop.f32.mrf.mxu0
        %v4154 = vadd.f32 0.0, %v4153
        %4155 = vmatprep.mubr.bf16.mxu0 %v3158
        %4156 = vmatmul.mubr.bf16.gmra.mxu0 %v3157
        %v4157 = vpop.f32.mrf.mxu0
        %v4158 = vadd.f32 0.0, %v4157
        %v4159 = vpop.f32.mrf.mxu0
        %v4160 = vadd.f32 0.0, %v4159
        %v4161 = vpop.f32.mrf.mxu0
        %v4162 = vadd.f32 0.0, %v4161
        %v4163 = vpop.f32.mrf.mxu0
        %v4164 = vadd.f32 0.0, %v4163
        %4165 = vmatprep.mubr.bf16.mxu0 %v3162
        %4166 = vmatmul.mubr.bf16.gmra.mxu0 %v3161
        %v4167 = vpop.f32.mrf.mxu0
        %v4168 = vadd.f32 0.0, %v4167
        %v4169 = vpop.f32.mrf.mxu0
        %v4170 = vadd.f32 0.0, %v4169
        %v4171 = vpop.f32.mrf.mxu0
        %v4172 = vadd.f32 0.0, %v4171
        %v4173 = vpop.f32.mrf.mxu0
        %v4174 = vadd.f32 0.0, %v4173
        %4175 = vdwg.mxu0
        %4176 = vmatprep.subr.bf16.mxu0 %v3676
        %4177 = vmatpush1.bf16.msra.mxu0 %v3675
        %4178 = vmatprep.subr.bf16.mxu0 %v3672
        %4179 = vmatpush1.bf16.msra.mxu0 %v3671
        %4180 = vmatprep.subr.bf16.mxu0 %v3668
        %4181 = vmatpush1.bf16.msra.mxu0 %v3667
        %4182 = vmatprep.subr.bf16.mxu0 %v3664
        %4183 = vmatpush1.bf16.msra.mxu0 %v3663
        %4184 = vmatprep.subr.bf16.mxu0 %v3660
        %4185 = vmatpush1.bf16.msra.mxu0 %v3659
        %4186 = vmatprep.subr.bf16.mxu0 %v3656
        %4187 = vmatpush1.bf16.msra.mxu0 %v3655
        %4188 = vmatprep.subr.bf16.mxu0 %v3652
        %4189 = vmatpush1.bf16.msra.mxu0 %v3651
        %4190 = vmatprep.subr.bf16.mxu0 %v3648
        %4191 = vmatpush1.bf16.msra.mxu0 %v3647
        %4192 = vmatprep.subr.bf16.mxu0 %v3708
        %4193 = vmatpush2.bf16.msra.mxu0 %v3707
        %4194 = vmatprep.subr.bf16.mxu0 %v3704
        %4195 = vmatpush2.bf16.msra.mxu0 %v3703
        %4196 = vmatprep.subr.bf16.mxu0 %v3700
        %4197 = vmatpush2.bf16.msra.mxu0 %v3699
        %4198 = vmatprep.subr.bf16.mxu0 %v3696
        %4199 = vmatpush2.bf16.msra.mxu0 %v3695
        %4200 = vmatprep.subr.bf16.mxu0 %v3692
        %4201 = vmatpush2.bf16.msra.mxu0 %v3691
        %4202 = vmatprep.subr.bf16.mxu0 %v3688
        %4203 = vmatpush2.bf16.msra.mxu0 %v3687
        %4204 = vmatprep.subr.bf16.mxu0 %v3684
        %4205 = vmatpush2.bf16.msra.mxu0 %v3683
        %4206 = vmatprep.subr.bf16.mxu0 %v3680
        %4207 = vmatpush2.bf16.msra.mxu0 %v3679
        %4208 = vmatprep.mubr.bf16.mxu0 %v3136
        %4209 = vmatmul.mubr.bf16.gmra.mxu0 %v3135
        %v4210 = vpop.f32.mrf.mxu0
        %v4211 = vadd.f32 %v4098, %v4210
        %v4212 = vpop.f32.mrf.mxu0
        %v4213 = vadd.f32 %v4100, %v4212
        %v4214 = vpop.f32.mrf.mxu0
        %v4215 = vadd.f32 %v4102, %v4214
        %v4216 = vpop.f32.mrf.mxu0
        %v4217 = vadd.f32 %v4104, %v4216
        %4218 = vmatprep.mubr.bf16.mxu0 %v3140
        %4219 = vmatmul.mubr.bf16.gmra.mxu0 %v3139
        %v4220 = vpop.f32.mrf.mxu0
        %v4221 = vadd.f32 %v4108, %v4220
        %v4222 = vpop.f32.mrf.mxu0
        %v4223 = vadd.f32 %v4110, %v4222
        %v4224 = vpop.f32.mrf.mxu0
        %v4225 = vadd.f32 %v4112, %v4224
        %v4226 = vpop.f32.mrf.mxu0
        %v4227 = vadd.f32 %v4114, %v4226
        %4228 = vmatprep.mubr.bf16.mxu0 %v3144
        %4229 = vmatmul.mubr.bf16.gmra.mxu0 %v3143
        %v4230 = vpop.f32.mrf.mxu0
        %v4231 = vadd.f32 %v4118, %v4230
        %v4232 = vpop.f32.mrf.mxu0
        %v4233 = vadd.f32 %v4120, %v4232
        %v4234 = vpop.f32.mrf.mxu0
        %v4235 = vadd.f32 %v4122, %v4234
        %v4236 = vpop.f32.mrf.mxu0
        %v4237 = vadd.f32 %v4124, %v4236
        %4238 = vmatprep.mubr.bf16.mxu0 %v3148
        %4239 = vmatmul.mubr.bf16.gmra.mxu0 %v3147
        %v4240 = vpop.f32.mrf.mxu0
        %v4241 = vadd.f32 %v4128, %v4240
        %v4242 = vpop.f32.mrf.mxu0
        %v4243 = vadd.f32 %v4130, %v4242
        %v4244 = vpop.f32.mrf.mxu0
        %v4245 = vadd.f32 %v4132, %v4244
        %v4246 = vpop.f32.mrf.mxu0
        %v4247 = vadd.f32 %v4134, %v4246
        %4248 = vmatprep.mubr.bf16.mxu0 %v3152
        %4249 = vmatmul.mubr.bf16.gmra.mxu0 %v3151
        %v4250 = vpop.f32.mrf.mxu0
        %v4251 = vadd.f32 %v4138, %v4250
        %v4252 = vpop.f32.mrf.mxu0
        %v4253 = vadd.f32 %v4140, %v4252
        %v4254 = vpop.f32.mrf.mxu0
        %v4255 = vadd.f32 %v4142, %v4254
        %v4256 = vpop.f32.mrf.mxu0
        %v4257 = vadd.f32 %v4144, %v4256
        %4258 = vmatprep.mubr.bf16.mxu0 %v3156
        %4259 = vmatmul.mubr.bf16.gmra.mxu0 %v3155
        %v4260 = vpop.f32.mrf.mxu0
        %v4261 = vadd.f32 %v4148, %v4260
        %v4262 = vpop.f32.mrf.mxu0
        %v4263 = vadd.f32 %v4150, %v4262
        %v4264 = vpop.f32.mrf.mxu0
        %v4265 = vadd.f32 %v4152, %v4264
        %v4266 = vpop.f32.mrf.mxu0
        %v4267 = vadd.f32 %v4154, %v4266
        %4268 = vmatprep.mubr.bf16.mxu0 %v3160
        %4269 = vmatmul.mubr.bf16.gmra.mxu0 %v3159
        %v4270 = vpop.f32.mrf.mxu0
        %v4271 = vadd.f32 %v4158, %v4270
        %v4272 = vpop.f32.mrf.mxu0
        %v4273 = vadd.f32 %v4160, %v4272
        %v4274 = vpop.f32.mrf.mxu0
        %v4275 = vadd.f32 %v4162, %v4274
        %v4276 = vpop.f32.mrf.mxu0
        %v4277 = vadd.f32 %v4164, %v4276
        %4278 = vmatprep.mubr.bf16.mxu0 %v3164
        %4279 = vmatmul.mubr.bf16.gmra.mxu0 %v3163
        %v4280 = vpop.f32.mrf.mxu0
        %v4281 = vadd.f32 %v4168, %v4280
        %v4282 = vpop.f32.mrf.mxu0
        %v4283 = vadd.f32 %v4170, %v4282
        %v4284 = vpop.f32.mrf.mxu0
        %v4285 = vadd.f32 %v4172, %v4284
        %v4286 = vpop.f32.mrf.mxu0
        %v4287 = vadd.f32 %v4174, %v4286
        %4288 = vdwg.mxu0
        %v4289 = vlaneseq
        %v4290 = vshrl.u32 %v4289, 7
        %v4291 = vadd.s32 %v4290, 8
        %v4292 = vadd.s32 %v4290, 16
        %v4293 = vadd.s32 %v4290, 24
        %v4294 = vadd.s32 %v4290, 32
        %v4295 = vadd.s32 %v4290, 40
        %v4296 = vadd.s32 %v4290, 48
        %v4297 = vadd.s32 %v4290, 56
        %v4298 = vadd.s32 %v4290, 64
        %v4299 = vadd.s32 %v4290, 72
        %v4300 = vadd.s32 %v4290, 80
        %v4301 = vadd.s32 %v4290, 88
        %v4302 = vadd.s32 %v4290, 96
        %v4303 = vadd.s32 %v4290, 104
        %v4304 = vadd.s32 %v4290, 112
        %v4305 = vadd.s32 %v4290, 120
        %v4306 = vstv %s239
        %v4307 = vadd.s32 %v4290, %v4306
        %v4308 = vadd.s32 %v4291, %v4306
        %v4309 = vadd.s32 %v4292, %v4306
        %v4310 = vadd.s32 %v4293, %v4306
        %v4311 = vadd.s32 %v4294, %v4306
        %v4312 = vadd.s32 %v4295, %v4306
        %v4313 = vadd.s32 %v4296, %v4306
        %v4314 = vadd.s32 %v4297, %v4306
        %v4315 = vadd.s32 %v4298, %v4306
        %v4316 = vadd.s32 %v4299, %v4306
        %v4317 = vadd.s32 %v4300, %v4306
        %v4318 = vadd.s32 %v4301, %v4306
        %v4319 = vadd.s32 %v4302, %v4306
        %v4320 = vadd.s32 %v4303, %v4306
        %v4321 = vadd.s32 %v4304, %v4306
        %v4322 = vadd.s32 %v4305, %v4306
        %v4323 = vlaneseq
        %v4324 = vand.u32 %v4323, 127
        %vm4325 = vcmp.le.s32.totalorder %v4324, %v4307
        %vm4326 = vcmp.le.s32.totalorder %v4324, %v4308
        %vm4327 = vcmp.le.s32.totalorder %v4324, %v4309
        %vm4328 = vcmp.le.s32.totalorder %v4324, %v4310
        %vm4329 = vcmp.le.s32.totalorder %v4324, %v4311
        %vm4330 = vcmp.le.s32.totalorder %v4324, %v4312
        %vm4331 = vcmp.le.s32.totalorder %v4324, %v4313
        %vm4332 = vcmp.le.s32.totalorder %v4324, %v4314
        %vm4333 = vcmp.le.s32.totalorder %v4324, %v4315
        %vm4334 = vcmp.le.s32.totalorder %v4324, %v4316
        %vm4335 = vcmp.le.s32.totalorder %v4324, %v4317
        %vm4336 = vcmp.le.s32.totalorder %v4324, %v4318
        %vm4337 = vcmp.le.s32.totalorder %v4324, %v4319
        %vm4338 = vcmp.le.s32.totalorder %v4324, %v4320
        %vm4339 = vcmp.le.s32.totalorder %v4324, %v4321
        %vm4340 = vcmp.le.s32.totalorder %v4324, %v4322
        %v4341 = vpack.c.bf16 %v3989, %v3985
        %v4342 = vpack.c.bf16 %v3999, %v3995
        %v4343 = vpack.c.bf16 %v4009, %v4005
        %v4344 = vpack.c.bf16 %v4019, %v4015
        %v4345 = vpack.c.bf16 %v4029, %v4025
        %v4346 = vpack.c.bf16 %v4039, %v4035
        %v4347 = vpack.c.bf16 %v4049, %v4045
        %v4348 = vpack.c.bf16 %v4059, %v4055
        %v4349 = vpack.c.bf16 %v2157, %v2153
        %v4350 = vpack.c.bf16 %v2167, %v2163
        %v4351 = vpack.c.bf16 %v2177, %v2173
        %v4352 = vpack.c.bf16 %v2187, %v2183
        %v4353 = vpack.c.bf16 %v2197, %v2193
        %v4354 = vpack.c.bf16 %v2207, %v2203
        %v4355 = vpack.c.bf16 %v2217, %v2213
        %v4356 = vpack.c.bf16 %v2227, %v2223
        %vm4357 = vcmask 523264
        %v4359 = vsel %vm4357, %v4341, 0
        %v4362 = vsel %vm4357, %v4342, 0
        %v4365 = vsel %vm4357, %v4343, 0
        %v4368 = vsel %vm4357, %v4344, 0
        %v4371 = vsel %vm4357, %v4345, 0
        %v4374 = vsel %vm4357, %v4346, 0
        %v4377 = vsel %vm4357, %v4347, 0
        %v4380 = vsel %vm4357, %v4348, 0
        %v4383 = vsel %vm4357, %v4349, 0
        %v4386 = vsel %vm4357, %v4350, 0
        %v4389 = vsel %vm4357, %v4351, 0
        %v4392 = vsel %vm4357, %v4352, 0
        %v4395 = vsel %vm4357, %v4353, 0
        %v4398 = vsel %vm4357, %v4354, 0
        %v4401 = vsel %vm4357, %v4355, 0
        %v4404 = vsel %vm4357, %v4356, 0
        %4406 = vmatprep.subr.bf16.mxu0 0
        %4407 = vmatpush1.bf16.xpose.msra.mxu0 %v4404
        %4408 = vmatprep.subr.bf16.mxu0 0
        %4409 = vmatpush1.bf16.xpose.msra.mxu0 %v4401
        %4410 = vmatprep.subr.bf16.mxu0 0
        %4411 = vmatpush1.bf16.xpose.msra.mxu0 %v4398
        %4412 = vmatprep.subr.bf16.mxu0 0
        %4413 = vmatpush1.bf16.xpose.msra.mxu0 %v4395
        %4414 = vmatprep.subr.bf16.mxu0 0
        %4415 = vmatpush1.bf16.xpose.msra.mxu0 %v4392
        %4416 = vmatprep.subr.bf16.mxu0 0
        %4417 = vmatpush1.bf16.xpose.msra.mxu0 %v4389
        %4418 = vmatprep.subr.bf16.mxu0 0
        %4419 = vmatpush1.bf16.xpose.msra.mxu0 %v4386
        %4420 = vmatprep.subr.bf16.mxu0 0
        %4421 = vmatpush1.bf16.xpose.msra.mxu0 %v4383
        %4422 = vmatprep.subr.bf16.mxu0 0
        %4423 = vmatpush2.bf16.xpose.msra.mxu0 0
        %4424 = vmatprep.subr.bf16.mxu0 0
        %4425 = vmatpush2.bf16.xpose.msra.mxu0 0
        %4426 = vmatprep.subr.bf16.mxu0 0
        %4427 = vmatpush2.bf16.xpose.msra.mxu0 0
        %4428 = vmatprep.subr.bf16.mxu0 0
        %4429 = vmatpush2.bf16.xpose.msra.mxu0 0
        %4430 = vmatprep.subr.bf16.mxu0 0
        %4431 = vmatpush2.bf16.xpose.msra.mxu0 0
        %4432 = vmatprep.subr.bf16.mxu0 0
        %4433 = vmatpush2.bf16.xpose.msra.mxu0 0
        %4434 = vmatprep.subr.bf16.mxu0 0
        %4435 = vmatpush2.bf16.xpose.msra.mxu0 0
        %4436 = vmatprep.subr.bf16.mxu0 0
        %4437 = vmatpush2.bf16.xpose.msra.mxu0 0
        %4438 = vmatprep.mubr.bf16.mxu0 0
        %4439 = vmatmul.mubr.bf16.gmra.mxu0 %v4359
        %v4440 = vpop.f32.mrf.mxu0
        %v4441 = vadd.f32 0.0, %v4440
        %v4442 = vpop.f32.mrf.mxu0
        %v4443 = vpop.f32.mrf.mxu0
        %v4444 = vadd.f32 0.0, %v4443
        %v4445 = vpop.f32.mrf.mxu0
        %4446 = vmatprep.mubr.bf16.mxu0 0
        %4447 = vmatmul.mubr.bf16.gmra.mxu0 %v4362
        %v4448 = vpop.f32.mrf.mxu0
        %v4449 = vadd.f32 0.0, %v4448
        %v4450 = vpop.f32.mrf.mxu0
        %v4451 = vpop.f32.mrf.mxu0
        %v4452 = vadd.f32 0.0, %v4451
        %v4453 = vpop.f32.mrf.mxu0
        %4454 = vmatprep.mubr.bf16.mxu0 0
        %4455 = vmatmul.mubr.bf16.gmra.mxu0 %v4365
        %v4456 = vpop.f32.mrf.mxu0
        %v4457 = vadd.f32 0.0, %v4456
        %v4458 = vpop.f32.mrf.mxu0
        %v4459 = vpop.f32.mrf.mxu0
        %v4460 = vadd.f32 0.0, %v4459
        %v4461 = vpop.f32.mrf.mxu0
        %4462 = vmatprep.mubr.bf16.mxu0 0
        %4463 = vmatmul.mubr.bf16.gmra.mxu0 %v4368
        %v4464 = vpop.f32.mrf.mxu0
        %v4465 = vadd.f32 0.0, %v4464
        %v4466 = vpop.f32.mrf.mxu0
        %v4467 = vpop.f32.mrf.mxu0
        %v4468 = vadd.f32 0.0, %v4467
        %v4469 = vpop.f32.mrf.mxu0
        %4470 = vmatprep.mubr.bf16.mxu0 0
        %4471 = vmatmul.mubr.bf16.gmra.mxu0 %v4371
        %v4472 = vpop.f32.mrf.mxu0
        %v4473 = vadd.f32 0.0, %v4472
        %v4474 = vpop.f32.mrf.mxu0
        %v4475 = vpop.f32.mrf.mxu0
        %v4476 = vadd.f32 0.0, %v4475
        %v4477 = vpop.f32.mrf.mxu0
        %4478 = vmatprep.mubr.bf16.mxu0 0
        %4479 = vmatmul.mubr.bf16.gmra.mxu0 %v4374
        %v4480 = vpop.f32.mrf.mxu0
        %v4481 = vadd.f32 0.0, %v4480
        %v4482 = vpop.f32.mrf.mxu0
        %v4483 = vpop.f32.mrf.mxu0
        %v4484 = vadd.f32 0.0, %v4483
        %v4485 = vpop.f32.mrf.mxu0
        %4486 = vmatprep.mubr.bf16.mxu0 0
        %4487 = vmatmul.mubr.bf16.gmra.mxu0 %v4377
        %v4488 = vpop.f32.mrf.mxu0
        %v4489 = vadd.f32 0.0, %v4488
        %v4490 = vpop.f32.mrf.mxu0
        %v4491 = vpop.f32.mrf.mxu0
        %v4492 = vadd.f32 0.0, %v4491
        %v4493 = vpop.f32.mrf.mxu0
        %4494 = vmatprep.mubr.bf16.mxu0 0
        %4495 = vmatmul.mubr.bf16.gmra.mxu0 %v4380
        %v4496 = vpop.f32.mrf.mxu0
        %v4497 = vadd.f32 0.0, %v4496
        %v4498 = vpop.f32.mrf.mxu0
        %v4499 = vpop.f32.mrf.mxu0
        %v4500 = vadd.f32 0.0, %v4499
        %v4501 = vpop.f32.mrf.mxu0
        %4502 = vdwg.mxu0
        %v4503 = vsel %vm4325, %v4441, -1e+30
        %v4504 = vsel %vm4326, %v4444, -1e+30
        %v4505 = vsel %vm4327, %v4449, -1e+30
        %v4506 = vsel %vm4328, %v4452, -1e+30
        %v4507 = vsel %vm4329, %v4457, -1e+30
        %v4508 = vsel %vm4330, %v4460, -1e+30
        %v4509 = vsel %vm4331, %v4465, -1e+30
        %v4510 = vsel %vm4332, %v4468, -1e+30
        %v4511 = vsel %vm4333, %v4473, -1e+30
        %v4512 = vsel %vm4334, %v4476, -1e+30
        %v4513 = vsel %vm4335, %v4481, -1e+30
        %v4514 = vsel %vm4336, %v4484, -1e+30
        %v4515 = vsel %vm4337, %v4489, -1e+30
        %v4516 = vsel %vm4338, %v4492, -1e+30
        %v4517 = vsel %vm4339, %v4497, -1e+30
        %v4518 = vsel %vm4340, %v4500, -1e+30
        %4519 = vmax.xlane.f32.xlu0 %v4503
        %v4520 = vpop.xlane.xlu0 %4519
        %4521 = vmax.xlane.f32.xlu0 %v4504
        %v4522 = vpop.xlane.xlu0 %4521
        %4523 = vmax.xlane.f32.xlu0 %v4505
        %v4524 = vpop.xlane.xlu0 %4523
        %4525 = vmax.xlane.f32.xlu0 %v4506
        %v4526 = vpop.xlane.xlu0 %4525
        %4527 = vmax.xlane.f32.xlu0 %v4507
        %v4528 = vpop.xlane.xlu0 %4527
        %4529 = vmax.xlane.f32.xlu0 %v4508
        %v4530 = vpop.xlane.xlu0 %4529
        %4531 = vmax.xlane.f32.xlu0 %v4509
        %v4532 = vpop.xlane.xlu0 %4531
        %4533 = vmax.xlane.f32.xlu0 %v4510
        %v4534 = vpop.xlane.xlu0 %4533
        %4535 = vmax.xlane.f32.xlu0 %v4511
        %v4536 = vpop.xlane.xlu0 %4535
        %4537 = vmax.xlane.f32.xlu0 %v4512
        %v4538 = vpop.xlane.xlu0 %4537
        %4539 = vmax.xlane.f32.xlu0 %v4513
        %v4540 = vpop.xlane.xlu0 %4539
        %4541 = vmax.xlane.f32.xlu0 %v4514
        %v4542 = vpop.xlane.xlu0 %4541
        %4543 = vmax.xlane.f32.xlu0 %v4515
        %v4544 = vpop.xlane.xlu0 %4543
        %4545 = vmax.xlane.f32.xlu0 %v4516
        %v4546 = vpop.xlane.xlu0 %4545
        %4547 = vmax.xlane.f32.xlu0 %v4517
        %v4548 = vpop.xlane.xlu0 %4547
        %4549 = vmax.xlane.f32.xlu0 %v4518
        %v4550 = vpop.xlane.xlu0 %4549
        %v4551 = vsub.f32 %v4503, %v4520
        %v4552 = vsub.f32 %v4504, %v4522
        %v4553 = vsub.f32 %v4505, %v4524
        %v4554 = vsub.f32 %v4506, %v4526
        %v4555 = vsub.f32 %v4507, %v4528
        %v4556 = vsub.f32 %v4508, %v4530
        %v4557 = vsub.f32 %v4509, %v4532
        %v4558 = vsub.f32 %v4510, %v4534
        %v4559 = vsub.f32 %v4511, %v4536
        %v4560 = vsub.f32 %v4512, %v4538
        %v4561 = vsub.f32 %v4513, %v4540
        %v4562 = vsub.f32 %v4514, %v4542
        %v4563 = vsub.f32 %v4515, %v4544
        %v4564 = vsub.f32 %v4516, %v4546
        %v4565 = vsub.f32 %v4517, %v4548
        %v4566 = vsub.f32 %v4518, %v4550
        %v4567 = vmul.f32 %v4551, 1.442695
        %v4568 = vpow.pop %v4567
        %v4569 = vmul.f32 %v4552, 1.442695
        %v4570 = vpow.pop %v4569
        %v4571 = vmul.f32 %v4553, 1.442695
        %v4572 = vpow.pop %v4571
        %v4573 = vmul.f32 %v4554, 1.442695
        %v4574 = vpow.pop %v4573
        %v4575 = vmul.f32 %v4555, 1.442695
        %v4576 = vpow.pop %v4575
        %v4577 = vmul.f32 %v4556, 1.442695
        %v4578 = vpow.pop %v4577
        %v4579 = vmul.f32 %v4557, 1.442695
        %v4580 = vpow.pop %v4579
        %v4581 = vmul.f32 %v4558, 1.442695
        %v4582 = vpow.pop %v4581
        %v4583 = vmul.f32 %v4559, 1.442695
        %v4584 = vpow.pop %v4583
        %v4585 = vmul.f32 %v4560, 1.442695
        %v4586 = vpow.pop %v4585
        %v4587 = vmul.f32 %v4561, 1.442695
        %v4588 = vpow.pop %v4587
        %v4589 = vmul.f32 %v4562, 1.442695
        %v4590 = vpow.pop %v4589
        %v4591 = vmul.f32 %v4563, 1.442695
        %v4592 = vpow.pop %v4591
        %v4593 = vmul.f32 %v4564, 1.442695
        %v4594 = vpow.pop %v4593
        %v4595 = vmul.f32 %v4565, 1.442695
        %v4596 = vpow.pop %v4595
        %v4597 = vmul.f32 %v4566, 1.442695
        %v4598 = vpow.pop %v4597
        %4599 = vadd.xlane.f32.xlu0 %v4568
        %v4600 = vpop.xlane.xlu0 %4599
        %4601 = vadd.xlane.f32.xlu0 %v4570
        %v4602 = vpop.xlane.xlu0 %4601
        %4603 = vadd.xlane.f32.xlu0 %v4572
        %v4604 = vpop.xlane.xlu0 %4603
        %4605 = vadd.xlane.f32.xlu0 %v4574
        %v4606 = vpop.xlane.xlu0 %4605
        %4607 = vadd.xlane.f32.xlu0 %v4576
        %v4608 = vpop.xlane.xlu0 %4607
        %4609 = vadd.xlane.f32.xlu0 %v4578
        %v4610 = vpop.xlane.xlu0 %4609
        %4611 = vadd.xlane.f32.xlu0 %v4580
        %v4612 = vpop.xlane.xlu0 %4611
        %4613 = vadd.xlane.f32.xlu0 %v4582
        %v4614 = vpop.xlane.xlu0 %4613
        %4615 = vadd.xlane.f32.xlu0 %v4584
        %v4616 = vpop.xlane.xlu0 %4615
        %4617 = vadd.xlane.f32.xlu0 %v4586
        %v4618 = vpop.xlane.xlu0 %4617
        %4619 = vadd.xlane.f32.xlu0 %v4588
        %v4620 = vpop.xlane.xlu0 %4619
        %4621 = vadd.xlane.f32.xlu0 %v4590
        %v4622 = vpop.xlane.xlu0 %4621
        %4623 = vadd.xlane.f32.xlu0 %v4592
        %v4624 = vpop.xlane.xlu0 %4623
        %4625 = vadd.xlane.f32.xlu0 %v4594
        %v4626 = vpop.xlane.xlu0 %4625
        %4627 = vadd.xlane.f32.xlu0 %v4596
        %v4628 = vpop.xlane.xlu0 %4627
        %4629 = vadd.xlane.f32.xlu0 %v4598
        %v4630 = vpop.xlane.xlu0 %4629
        %v4631 = vrcp.pop %v4600
        %v4632 = vrcp.pop %v4602
        %v4633 = vrcp.pop %v4604
        %v4634 = vrcp.pop %v4606
        %v4635 = vrcp.pop %v4608
        %v4636 = vrcp.pop %v4610
        %v4637 = vrcp.pop %v4612
        %v4638 = vrcp.pop %v4614
        %v4639 = vrcp.pop %v4616
        %v4640 = vrcp.pop %v4618
        %v4641 = vrcp.pop %v4620
        %v4642 = vrcp.pop %v4622
        %v4643 = vrcp.pop %v4624
        %v4644 = vrcp.pop %v4626
        %v4645 = vrcp.pop %v4628
        %v4646 = vrcp.pop %v4630
        %v4647 = vpack.c.bf16 %v4570, %v4568
        %v4648 = vpack.c.bf16 %v4574, %v4572
        %v4649 = vpack.c.bf16 %v4578, %v4576
        %v4650 = vpack.c.bf16 %v4582, %v4580
        %v4651 = vpack.c.bf16 %v4586, %v4584
        %v4652 = vpack.c.bf16 %v4590, %v4588
        %v4653 = vpack.c.bf16 %v4594, %v4592
        %v4654 = vpack.c.bf16 %v4598, %v4596
        %v4655 = vpack.c.bf16 %v2609, %v2605
        %v4656 = vpack.c.bf16 %v2619, %v2615
        %v4657 = vpack.c.bf16 %v2629, %v2625
        %v4658 = vpack.c.bf16 %v2639, %v2635
        %v4659 = vpack.c.bf16 %v2649, %v2645
        %v4660 = vpack.c.bf16 %v2659, %v2655
        %v4661 = vpack.c.bf16 %v2669, %v2665
        %v4662 = vpack.c.bf16 %v2679, %v2675
        %4663 = vmatprep.subr.bf16.mxu0 0
        %4664 = vmatpush1.bf16.msra.mxu0 %v4662
        %4665 = vmatprep.subr.bf16.mxu0 0
        %4666 = vmatpush1.bf16.msra.mxu0 %v4661
        %4667 = vmatprep.subr.bf16.mxu0 0
        %4668 = vmatpush1.bf16.msra.mxu0 %v4660
        %4669 = vmatprep.subr.bf16.mxu0 0
        %4670 = vmatpush1.bf16.msra.mxu0 %v4659
        %4671 = vmatprep.subr.bf16.mxu0 0
        %4672 = vmatpush1.bf16.msra.mxu0 %v4658
        %4673 = vmatprep.subr.bf16.mxu0 0
        %4674 = vmatpush1.bf16.msra.mxu0 %v4657
        %4675 = vmatprep.subr.bf16.mxu0 0
        %4676 = vmatpush1.bf16.msra.mxu0 %v4656
        %4677 = vmatprep.subr.bf16.mxu0 0
        %4678 = vmatpush1.bf16.msra.mxu0 %v4655
        %4679 = vmatprep.subr.bf16.mxu0 0
        %4680 = vmatpush2.bf16.msra.mxu0 0
        %4681 = vmatprep.subr.bf16.mxu0 0
        %4682 = vmatpush2.bf16.msra.mxu0 0
        %4683 = vmatprep.subr.bf16.mxu0 0
        %4684 = vmatpush2.bf16.msra.mxu0 0
        %4685 = vmatprep.subr.bf16.mxu0 0
        %4686 = vmatpush2.bf16.msra.mxu0 0
        %4687 = vmatprep.subr.bf16.mxu0 0
        %4688 = vmatpush2.bf16.msra.mxu0 0
        %4689 = vmatprep.subr.bf16.mxu0 0
        %4690 = vmatpush2.bf16.msra.mxu0 0
        %4691 = vmatprep.subr.bf16.mxu0 0
        %4692 = vmatpush2.bf16.msra.mxu0 0
        %4693 = vmatprep.subr.bf16.mxu0 0
        %4694 = vmatpush2.bf16.msra.mxu0 0
        %4695 = vmatprep.mubr.bf16.mxu0 0
        %4696 = vmatmul.mubr.bf16.gmra.mxu0 %v4647
        %v4697 = vpop.f32.mrf.mxu0
        %v4698 = vadd.f32 0.0, %v4697
        %v4699 = vpop.f32.mrf.mxu0
        %v4700 = vpop.f32.mrf.mxu0
        %v4701 = vadd.f32 0.0, %v4700
        %v4702 = vpop.f32.mrf.mxu0
        %4703 = vmatprep.mubr.bf16.mxu0 0
        %4704 = vmatmul.mubr.bf16.gmra.mxu0 %v4648
        %v4705 = vpop.f32.mrf.mxu0
        %v4706 = vadd.f32 0.0, %v4705
        %v4707 = vpop.f32.mrf.mxu0
        %v4708 = vpop.f32.mrf.mxu0
        %v4709 = vadd.f32 0.0, %v4708
        %v4710 = vpop.f32.mrf.mxu0
        %4711 = vmatprep.mubr.bf16.mxu0 0
        %4712 = vmatmul.mubr.bf16.gmra.mxu0 %v4649
        %v4713 = vpop.f32.mrf.mxu0
        %v4714 = vadd.f32 0.0, %v4713
        %v4715 = vpop.f32.mrf.mxu0
        %v4716 = vpop.f32.mrf.mxu0
        %v4717 = vadd.f32 0.0, %v4716
        %v4718 = vpop.f32.mrf.mxu0
        %4719 = vmatprep.mubr.bf16.mxu0 0
        %4720 = vmatmul.mubr.bf16.gmra.mxu0 %v4650
        %v4721 = vpop.f32.mrf.mxu0
        %v4722 = vadd.f32 0.0, %v4721
        %v4723 = vpop.f32.mrf.mxu0
        %v4724 = vpop.f32.mrf.mxu0
        %v4725 = vadd.f32 0.0, %v4724
        %v4726 = vpop.f32.mrf.mxu0
        %4727 = vmatprep.mubr.bf16.mxu0 0
        %4728 = vmatmul.mubr.bf16.gmra.mxu0 %v4651
        %v4729 = vpop.f32.mrf.mxu0
        %v4730 = vadd.f32 0.0, %v4729
        %v4731 = vpop.f32.mrf.mxu0
        %v4732 = vpop.f32.mrf.mxu0
        %v4733 = vadd.f32 0.0, %v4732
        %v4734 = vpop.f32.mrf.mxu0
        %4735 = vmatprep.mubr.bf16.mxu0 0
        %4736 = vmatmul.mubr.bf16.gmra.mxu0 %v4652
        %v4737 = vpop.f32.mrf.mxu0
        %v4738 = vadd.f32 0.0, %v4737
        %v4739 = vpop.f32.mrf.mxu0
        %v4740 = vpop.f32.mrf.mxu0
        %v4741 = vadd.f32 0.0, %v4740
        %v4742 = vpop.f32.mrf.mxu0
        %4743 = vmatprep.mubr.bf16.mxu0 0
        %4744 = vmatmul.mubr.bf16.gmra.mxu0 %v4653
        %v4745 = vpop.f32.mrf.mxu0
        %v4746 = vadd.f32 0.0, %v4745
        %v4747 = vpop.f32.mrf.mxu0
        %v4748 = vpop.f32.mrf.mxu0
        %v4749 = vadd.f32 0.0, %v4748
        %v4750 = vpop.f32.mrf.mxu0
        %4751 = vmatprep.mubr.bf16.mxu0 0
        %4752 = vmatmul.mubr.bf16.gmra.mxu0 %v4654
        %v4753 = vpop.f32.mrf.mxu0
        %v4754 = vadd.f32 0.0, %v4753
        %v4755 = vpop.f32.mrf.mxu0
        %v4756 = vpop.f32.mrf.mxu0
        %v4757 = vadd.f32 0.0, %v4756
        %v4758 = vpop.f32.mrf.mxu0
        %4759 = vdwg.mxu0
        %v4760 = vmul.f32 %v4698, %v4631
        %v4761 = vmul.f32 %v4701, %v4632
        %v4762 = vmul.f32 %v4706, %v4633
        %v4763 = vmul.f32 %v4709, %v4634
        %v4764 = vmul.f32 %v4714, %v4635
        %v4765 = vmul.f32 %v4717, %v4636
        %v4766 = vmul.f32 %v4722, %v4637
        %v4767 = vmul.f32 %v4725, %v4638
        %v4768 = vmul.f32 %v4730, %v4639
        %v4769 = vmul.f32 %v4733, %v4640
        %v4770 = vmul.f32 %v4738, %v4641
        %v4771 = vmul.f32 %v4741, %v4642
        %v4772 = vmul.f32 %v4746, %v4643
        %v4773 = vmul.f32 %v4749, %v4644
        %v4774 = vmul.f32 %v4754, %v4645
        %v4775 = vmul.f32 %v4757, %v4646
        %4784 = vrot.lane.b32.xlu0 %v4341, 64
        %v4785 = vpop.permute.xlu0 %4784
        %4786 = vrot.lane.b32.xlu0 %v4342, 64
        %v4787 = vpop.permute.xlu0 %4786
        %4788 = vrot.lane.b32.xlu0 %v4343, 64
        %v4789 = vpop.permute.xlu0 %4788
        %4790 = vrot.lane.b32.xlu0 %v4344, 64
        %v4791 = vpop.permute.xlu0 %4790
        %4792 = vrot.lane.b32.xlu0 %v4345, 64
        %v4793 = vpop.permute.xlu0 %4792
        %4794 = vrot.lane.b32.xlu0 %v4346, 64
        %v4795 = vpop.permute.xlu0 %4794
        %4796 = vrot.lane.b32.xlu0 %v4347, 64
        %v4797 = vpop.permute.xlu0 %4796
        %4798 = vrot.lane.b32.xlu0 %v4348, 64
        %v4799 = vpop.permute.xlu0 %4798
        %4808 = vrot.lane.b32.xlu0 %v4349, 64
        %v4809 = vpop.permute.xlu0 %4808
        %4810 = vrot.lane.b32.xlu0 %v4350, 64
        %v4811 = vpop.permute.xlu0 %4810
        %4812 = vrot.lane.b32.xlu0 %v4351, 64
        %v4813 = vpop.permute.xlu0 %4812
        %4814 = vrot.lane.b32.xlu0 %v4352, 64
        %v4815 = vpop.permute.xlu0 %4814
        %4816 = vrot.lane.b32.xlu0 %v4353, 64
        %v4817 = vpop.permute.xlu0 %4816
        %4818 = vrot.lane.b32.xlu0 %v4354, 64
        %v4819 = vpop.permute.xlu0 %4818
        %4820 = vrot.lane.b32.xlu0 %v4355, 64
        %v4821 = vpop.permute.xlu0 %4820
        %4822 = vrot.lane.b32.xlu0 %v4356, 64
        %v4823 = vpop.permute.xlu0 %4822
        %v4825 = vsel %vm4357, %v4785, 0
        %v4828 = vsel %vm4357, %v4787, 0
        %v4831 = vsel %vm4357, %v4789, 0
        %v4834 = vsel %vm4357, %v4791, 0
        %v4837 = vsel %vm4357, %v4793, 0
        %v4840 = vsel %vm4357, %v4795, 0
        %v4843 = vsel %vm4357, %v4797, 0
        %v4846 = vsel %vm4357, %v4799, 0
        %v4849 = vsel %vm4357, %v4809, 0
        %v4852 = vsel %vm4357, %v4811, 0
        %v4855 = vsel %vm4357, %v4813, 0
        %v4858 = vsel %vm4357, %v4815, 0
        %v4861 = vsel %vm4357, %v4817, 0
        %v4864 = vsel %vm4357, %v4819, 0
        %v4867 = vsel %vm4357, %v4821, 0
        %v4870 = vsel %vm4357, %v4823, 0
        %4872 = vmatprep.subr.bf16.mxu0 0
        %4873 = vmatpush1.bf16.xpose.msra.mxu0 %v4870
        %4874 = vmatprep.subr.bf16.mxu0 0
        %4875 = vmatpush1.bf16.xpose.msra.mxu0 %v4867
        %4876 = vmatprep.subr.bf16.mxu0 0
        %4877 = vmatpush1.bf16.xpose.msra.mxu0 %v4864
        %4878 = vmatprep.subr.bf16.mxu0 0
        %4879 = vmatpush1.bf16.xpose.msra.mxu0 %v4861
        %4880 = vmatprep.subr.bf16.mxu0 0
        %4881 = vmatpush1.bf16.xpose.msra.mxu0 %v4858
        %4882 = vmatprep.subr.bf16.mxu0 0
        %4883 = vmatpush1.bf16.xpose.msra.mxu0 %v4855
        %4884 = vmatprep.subr.bf16.mxu0 0
        %4885 = vmatpush1.bf16.xpose.msra.mxu0 %v4852
        %4886 = vmatprep.subr.bf16.mxu0 0
        %4887 = vmatpush1.bf16.xpose.msra.mxu0 %v4849
        %4888 = vmatprep.subr.bf16.mxu0 0
        %4889 = vmatpush2.bf16.xpose.msra.mxu0 0
        %4890 = vmatprep.subr.bf16.mxu0 0
        %4891 = vmatpush2.bf16.xpose.msra.mxu0 0
        %4892 = vmatprep.subr.bf16.mxu0 0
        %4893 = vmatpush2.bf16.xpose.msra.mxu0 0
        %4894 = vmatprep.subr.bf16.mxu0 0
        %4895 = vmatpush2.bf16.xpose.msra.mxu0 0
        %4896 = vmatprep.subr.bf16.mxu0 0
        %4897 = vmatpush2.bf16.xpose.msra.mxu0 0
        %4898 = vmatprep.subr.bf16.mxu0 0
        %4899 = vmatpush2.bf16.xpose.msra.mxu0 0
        %4900 = vmatprep.subr.bf16.mxu0 0
        %4901 = vmatpush2.bf16.xpose.msra.mxu0 0
        %4902 = vmatprep.subr.bf16.mxu0 0
        %4903 = vmatpush2.bf16.xpose.msra.mxu0 0
        %4904 = vmatprep.mubr.bf16.mxu0 0
        %4905 = vmatmul.mubr.bf16.gmra.mxu0 %v4825
        %v4906 = vpop.f32.mrf.mxu0
        %v4907 = vadd.f32 0.0, %v4906
        %v4908 = vpop.f32.mrf.mxu0
        %v4909 = vpop.f32.mrf.mxu0
        %v4910 = vadd.f32 0.0, %v4909
        %v4911 = vpop.f32.mrf.mxu0
        %4912 = vmatprep.mubr.bf16.mxu0 0
        %4913 = vmatmul.mubr.bf16.gmra.mxu0 %v4828
        %v4914 = vpop.f32.mrf.mxu0
        %v4915 = vadd.f32 0.0, %v4914
        %v4916 = vpop.f32.mrf.mxu0
        %v4917 = vpop.f32.mrf.mxu0
        %v4918 = vadd.f32 0.0, %v4917
        %v4919 = vpop.f32.mrf.mxu0
        %4920 = vmatprep.mubr.bf16.mxu0 0
        %4921 = vmatmul.mubr.bf16.gmra.mxu0 %v4831
        %v4922 = vpop.f32.mrf.mxu0
        %v4923 = vadd.f32 0.0, %v4922
        %v4924 = vpop.f32.mrf.mxu0
        %v4925 = vpop.f32.mrf.mxu0
        %v4926 = vadd.f32 0.0, %v4925
        %v4927 = vpop.f32.mrf.mxu0
        %4928 = vmatprep.mubr.bf16.mxu0 0
        %4929 = vmatmul.mubr.bf16.gmra.mxu0 %v4834
        %v4930 = vpop.f32.mrf.mxu0
        %v4931 = vadd.f32 0.0, %v4930
        %v4932 = vpop.f32.mrf.mxu0
        %v4933 = vpop.f32.mrf.mxu0
        %v4934 = vadd.f32 0.0, %v4933
        %v4935 = vpop.f32.mrf.mxu0
        %4936 = vmatprep.mubr.bf16.mxu0 0
        %4937 = vmatmul.mubr.bf16.gmra.mxu0 %v4837
        %v4938 = vpop.f32.mrf.mxu0
        %v4939 = vadd.f32 0.0, %v4938
        %v4940 = vpop.f32.mrf.mxu0
        %v4941 = vpop.f32.mrf.mxu0
        %v4942 = vadd.f32 0.0, %v4941
        %v4943 = vpop.f32.mrf.mxu0
        %4944 = vmatprep.mubr.bf16.mxu0 0
        %4945 = vmatmul.mubr.bf16.gmra.mxu0 %v4840
        %v4946 = vpop.f32.mrf.mxu0
        %v4947 = vadd.f32 0.0, %v4946
        %v4948 = vpop.f32.mrf.mxu0
        %v4949 = vpop.f32.mrf.mxu0
        %v4950 = vadd.f32 0.0, %v4949
        %v4951 = vpop.f32.mrf.mxu0
        %4952 = vmatprep.mubr.bf16.mxu0 0
        %4953 = vmatmul.mubr.bf16.gmra.mxu0 %v4843
        %v4954 = vpop.f32.mrf.mxu0
        %v4955 = vadd.f32 0.0, %v4954
        %v4956 = vpop.f32.mrf.mxu0
        %v4957 = vpop.f32.mrf.mxu0
        %v4958 = vadd.f32 0.0, %v4957
        %v4959 = vpop.f32.mrf.mxu0
        %4960 = vmatprep.mubr.bf16.mxu0 0
        %4961 = vmatmul.mubr.bf16.gmra.mxu0 %v4846
        %v4962 = vpop.f32.mrf.mxu0
        %v4963 = vadd.f32 0.0, %v4962
        %v4964 = vpop.f32.mrf.mxu0
        %v4965 = vpop.f32.mrf.mxu0
        %v4966 = vadd.f32 0.0, %v4965
        %v4967 = vpop.f32.mrf.mxu0
        %4968 = vdwg.mxu0
        %v4969 = vsel %vm4325, %v4907, -1e+30
        %v4970 = vsel %vm4326, %v4910, -1e+30
        %v4971 = vsel %vm4327, %v4915, -1e+30
        %v4972 = vsel %vm4328, %v4918, -1e+30
        %v4973 = vsel %vm4329, %v4923, -1e+30
        %v4974 = vsel %vm4330, %v4926, -1e+30
        %v4975 = vsel %vm4331, %v4931, -1e+30
        %v4976 = vsel %vm4332, %v4934, -1e+30
        %v4977 = vsel %vm4333, %v4939, -1e+30
        %v4978 = vsel %vm4334, %v4942, -1e+30
        %v4979 = vsel %vm4335, %v4947, -1e+30
        %v4980 = vsel %vm4336, %v4950, -1e+30
        %v4981 = vsel %vm4337, %v4955, -1e+30
        %v4982 = vsel %vm4338, %v4958, -1e+30
        %v4983 = vsel %vm4339, %v4963, -1e+30
        %v4984 = vsel %vm4340, %v4966, -1e+30
        %4985 = vmax.xlane.f32.xlu0 %v4969
        %v4986 = vpop.xlane.xlu0 %4985
        %4987 = vmax.xlane.f32.xlu0 %v4970
        %v4988 = vpop.xlane.xlu0 %4987
        %4989 = vmax.xlane.f32.xlu0 %v4971
        %v4990 = vpop.xlane.xlu0 %4989
        %4991 = vmax.xlane.f32.xlu0 %v4972
        %v4992 = vpop.xlane.xlu0 %4991
        %4993 = vmax.xlane.f32.xlu0 %v4973
        %v4994 = vpop.xlane.xlu0 %4993
        %4995 = vmax.xlane.f32.xlu0 %v4974
        %v4996 = vpop.xlane.xlu0 %4995
        %4997 = vmax.xlane.f32.xlu0 %v4975
        %v4998 = vpop.xlane.xlu0 %4997
        %4999 = vmax.xlane.f32.xlu0 %v4976
        %v5000 = vpop.xlane.xlu0 %4999
        %5001 = vmax.xlane.f32.xlu0 %v4977
        %v5002 = vpop.xlane.xlu0 %5001
        %5003 = vmax.xlane.f32.xlu0 %v4978
        %v5004 = vpop.xlane.xlu0 %5003
        %5005 = vmax.xlane.f32.xlu0 %v4979
        %v5006 = vpop.xlane.xlu0 %5005
        %5007 = vmax.xlane.f32.xlu0 %v4980
        %v5008 = vpop.xlane.xlu0 %5007
        %5009 = vmax.xlane.f32.xlu0 %v4981
        %v5010 = vpop.xlane.xlu0 %5009
        %5011 = vmax.xlane.f32.xlu0 %v4982
        %v5012 = vpop.xlane.xlu0 %5011
        %5013 = vmax.xlane.f32.xlu0 %v4983
        %v5014 = vpop.xlane.xlu0 %5013
        %5015 = vmax.xlane.f32.xlu0 %v4984
        %v5016 = vpop.xlane.xlu0 %5015
        %v5017 = vsub.f32 %v4969, %v4986
        %v5018 = vsub.f32 %v4970, %v4988
        %v5019 = vsub.f32 %v4971, %v4990
        %v5020 = vsub.f32 %v4972, %v4992
        %v5021 = vsub.f32 %v4973, %v4994
        %v5022 = vsub.f32 %v4974, %v4996
        %v5023 = vsub.f32 %v4975, %v4998
        %v5024 = vsub.f32 %v4976, %v5000
        %v5025 = vsub.f32 %v4977, %v5002
        %v5026 = vsub.f32 %v4978, %v5004
        %v5027 = vsub.f32 %v4979, %v5006
        %v5028 = vsub.f32 %v4980, %v5008
        %v5029 = vsub.f32 %v4981, %v5010
        %v5030 = vsub.f32 %v4982, %v5012
        %v5031 = vsub.f32 %v4983, %v5014
        %v5032 = vsub.f32 %v4984, %v5016
        %v5033 = vmul.f32 %v5017, 1.442695
        %v5034 = vpow.pop %v5033
        %v5035 = vmul.f32 %v5018, 1.442695
        %v5036 = vpow.pop %v5035
        %v5037 = vmul.f32 %v5019, 1.442695
        %v5038 = vpow.pop %v5037
        %v5039 = vmul.f32 %v5020, 1.442695
        %v5040 = vpow.pop %v5039
        %v5041 = vmul.f32 %v5021, 1.442695
        %v5042 = vpow.pop %v5041
        %v5043 = vmul.f32 %v5022, 1.442695
        %v5044 = vpow.pop %v5043
        %v5045 = vmul.f32 %v5023, 1.442695
        %v5046 = vpow.pop %v5045
        %v5047 = vmul.f32 %v5024, 1.442695
        %v5048 = vpow.pop %v5047
        %v5049 = vmul.f32 %v5025, 1.442695
        %v5050 = vpow.pop %v5049
        %v5051 = vmul.f32 %v5026, 1.442695
        %v5052 = vpow.pop %v5051
        %v5053 = vmul.f32 %v5027, 1.442695
        %v5054 = vpow.pop %v5053
        %v5055 = vmul.f32 %v5028, 1.442695
        %v5056 = vpow.pop %v5055
        %v5057 = vmul.f32 %v5029, 1.442695
        %v5058 = vpow.pop %v5057
        %v5059 = vmul.f32 %v5030, 1.442695
        %v5060 = vpow.pop %v5059
        %v5061 = vmul.f32 %v5031, 1.442695
        %v5062 = vpow.pop %v5061
        %v5063 = vmul.f32 %v5032, 1.442695
        %v5064 = vpow.pop %v5063
        %5065 = vadd.xlane.f32.xlu0 %v5034
        %v5066 = vpop.xlane.xlu0 %5065
        %5067 = vadd.xlane.f32.xlu0 %v5036
        %v5068 = vpop.xlane.xlu0 %5067
        %5069 = vadd.xlane.f32.xlu0 %v5038
        %v5070 = vpop.xlane.xlu0 %5069
        %5071 = vadd.xlane.f32.xlu0 %v5040
        %v5072 = vpop.xlane.xlu0 %5071
        %5073 = vadd.xlane.f32.xlu0 %v5042
        %v5074 = vpop.xlane.xlu0 %5073
        %5075 = vadd.xlane.f32.xlu0 %v5044
        %v5076 = vpop.xlane.xlu0 %5075
        %5077 = vadd.xlane.f32.xlu0 %v5046
        %v5078 = vpop.xlane.xlu0 %5077
        %5079 = vadd.xlane.f32.xlu0 %v5048
        %v5080 = vpop.xlane.xlu0 %5079
        %5081 = vadd.xlane.f32.xlu0 %v5050
        %v5082 = vpop.xlane.xlu0 %5081
        %5083 = vadd.xlane.f32.xlu0 %v5052
        %v5084 = vpop.xlane.xlu0 %5083
        %5085 = vadd.xlane.f32.xlu0 %v5054
        %v5086 = vpop.xlane.xlu0 %5085
        %5087 = vadd.xlane.f32.xlu0 %v5056
        %v5088 = vpop.xlane.xlu0 %5087
        %5089 = vadd.xlane.f32.xlu0 %v5058
        %v5090 = vpop.xlane.xlu0 %5089
        %5091 = vadd.xlane.f32.xlu0 %v5060
        %v5092 = vpop.xlane.xlu0 %5091
        %5093 = vadd.xlane.f32.xlu0 %v5062
        %v5094 = vpop.xlane.xlu0 %5093
        %5095 = vadd.xlane.f32.xlu0 %v5064
        %v5096 = vpop.xlane.xlu0 %5095
        %v5097 = vrcp.pop %v5066
        %v5098 = vrcp.pop %v5068
        %v5099 = vrcp.pop %v5070
        %v5100 = vrcp.pop %v5072
        %v5101 = vrcp.pop %v5074
        %v5102 = vrcp.pop %v5076
        %v5103 = vrcp.pop %v5078
        %v5104 = vrcp.pop %v5080
        %v5105 = vrcp.pop %v5082
        %v5106 = vrcp.pop %v5084
        %v5107 = vrcp.pop %v5086
        %v5108 = vrcp.pop %v5088
        %v5109 = vrcp.pop %v5090
        %v5110 = vrcp.pop %v5092
        %v5111 = vrcp.pop %v5094
        %v5112 = vrcp.pop %v5096
        %v5113 = vpack.c.bf16 %v5036, %v5034
        %v5114 = vpack.c.bf16 %v5040, %v5038
        %v5115 = vpack.c.bf16 %v5044, %v5042
        %v5116 = vpack.c.bf16 %v5048, %v5046
        %v5117 = vpack.c.bf16 %v5052, %v5050
        %v5118 = vpack.c.bf16 %v5056, %v5054
        %v5119 = vpack.c.bf16 %v5060, %v5058
        %v5120 = vpack.c.bf16 %v5064, %v5062
        %5129 = vrot.lane.b32.xlu0 %v4655, 64
        %v5130 = vpop.permute.xlu0 %5129
        %5131 = vrot.lane.b32.xlu0 %v4656, 64
        %v5132 = vpop.permute.xlu0 %5131
        %5133 = vrot.lane.b32.xlu0 %v4657, 64
        %v5134 = vpop.permute.xlu0 %5133
        %5135 = vrot.lane.b32.xlu0 %v4658, 64
        %v5136 = vpop.permute.xlu0 %5135
        %5137 = vrot.lane.b32.xlu0 %v4659, 64
        %v5138 = vpop.permute.xlu0 %5137
        %5139 = vrot.lane.b32.xlu0 %v4660, 64
        %v5140 = vpop.permute.xlu0 %5139
        %5141 = vrot.lane.b32.xlu0 %v4661, 64
        %v5142 = vpop.permute.xlu0 %5141
        %5143 = vrot.lane.b32.xlu0 %v4662, 64
        %v5144 = vpop.permute.xlu0 %5143
        %5153 = vmatprep.subr.bf16.mxu0 0
        %5154 = vmatpush1.bf16.msra.mxu0 %v5144
        %5155 = vmatprep.subr.bf16.mxu0 0
        %5156 = vmatpush1.bf16.msra.mxu0 %v5142
        %5157 = vmatprep.subr.bf16.mxu0 0
        %5158 = vmatpush1.bf16.msra.mxu0 %v5140
        %5159 = vmatprep.subr.bf16.mxu0 0
        %5160 = vmatpush1.bf16.msra.mxu0 %v5138
        %5161 = vmatprep.subr.bf16.mxu0 0
        %5162 = vmatpush1.bf16.msra.mxu0 %v5136
        %5163 = vmatprep.subr.bf16.mxu0 0
        %5164 = vmatpush1.bf16.msra.mxu0 %v5134
        %5165 = vmatprep.subr.bf16.mxu0 0
        %5166 = vmatpush1.bf16.msra.mxu0 %v5132
        %5167 = vmatprep.subr.bf16.mxu0 0
        %5168 = vmatpush1.bf16.msra.mxu0 %v5130
        %5169 = vmatprep.subr.bf16.mxu0 0
        %5170 = vmatpush2.bf16.msra.mxu0 0
        %5171 = vmatprep.subr.bf16.mxu0 0
        %5172 = vmatpush2.bf16.msra.mxu0 0
        %5173 = vmatprep.subr.bf16.mxu0 0
        %5174 = vmatpush2.bf16.msra.mxu0 0
        %5175 = vmatprep.subr.bf16.mxu0 0
        %5176 = vmatpush2.bf16.msra.mxu0 0
        %5177 = vmatprep.subr.bf16.mxu0 0
        %5178 = vmatpush2.bf16.msra.mxu0 0
        %5179 = vmatprep.subr.bf16.mxu0 0
        %5180 = vmatpush2.bf16.msra.mxu0 0
        %5181 = vmatprep.subr.bf16.mxu0 0
        %5182 = vmatpush2.bf16.msra.mxu0 0
        %5183 = vmatprep.subr.bf16.mxu0 0
        %5184 = vmatpush2.bf16.msra.mxu0 0
        %5185 = vmatprep.mubr.bf16.mxu0 0
        %5186 = vmatmul.mubr.bf16.gmra.mxu0 %v5113
        %v5187 = vpop.f32.mrf.mxu0
        %v5188 = vadd.f32 0.0, %v5187
        %v5189 = vpop.f32.mrf.mxu0
        %v5190 = vpop.f32.mrf.mxu0
        %v5191 = vadd.f32 0.0, %v5190
        %v5192 = vpop.f32.mrf.mxu0
        %5193 = vmatprep.mubr.bf16.mxu0 0
        %5194 = vmatmul.mubr.bf16.gmra.mxu0 %v5114
        %v5195 = vpop.f32.mrf.mxu0
        %v5196 = vadd.f32 0.0, %v5195
        %v5197 = vpop.f32.mrf.mxu0
        %v5198 = vpop.f32.mrf.mxu0
        %v5199 = vadd.f32 0.0, %v5198
        %v5200 = vpop.f32.mrf.mxu0
        %5201 = vmatprep.mubr.bf16.mxu0 0
        %5202 = vmatmul.mubr.bf16.gmra.mxu0 %v5115
        %v5203 = vpop.f32.mrf.mxu0
        %v5204 = vadd.f32 0.0, %v5203
        %v5205 = vpop.f32.mrf.mxu0
        %v5206 = vpop.f32.mrf.mxu0
        %v5207 = vadd.f32 0.0, %v5206
        %v5208 = vpop.f32.mrf.mxu0
        %5209 = vmatprep.mubr.bf16.mxu0 0
        %5210 = vmatmul.mubr.bf16.gmra.mxu0 %v5116
        %v5211 = vpop.f32.mrf.mxu0
        %v5212 = vadd.f32 0.0, %v5211
        %v5213 = vpop.f32.mrf.mxu0
        %v5214 = vpop.f32.mrf.mxu0
        %v5215 = vadd.f32 0.0, %v5214
        %v5216 = vpop.f32.mrf.mxu0
        %5217 = vmatprep.mubr.bf16.mxu0 0
        %5218 = vmatmul.mubr.bf16.gmra.mxu0 %v5117
        %v5219 = vpop.f32.mrf.mxu0
        %v5220 = vadd.f32 0.0, %v5219
        %v5221 = vpop.f32.mrf.mxu0
        %v5222 = vpop.f32.mrf.mxu0
        %v5223 = vadd.f32 0.0, %v5222
        %v5224 = vpop.f32.mrf.mxu0
        %5225 = vmatprep.mubr.bf16.mxu0 0
        %5226 = vmatmul.mubr.bf16.gmra.mxu0 %v5118
        %v5227 = vpop.f32.mrf.mxu0
        %v5228 = vadd.f32 0.0, %v5227
        %v5229 = vpop.f32.mrf.mxu0
        %v5230 = vpop.f32.mrf.mxu0
        %v5231 = vadd.f32 0.0, %v5230
        %v5232 = vpop.f32.mrf.mxu0
        %5233 = vmatprep.mubr.bf16.mxu0 0
        %5234 = vmatmul.mubr.bf16.gmra.mxu0 %v5119
        %v5235 = vpop.f32.mrf.mxu0
        %v5236 = vadd.f32 0.0, %v5235
        %v5237 = vpop.f32.mrf.mxu0
        %v5238 = vpop.f32.mrf.mxu0
        %v5239 = vadd.f32 0.0, %v5238
        %v5240 = vpop.f32.mrf.mxu0
        %5241 = vmatprep.mubr.bf16.mxu0 0
        %5242 = vmatmul.mubr.bf16.gmra.mxu0 %v5120
        %v5243 = vpop.f32.mrf.mxu0
        %v5244 = vadd.f32 0.0, %v5243
        %v5245 = vpop.f32.mrf.mxu0
        %v5246 = vpop.f32.mrf.mxu0
        %v5247 = vadd.f32 0.0, %v5246
        %v5248 = vpop.f32.mrf.mxu0
        %5249 = vdwg.mxu0
        %v5250 = vmul.f32 %v5188, %v5097
        %v5251 = vmul.f32 %v5191, %v5098
        %v5252 = vmul.f32 %v5196, %v5099
        %v5253 = vmul.f32 %v5199, %v5100
        %v5254 = vmul.f32 %v5204, %v5101
        %v5255 = vmul.f32 %v5207, %v5102
        %v5256 = vmul.f32 %v5212, %v5103
        %v5257 = vmul.f32 %v5215, %v5104
        %v5258 = vmul.f32 %v5220, %v5105
        %v5259 = vmul.f32 %v5223, %v5106
        %v5260 = vmul.f32 %v5228, %v5107
        %v5261 = vmul.f32 %v5231, %v5108
        %v5262 = vmul.f32 %v5236, %v5109
        %v5263 = vmul.f32 %v5239, %v5110
        %v5264 = vmul.f32 %v5244, %v5111
        %v5265 = vmul.f32 %v5247, %v5112
        %v5266 = vpack.c.bf16 %v3991, %v3987
        %v5267 = vpack.c.bf16 %v4001, %v3997
        %v5268 = vpack.c.bf16 %v4011, %v4007
        %v5269 = vpack.c.bf16 %v4021, %v4017
        %v5270 = vpack.c.bf16 %v4031, %v4027
        %v5271 = vpack.c.bf16 %v4041, %v4037
        %v5272 = vpack.c.bf16 %v4051, %v4047
        %v5273 = vpack.c.bf16 %v4061, %v4057
        %v5274 = vpack.c.bf16 %v2159, %v2155
        %v5275 = vpack.c.bf16 %v2169, %v2165
        %v5276 = vpack.c.bf16 %v2179, %v2175
        %v5277 = vpack.c.bf16 %v2189, %v2185
        %v5278 = vpack.c.bf16 %v2199, %v2195
        %v5279 = vpack.c.bf16 %v2209, %v2205
        %v5280 = vpack.c.bf16 %v2219, %v2215
        %v5281 = vpack.c.bf16 %v2229, %v2225
        %v5283 = vsel %vm4357, %v5266, 0
        %v5286 = vsel %vm4357, %v5267, 0
        %v5289 = vsel %vm4357, %v5268, 0
        %v5292 = vsel %vm4357, %v5269, 0
        %v5295 = vsel %vm4357, %v5270, 0
        %v5298 = vsel %vm4357, %v5271, 0
        %v5301 = vsel %vm4357, %v5272, 0
        %v5304 = vsel %vm4357, %v5273, 0
        %v5307 = vsel %vm4357, %v5274, 0
        %v5310 = vsel %vm4357, %v5275, 0
        %v5313 = vsel %vm4357, %v5276, 0
        %v5316 = vsel %vm4357, %v5277, 0
        %v5319 = vsel %vm4357, %v5278, 0
        %v5322 = vsel %vm4357, %v5279, 0
        %v5325 = vsel %vm4357, %v5280, 0
        %v5328 = vsel %vm4357, %v5281, 0
        %5330 = vmatprep.subr.bf16.mxu0 0
        %5331 = vmatpush1.bf16.xpose.msra.mxu0 %v5328
        %5332 = vmatprep.subr.bf16.mxu0 0
        %5333 = vmatpush1.bf16.xpose.msra.mxu0 %v5325
        %5334 = vmatprep.subr.bf16.mxu0 0
        %5335 = vmatpush1.bf16.xpose.msra.mxu0 %v5322
        %5336 = vmatprep.subr.bf16.mxu0 0
        %5337 = vmatpush1.bf16.xpose.msra.mxu0 %v5319
        %5338 = vmatprep.subr.bf16.mxu0 0
        %5339 = vmatpush1.bf16.xpose.msra.mxu0 %v5316
        %5340 = vmatprep.subr.bf16.mxu0 0
        %5341 = vmatpush1.bf16.xpose.msra.mxu0 %v5313
        %5342 = vmatprep.subr.bf16.mxu0 0
        %5343 = vmatpush1.bf16.xpose.msra.mxu0 %v5310
        %5344 = vmatprep.subr.bf16.mxu0 0
        %5345 = vmatpush1.bf16.xpose.msra.mxu0 %v5307
        %5346 = vmatprep.subr.bf16.mxu0 0
        %5347 = vmatpush2.bf16.xpose.msra.mxu0 0
        %5348 = vmatprep.subr.bf16.mxu0 0
        %5349 = vmatpush2.bf16.xpose.msra.mxu0 0
        %5350 = vmatprep.subr.bf16.mxu0 0
        %5351 = vmatpush2.bf16.xpose.msra.mxu0 0
        %5352 = vmatprep.subr.bf16.mxu0 0
        %5353 = vmatpush2.bf16.xpose.msra.mxu0 0
        %5354 = vmatprep.subr.bf16.mxu0 0
        %5355 = vmatpush2.bf16.xpose.msra.mxu0 0
        %5356 = vmatprep.subr.bf16.mxu0 0
        %5357 = vmatpush2.bf16.xpose.msra.mxu0 0
        %5358 = vmatprep.subr.bf16.mxu0 0
        %5359 = vmatpush2.bf16.xpose.msra.mxu0 0
        %5360 = vmatprep.subr.bf16.mxu0 0
        %5361 = vmatpush2.bf16.xpose.msra.mxu0 0
        %5362 = vmatprep.mubr.bf16.mxu0 0
        %5363 = vmatmul.mubr.bf16.gmra.mxu0 %v5283
        %v5364 = vpop.f32.mrf.mxu0
        %v5365 = vadd.f32 0.0, %v5364
        %v5366 = vpop.f32.mrf.mxu0
        %v5367 = vpop.f32.mrf.mxu0
        %v5368 = vadd.f32 0.0, %v5367
        %v5369 = vpop.f32.mrf.mxu0
        %5370 = vmatprep.mubr.bf16.mxu0 0
        %5371 = vmatmul.mubr.bf16.gmra.mxu0 %v5286
        %v5372 = vpop.f32.mrf.mxu0
        %v5373 = vadd.f32 0.0, %v5372
        %v5374 = vpop.f32.mrf.mxu0
        %v5375 = vpop.f32.mrf.mxu0
        %v5376 = vadd.f32 0.0, %v5375
        %v5377 = vpop.f32.mrf.mxu0
        %5378 = vmatprep.mubr.bf16.mxu0 0
        %5379 = vmatmul.mubr.bf16.gmra.mxu0 %v5289
        %v5380 = vpop.f32.mrf.mxu0
        %v5381 = vadd.f32 0.0, %v5380
        %v5382 = vpop.f32.mrf.mxu0
        %v5383 = vpop.f32.mrf.mxu0
        %v5384 = vadd.f32 0.0, %v5383
        %v5385 = vpop.f32.mrf.mxu0
        %5386 = vmatprep.mubr.bf16.mxu0 0
        %5387 = vmatmul.mubr.bf16.gmra.mxu0 %v5292
        %v5388 = vpop.f32.mrf.mxu0
        %v5389 = vadd.f32 0.0, %v5388
        %v5390 = vpop.f32.mrf.mxu0
        %v5391 = vpop.f32.mrf.mxu0
        %v5392 = vadd.f32 0.0, %v5391
        %v5393 = vpop.f32.mrf.mxu0
        %5394 = vmatprep.mubr.bf16.mxu0 0
        %5395 = vmatmul.mubr.bf16.gmra.mxu0 %v5295
        %v5396 = vpop.f32.mrf.mxu0
        %v5397 = vadd.f32 0.0, %v5396
        %v5398 = vpop.f32.mrf.mxu0
        %v5399 = vpop.f32.mrf.mxu0
        %v5400 = vadd.f32 0.0, %v5399
        %v5401 = vpop.f32.mrf.mxu0
        %5402 = vmatprep.mubr.bf16.mxu0 0
        %5403 = vmatmul.mubr.bf16.gmra.mxu0 %v5298
        %v5404 = vpop.f32.mrf.mxu0
        %v5405 = vadd.f32 0.0, %v5404
        %v5406 = vpop.f32.mrf.mxu0
        %v5407 = vpop.f32.mrf.mxu0
        %v5408 = vadd.f32 0.0, %v5407
        %v5409 = vpop.f32.mrf.mxu0
        %5410 = vmatprep.mubr.bf16.mxu0 0
        %5411 = vmatmul.mubr.bf16.gmra.mxu0 %v5301
        %v5412 = vpop.f32.mrf.mxu0
        %v5413 = vadd.f32 0.0, %v5412
        %v5414 = vpop.f32.mrf.mxu0
        %v5415 = vpop.f32.mrf.mxu0
        %v5416 = vadd.f32 0.0, %v5415
        %v5417 = vpop.f32.mrf.mxu0
        %5418 = vmatprep.mubr.bf16.mxu0 0
        %5419 = vmatmul.mubr.bf16.gmra.mxu0 %v5304
        %v5420 = vpop.f32.mrf.mxu0
        %v5421 = vadd.f32 0.0, %v5420
        %v5422 = vpop.f32.mrf.mxu0
        %v5423 = vpop.f32.mrf.mxu0
        %v5424 = vadd.f32 0.0, %v5423
        %v5425 = vpop.f32.mrf.mxu0
        %5426 = vdwg.mxu0
        %v5427 = vsel %vm4325, %v5365, -1e+30
        %v5428 = vsel %vm4326, %v5368, -1e+30
        %v5429 = vsel %vm4327, %v5373, -1e+30
        %v5430 = vsel %vm4328, %v5376, -1e+30
        %v5431 = vsel %vm4329, %v5381, -1e+30
        %v5432 = vsel %vm4330, %v5384, -1e+30
        %v5433 = vsel %vm4331, %v5389, -1e+30
        %v5434 = vsel %vm4332, %v5392, -1e+30
        %v5435 = vsel %vm4333, %v5397, -1e+30
        %v5436 = vsel %vm4334, %v5400, -1e+30
        %v5437 = vsel %vm4335, %v5405, -1e+30
        %v5438 = vsel %vm4336, %v5408, -1e+30
        %v5439 = vsel %vm4337, %v5413, -1e+30
        %v5440 = vsel %vm4338, %v5416, -1e+30
        %v5441 = vsel %vm4339, %v5421, -1e+30
        %v5442 = vsel %vm4340, %v5424, -1e+30
        %5443 = vmax.xlane.f32.xlu0 %v5427
        %v5444 = vpop.xlane.xlu0 %5443
        %5445 = vmax.xlane.f32.xlu0 %v5428
        %v5446 = vpop.xlane.xlu0 %5445
        %5447 = vmax.xlane.f32.xlu0 %v5429
        %v5448 = vpop.xlane.xlu0 %5447
        %5449 = vmax.xlane.f32.xlu0 %v5430
        %v5450 = vpop.xlane.xlu0 %5449
        %5451 = vmax.xlane.f32.xlu0 %v5431
        %v5452 = vpop.xlane.xlu0 %5451
        %5453 = vmax.xlane.f32.xlu0 %v5432
        %v5454 = vpop.xlane.xlu0 %5453
        %5455 = vmax.xlane.f32.xlu0 %v5433
        %v5456 = vpop.xlane.xlu0 %5455
        %5457 = vmax.xlane.f32.xlu0 %v5434
        %v5458 = vpop.xlane.xlu0 %5457
        %5459 = vmax.xlane.f32.xlu0 %v5435
        %v5460 = vpop.xlane.xlu0 %5459
        %5461 = vmax.xlane.f32.xlu0 %v5436
        %v5462 = vpop.xlane.xlu0 %5461
        %5463 = vmax.xlane.f32.xlu0 %v5437
        %v5464 = vpop.xlane.xlu0 %5463
        %5465 = vmax.xlane.f32.xlu0 %v5438
        %v5466 = vpop.xlane.xlu0 %5465
        %5467 = vmax.xlane.f32.xlu0 %v5439
        %v5468 = vpop.xlane.xlu0 %5467
        %5469 = vmax.xlane.f32.xlu0 %v5440
        %v5470 = vpop.xlane.xlu0 %5469
        %5471 = vmax.xlane.f32.xlu0 %v5441
        %v5472 = vpop.xlane.xlu0 %5471
        %5473 = vmax.xlane.f32.xlu0 %v5442
        %v5474 = vpop.xlane.xlu0 %5473
        %v5475 = vsub.f32 %v5427, %v5444
        %v5476 = vsub.f32 %v5428, %v5446
        %v5477 = vsub.f32 %v5429, %v5448
        %v5478 = vsub.f32 %v5430, %v5450
        %v5479 = vsub.f32 %v5431, %v5452
        %v5480 = vsub.f32 %v5432, %v5454
        %v5481 = vsub.f32 %v5433, %v5456
        %v5482 = vsub.f32 %v5434, %v5458
        %v5483 = vsub.f32 %v5435, %v5460
        %v5484 = vsub.f32 %v5436, %v5462
        %v5485 = vsub.f32 %v5437, %v5464
        %v5486 = vsub.f32 %v5438, %v5466
        %v5487 = vsub.f32 %v5439, %v5468
        %v5488 = vsub.f32 %v5440, %v5470
        %v5489 = vsub.f32 %v5441, %v5472
        %v5490 = vsub.f32 %v5442, %v5474
        %v5491 = vmul.f32 %v5475, 1.442695
        %v5492 = vpow.pop %v5491
        %v5493 = vmul.f32 %v5476, 1.442695
        %v5494 = vpow.pop %v5493
        %v5495 = vmul.f32 %v5477, 1.442695
        %v5496 = vpow.pop %v5495
        %v5497 = vmul.f32 %v5478, 1.442695
        %v5498 = vpow.pop %v5497
        %v5499 = vmul.f32 %v5479, 1.442695
        %v5500 = vpow.pop %v5499
        %v5501 = vmul.f32 %v5480, 1.442695
        %v5502 = vpow.pop %v5501
        %v5503 = vmul.f32 %v5481, 1.442695
        %v5504 = vpow.pop %v5503
        %v5505 = vmul.f32 %v5482, 1.442695
        %v5506 = vpow.pop %v5505
        %v5507 = vmul.f32 %v5483, 1.442695
        %v5508 = vpow.pop %v5507
        %v5509 = vmul.f32 %v5484, 1.442695
        %v5510 = vpow.pop %v5509
        %v5511 = vmul.f32 %v5485, 1.442695
        %v5512 = vpow.pop %v5511
        %v5513 = vmul.f32 %v5486, 1.442695
        %v5514 = vpow.pop %v5513
        %v5515 = vmul.f32 %v5487, 1.442695
        %v5516 = vpow.pop %v5515
        %v5517 = vmul.f32 %v5488, 1.442695
        %v5518 = vpow.pop %v5517
        %v5519 = vmul.f32 %v5489, 1.442695
        %v5520 = vpow.pop %v5519
        %v5521 = vmul.f32 %v5490, 1.442695
        %v5522 = vpow.pop %v5521
        %5523 = vadd.xlane.f32.xlu0 %v5492
        %v5524 = vpop.xlane.xlu0 %5523
        %5525 = vadd.xlane.f32.xlu0 %v5494
        %v5526 = vpop.xlane.xlu0 %5525
        %5527 = vadd.xlane.f32.xlu0 %v5496
        %v5528 = vpop.xlane.xlu0 %5527
        %5529 = vadd.xlane.f32.xlu0 %v5498
        %v5530 = vpop.xlane.xlu0 %5529
        %5531 = vadd.xlane.f32.xlu0 %v5500
        %v5532 = vpop.xlane.xlu0 %5531
        %5533 = vadd.xlane.f32.xlu0 %v5502
        %v5534 = vpop.xlane.xlu0 %5533
        %5535 = vadd.xlane.f32.xlu0 %v5504
        %v5536 = vpop.xlane.xlu0 %5535
        %5537 = vadd.xlane.f32.xlu0 %v5506
        %v5538 = vpop.xlane.xlu0 %5537
        %5539 = vadd.xlane.f32.xlu0 %v5508
        %v5540 = vpop.xlane.xlu0 %5539
        %5541 = vadd.xlane.f32.xlu0 %v5510
        %v5542 = vpop.xlane.xlu0 %5541
        %5543 = vadd.xlane.f32.xlu0 %v5512
        %v5544 = vpop.xlane.xlu0 %5543
        %5545 = vadd.xlane.f32.xlu0 %v5514
        %v5546 = vpop.xlane.xlu0 %5545
        %5547 = vadd.xlane.f32.xlu0 %v5516
        %v5548 = vpop.xlane.xlu0 %5547
        %5549 = vadd.xlane.f32.xlu0 %v5518
        %v5550 = vpop.xlane.xlu0 %5549
        %5551 = vadd.xlane.f32.xlu0 %v5520
        %v5552 = vpop.xlane.xlu0 %5551
        %5553 = vadd.xlane.f32.xlu0 %v5522
        %v5554 = vpop.xlane.xlu0 %5553
        %v5555 = vrcp.pop %v5524
        %v5556 = vrcp.pop %v5526
        %v5557 = vrcp.pop %v5528
        %v5558 = vrcp.pop %v5530
        %v5559 = vrcp.pop %v5532
        %v5560 = vrcp.pop %v5534
        %v5561 = vrcp.pop %v5536
        %v5562 = vrcp.pop %v5538
        %v5563 = vrcp.pop %v5540
        %v5564 = vrcp.pop %v5542
        %v5565 = vrcp.pop %v5544
        %v5566 = vrcp.pop %v5546
        %v5567 = vrcp.pop %v5548
        %v5568 = vrcp.pop %v5550
        %v5569 = vrcp.pop %v5552
        %v5570 = vrcp.pop %v5554
        %v5571 = vpack.c.bf16 %v5494, %v5492
        %v5572 = vpack.c.bf16 %v5498, %v5496
        %v5573 = vpack.c.bf16 %v5502, %v5500
        %v5574 = vpack.c.bf16 %v5506, %v5504
        %v5575 = vpack.c.bf16 %v5510, %v5508
        %v5576 = vpack.c.bf16 %v5514, %v5512
        %v5577 = vpack.c.bf16 %v5518, %v5516
        %v5578 = vpack.c.bf16 %v5522, %v5520
        %v5579 = vpack.c.bf16 %v2611, %v2607
        %v5580 = vpack.c.bf16 %v2621, %v2617
        %v5581 = vpack.c.bf16 %v2631, %v2627
        %v5582 = vpack.c.bf16 %v2641, %v2637
        %v5583 = vpack.c.bf16 %v2651, %v2647
        %v5584 = vpack.c.bf16 %v2661, %v2657
        %v5585 = vpack.c.bf16 %v2671, %v2667
        %v5586 = vpack.c.bf16 %v2681, %v2677
        %5587 = vmatprep.subr.bf16.mxu0 0
        %5588 = vmatpush1.bf16.msra.mxu0 %v5586
        %5589 = vmatprep.subr.bf16.mxu0 0
        %5590 = vmatpush1.bf16.msra.mxu0 %v5585
        %5591 = vmatprep.subr.bf16.mxu0 0
        %5592 = vmatpush1.bf16.msra.mxu0 %v5584
        %5593 = vmatprep.subr.bf16.mxu0 0
        %5594 = vmatpush1.bf16.msra.mxu0 %v5583
        %5595 = vmatprep.subr.bf16.mxu0 0
        %5596 = vmatpush1.bf16.msra.mxu0 %v5582
        %5597 = vmatprep.subr.bf16.mxu0 0
        %5598 = vmatpush1.bf16.msra.mxu0 %v5581
        %5599 = vmatprep.subr.bf16.mxu0 0
        %5600 = vmatpush1.bf16.msra.mxu0 %v5580
        %5601 = vmatprep.subr.bf16.mxu0 0
        %5602 = vmatpush1.bf16.msra.mxu0 %v5579
        %5603 = vmatprep.subr.bf16.mxu0 0
        %5604 = vmatpush2.bf16.msra.mxu0 0
        %5605 = vmatprep.subr.bf16.mxu0 0
        %5606 = vmatpush2.bf16.msra.mxu0 0
        %5607 = vmatprep.subr.bf16.mxu0 0
        %5608 = vmatpush2.bf16.msra.mxu0 0
        %5609 = vmatprep.subr.bf16.mxu0 0
        %5610 = vmatpush2.bf16.msra.mxu0 0
        %5611 = vmatprep.subr.bf16.mxu0 0
        %5612 = vmatpush2.bf16.msra.mxu0 0
        %5613 = vmatprep.subr.bf16.mxu0 0
        %5614 = vmatpush2.bf16.msra.mxu0 0
        %5615 = vmatprep.subr.bf16.mxu0 0
        %5616 = vmatpush2.bf16.msra.mxu0 0
        %5617 = vmatprep.subr.bf16.mxu0 0
        %5618 = vmatpush2.bf16.msra.mxu0 0
        %5619 = vmatprep.mubr.bf16.mxu0 0
        %5620 = vmatmul.mubr.bf16.gmra.mxu0 %v5571
        %v5621 = vpop.f32.mrf.mxu0
        %v5622 = vadd.f32 0.0, %v5621
        %v5623 = vpop.f32.mrf.mxu0
        %v5624 = vpop.f32.mrf.mxu0
        %v5625 = vadd.f32 0.0, %v5624
        %v5626 = vpop.f32.mrf.mxu0
        %5627 = vmatprep.mubr.bf16.mxu0 0
        %5628 = vmatmul.mubr.bf16.gmra.mxu0 %v5572
        %v5629 = vpop.f32.mrf.mxu0
        %v5630 = vadd.f32 0.0, %v5629
        %v5631 = vpop.f32.mrf.mxu0
        %v5632 = vpop.f32.mrf.mxu0
        %v5633 = vadd.f32 0.0, %v5632
        %v5634 = vpop.f32.mrf.mxu0
        %5635 = vmatprep.mubr.bf16.mxu0 0
        %5636 = vmatmul.mubr.bf16.gmra.mxu0 %v5573
        %v5637 = vpop.f32.mrf.mxu0
        %v5638 = vadd.f32 0.0, %v5637
        %v5639 = vpop.f32.mrf.mxu0
        %v5640 = vpop.f32.mrf.mxu0
        %v5641 = vadd.f32 0.0, %v5640
        %v5642 = vpop.f32.mrf.mxu0
        %5643 = vmatprep.mubr.bf16.mxu0 0
        %5644 = vmatmul.mubr.bf16.gmra.mxu0 %v5574
        %v5645 = vpop.f32.mrf.mxu0
        %v5646 = vadd.f32 0.0, %v5645
        %v5647 = vpop.f32.mrf.mxu0
        %v5648 = vpop.f32.mrf.mxu0
        %v5649 = vadd.f32 0.0, %v5648
        %v5650 = vpop.f32.mrf.mxu0
        %5651 = vmatprep.mubr.bf16.mxu0 0
        %5652 = vmatmul.mubr.bf16.gmra.mxu0 %v5575
        %v5653 = vpop.f32.mrf.mxu0
        %v5654 = vadd.f32 0.0, %v5653
        %v5655 = vpop.f32.mrf.mxu0
        %v5656 = vpop.f32.mrf.mxu0
        %v5657 = vadd.f32 0.0, %v5656
        %v5658 = vpop.f32.mrf.mxu0
        %5659 = vmatprep.mubr.bf16.mxu0 0
        %5660 = vmatmul.mubr.bf16.gmra.mxu0 %v5576
        %v5661 = vpop.f32.mrf.mxu0
        %v5662 = vadd.f32 0.0, %v5661
        %v5663 = vpop.f32.mrf.mxu0
        %v5664 = vpop.f32.mrf.mxu0
        %v5665 = vadd.f32 0.0, %v5664
        %v5666 = vpop.f32.mrf.mxu0
        %5667 = vmatprep.mubr.bf16.mxu0 0
        %5668 = vmatmul.mubr.bf16.gmra.mxu0 %v5577
        %v5669 = vpop.f32.mrf.mxu0
        %v5670 = vadd.f32 0.0, %v5669
        %v5671 = vpop.f32.mrf.mxu0
        %v5672 = vpop.f32.mrf.mxu0
        %v5673 = vadd.f32 0.0, %v5672
        %v5674 = vpop.f32.mrf.mxu0
        %5675 = vmatprep.mubr.bf16.mxu0 0
        %5676 = vmatmul.mubr.bf16.gmra.mxu0 %v5578
        %v5677 = vpop.f32.mrf.mxu0
        %v5678 = vadd.f32 0.0, %v5677
        %v5679 = vpop.f32.mrf.mxu0
        %v5680 = vpop.f32.mrf.mxu0
        %v5681 = vadd.f32 0.0, %v5680
        %v5682 = vpop.f32.mrf.mxu0
        %5683 = vdwg.mxu0
        %v5684 = vmul.f32 %v5622, %v5555
        %v5685 = vmul.f32 %v5625, %v5556
        %v5686 = vmul.f32 %v5630, %v5557
        %v5687 = vmul.f32 %v5633, %v5558
        %v5688 = vmul.f32 %v5638, %v5559
        %v5689 = vmul.f32 %v5641, %v5560
        %v5690 = vmul.f32 %v5646, %v5561
        %v5691 = vmul.f32 %v5649, %v5562
        %v5692 = vmul.f32 %v5654, %v5563
        %v5693 = vmul.f32 %v5657, %v5564
        %v5694 = vmul.f32 %v5662, %v5565
        %v5695 = vmul.f32 %v5665, %v5566
        %v5696 = vmul.f32 %v5670, %v5567
        %v5697 = vmul.f32 %v5673, %v5568
        %v5698 = vmul.f32 %v5678, %v5569
        %v5699 = vmul.f32 %v5681, %v5570
        %5708 = vrot.lane.b32.xlu0 %v5266, 64
        %v5709 = vpop.permute.xlu0 %5708
        %5710 = vrot.lane.b32.xlu0 %v5267, 64
        %v5711 = vpop.permute.xlu0 %5710
        %5712 = vrot.lane.b32.xlu0 %v5268, 64
        %v5713 = vpop.permute.xlu0 %5712
        %5714 = vrot.lane.b32.xlu0 %v5269, 64
        %v5715 = vpop.permute.xlu0 %5714
        %5716 = vrot.lane.b32.xlu0 %v5270, 64
        %v5717 = vpop.permute.xlu0 %5716
        %5718 = vrot.lane.b32.xlu0 %v5271, 64
        %v5719 = vpop.permute.xlu0 %5718
        %5720 = vrot.lane.b32.xlu0 %v5272, 64
        %v5721 = vpop.permute.xlu0 %5720
        %5722 = vrot.lane.b32.xlu0 %v5273, 64
        %v5723 = vpop.permute.xlu0 %5722
        %5732 = vrot.lane.b32.xlu0 %v5274, 64
        %v5733 = vpop.permute.xlu0 %5732
        %5734 = vrot.lane.b32.xlu0 %v5275, 64
        %v5735 = vpop.permute.xlu0 %5734
        %5736 = vrot.lane.b32.xlu0 %v5276, 64
        %v5737 = vpop.permute.xlu0 %5736
        %5738 = vrot.lane.b32.xlu0 %v5277, 64
        %v5739 = vpop.permute.xlu0 %5738
        %5740 = vrot.lane.b32.xlu0 %v5278, 64
        %v5741 = vpop.permute.xlu0 %5740
        %5742 = vrot.lane.b32.xlu0 %v5279, 64
        %v5743 = vpop.permute.xlu0 %5742
        %5744 = vrot.lane.b32.xlu0 %v5280, 64
        %v5745 = vpop.permute.xlu0 %5744
        %5746 = vrot.lane.b32.xlu0 %v5281, 64
        %v5747 = vpop.permute.xlu0 %5746
        %v5749 = vsel %vm4357, %v5709, 0
        %v5752 = vsel %vm4357, %v5711, 0
        %v5755 = vsel %vm4357, %v5713, 0
        %v5758 = vsel %vm4357, %v5715, 0
        %v5761 = vsel %vm4357, %v5717, 0
        %v5764 = vsel %vm4357, %v5719, 0
        %v5767 = vsel %vm4357, %v5721, 0
        %v5770 = vsel %vm4357, %v5723, 0
        %v5773 = vsel %vm4357, %v5733, 0
        %v5776 = vsel %vm4357, %v5735, 0
        %v5779 = vsel %vm4357, %v5737, 0
        %v5782 = vsel %vm4357, %v5739, 0
        %v5785 = vsel %vm4357, %v5741, 0
        %v5788 = vsel %vm4357, %v5743, 0
        %v5791 = vsel %vm4357, %v5745, 0
        %v5794 = vsel %vm4357, %v5747, 0
        %5796 = vmatprep.subr.bf16.mxu0 0
        %5797 = vmatpush1.bf16.xpose.msra.mxu0 %v5794
        %5798 = vmatprep.subr.bf16.mxu0 0
        %5799 = vmatpush1.bf16.xpose.msra.mxu0 %v5791
        %5800 = vmatprep.subr.bf16.mxu0 0
        %5801 = vmatpush1.bf16.xpose.msra.mxu0 %v5788
        %5802 = vmatprep.subr.bf16.mxu0 0
        %5803 = vmatpush1.bf16.xpose.msra.mxu0 %v5785
        %5804 = vmatprep.subr.bf16.mxu0 0
        %5805 = vmatpush1.bf16.xpose.msra.mxu0 %v5782
        %5806 = vmatprep.subr.bf16.mxu0 0
        %5807 = vmatpush1.bf16.xpose.msra.mxu0 %v5779
        %5808 = vmatprep.subr.bf16.mxu0 0
        %5809 = vmatpush1.bf16.xpose.msra.mxu0 %v5776
        %5810 = vmatprep.subr.bf16.mxu0 0
        %5811 = vmatpush1.bf16.xpose.msra.mxu0 %v5773
        %5812 = vmatprep.subr.bf16.mxu0 0
        %5813 = vmatpush2.bf16.xpose.msra.mxu0 0
        %5814 = vmatprep.subr.bf16.mxu0 0
        %5815 = vmatpush2.bf16.xpose.msra.mxu0 0
        %5816 = vmatprep.subr.bf16.mxu0 0
        %5817 = vmatpush2.bf16.xpose.msra.mxu0 0
        %5818 = vmatprep.subr.bf16.mxu0 0
        %5819 = vmatpush2.bf16.xpose.msra.mxu0 0
        %5820 = vmatprep.subr.bf16.mxu0 0
        %5821 = vmatpush2.bf16.xpose.msra.mxu0 0
        %5822 = vmatprep.subr.bf16.mxu0 0
        %5823 = vmatpush2.bf16.xpose.msra.mxu0 0
        %5824 = vmatprep.subr.bf16.mxu0 0
        %5825 = vmatpush2.bf16.xpose.msra.mxu0 0
        %5826 = vmatprep.subr.bf16.mxu0 0
        %5827 = vmatpush2.bf16.xpose.msra.mxu0 0
        %5828 = vmatprep.mubr.bf16.mxu0 0
        %5829 = vmatmul.mubr.bf16.gmra.mxu0 %v5749
        %v5830 = vpop.f32.mrf.mxu0
        %v5831 = vadd.f32 0.0, %v5830
        %v5832 = vpop.f32.mrf.mxu0
        %v5833 = vpop.f32.mrf.mxu0
        %v5834 = vadd.f32 0.0, %v5833
        %v5835 = vpop.f32.mrf.mxu0
        %5836 = vmatprep.mubr.bf16.mxu0 0
        %5837 = vmatmul.mubr.bf16.gmra.mxu0 %v5752
        %v5838 = vpop.f32.mrf.mxu0
        %v5839 = vadd.f32 0.0, %v5838
        %v5840 = vpop.f32.mrf.mxu0
        %v5841 = vpop.f32.mrf.mxu0
        %v5842 = vadd.f32 0.0, %v5841
        %v5843 = vpop.f32.mrf.mxu0
        %5844 = vmatprep.mubr.bf16.mxu0 0
        %5845 = vmatmul.mubr.bf16.gmra.mxu0 %v5755
        %v5846 = vpop.f32.mrf.mxu0
        %v5847 = vadd.f32 0.0, %v5846
        %v5848 = vpop.f32.mrf.mxu0
        %v5849 = vpop.f32.mrf.mxu0
        %v5850 = vadd.f32 0.0, %v5849
        %v5851 = vpop.f32.mrf.mxu0
        %5852 = vmatprep.mubr.bf16.mxu0 0
        %5853 = vmatmul.mubr.bf16.gmra.mxu0 %v5758
        %v5854 = vpop.f32.mrf.mxu0
        %v5855 = vadd.f32 0.0, %v5854
        %v5856 = vpop.f32.mrf.mxu0
        %v5857 = vpop.f32.mrf.mxu0
        %v5858 = vadd.f32 0.0, %v5857
        %v5859 = vpop.f32.mrf.mxu0
        %5860 = vmatprep.mubr.bf16.mxu0 0
        %5861 = vmatmul.mubr.bf16.gmra.mxu0 %v5761
        %v5862 = vpop.f32.mrf.mxu0
        %v5863 = vadd.f32 0.0, %v5862
        %v5864 = vpop.f32.mrf.mxu0
        %v5865 = vpop.f32.mrf.mxu0
        %v5866 = vadd.f32 0.0, %v5865
        %v5867 = vpop.f32.mrf.mxu0
        %5868 = vmatprep.mubr.bf16.mxu0 0
        %5869 = vmatmul.mubr.bf16.gmra.mxu0 %v5764
        %v5870 = vpop.f32.mrf.mxu0
        %v5871 = vadd.f32 0.0, %v5870
        %v5872 = vpop.f32.mrf.mxu0
        %v5873 = vpop.f32.mrf.mxu0
        %v5874 = vadd.f32 0.0, %v5873
        %v5875 = vpop.f32.mrf.mxu0
        %5876 = vmatprep.mubr.bf16.mxu0 0
        %5877 = vmatmul.mubr.bf16.gmra.mxu0 %v5767
        %v5878 = vpop.f32.mrf.mxu0
        %v5879 = vadd.f32 0.0, %v5878
        %v5880 = vpop.f32.mrf.mxu0
        %v5881 = vpop.f32.mrf.mxu0
        %v5882 = vadd.f32 0.0, %v5881
        %v5883 = vpop.f32.mrf.mxu0
        %5884 = vmatprep.mubr.bf16.mxu0 0
        %5885 = vmatmul.mubr.bf16.gmra.mxu0 %v5770
        %v5886 = vpop.f32.mrf.mxu0
        %v5887 = vadd.f32 0.0, %v5886
        %v5888 = vpop.f32.mrf.mxu0
        %v5889 = vpop.f32.mrf.mxu0
        %v5890 = vadd.f32 0.0, %v5889
        %v5891 = vpop.f32.mrf.mxu0
        %5892 = vdwg.mxu0
        %v5893 = vsel %vm4325, %v5831, -1e+30
        %v5894 = vsel %vm4326, %v5834, -1e+30
        %v5895 = vsel %vm4327, %v5839, -1e+30
        %v5896 = vsel %vm4328, %v5842, -1e+30
        %v5897 = vsel %vm4329, %v5847, -1e+30
        %v5898 = vsel %vm4330, %v5850, -1e+30
        %v5899 = vsel %vm4331, %v5855, -1e+30
        %v5900 = vsel %vm4332, %v5858, -1e+30
        %v5901 = vsel %vm4333, %v5863, -1e+30
        %v5902 = vsel %vm4334, %v5866, -1e+30
        %v5903 = vsel %vm4335, %v5871, -1e+30
        %v5904 = vsel %vm4336, %v5874, -1e+30
        %v5905 = vsel %vm4337, %v5879, -1e+30
        %v5906 = vsel %vm4338, %v5882, -1e+30
        %v5907 = vsel %vm4339, %v5887, -1e+30
        %v5908 = vsel %vm4340, %v5890, -1e+30
        %5909 = vmax.xlane.f32.xlu0 %v5893
        %v5910 = vpop.xlane.xlu0 %5909
        %5911 = vmax.xlane.f32.xlu0 %v5894
        %v5912 = vpop.xlane.xlu0 %5911
        %5913 = vmax.xlane.f32.xlu0 %v5895
        %v5914 = vpop.xlane.xlu0 %5913
        %5915 = vmax.xlane.f32.xlu0 %v5896
        %v5916 = vpop.xlane.xlu0 %5915
        %5917 = vmax.xlane.f32.xlu0 %v5897
        %v5918 = vpop.xlane.xlu0 %5917
        %5919 = vmax.xlane.f32.xlu0 %v5898
        %v5920 = vpop.xlane.xlu0 %5919
        %5921 = vmax.xlane.f32.xlu0 %v5899
        %v5922 = vpop.xlane.xlu0 %5921
        %5923 = vmax.xlane.f32.xlu0 %v5900
        %v5924 = vpop.xlane.xlu0 %5923
        %5925 = vmax.xlane.f32.xlu0 %v5901
        %v5926 = vpop.xlane.xlu0 %5925
        %5927 = vmax.xlane.f32.xlu0 %v5902
        %v5928 = vpop.xlane.xlu0 %5927
        %5929 = vmax.xlane.f32.xlu0 %v5903
        %v5930 = vpop.xlane.xlu0 %5929
        %5931 = vmax.xlane.f32.xlu0 %v5904
        %v5932 = vpop.xlane.xlu0 %5931
        %5933 = vmax.xlane.f32.xlu0 %v5905
        %v5934 = vpop.xlane.xlu0 %5933
        %5935 = vmax.xlane.f32.xlu0 %v5906
        %v5936 = vpop.xlane.xlu0 %5935
        %5937 = vmax.xlane.f32.xlu0 %v5907
        %v5938 = vpop.xlane.xlu0 %5937
        %5939 = vmax.xlane.f32.xlu0 %v5908
        %v5940 = vpop.xlane.xlu0 %5939
        %v5941 = vsub.f32 %v5893, %v5910
        %v5942 = vsub.f32 %v5894, %v5912
        %v5943 = vsub.f32 %v5895, %v5914
        %v5944 = vsub.f32 %v5896, %v5916
        %v5945 = vsub.f32 %v5897, %v5918
        %v5946 = vsub.f32 %v5898, %v5920
        %v5947 = vsub.f32 %v5899, %v5922
        %v5948 = vsub.f32 %v5900, %v5924
        %v5949 = vsub.f32 %v5901, %v5926
        %v5950 = vsub.f32 %v5902, %v5928
        %v5951 = vsub.f32 %v5903, %v5930
        %v5952 = vsub.f32 %v5904, %v5932
        %v5953 = vsub.f32 %v5905, %v5934
        %v5954 = vsub.f32 %v5906, %v5936
        %v5955 = vsub.f32 %v5907, %v5938
        %v5956 = vsub.f32 %v5908, %v5940
        %v5957 = vmul.f32 %v5941, 1.442695
        %v5958 = vpow.pop %v5957
        %v5959 = vmul.f32 %v5942, 1.442695
        %v5960 = vpow.pop %v5959
        %v5961 = vmul.f32 %v5943, 1.442695
        %v5962 = vpow.pop %v5961
        %v5963 = vmul.f32 %v5944, 1.442695
        %v5964 = vpow.pop %v5963
        %v5965 = vmul.f32 %v5945, 1.442695
        %v5966 = vpow.pop %v5965
        %v5967 = vmul.f32 %v5946, 1.442695
        %v5968 = vpow.pop %v5967
        %v5969 = vmul.f32 %v5947, 1.442695
        %v5970 = vpow.pop %v5969
        %v5971 = vmul.f32 %v5948, 1.442695
        %v5972 = vpow.pop %v5971
        %v5973 = vmul.f32 %v5949, 1.442695
        %v5974 = vpow.pop %v5973
        %v5975 = vmul.f32 %v5950, 1.442695
        %v5976 = vpow.pop %v5975
        %v5977 = vmul.f32 %v5951, 1.442695
        %v5978 = vpow.pop %v5977
        %v5979 = vmul.f32 %v5952, 1.442695
        %v5980 = vpow.pop %v5979
        %v5981 = vmul.f32 %v5953, 1.442695
        %v5982 = vpow.pop %v5981
        %v5983 = vmul.f32 %v5954, 1.442695
        %v5984 = vpow.pop %v5983
        %v5985 = vmul.f32 %v5955, 1.442695
        %v5986 = vpow.pop %v5985
        %v5987 = vmul.f32 %v5956, 1.442695
        %v5988 = vpow.pop %v5987
        %5989 = vadd.xlane.f32.xlu0 %v5958
        %v5990 = vpop.xlane.xlu0 %5989
        %5991 = vadd.xlane.f32.xlu0 %v5960
        %v5992 = vpop.xlane.xlu0 %5991
        %5993 = vadd.xlane.f32.xlu0 %v5962
        %v5994 = vpop.xlane.xlu0 %5993
        %5995 = vadd.xlane.f32.xlu0 %v5964
        %v5996 = vpop.xlane.xlu0 %5995
        %5997 = vadd.xlane.f32.xlu0 %v5966
        %v5998 = vpop.xlane.xlu0 %5997
        %5999 = vadd.xlane.f32.xlu0 %v5968
        %v6000 = vpop.xlane.xlu0 %5999
        %6001 = vadd.xlane.f32.xlu0 %v5970
        %v6002 = vpop.xlane.xlu0 %6001
        %6003 = vadd.xlane.f32.xlu0 %v5972
        %v6004 = vpop.xlane.xlu0 %6003
        %6005 = vadd.xlane.f32.xlu0 %v5974
        %v6006 = vpop.xlane.xlu0 %6005
        %6007 = vadd.xlane.f32.xlu0 %v5976
        %v6008 = vpop.xlane.xlu0 %6007
        %6009 = vadd.xlane.f32.xlu0 %v5978
        %v6010 = vpop.xlane.xlu0 %6009
        %6011 = vadd.xlane.f32.xlu0 %v5980
        %v6012 = vpop.xlane.xlu0 %6011
        %6013 = vadd.xlane.f32.xlu0 %v5982
        %v6014 = vpop.xlane.xlu0 %6013
        %6015 = vadd.xlane.f32.xlu0 %v5984
        %v6016 = vpop.xlane.xlu0 %6015
        %6017 = vadd.xlane.f32.xlu0 %v5986
        %v6018 = vpop.xlane.xlu0 %6017
        %6019 = vadd.xlane.f32.xlu0 %v5988
        %v6020 = vpop.xlane.xlu0 %6019
        %v6021 = vrcp.pop %v5990
        %v6022 = vrcp.pop %v5992
        %v6023 = vrcp.pop %v5994
        %v6024 = vrcp.pop %v5996
        %v6025 = vrcp.pop %v5998
        %v6026 = vrcp.pop %v6000
        %v6027 = vrcp.pop %v6002
        %v6028 = vrcp.pop %v6004
        %v6029 = vrcp.pop %v6006
        %v6030 = vrcp.pop %v6008
        %v6031 = vrcp.pop %v6010
        %v6032 = vrcp.pop %v6012
        %v6033 = vrcp.pop %v6014
        %v6034 = vrcp.pop %v6016
        %v6035 = vrcp.pop %v6018
        %v6036 = vrcp.pop %v6020
        %v6037 = vpack.c.bf16 %v5960, %v5958
        %v6038 = vpack.c.bf16 %v5964, %v5962
        %v6039 = vpack.c.bf16 %v5968, %v5966
        %v6040 = vpack.c.bf16 %v5972, %v5970
        %v6041 = vpack.c.bf16 %v5976, %v5974
        %v6042 = vpack.c.bf16 %v5980, %v5978
        %v6043 = vpack.c.bf16 %v5984, %v5982
        %v6044 = vpack.c.bf16 %v5988, %v5986
        %6053 = vrot.lane.b32.xlu0 %v5579, 64
        %v6054 = vpop.permute.xlu0 %6053
        %6055 = vrot.lane.b32.xlu0 %v5580, 64
        %v6056 = vpop.permute.xlu0 %6055
        %6057 = vrot.lane.b32.xlu0 %v5581, 64
        %v6058 = vpop.permute.xlu0 %6057
        %6059 = vrot.lane.b32.xlu0 %v5582, 64
        %v6060 = vpop.permute.xlu0 %6059
        %6061 = vrot.lane.b32.xlu0 %v5583, 64
        %v6062 = vpop.permute.xlu0 %6061
        %6063 = vrot.lane.b32.xlu0 %v5584, 64
        %v6064 = vpop.permute.xlu0 %6063
        %6065 = vrot.lane.b32.xlu0 %v5585, 64
        %v6066 = vpop.permute.xlu0 %6065
        %6067 = vrot.lane.b32.xlu0 %v5586, 64
        %v6068 = vpop.permute.xlu0 %6067
        %6077 = vmatprep.subr.bf16.mxu0 0
        %6078 = vmatpush1.bf16.msra.mxu0 %v6068
        %6079 = vmatprep.subr.bf16.mxu0 0
        %6080 = vmatpush1.bf16.msra.mxu0 %v6066
        %6081 = vmatprep.subr.bf16.mxu0 0
        %6082 = vmatpush1.bf16.msra.mxu0 %v6064
        %6083 = vmatprep.subr.bf16.mxu0 0
        %6084 = vmatpush1.bf16.msra.mxu0 %v6062
        %6085 = vmatprep.subr.bf16.mxu0 0
        %6086 = vmatpush1.bf16.msra.mxu0 %v6060
        %6087 = vmatprep.subr.bf16.mxu0 0
        %6088 = vmatpush1.bf16.msra.mxu0 %v6058
        %6089 = vmatprep.subr.bf16.mxu0 0
        %6090 = vmatpush1.bf16.msra.mxu0 %v6056
        %6091 = vmatprep.subr.bf16.mxu0 0
        %6092 = vmatpush1.bf16.msra.mxu0 %v6054
        %6093 = vmatprep.subr.bf16.mxu0 0
        %6094 = vmatpush2.bf16.msra.mxu0 0
        %6095 = vmatprep.subr.bf16.mxu0 0
        %6096 = vmatpush2.bf16.msra.mxu0 0
        %6097 = vmatprep.subr.bf16.mxu0 0
        %6098 = vmatpush2.bf16.msra.mxu0 0
        %6099 = vmatprep.subr.bf16.mxu0 0
        %6100 = vmatpush2.bf16.msra.mxu0 0
        %6101 = vmatprep.subr.bf16.mxu0 0
        %6102 = vmatpush2.bf16.msra.mxu0 0
        %6103 = vmatprep.subr.bf16.mxu0 0
        %6104 = vmatpush2.bf16.msra.mxu0 0
        %6105 = vmatprep.subr.bf16.mxu0 0
        %6106 = vmatpush2.bf16.msra.mxu0 0
        %6107 = vmatprep.subr.bf16.mxu0 0
        %6108 = vmatpush2.bf16.msra.mxu0 0
        %6109 = vmatprep.mubr.bf16.mxu0 0
        %6110 = vmatmul.mubr.bf16.gmra.mxu0 %v6037
        %v6111 = vpop.f32.mrf.mxu0
        %v6112 = vadd.f32 0.0, %v6111
        %v6113 = vpop.f32.mrf.mxu0
        %v6114 = vpop.f32.mrf.mxu0
        %v6115 = vadd.f32 0.0, %v6114
        %v6116 = vpop.f32.mrf.mxu0
        %6117 = vmatprep.mubr.bf16.mxu0 0
        %6118 = vmatmul.mubr.bf16.gmra.mxu0 %v6038
        %v6119 = vpop.f32.mrf.mxu0
        %v6120 = vadd.f32 0.0, %v6119
        %v6121 = vpop.f32.mrf.mxu0
        %v6122 = vpop.f32.mrf.mxu0
        %v6123 = vadd.f32 0.0, %v6122
        %v6124 = vpop.f32.mrf.mxu0
        %6125 = vmatprep.mubr.bf16.mxu0 0
        %6126 = vmatmul.mubr.bf16.gmra.mxu0 %v6039
        %v6127 = vpop.f32.mrf.mxu0
        %v6128 = vadd.f32 0.0, %v6127
        %v6129 = vpop.f32.mrf.mxu0
        %v6130 = vpop.f32.mrf.mxu0
        %v6131 = vadd.f32 0.0, %v6130
        %v6132 = vpop.f32.mrf.mxu0
        %6133 = vmatprep.mubr.bf16.mxu0 0
        %6134 = vmatmul.mubr.bf16.gmra.mxu0 %v6040
        %v6135 = vpop.f32.mrf.mxu0
        %v6136 = vadd.f32 0.0, %v6135
        %v6137 = vpop.f32.mrf.mxu0
        %v6138 = vpop.f32.mrf.mxu0
        %v6139 = vadd.f32 0.0, %v6138
        %v6140 = vpop.f32.mrf.mxu0
        %6141 = vmatprep.mubr.bf16.mxu0 0
        %6142 = vmatmul.mubr.bf16.gmra.mxu0 %v6041
        %v6143 = vpop.f32.mrf.mxu0
        %v6144 = vadd.f32 0.0, %v6143
        %v6145 = vpop.f32.mrf.mxu0
        %v6146 = vpop.f32.mrf.mxu0
        %v6147 = vadd.f32 0.0, %v6146
        %v6148 = vpop.f32.mrf.mxu0
        %6149 = vmatprep.mubr.bf16.mxu0 0
        %6150 = vmatmul.mubr.bf16.gmra.mxu0 %v6042
        %v6151 = vpop.f32.mrf.mxu0
        %v6152 = vadd.f32 0.0, %v6151
        %v6153 = vpop.f32.mrf.mxu0
        %v6154 = vpop.f32.mrf.mxu0
        %v6155 = vadd.f32 0.0, %v6154
        %v6156 = vpop.f32.mrf.mxu0
        %6157 = vmatprep.mubr.bf16.mxu0 0
        %6158 = vmatmul.mubr.bf16.gmra.mxu0 %v6043
        %v6159 = vpop.f32.mrf.mxu0
        %v6160 = vadd.f32 0.0, %v6159
        %v6161 = vpop.f32.mrf.mxu0
        %v6162 = vpop.f32.mrf.mxu0
        %v6163 = vadd.f32 0.0, %v6162
        %v6164 = vpop.f32.mrf.mxu0
        %6165 = vmatprep.mubr.bf16.mxu0 0
        %6166 = vmatmul.mubr.bf16.gmra.mxu0 %v6044
        %v6167 = vpop.f32.mrf.mxu0
        %v6168 = vadd.f32 0.0, %v6167
        %v6169 = vpop.f32.mrf.mxu0
        %v6170 = vpop.f32.mrf.mxu0
        %v6171 = vadd.f32 0.0, %v6170
        %v6172 = vpop.f32.mrf.mxu0
        %6173 = vdwg.mxu0
        %v6174 = vmul.f32 %v6112, %v6021
        %v6175 = vmul.f32 %v6115, %v6022
        %v6176 = vmul.f32 %v6120, %v6023
        %v6177 = vmul.f32 %v6123, %v6024
        %v6178 = vmul.f32 %v6128, %v6025
        %v6179 = vmul.f32 %v6131, %v6026
        %v6180 = vmul.f32 %v6136, %v6027
        %v6181 = vmul.f32 %v6139, %v6028
        %v6182 = vmul.f32 %v6144, %v6029
        %v6183 = vmul.f32 %v6147, %v6030
        %v6184 = vmul.f32 %v6152, %v6031
        %v6185 = vmul.f32 %v6155, %v6032
        %v6186 = vmul.f32 %v6160, %v6033
        %v6187 = vmul.f32 %v6163, %v6034
        %v6188 = vmul.f32 %v6168, %v6035
        %v6189 = vmul.f32 %v6171, %v6036
        %v6190 = vpack.c.bf16 %v4215, %v4211
        %v6191 = vpack.c.bf16 %v4225, %v4221
        %v6192 = vpack.c.bf16 %v4235, %v4231
        %v6193 = vpack.c.bf16 %v4245, %v4241
        %v6194 = vpack.c.bf16 %v4255, %v4251
        %v6195 = vpack.c.bf16 %v4265, %v4261
        %v6196 = vpack.c.bf16 %v4275, %v4271
        %v6197 = vpack.c.bf16 %v4285, %v4281
        %v6198 = vpack.c.bf16 %v2383, %v2379
        %v6199 = vpack.c.bf16 %v2393, %v2389
        %v6200 = vpack.c.bf16 %v2403, %v2399
        %v6201 = vpack.c.bf16 %v2413, %v2409
        %v6202 = vpack.c.bf16 %v2423, %v2419
        %v6203 = vpack.c.bf16 %v2433, %v2429
        %v6204 = vpack.c.bf16 %v2443, %v2439
        %v6205 = vpack.c.bf16 %v2453, %v2449
        %v6207 = vsel %vm4357, %v6190, 0
        %v6210 = vsel %vm4357, %v6191, 0
        %v6213 = vsel %vm4357, %v6192, 0
        %v6216 = vsel %vm4357, %v6193, 0
        %v6219 = vsel %vm4357, %v6194, 0
        %v6222 = vsel %vm4357, %v6195, 0
        %v6225 = vsel %vm4357, %v6196, 0
        %v6228 = vsel %vm4357, %v6197, 0
        %v6231 = vsel %vm4357, %v6198, 0
        %v6234 = vsel %vm4357, %v6199, 0
        %v6237 = vsel %vm4357, %v6200, 0
        %v6240 = vsel %vm4357, %v6201, 0
        %v6243 = vsel %vm4357, %v6202, 0
        %v6246 = vsel %vm4357, %v6203, 0
        %v6249 = vsel %vm4357, %v6204, 0
        %v6252 = vsel %vm4357, %v6205, 0
        %6254 = vmatprep.subr.bf16.mxu0 0
        %6255 = vmatpush1.bf16.xpose.msra.mxu0 %v6252
        %6256 = vmatprep.subr.bf16.mxu0 0
        %6257 = vmatpush1.bf16.xpose.msra.mxu0 %v6249
        %6258 = vmatprep.subr.bf16.mxu0 0
        %6259 = vmatpush1.bf16.xpose.msra.mxu0 %v6246
        %6260 = vmatprep.subr.bf16.mxu0 0
        %6261 = vmatpush1.bf16.xpose.msra.mxu0 %v6243
        %6262 = vmatprep.subr.bf16.mxu0 0
        %6263 = vmatpush1.bf16.xpose.msra.mxu0 %v6240
        %6264 = vmatprep.subr.bf16.mxu0 0
        %6265 = vmatpush1.bf16.xpose.msra.mxu0 %v6237
        %6266 = vmatprep.subr.bf16.mxu0 0
        %6267 = vmatpush1.bf16.xpose.msra.mxu0 %v6234
        %6268 = vmatprep.subr.bf16.mxu0 0
        %6269 = vmatpush1.bf16.xpose.msra.mxu0 %v6231
        %6270 = vmatprep.subr.bf16.mxu0 0
        %6271 = vmatpush2.bf16.xpose.msra.mxu0 0
        %6272 = vmatprep.subr.bf16.mxu0 0
        %6273 = vmatpush2.bf16.xpose.msra.mxu0 0
        %6274 = vmatprep.subr.bf16.mxu0 0
        %6275 = vmatpush2.bf16.xpose.msra.mxu0 0
        %6276 = vmatprep.subr.bf16.mxu0 0
        %6277 = vmatpush2.bf16.xpose.msra.mxu0 0
        %6278 = vmatprep.subr.bf16.mxu0 0
        %6279 = vmatpush2.bf16.xpose.msra.mxu0 0
        %6280 = vmatprep.subr.bf16.mxu0 0
        %6281 = vmatpush2.bf16.xpose.msra.mxu0 0
        %6282 = vmatprep.subr.bf16.mxu0 0
        %6283 = vmatpush2.bf16.xpose.msra.mxu0 0
        %6284 = vmatprep.subr.bf16.mxu0 0
        %6285 = vmatpush2.bf16.xpose.msra.mxu0 0
        %6286 = vmatprep.mubr.bf16.mxu0 0
        %6287 = vmatmul.mubr.bf16.gmra.mxu0 %v6207
        %v6288 = vpop.f32.mrf.mxu0
        %v6289 = vadd.f32 0.0, %v6288
        %v6290 = vpop.f32.mrf.mxu0
        %v6291 = vpop.f32.mrf.mxu0
        %v6292 = vadd.f32 0.0, %v6291
        %v6293 = vpop.f32.mrf.mxu0
        %6294 = vmatprep.mubr.bf16.mxu0 0
        %6295 = vmatmul.mubr.bf16.gmra.mxu0 %v6210
        %v6296 = vpop.f32.mrf.mxu0
        %v6297 = vadd.f32 0.0, %v6296
        %v6298 = vpop.f32.mrf.mxu0
        %v6299 = vpop.f32.mrf.mxu0
        %v6300 = vadd.f32 0.0, %v6299
        %v6301 = vpop.f32.mrf.mxu0
        %6302 = vmatprep.mubr.bf16.mxu0 0
        %6303 = vmatmul.mubr.bf16.gmra.mxu0 %v6213
        %v6304 = vpop.f32.mrf.mxu0
        %v6305 = vadd.f32 0.0, %v6304
        %v6306 = vpop.f32.mrf.mxu0
        %v6307 = vpop.f32.mrf.mxu0
        %v6308 = vadd.f32 0.0, %v6307
        %v6309 = vpop.f32.mrf.mxu0
        %6310 = vmatprep.mubr.bf16.mxu0 0
        %6311 = vmatmul.mubr.bf16.gmra.mxu0 %v6216
        %v6312 = vpop.f32.mrf.mxu0
        %v6313 = vadd.f32 0.0, %v6312
        %v6314 = vpop.f32.mrf.mxu0
        %v6315 = vpop.f32.mrf.mxu0
        %v6316 = vadd.f32 0.0, %v6315
        %v6317 = vpop.f32.mrf.mxu0
        %6318 = vmatprep.mubr.bf16.mxu0 0
        %6319 = vmatmul.mubr.bf16.gmra.mxu0 %v6219
        %v6320 = vpop.f32.mrf.mxu0
        %v6321 = vadd.f32 0.0, %v6320
        %v6322 = vpop.f32.mrf.mxu0
        %v6323 = vpop.f32.mrf.mxu0
        %v6324 = vadd.f32 0.0, %v6323
        %v6325 = vpop.f32.mrf.mxu0
        %6326 = vmatprep.mubr.bf16.mxu0 0
        %6327 = vmatmul.mubr.bf16.gmra.mxu0 %v6222
        %v6328 = vpop.f32.mrf.mxu0
        %v6329 = vadd.f32 0.0, %v6328
        %v6330 = vpop.f32.mrf.mxu0
        %v6331 = vpop.f32.mrf.mxu0
        %v6332 = vadd.f32 0.0, %v6331
        %v6333 = vpop.f32.mrf.mxu0
        %6334 = vmatprep.mubr.bf16.mxu0 0
        %6335 = vmatmul.mubr.bf16.gmra.mxu0 %v6225
        %v6336 = vpop.f32.mrf.mxu0
        %v6337 = vadd.f32 0.0, %v6336
        %v6338 = vpop.f32.mrf.mxu0
        %v6339 = vpop.f32.mrf.mxu0
        %v6340 = vadd.f32 0.0, %v6339
        %v6341 = vpop.f32.mrf.mxu0
        %6342 = vmatprep.mubr.bf16.mxu0 0
        %6343 = vmatmul.mubr.bf16.gmra.mxu0 %v6228
        %v6344 = vpop.f32.mrf.mxu0
        %v6345 = vadd.f32 0.0, %v6344
        %v6346 = vpop.f32.mrf.mxu0
        %v6347 = vpop.f32.mrf.mxu0
        %v6348 = vadd.f32 0.0, %v6347
        %v6349 = vpop.f32.mrf.mxu0
        %6350 = vdwg.mxu0
        %v6351 = vsel %vm4325, %v6289, -1e+30
        %v6352 = vsel %vm4326, %v6292, -1e+30
        %v6353 = vsel %vm4327, %v6297, -1e+30
        %v6354 = vsel %vm4328, %v6300, -1e+30
        %v6355 = vsel %vm4329, %v6305, -1e+30
        %v6356 = vsel %vm4330, %v6308, -1e+30
        %v6357 = vsel %vm4331, %v6313, -1e+30
        %v6358 = vsel %vm4332, %v6316, -1e+30
        %v6359 = vsel %vm4333, %v6321, -1e+30
        %v6360 = vsel %vm4334, %v6324, -1e+30
        %v6361 = vsel %vm4335, %v6329, -1e+30
        %v6362 = vsel %vm4336, %v6332, -1e+30
        %v6363 = vsel %vm4337, %v6337, -1e+30
        %v6364 = vsel %vm4338, %v6340, -1e+30
        %v6365 = vsel %vm4339, %v6345, -1e+30
        %v6366 = vsel %vm4340, %v6348, -1e+30
        %6367 = vmax.xlane.f32.xlu0 %v6351
        %v6368 = vpop.xlane.xlu0 %6367
        %6369 = vmax.xlane.f32.xlu0 %v6352
        %v6370 = vpop.xlane.xlu0 %6369
        %6371 = vmax.xlane.f32.xlu0 %v6353
        %v6372 = vpop.xlane.xlu0 %6371
        %6373 = vmax.xlane.f32.xlu0 %v6354
        %v6374 = vpop.xlane.xlu0 %6373
        %6375 = vmax.xlane.f32.xlu0 %v6355
        %v6376 = vpop.xlane.xlu0 %6375
        %6377 = vmax.xlane.f32.xlu0 %v6356
        %v6378 = vpop.xlane.xlu0 %6377
        %6379 = vmax.xlane.f32.xlu0 %v6357
        %v6380 = vpop.xlane.xlu0 %6379
        %6381 = vmax.xlane.f32.xlu0 %v6358
        %v6382 = vpop.xlane.xlu0 %6381
        %6383 = vmax.xlane.f32.xlu0 %v6359
        %v6384 = vpop.xlane.xlu0 %6383
        %6385 = vmax.xlane.f32.xlu0 %v6360
        %v6386 = vpop.xlane.xlu0 %6385
        %6387 = vmax.xlane.f32.xlu0 %v6361
        %v6388 = vpop.xlane.xlu0 %6387
        %6389 = vmax.xlane.f32.xlu0 %v6362
        %v6390 = vpop.xlane.xlu0 %6389
        %6391 = vmax.xlane.f32.xlu0 %v6363
        %v6392 = vpop.xlane.xlu0 %6391
        %6393 = vmax.xlane.f32.xlu0 %v6364
        %v6394 = vpop.xlane.xlu0 %6393
        %6395 = vmax.xlane.f32.xlu0 %v6365
        %v6396 = vpop.xlane.xlu0 %6395
        %6397 = vmax.xlane.f32.xlu0 %v6366
        %v6398 = vpop.xlane.xlu0 %6397
        %v6399 = vsub.f32 %v6351, %v6368
        %v6400 = vsub.f32 %v6352, %v6370
        %v6401 = vsub.f32 %v6353, %v6372
        %v6402 = vsub.f32 %v6354, %v6374
        %v6403 = vsub.f32 %v6355, %v6376
        %v6404 = vsub.f32 %v6356, %v6378
        %v6405 = vsub.f32 %v6357, %v6380
        %v6406 = vsub.f32 %v6358, %v6382
        %v6407 = vsub.f32 %v6359, %v6384
        %v6408 = vsub.f32 %v6360, %v6386
        %v6409 = vsub.f32 %v6361, %v6388
        %v6410 = vsub.f32 %v6362, %v6390
        %v6411 = vsub.f32 %v6363, %v6392
        %v6412 = vsub.f32 %v6364, %v6394
        %v6413 = vsub.f32 %v6365, %v6396
        %v6414 = vsub.f32 %v6366, %v6398
        %v6415 = vmul.f32 %v6399, 1.442695
        %v6416 = vpow.pop %v6415
        %v6417 = vmul.f32 %v6400, 1.442695
        %v6418 = vpow.pop %v6417
        %v6419 = vmul.f32 %v6401, 1.442695
        %v6420 = vpow.pop %v6419
        %v6421 = vmul.f32 %v6402, 1.442695
        %v6422 = vpow.pop %v6421
        %v6423 = vmul.f32 %v6403, 1.442695
        %v6424 = vpow.pop %v6423
        %v6425 = vmul.f32 %v6404, 1.442695
        %v6426 = vpow.pop %v6425
        %v6427 = vmul.f32 %v6405, 1.442695
        %v6428 = vpow.pop %v6427
        %v6429 = vmul.f32 %v6406, 1.442695
        %v6430 = vpow.pop %v6429
        %v6431 = vmul.f32 %v6407, 1.442695
        %v6432 = vpow.pop %v6431
        %v6433 = vmul.f32 %v6408, 1.442695
        %v6434 = vpow.pop %v6433
        %v6435 = vmul.f32 %v6409, 1.442695
        %v6436 = vpow.pop %v6435
        %v6437 = vmul.f32 %v6410, 1.442695
        %v6438 = vpow.pop %v6437
        %v6439 = vmul.f32 %v6411, 1.442695
        %v6440 = vpow.pop %v6439
        %v6441 = vmul.f32 %v6412, 1.442695
        %v6442 = vpow.pop %v6441
        %v6443 = vmul.f32 %v6413, 1.442695
        %v6444 = vpow.pop %v6443
        %v6445 = vmul.f32 %v6414, 1.442695
        %v6446 = vpow.pop %v6445
        %6447 = vadd.xlane.f32.xlu0 %v6416
        %v6448 = vpop.xlane.xlu0 %6447
        %6449 = vadd.xlane.f32.xlu0 %v6418
        %v6450 = vpop.xlane.xlu0 %6449
        %6451 = vadd.xlane.f32.xlu0 %v6420
        %v6452 = vpop.xlane.xlu0 %6451
        %6453 = vadd.xlane.f32.xlu0 %v6422
        %v6454 = vpop.xlane.xlu0 %6453
        %6455 = vadd.xlane.f32.xlu0 %v6424
        %v6456 = vpop.xlane.xlu0 %6455
        %6457 = vadd.xlane.f32.xlu0 %v6426
        %v6458 = vpop.xlane.xlu0 %6457
        %6459 = vadd.xlane.f32.xlu0 %v6428
        %v6460 = vpop.xlane.xlu0 %6459
        %6461 = vadd.xlane.f32.xlu0 %v6430
        %v6462 = vpop.xlane.xlu0 %6461
        %6463 = vadd.xlane.f32.xlu0 %v6432
        %v6464 = vpop.xlane.xlu0 %6463
        %6465 = vadd.xlane.f32.xlu0 %v6434
        %v6466 = vpop.xlane.xlu0 %6465
        %6467 = vadd.xlane.f32.xlu0 %v6436
        %v6468 = vpop.xlane.xlu0 %6467
        %6469 = vadd.xlane.f32.xlu0 %v6438
        %v6470 = vpop.xlane.xlu0 %6469
        %6471 = vadd.xlane.f32.xlu0 %v6440
        %v6472 = vpop.xlane.xlu0 %6471
        %6473 = vadd.xlane.f32.xlu0 %v6442
        %v6474 = vpop.xlane.xlu0 %6473
        %6475 = vadd.xlane.f32.xlu0 %v6444
        %v6476 = vpop.xlane.xlu0 %6475
        %6477 = vadd.xlane.f32.xlu0 %v6446
        %v6478 = vpop.xlane.xlu0 %6477
        %v6479 = vrcp.pop %v6448
        %v6480 = vrcp.pop %v6450
        %v6481 = vrcp.pop %v6452
        %v6482 = vrcp.pop %v6454
        %v6483 = vrcp.pop %v6456
        %v6484 = vrcp.pop %v6458
        %v6485 = vrcp.pop %v6460
        %v6486 = vrcp.pop %v6462
        %v6487 = vrcp.pop %v6464
        %v6488 = vrcp.pop %v6466
        %v6489 = vrcp.pop %v6468
        %v6490 = vrcp.pop %v6470
        %v6491 = vrcp.pop %v6472
        %v6492 = vrcp.pop %v6474
        %v6493 = vrcp.pop %v6476
        %v6494 = vrcp.pop %v6478
        %v6495 = vpack.c.bf16 %v6418, %v6416
        %v6496 = vpack.c.bf16 %v6422, %v6420
        %v6497 = vpack.c.bf16 %v6426, %v6424
        %v6498 = vpack.c.bf16 %v6430, %v6428
        %v6499 = vpack.c.bf16 %v6434, %v6432
        %v6500 = vpack.c.bf16 %v6438, %v6436
        %v6501 = vpack.c.bf16 %v6442, %v6440
        %v6502 = vpack.c.bf16 %v6446, %v6444
        %v6503 = vpack.c.bf16 %v2835, %v2831
        %v6504 = vpack.c.bf16 %v2845, %v2841
        %v6505 = vpack.c.bf16 %v2855, %v2851
        %v6506 = vpack.c.bf16 %v2865, %v2861
        %v6507 = vpack.c.bf16 %v2875, %v2871
        %v6508 = vpack.c.bf16 %v2885, %v2881
        %v6509 = vpack.c.bf16 %v2895, %v2891
        %v6510 = vpack.c.bf16 %v2905, %v2901
        %6511 = vmatprep.subr.bf16.mxu0 0
        %6512 = vmatpush1.bf16.msra.mxu0 %v6510
        %6513 = vmatprep.subr.bf16.mxu0 0
        %6514 = vmatpush1.bf16.msra.mxu0 %v6509
        %6515 = vmatprep.subr.bf16.mxu0 0
        %6516 = vmatpush1.bf16.msra.mxu0 %v6508
        %6517 = vmatprep.subr.bf16.mxu0 0
        %6518 = vmatpush1.bf16.msra.mxu0 %v6507
        %6519 = vmatprep.subr.bf16.mxu0 0
        %6520 = vmatpush1.bf16.msra.mxu0 %v6506
        %6521 = vmatprep.subr.bf16.mxu0 0
        %6522 = vmatpush1.bf16.msra.mxu0 %v6505
        %6523 = vmatprep.subr.bf16.mxu0 0
        %6524 = vmatpush1.bf16.msra.mxu0 %v6504
        %6525 = vmatprep.subr.bf16.mxu0 0
        %6526 = vmatpush1.bf16.msra.mxu0 %v6503
        %6527 = vmatprep.subr.bf16.mxu0 0
        %6528 = vmatpush2.bf16.msra.mxu0 0
        %6529 = vmatprep.subr.bf16.mxu0 0
        %6530 = vmatpush2.bf16.msra.mxu0 0
        %6531 = vmatprep.subr.bf16.mxu0 0
        %6532 = vmatpush2.bf16.msra.mxu0 0
        %6533 = vmatprep.subr.bf16.mxu0 0
        %6534 = vmatpush2.bf16.msra.mxu0 0
        %6535 = vmatprep.subr.bf16.mxu0 0
        %6536 = vmatpush2.bf16.msra.mxu0 0
        %6537 = vmatprep.subr.bf16.mxu0 0
        %6538 = vmatpush2.bf16.msra.mxu0 0
        %6539 = vmatprep.subr.bf16.mxu0 0
        %6540 = vmatpush2.bf16.msra.mxu0 0
        %6541 = vmatprep.subr.bf16.mxu0 0
        %6542 = vmatpush2.bf16.msra.mxu0 0
        %6543 = vmatprep.mubr.bf16.mxu0 0
        %6544 = vmatmul.mubr.bf16.gmra.mxu0 %v6495
        %v6545 = vpop.f32.mrf.mxu0
        %v6546 = vadd.f32 0.0, %v6545
        %v6547 = vpop.f32.mrf.mxu0
        %v6548 = vpop.f32.mrf.mxu0
        %v6549 = vadd.f32 0.0, %v6548
        %v6550 = vpop.f32.mrf.mxu0
        %6551 = vmatprep.mubr.bf16.mxu0 0
        %6552 = vmatmul.mubr.bf16.gmra.mxu0 %v6496
        %v6553 = vpop.f32.mrf.mxu0
        %v6554 = vadd.f32 0.0, %v6553
        %v6555 = vpop.f32.mrf.mxu0
        %v6556 = vpop.f32.mrf.mxu0
        %v6557 = vadd.f32 0.0, %v6556
        %v6558 = vpop.f32.mrf.mxu0
        %6559 = vmatprep.mubr.bf16.mxu0 0
        %6560 = vmatmul.mubr.bf16.gmra.mxu0 %v6497
        %v6561 = vpop.f32.mrf.mxu0
        %v6562 = vadd.f32 0.0, %v6561
        %v6563 = vpop.f32.mrf.mxu0
        %v6564 = vpop.f32.mrf.mxu0
        %v6565 = vadd.f32 0.0, %v6564
        %v6566 = vpop.f32.mrf.mxu0
        %6567 = vmatprep.mubr.bf16.mxu0 0
        %6568 = vmatmul.mubr.bf16.gmra.mxu0 %v6498
        %v6569 = vpop.f32.mrf.mxu0
        %v6570 = vadd.f32 0.0, %v6569
        %v6571 = vpop.f32.mrf.mxu0
        %v6572 = vpop.f32.mrf.mxu0
        %v6573 = vadd.f32 0.0, %v6572
        %v6574 = vpop.f32.mrf.mxu0
        %6575 = vmatprep.mubr.bf16.mxu0 0
        %6576 = vmatmul.mubr.bf16.gmra.mxu0 %v6499
        %v6577 = vpop.f32.mrf.mxu0
        %v6578 = vadd.f32 0.0, %v6577
        %v6579 = vpop.f32.mrf.mxu0
        %v6580 = vpop.f32.mrf.mxu0
        %v6581 = vadd.f32 0.0, %v6580
        %v6582 = vpop.f32.mrf.mxu0
        %6583 = vmatprep.mubr.bf16.mxu0 0
        %6584 = vmatmul.mubr.bf16.gmra.mxu0 %v6500
        %v6585 = vpop.f32.mrf.mxu0
        %v6586 = vadd.f32 0.0, %v6585
        %v6587 = vpop.f32.mrf.mxu0
        %v6588 = vpop.f32.mrf.mxu0
        %v6589 = vadd.f32 0.0, %v6588
        %v6590 = vpop.f32.mrf.mxu0
        %6591 = vmatprep.mubr.bf16.mxu0 0
        %6592 = vmatmul.mubr.bf16.gmra.mxu0 %v6501
        %v6593 = vpop.f32.mrf.mxu0
        %v6594 = vadd.f32 0.0, %v6593
        %v6595 = vpop.f32.mrf.mxu0
        %v6596 = vpop.f32.mrf.mxu0
        %v6597 = vadd.f32 0.0, %v6596
        %v6598 = vpop.f32.mrf.mxu0
        %6599 = vmatprep.mubr.bf16.mxu0 0
        %6600 = vmatmul.mubr.bf16.gmra.mxu0 %v6502
        %v6601 = vpop.f32.mrf.mxu0
        %v6602 = vadd.f32 0.0, %v6601
        %v6603 = vpop.f32.mrf.mxu0
        %v6604 = vpop.f32.mrf.mxu0
        %v6605 = vadd.f32 0.0, %v6604
        %v6606 = vpop.f32.mrf.mxu0
        %6607 = vdwg.mxu0
        %v6608 = vmul.f32 %v6546, %v6479
        %v6609 = vmul.f32 %v6549, %v6480
        %v6610 = vmul.f32 %v6554, %v6481
        %v6611 = vmul.f32 %v6557, %v6482
        %v6612 = vmul.f32 %v6562, %v6483
        %v6613 = vmul.f32 %v6565, %v6484
        %v6614 = vmul.f32 %v6570, %v6485
        %v6615 = vmul.f32 %v6573, %v6486
        %v6616 = vmul.f32 %v6578, %v6487
        %v6617 = vmul.f32 %v6581, %v6488
        %v6618 = vmul.f32 %v6586, %v6489
        %v6619 = vmul.f32 %v6589, %v6490
        %v6620 = vmul.f32 %v6594, %v6491
        %v6621 = vmul.f32 %v6597, %v6492
        %v6622 = vmul.f32 %v6602, %v6493
        %v6623 = vmul.f32 %v6605, %v6494
        %6632 = vrot.lane.b32.xlu0 %v6190, 64
        %v6633 = vpop.permute.xlu0 %6632
        %6634 = vrot.lane.b32.xlu0 %v6191, 64
        %v6635 = vpop.permute.xlu0 %6634
        %6636 = vrot.lane.b32.xlu0 %v6192, 64
        %v6637 = vpop.permute.xlu0 %6636
        %6638 = vrot.lane.b32.xlu0 %v6193, 64
        %v6639 = vpop.permute.xlu0 %6638
        %6640 = vrot.lane.b32.xlu0 %v6194, 64
        %v6641 = vpop.permute.xlu0 %6640
        %6642 = vrot.lane.b32.xlu0 %v6195, 64
        %v6643 = vpop.permute.xlu0 %6642
        %6644 = vrot.lane.b32.xlu0 %v6196, 64
        %v6645 = vpop.permute.xlu0 %6644
        %6646 = vrot.lane.b32.xlu0 %v6197, 64
        %v6647 = vpop.permute.xlu0 %6646
        %6656 = vrot.lane.b32.xlu0 %v6198, 64
        %v6657 = vpop.permute.xlu0 %6656
        %6658 = vrot.lane.b32.xlu0 %v6199, 64
        %v6659 = vpop.permute.xlu0 %6658
        %6660 = vrot.lane.b32.xlu0 %v6200, 64
        %v6661 = vpop.permute.xlu0 %6660
        %6662 = vrot.lane.b32.xlu0 %v6201, 64
        %v6663 = vpop.permute.xlu0 %6662
        %6664 = vrot.lane.b32.xlu0 %v6202, 64
        %v6665 = vpop.permute.xlu0 %6664
        %6666 = vrot.lane.b32.xlu0 %v6203, 64
        %v6667 = vpop.permute.xlu0 %6666
        %6668 = vrot.lane.b32.xlu0 %v6204, 64
        %v6669 = vpop.permute.xlu0 %6668
        %6670 = vrot.lane.b32.xlu0 %v6205, 64
        %v6671 = vpop.permute.xlu0 %6670
        %v6673 = vsel %vm4357, %v6633, 0
        %v6676 = vsel %vm4357, %v6635, 0
        %v6679 = vsel %vm4357, %v6637, 0
        %v6682 = vsel %vm4357, %v6639, 0
        %v6685 = vsel %vm4357, %v6641, 0
        %v6688 = vsel %vm4357, %v6643, 0
        %v6691 = vsel %vm4357, %v6645, 0
        %v6694 = vsel %vm4357, %v6647, 0
        %v6697 = vsel %vm4357, %v6657, 0
        %v6700 = vsel %vm4357, %v6659, 0
        %v6703 = vsel %vm4357, %v6661, 0
        %v6706 = vsel %vm4357, %v6663, 0
        %v6709 = vsel %vm4357, %v6665, 0
        %v6712 = vsel %vm4357, %v6667, 0
        %v6715 = vsel %vm4357, %v6669, 0
        %v6718 = vsel %vm4357, %v6671, 0
        %6720 = vmatprep.subr.bf16.mxu0 0
        %6721 = vmatpush1.bf16.xpose.msra.mxu0 %v6718
        %6722 = vmatprep.subr.bf16.mxu0 0
        %6723 = vmatpush1.bf16.xpose.msra.mxu0 %v6715
        %6724 = vmatprep.subr.bf16.mxu0 0
        %6725 = vmatpush1.bf16.xpose.msra.mxu0 %v6712
        %6726 = vmatprep.subr.bf16.mxu0 0
        %6727 = vmatpush1.bf16.xpose.msra.mxu0 %v6709
        %6728 = vmatprep.subr.bf16.mxu0 0
        %6729 = vmatpush1.bf16.xpose.msra.mxu0 %v6706
        %6730 = vmatprep.subr.bf16.mxu0 0
        %6731 = vmatpush1.bf16.xpose.msra.mxu0 %v6703
        %6732 = vmatprep.subr.bf16.mxu0 0
        %6733 = vmatpush1.bf16.xpose.msra.mxu0 %v6700
        %6734 = vmatprep.subr.bf16.mxu0 0
        %6735 = vmatpush1.bf16.xpose.msra.mxu0 %v6697
        %6736 = vmatprep.subr.bf16.mxu0 0
        %6737 = vmatpush2.bf16.xpose.msra.mxu0 0
        %6738 = vmatprep.subr.bf16.mxu0 0
        %6739 = vmatpush2.bf16.xpose.msra.mxu0 0
        %6740 = vmatprep.subr.bf16.mxu0 0
        %6741 = vmatpush2.bf16.xpose.msra.mxu0 0
        %6742 = vmatprep.subr.bf16.mxu0 0
        %6743 = vmatpush2.bf16.xpose.msra.mxu0 0
        %6744 = vmatprep.subr.bf16.mxu0 0
        %6745 = vmatpush2.bf16.xpose.msra.mxu0 0
        %6746 = vmatprep.subr.bf16.mxu0 0
        %6747 = vmatpush2.bf16.xpose.msra.mxu0 0
        %6748 = vmatprep.subr.bf16.mxu0 0
        %6749 = vmatpush2.bf16.xpose.msra.mxu0 0
        %6750 = vmatprep.subr.bf16.mxu0 0
        %6751 = vmatpush2.bf16.xpose.msra.mxu0 0
        %6752 = vmatprep.mubr.bf16.mxu0 0
        %6753 = vmatmul.mubr.bf16.gmra.mxu0 %v6673
        %v6754 = vpop.f32.mrf.mxu0
        %v6755 = vadd.f32 0.0, %v6754
        %v6756 = vpop.f32.mrf.mxu0
        %v6757 = vpop.f32.mrf.mxu0
        %v6758 = vadd.f32 0.0, %v6757
        %v6759 = vpop.f32.mrf.mxu0
        %6760 = vmatprep.mubr.bf16.mxu0 0
        %6761 = vmatmul.mubr.bf16.gmra.mxu0 %v6676
        %v6762 = vpop.f32.mrf.mxu0
        %v6763 = vadd.f32 0.0, %v6762
        %v6764 = vpop.f32.mrf.mxu0
        %v6765 = vpop.f32.mrf.mxu0
        %v6766 = vadd.f32 0.0, %v6765
        %v6767 = vpop.f32.mrf.mxu0
        %6768 = vmatprep.mubr.bf16.mxu0 0
        %6769 = vmatmul.mubr.bf16.gmra.mxu0 %v6679
        %v6770 = vpop.f32.mrf.mxu0
        %v6771 = vadd.f32 0.0, %v6770
        %v6772 = vpop.f32.mrf.mxu0
        %v6773 = vpop.f32.mrf.mxu0
        %v6774 = vadd.f32 0.0, %v6773
        %v6775 = vpop.f32.mrf.mxu0
        %6776 = vmatprep.mubr.bf16.mxu0 0
        %6777 = vmatmul.mubr.bf16.gmra.mxu0 %v6682
        %v6778 = vpop.f32.mrf.mxu0
        %v6779 = vadd.f32 0.0, %v6778
        %v6780 = vpop.f32.mrf.mxu0
        %v6781 = vpop.f32.mrf.mxu0
        %v6782 = vadd.f32 0.0, %v6781
        %v6783 = vpop.f32.mrf.mxu0
        %6784 = vmatprep.mubr.bf16.mxu0 0
        %6785 = vmatmul.mubr.bf16.gmra.mxu0 %v6685
        %v6786 = vpop.f32.mrf.mxu0
        %v6787 = vadd.f32 0.0, %v6786
        %v6788 = vpop.f32.mrf.mxu0
        %v6789 = vpop.f32.mrf.mxu0
        %v6790 = vadd.f32 0.0, %v6789
        %v6791 = vpop.f32.mrf.mxu0
        %6792 = vmatprep.mubr.bf16.mxu0 0
        %6793 = vmatmul.mubr.bf16.gmra.mxu0 %v6688
        %v6794 = vpop.f32.mrf.mxu0
        %v6795 = vadd.f32 0.0, %v6794
        %v6796 = vpop.f32.mrf.mxu0
        %v6797 = vpop.f32.mrf.mxu0
        %v6798 = vadd.f32 0.0, %v6797
        %v6799 = vpop.f32.mrf.mxu0
        %6800 = vmatprep.mubr.bf16.mxu0 0
        %6801 = vmatmul.mubr.bf16.gmra.mxu0 %v6691
        %v6802 = vpop.f32.mrf.mxu0
        %v6803 = vadd.f32 0.0, %v6802
        %v6804 = vpop.f32.mrf.mxu0
        %v6805 = vpop.f32.mrf.mxu0
        %v6806 = vadd.f32 0.0, %v6805
        %v6807 = vpop.f32.mrf.mxu0
        %6808 = vmatprep.mubr.bf16.mxu0 0
        %6809 = vmatmul.mubr.bf16.gmra.mxu0 %v6694
        %v6810 = vpop.f32.mrf.mxu0
        %v6811 = vadd.f32 0.0, %v6810
        %v6812 = vpop.f32.mrf.mxu0
        %v6813 = vpop.f32.mrf.mxu0
        %v6814 = vadd.f32 0.0, %v6813
        %v6815 = vpop.f32.mrf.mxu0
        %6816 = vdwg.mxu0
        %v6817 = vsel %vm4325, %v6755, -1e+30
        %v6818 = vsel %vm4326, %v6758, -1e+30
        %v6819 = vsel %vm4327, %v6763, -1e+30
        %v6820 = vsel %vm4328, %v6766, -1e+30
        %v6821 = vsel %vm4329, %v6771, -1e+30
        %v6822 = vsel %vm4330, %v6774, -1e+30
        %v6823 = vsel %vm4331, %v6779, -1e+30
        %v6824 = vsel %vm4332, %v6782, -1e+30
        %v6825 = vsel %vm4333, %v6787, -1e+30
        %v6826 = vsel %vm4334, %v6790, -1e+30
        %v6827 = vsel %vm4335, %v6795, -1e+30
        %v6828 = vsel %vm4336, %v6798, -1e+30
        %v6829 = vsel %vm4337, %v6803, -1e+30
        %v6830 = vsel %vm4338, %v6806, -1e+30
        %v6831 = vsel %vm4339, %v6811, -1e+30
        %v6832 = vsel %vm4340, %v6814, -1e+30
        %6833 = vmax.xlane.f32.xlu0 %v6817
        %v6834 = vpop.xlane.xlu0 %6833
        %6835 = vmax.xlane.f32.xlu0 %v6818
        %v6836 = vpop.xlane.xlu0 %6835
        %6837 = vmax.xlane.f32.xlu0 %v6819
        %v6838 = vpop.xlane.xlu0 %6837
        %6839 = vmax.xlane.f32.xlu0 %v6820
        %v6840 = vpop.xlane.xlu0 %6839
        %6841 = vmax.xlane.f32.xlu0 %v6821
        %v6842 = vpop.xlane.xlu0 %6841
        %6843 = vmax.xlane.f32.xlu0 %v6822
        %v6844 = vpop.xlane.xlu0 %6843
        %6845 = vmax.xlane.f32.xlu0 %v6823
        %v6846 = vpop.xlane.xlu0 %6845
        %6847 = vmax.xlane.f32.xlu0 %v6824
        %v6848 = vpop.xlane.xlu0 %6847
        %6849 = vmax.xlane.f32.xlu0 %v6825
        %v6850 = vpop.xlane.xlu0 %6849
        %6851 = vmax.xlane.f32.xlu0 %v6826
        %v6852 = vpop.xlane.xlu0 %6851
        %6853 = vmax.xlane.f32.xlu0 %v6827
        %v6854 = vpop.xlane.xlu0 %6853
        %6855 = vmax.xlane.f32.xlu0 %v6828
        %v6856 = vpop.xlane.xlu0 %6855
        %6857 = vmax.xlane.f32.xlu0 %v6829
        %v6858 = vpop.xlane.xlu0 %6857
        %6859 = vmax.xlane.f32.xlu0 %v6830
        %v6860 = vpop.xlane.xlu0 %6859
        %6861 = vmax.xlane.f32.xlu0 %v6831
        %v6862 = vpop.xlane.xlu0 %6861
        %6863 = vmax.xlane.f32.xlu0 %v6832
        %v6864 = vpop.xlane.xlu0 %6863
        %v6865 = vsub.f32 %v6817, %v6834
        %v6866 = vsub.f32 %v6818, %v6836
        %v6867 = vsub.f32 %v6819, %v6838
        %v6868 = vsub.f32 %v6820, %v6840
        %v6869 = vsub.f32 %v6821, %v6842
        %v6870 = vsub.f32 %v6822, %v6844
        %v6871 = vsub.f32 %v6823, %v6846
        %v6872 = vsub.f32 %v6824, %v6848
        %v6873 = vsub.f32 %v6825, %v6850
        %v6874 = vsub.f32 %v6826, %v6852
        %v6875 = vsub.f32 %v6827, %v6854
        %v6876 = vsub.f32 %v6828, %v6856
        %v6877 = vsub.f32 %v6829, %v6858
        %v6878 = vsub.f32 %v6830, %v6860
        %v6879 = vsub.f32 %v6831, %v6862
        %v6880 = vsub.f32 %v6832, %v6864
        %v6881 = vmul.f32 %v6865, 1.442695
        %v6882 = vpow.pop %v6881
        %v6883 = vmul.f32 %v6866, 1.442695
        %v6884 = vpow.pop %v6883
        %v6885 = vmul.f32 %v6867, 1.442695
        %v6886 = vpow.pop %v6885
        %v6887 = vmul.f32 %v6868, 1.442695
        %v6888 = vpow.pop %v6887
        %v6889 = vmul.f32 %v6869, 1.442695
        %v6890 = vpow.pop %v6889
        %v6891 = vmul.f32 %v6870, 1.442695
        %v6892 = vpow.pop %v6891
        %v6893 = vmul.f32 %v6871, 1.442695
        %v6894 = vpow.pop %v6893
        %v6895 = vmul.f32 %v6872, 1.442695
        %v6896 = vpow.pop %v6895
        %v6897 = vmul.f32 %v6873, 1.442695
        %v6898 = vpow.pop %v6897
        %v6899 = vmul.f32 %v6874, 1.442695
        %v6900 = vpow.pop %v6899
        %v6901 = vmul.f32 %v6875, 1.442695
        %v6902 = vpow.pop %v6901
        %v6903 = vmul.f32 %v6876, 1.442695
        %v6904 = vpow.pop %v6903
        %v6905 = vmul.f32 %v6877, 1.442695
        %v6906 = vpow.pop %v6905
        %v6907 = vmul.f32 %v6878, 1.442695
        %v6908 = vpow.pop %v6907
        %v6909 = vmul.f32 %v6879, 1.442695
        %v6910 = vpow.pop %v6909
        %v6911 = vmul.f32 %v6880, 1.442695
        %v6912 = vpow.pop %v6911
        %6913 = vadd.xlane.f32.xlu0 %v6882
        %v6914 = vpop.xlane.xlu0 %6913
        %6915 = vadd.xlane.f32.xlu0 %v6884
        %v6916 = vpop.xlane.xlu0 %6915
        %6917 = vadd.xlane.f32.xlu0 %v6886
        %v6918 = vpop.xlane.xlu0 %6917
        %6919 = vadd.xlane.f32.xlu0 %v6888
        %v6920 = vpop.xlane.xlu0 %6919
        %6921 = vadd.xlane.f32.xlu0 %v6890
        %v6922 = vpop.xlane.xlu0 %6921
        %6923 = vadd.xlane.f32.xlu0 %v6892
        %v6924 = vpop.xlane.xlu0 %6923
        %6925 = vadd.xlane.f32.xlu0 %v6894
        %v6926 = vpop.xlane.xlu0 %6925
        %6927 = vadd.xlane.f32.xlu0 %v6896
        %v6928 = vpop.xlane.xlu0 %6927
        %6929 = vadd.xlane.f32.xlu0 %v6898
        %v6930 = vpop.xlane.xlu0 %6929
        %6931 = vadd.xlane.f32.xlu0 %v6900
        %v6932 = vpop.xlane.xlu0 %6931
        %6933 = vadd.xlane.f32.xlu0 %v6902
        %v6934 = vpop.xlane.xlu0 %6933
        %6935 = vadd.xlane.f32.xlu0 %v6904
        %v6936 = vpop.xlane.xlu0 %6935
        %6937 = vadd.xlane.f32.xlu0 %v6906
        %v6938 = vpop.xlane.xlu0 %6937
        %6939 = vadd.xlane.f32.xlu0 %v6908
        %v6940 = vpop.xlane.xlu0 %6939
        %6941 = vadd.xlane.f32.xlu0 %v6910
        %v6942 = vpop.xlane.xlu0 %6941
        %6943 = vadd.xlane.f32.xlu0 %v6912
        %v6944 = vpop.xlane.xlu0 %6943
        %v6945 = vrcp.pop %v6914
        %v6946 = vrcp.pop %v6916
        %v6947 = vrcp.pop %v6918
        %v6948 = vrcp.pop %v6920
        %v6949 = vrcp.pop %v6922
        %v6950 = vrcp.pop %v6924
        %v6951 = vrcp.pop %v6926
        %v6952 = vrcp.pop %v6928
        %v6953 = vrcp.pop %v6930
        %v6954 = vrcp.pop %v6932
        %v6955 = vrcp.pop %v6934
        %v6956 = vrcp.pop %v6936
        %v6957 = vrcp.pop %v6938
        %v6958 = vrcp.pop %v6940
        %v6959 = vrcp.pop %v6942
        %v6960 = vrcp.pop %v6944
        %v6961 = vpack.c.bf16 %v6884, %v6882
        %v6962 = vpack.c.bf16 %v6888, %v6886
        %v6963 = vpack.c.bf16 %v6892, %v6890
        %v6964 = vpack.c.bf16 %v6896, %v6894
        %v6965 = vpack.c.bf16 %v6900, %v6898
        %v6966 = vpack.c.bf16 %v6904, %v6902
        %v6967 = vpack.c.bf16 %v6908, %v6906
        %v6968 = vpack.c.bf16 %v6912, %v6910
        %6977 = vrot.lane.b32.xlu0 %v6503, 64
        %v6978 = vpop.permute.xlu0 %6977
        %6979 = vrot.lane.b32.xlu0 %v6504, 64
        %v6980 = vpop.permute.xlu0 %6979
        %6981 = vrot.lane.b32.xlu0 %v6505, 64
        %v6982 = vpop.permute.xlu0 %6981
        %6983 = vrot.lane.b32.xlu0 %v6506, 64
        %v6984 = vpop.permute.xlu0 %6983
        %6985 = vrot.lane.b32.xlu0 %v6507, 64
        %v6986 = vpop.permute.xlu0 %6985
        %6987 = vrot.lane.b32.xlu0 %v6508, 64
        %v6988 = vpop.permute.xlu0 %6987
        %6989 = vrot.lane.b32.xlu0 %v6509, 64
        %v6990 = vpop.permute.xlu0 %6989
        %6991 = vrot.lane.b32.xlu0 %v6510, 64
        %v6992 = vpop.permute.xlu0 %6991
        %7001 = vmatprep.subr.bf16.mxu0 0
        %7002 = vmatpush1.bf16.msra.mxu0 %v6992
        %7003 = vmatprep.subr.bf16.mxu0 0
        %7004 = vmatpush1.bf16.msra.mxu0 %v6990
        %7005 = vmatprep.subr.bf16.mxu0 0
        %7006 = vmatpush1.bf16.msra.mxu0 %v6988
        %7007 = vmatprep.subr.bf16.mxu0 0
        %7008 = vmatpush1.bf16.msra.mxu0 %v6986
        %7009 = vmatprep.subr.bf16.mxu0 0
        %7010 = vmatpush1.bf16.msra.mxu0 %v6984
        %7011 = vmatprep.subr.bf16.mxu0 0
        %7012 = vmatpush1.bf16.msra.mxu0 %v6982
        %7013 = vmatprep.subr.bf16.mxu0 0
        %7014 = vmatpush1.bf16.msra.mxu0 %v6980
        %7015 = vmatprep.subr.bf16.mxu0 0
        %7016 = vmatpush1.bf16.msra.mxu0 %v6978
        %7017 = vmatprep.subr.bf16.mxu0 0
        %7018 = vmatpush2.bf16.msra.mxu0 0
        %7019 = vmatprep.subr.bf16.mxu0 0
        %7020 = vmatpush2.bf16.msra.mxu0 0
        %7021 = vmatprep.subr.bf16.mxu0 0
        %7022 = vmatpush2.bf16.msra.mxu0 0
        %7023 = vmatprep.subr.bf16.mxu0 0
        %7024 = vmatpush2.bf16.msra.mxu0 0
        %7025 = vmatprep.subr.bf16.mxu0 0
        %7026 = vmatpush2.bf16.msra.mxu0 0
        %7027 = vmatprep.subr.bf16.mxu0 0
        %7028 = vmatpush2.bf16.msra.mxu0 0
        %7029 = vmatprep.subr.bf16.mxu0 0
        %7030 = vmatpush2.bf16.msra.mxu0 0
        %7031 = vmatprep.subr.bf16.mxu0 0
        %7032 = vmatpush2.bf16.msra.mxu0 0
        %7033 = vmatprep.mubr.bf16.mxu0 0
        %7034 = vmatmul.mubr.bf16.gmra.mxu0 %v6961
        %v7035 = vpop.f32.mrf.mxu0
        %v7036 = vadd.f32 0.0, %v7035
        %v7037 = vpop.f32.mrf.mxu0
        %v7038 = vpop.f32.mrf.mxu0
        %v7039 = vadd.f32 0.0, %v7038
        %v7040 = vpop.f32.mrf.mxu0
        %7041 = vmatprep.mubr.bf16.mxu0 0
        %7042 = vmatmul.mubr.bf16.gmra.mxu0 %v6962
        %v7043 = vpop.f32.mrf.mxu0
        %v7044 = vadd.f32 0.0, %v7043
        %v7045 = vpop.f32.mrf.mxu0
        %v7046 = vpop.f32.mrf.mxu0
        %v7047 = vadd.f32 0.0, %v7046
        %v7048 = vpop.f32.mrf.mxu0
        %7049 = vmatprep.mubr.bf16.mxu0 0
        %7050 = vmatmul.mubr.bf16.gmra.mxu0 %v6963
        %v7051 = vpop.f32.mrf.mxu0
        %v7052 = vadd.f32 0.0, %v7051
        %v7053 = vpop.f32.mrf.mxu0
        %v7054 = vpop.f32.mrf.mxu0
        %v7055 = vadd.f32 0.0, %v7054
        %v7056 = vpop.f32.mrf.mxu0
        %7057 = vmatprep.mubr.bf16.mxu0 0
        %7058 = vmatmul.mubr.bf16.gmra.mxu0 %v6964
        %v7059 = vpop.f32.mrf.mxu0
        %v7060 = vadd.f32 0.0, %v7059
        %v7061 = vpop.f32.mrf.mxu0
        %v7062 = vpop.f32.mrf.mxu0
        %v7063 = vadd.f32 0.0, %v7062
        %v7064 = vpop.f32.mrf.mxu0
        %7065 = vmatprep.mubr.bf16.mxu0 0
        %7066 = vmatmul.mubr.bf16.gmra.mxu0 %v6965
        %v7067 = vpop.f32.mrf.mxu0
        %v7068 = vadd.f32 0.0, %v7067
        %v7069 = vpop.f32.mrf.mxu0
        %v7070 = vpop.f32.mrf.mxu0
        %v7071 = vadd.f32 0.0, %v7070
        %v7072 = vpop.f32.mrf.mxu0
        %7073 = vmatprep.mubr.bf16.mxu0 0
        %7074 = vmatmul.mubr.bf16.gmra.mxu0 %v6966
        %v7075 = vpop.f32.mrf.mxu0
        %v7076 = vadd.f32 0.0, %v7075
        %v7077 = vpop.f32.mrf.mxu0
        %v7078 = vpop.f32.mrf.mxu0
        %v7079 = vadd.f32 0.0, %v7078
        %v7080 = vpop.f32.mrf.mxu0
        %7081 = vmatprep.mubr.bf16.mxu0 0
        %7082 = vmatmul.mubr.bf16.gmra.mxu0 %v6967
        %v7083 = vpop.f32.mrf.mxu0
        %v7084 = vadd.f32 0.0, %v7083
        %v7085 = vpop.f32.mrf.mxu0
        %v7086 = vpop.f32.mrf.mxu0
        %v7087 = vadd.f32 0.0, %v7086
        %v7088 = vpop.f32.mrf.mxu0
        %7089 = vmatprep.mubr.bf16.mxu0 0
        %7090 = vmatmul.mubr.bf16.gmra.mxu0 %v6968
        %v7091 = vpop.f32.mrf.mxu0
        %v7092 = vadd.f32 0.0, %v7091
        %v7093 = vpop.f32.mrf.mxu0
        %v7094 = vpop.f32.mrf.mxu0
        %v7095 = vadd.f32 0.0, %v7094
        %v7096 = vpop.f32.mrf.mxu0
        %7097 = vdwg.mxu0
        %v7098 = vmul.f32 %v7036, %v6945
        %v7099 = vmul.f32 %v7039, %v6946
        %v7100 = vmul.f32 %v7044, %v6947
        %v7101 = vmul.f32 %v7047, %v6948
        %v7102 = vmul.f32 %v7052, %v6949
        %v7103 = vmul.f32 %v7055, %v6950
        %v7104 = vmul.f32 %v7060, %v6951
        %v7105 = vmul.f32 %v7063, %v6952
        %v7106 = vmul.f32 %v7068, %v6953
        %v7107 = vmul.f32 %v7071, %v6954
        %v7108 = vmul.f32 %v7076, %v6955
        %v7109 = vmul.f32 %v7079, %v6956
        %v7110 = vmul.f32 %v7084, %v6957
        %v7111 = vmul.f32 %v7087, %v6958
        %v7112 = vmul.f32 %v7092, %v6959
        %v7113 = vmul.f32 %v7095, %v6960
        %v7114 = vpack.c.bf16 %v4217, %v4213
        %v7115 = vpack.c.bf16 %v4227, %v4223
        %v7116 = vpack.c.bf16 %v4237, %v4233
        %v7117 = vpack.c.bf16 %v4247, %v4243
        %v7118 = vpack.c.bf16 %v4257, %v4253
        %v7119 = vpack.c.bf16 %v4267, %v4263
        %v7120 = vpack.c.bf16 %v4277, %v4273
        %v7121 = vpack.c.bf16 %v4287, %v4283
        %v7122 = vpack.c.bf16 %v2385, %v2381
        %v7123 = vpack.c.bf16 %v2395, %v2391
        %v7124 = vpack.c.bf16 %v2405, %v2401
        %v7125 = vpack.c.bf16 %v2415, %v2411
        %v7126 = vpack.c.bf16 %v2425, %v2421
        %v7127 = vpack.c.bf16 %v2435, %v2431
        %v7128 = vpack.c.bf16 %v2445, %v2441
        %v7129 = vpack.c.bf16 %v2455, %v2451
        %v7131 = vsel %vm4357, %v7114, 0
        %v7134 = vsel %vm4357, %v7115, 0
        %v7137 = vsel %vm4357, %v7116, 0
        %v7140 = vsel %vm4357, %v7117, 0
        %v7143 = vsel %vm4357, %v7118, 0
        %v7146 = vsel %vm4357, %v7119, 0
        %v7149 = vsel %vm4357, %v7120, 0
        %v7152 = vsel %vm4357, %v7121, 0
        %v7155 = vsel %vm4357, %v7122, 0
        %v7158 = vsel %vm4357, %v7123, 0
        %v7161 = vsel %vm4357, %v7124, 0
        %v7164 = vsel %vm4357, %v7125, 0
        %v7167 = vsel %vm4357, %v7126, 0
        %v7170 = vsel %vm4357, %v7127, 0
        %v7173 = vsel %vm4357, %v7128, 0
        %v7176 = vsel %vm4357, %v7129, 0
        %7178 = vmatprep.subr.bf16.mxu0 0
        %7179 = vmatpush1.bf16.xpose.msra.mxu0 %v7176
        %7180 = vmatprep.subr.bf16.mxu0 0
        %7181 = vmatpush1.bf16.xpose.msra.mxu0 %v7173
        %7182 = vmatprep.subr.bf16.mxu0 0
        %7183 = vmatpush1.bf16.xpose.msra.mxu0 %v7170
        %7184 = vmatprep.subr.bf16.mxu0 0
        %7185 = vmatpush1.bf16.xpose.msra.mxu0 %v7167
        %7186 = vmatprep.subr.bf16.mxu0 0
        %7187 = vmatpush1.bf16.xpose.msra.mxu0 %v7164
        %7188 = vmatprep.subr.bf16.mxu0 0
        %7189 = vmatpush1.bf16.xpose.msra.mxu0 %v7161
        %7190 = vmatprep.subr.bf16.mxu0 0
        %7191 = vmatpush1.bf16.xpose.msra.mxu0 %v7158
        %7192 = vmatprep.subr.bf16.mxu0 0
        %7193 = vmatpush1.bf16.xpose.msra.mxu0 %v7155
        %7194 = vmatprep.subr.bf16.mxu0 0
        %7195 = vmatpush2.bf16.xpose.msra.mxu0 0
        %7196 = vmatprep.subr.bf16.mxu0 0
        %7197 = vmatpush2.bf16.xpose.msra.mxu0 0
        %7198 = vmatprep.subr.bf16.mxu0 0
        %7199 = vmatpush2.bf16.xpose.msra.mxu0 0
        %7200 = vmatprep.subr.bf16.mxu0 0
        %7201 = vmatpush2.bf16.xpose.msra.mxu0 0
        %7202 = vmatprep.subr.bf16.mxu0 0
        %7203 = vmatpush2.bf16.xpose.msra.mxu0 0
        %7204 = vmatprep.subr.bf16.mxu0 0
        %7205 = vmatpush2.bf16.xpose.msra.mxu0 0
        %7206 = vmatprep.subr.bf16.mxu0 0
        %7207 = vmatpush2.bf16.xpose.msra.mxu0 0
        %7208 = vmatprep.subr.bf16.mxu0 0
        %7209 = vmatpush2.bf16.xpose.msra.mxu0 0
        %7210 = vmatprep.mubr.bf16.mxu0 0
        %7211 = vmatmul.mubr.bf16.gmra.mxu0 %v7131
        %v7212 = vpop.f32.mrf.mxu0
        %v7213 = vadd.f32 0.0, %v7212
        %v7214 = vpop.f32.mrf.mxu0
        %v7215 = vpop.f32.mrf.mxu0
        %v7216 = vadd.f32 0.0, %v7215
        %v7217 = vpop.f32.mrf.mxu0
        %7218 = vmatprep.mubr.bf16.mxu0 0
        %7219 = vmatmul.mubr.bf16.gmra.mxu0 %v7134
        %v7220 = vpop.f32.mrf.mxu0
        %v7221 = vadd.f32 0.0, %v7220
        %v7222 = vpop.f32.mrf.mxu0
        %v7223 = vpop.f32.mrf.mxu0
        %v7224 = vadd.f32 0.0, %v7223
        %v7225 = vpop.f32.mrf.mxu0
        %7226 = vmatprep.mubr.bf16.mxu0 0
        %7227 = vmatmul.mubr.bf16.gmra.mxu0 %v7137
        %v7228 = vpop.f32.mrf.mxu0
        %v7229 = vadd.f32 0.0, %v7228
        %v7230 = vpop.f32.mrf.mxu0
        %v7231 = vpop.f32.mrf.mxu0
        %v7232 = vadd.f32 0.0, %v7231
        %v7233 = vpop.f32.mrf.mxu0
        %7234 = vmatprep.mubr.bf16.mxu0 0
        %7235 = vmatmul.mubr.bf16.gmra.mxu0 %v7140
        %v7236 = vpop.f32.mrf.mxu0
        %v7237 = vadd.f32 0.0, %v7236
        %v7238 = vpop.f32.mrf.mxu0
        %v7239 = vpop.f32.mrf.mxu0
        %v7240 = vadd.f32 0.0, %v7239
        %v7241 = vpop.f32.mrf.mxu0
        %7242 = vmatprep.mubr.bf16.mxu0 0
        %7243 = vmatmul.mubr.bf16.gmra.mxu0 %v7143
        %v7244 = vpop.f32.mrf.mxu0
        %v7245 = vadd.f32 0.0, %v7244
        %v7246 = vpop.f32.mrf.mxu0
        %v7247 = vpop.f32.mrf.mxu0
        %v7248 = vadd.f32 0.0, %v7247
        %v7249 = vpop.f32.mrf.mxu0
        %7250 = vmatprep.mubr.bf16.mxu0 0
        %7251 = vmatmul.mubr.bf16.gmra.mxu0 %v7146
        %v7252 = vpop.f32.mrf.mxu0
        %v7253 = vadd.f32 0.0, %v7252
        %v7254 = vpop.f32.mrf.mxu0
        %v7255 = vpop.f32.mrf.mxu0
        %v7256 = vadd.f32 0.0, %v7255
        %v7257 = vpop.f32.mrf.mxu0
        %7258 = vmatprep.mubr.bf16.mxu0 0
        %7259 = vmatmul.mubr.bf16.gmra.mxu0 %v7149
        %v7260 = vpop.f32.mrf.mxu0
        %v7261 = vadd.f32 0.0, %v7260
        %v7262 = vpop.f32.mrf.mxu0
        %v7263 = vpop.f32.mrf.mxu0
        %v7264 = vadd.f32 0.0, %v7263
        %v7265 = vpop.f32.mrf.mxu0
        %7266 = vmatprep.mubr.bf16.mxu0 0
        %7267 = vmatmul.mubr.bf16.gmra.mxu0 %v7152
        %v7268 = vpop.f32.mrf.mxu0
        %v7269 = vadd.f32 0.0, %v7268
        %v7270 = vpop.f32.mrf.mxu0
        %v7271 = vpop.f32.mrf.mxu0
        %v7272 = vadd.f32 0.0, %v7271
        %v7273 = vpop.f32.mrf.mxu0
        %7274 = vdwg.mxu0
        %v7275 = vsel %vm4325, %v7213, -1e+30
        %v7276 = vsel %vm4326, %v7216, -1e+30
        %v7277 = vsel %vm4327, %v7221, -1e+30
        %v7278 = vsel %vm4328, %v7224, -1e+30
        %v7279 = vsel %vm4329, %v7229, -1e+30
        %v7280 = vsel %vm4330, %v7232, -1e+30
        %v7281 = vsel %vm4331, %v7237, -1e+30
        %v7282 = vsel %vm4332, %v7240, -1e+30
        %v7283 = vsel %vm4333, %v7245, -1e+30
        %v7284 = vsel %vm4334, %v7248, -1e+30
        %v7285 = vsel %vm4335, %v7253, -1e+30
        %v7286 = vsel %vm4336, %v7256, -1e+30
        %v7287 = vsel %vm4337, %v7261, -1e+30
        %v7288 = vsel %vm4338, %v7264, -1e+30
        %v7289 = vsel %vm4339, %v7269, -1e+30
        %v7290 = vsel %vm4340, %v7272, -1e+30
        %7291 = vmax.xlane.f32.xlu0 %v7275
        %v7292 = vpop.xlane.xlu0 %7291
        %7293 = vmax.xlane.f32.xlu0 %v7276
        %v7294 = vpop.xlane.xlu0 %7293
        %7295 = vmax.xlane.f32.xlu0 %v7277
        %v7296 = vpop.xlane.xlu0 %7295
        %7297 = vmax.xlane.f32.xlu0 %v7278
        %v7298 = vpop.xlane.xlu0 %7297
        %7299 = vmax.xlane.f32.xlu0 %v7279
        %v7300 = vpop.xlane.xlu0 %7299
        %7301 = vmax.xlane.f32.xlu0 %v7280
        %v7302 = vpop.xlane.xlu0 %7301
        %7303 = vmax.xlane.f32.xlu0 %v7281
        %v7304 = vpop.xlane.xlu0 %7303
        %7305 = vmax.xlane.f32.xlu0 %v7282
        %v7306 = vpop.xlane.xlu0 %7305
        %7307 = vmax.xlane.f32.xlu0 %v7283
        %v7308 = vpop.xlane.xlu0 %7307
        %7309 = vmax.xlane.f32.xlu0 %v7284
        %v7310 = vpop.xlane.xlu0 %7309
        %7311 = vmax.xlane.f32.xlu0 %v7285
        %v7312 = vpop.xlane.xlu0 %7311
        %7313 = vmax.xlane.f32.xlu0 %v7286
        %v7314 = vpop.xlane.xlu0 %7313
        %7315 = vmax.xlane.f32.xlu0 %v7287
        %v7316 = vpop.xlane.xlu0 %7315
        %7317 = vmax.xlane.f32.xlu0 %v7288
        %v7318 = vpop.xlane.xlu0 %7317
        %7319 = vmax.xlane.f32.xlu0 %v7289
        %v7320 = vpop.xlane.xlu0 %7319
        %7321 = vmax.xlane.f32.xlu0 %v7290
        %v7322 = vpop.xlane.xlu0 %7321
        %v7323 = vsub.f32 %v7275, %v7292
        %v7324 = vsub.f32 %v7276, %v7294
        %v7325 = vsub.f32 %v7277, %v7296
        %v7326 = vsub.f32 %v7278, %v7298
        %v7327 = vsub.f32 %v7279, %v7300
        %v7328 = vsub.f32 %v7280, %v7302
        %v7329 = vsub.f32 %v7281, %v7304
        %v7330 = vsub.f32 %v7282, %v7306
        %v7331 = vsub.f32 %v7283, %v7308
        %v7332 = vsub.f32 %v7284, %v7310
        %v7333 = vsub.f32 %v7285, %v7312
        %v7334 = vsub.f32 %v7286, %v7314
        %v7335 = vsub.f32 %v7287, %v7316
        %v7336 = vsub.f32 %v7288, %v7318
        %v7337 = vsub.f32 %v7289, %v7320
        %v7338 = vsub.f32 %v7290, %v7322
        %v7339 = vmul.f32 %v7323, 1.442695
        %v7340 = vpow.pop %v7339
        %v7341 = vmul.f32 %v7324, 1.442695
        %v7342 = vpow.pop %v7341
        %v7343 = vmul.f32 %v7325, 1.442695
        %v7344 = vpow.pop %v7343
        %v7345 = vmul.f32 %v7326, 1.442695
        %v7346 = vpow.pop %v7345
        %v7347 = vmul.f32 %v7327, 1.442695
        %v7348 = vpow.pop %v7347
        %v7349 = vmul.f32 %v7328, 1.442695
        %v7350 = vpow.pop %v7349
        %v7351 = vmul.f32 %v7329, 1.442695
        %v7352 = vpow.pop %v7351
        %v7353 = vmul.f32 %v7330, 1.442695
        %v7354 = vpow.pop %v7353
        %v7355 = vmul.f32 %v7331, 1.442695
        %v7356 = vpow.pop %v7355
        %v7357 = vmul.f32 %v7332, 1.442695
        %v7358 = vpow.pop %v7357
        %v7359 = vmul.f32 %v7333, 1.442695
        %v7360 = vpow.pop %v7359
        %v7361 = vmul.f32 %v7334, 1.442695
        %v7362 = vpow.pop %v7361
        %v7363 = vmul.f32 %v7335, 1.442695
        %v7364 = vpow.pop %v7363
        %v7365 = vmul.f32 %v7336, 1.442695
        %v7366 = vpow.pop %v7365
        %v7367 = vmul.f32 %v7337, 1.442695
        %v7368 = vpow.pop %v7367
        %v7369 = vmul.f32 %v7338, 1.442695
        %v7370 = vpow.pop %v7369
        %7371 = vadd.xlane.f32.xlu0 %v7340
        %v7372 = vpop.xlane.xlu0 %7371
        %7373 = vadd.xlane.f32.xlu0 %v7342
        %v7374 = vpop.xlane.xlu0 %7373
        %7375 = vadd.xlane.f32.xlu0 %v7344
        %v7376 = vpop.xlane.xlu0 %7375
        %7377 = vadd.xlane.f32.xlu0 %v7346
        %v7378 = vpop.xlane.xlu0 %7377
        %7379 = vadd.xlane.f32.xlu0 %v7348
        %v7380 = vpop.xlane.xlu0 %7379
        %7381 = vadd.xlane.f32.xlu0 %v7350
        %v7382 = vpop.xlane.xlu0 %7381
        %7383 = vadd.xlane.f32.xlu0 %v7352
        %v7384 = vpop.xlane.xlu0 %7383
        %7385 = vadd.xlane.f32.xlu0 %v7354
        %v7386 = vpop.xlane.xlu0 %7385
        %7387 = vadd.xlane.f32.xlu0 %v7356
        %v7388 = vpop.xlane.xlu0 %7387
        %7389 = vadd.xlane.f32.xlu0 %v7358
        %v7390 = vpop.xlane.xlu0 %7389
        %7391 = vadd.xlane.f32.xlu0 %v7360
        %v7392 = vpop.xlane.xlu0 %7391
        %7393 = vadd.xlane.f32.xlu0 %v7362
        %v7394 = vpop.xlane.xlu0 %7393
        %7395 = vadd.xlane.f32.xlu0 %v7364
        %v7396 = vpop.xlane.xlu0 %7395
        %7397 = vadd.xlane.f32.xlu0 %v7366
        %v7398 = vpop.xlane.xlu0 %7397
        %7399 = vadd.xlane.f32.xlu0 %v7368
        %v7400 = vpop.xlane.xlu0 %7399
        %7401 = vadd.xlane.f32.xlu0 %v7370
        %v7402 = vpop.xlane.xlu0 %7401
        %v7403 = vrcp.pop %v7372
        %v7404 = vrcp.pop %v7374
        %v7405 = vrcp.pop %v7376
        %v7406 = vrcp.pop %v7378
        %v7407 = vrcp.pop %v7380
        %v7408 = vrcp.pop %v7382
        %v7409 = vrcp.pop %v7384
        %v7410 = vrcp.pop %v7386
        %v7411 = vrcp.pop %v7388
        %v7412 = vrcp.pop %v7390
        %v7413 = vrcp.pop %v7392
        %v7414 = vrcp.pop %v7394
        %v7415 = vrcp.pop %v7396
        %v7416 = vrcp.pop %v7398
        %v7417 = vrcp.pop %v7400
        %v7418 = vrcp.pop %v7402
        %v7419 = vpack.c.bf16 %v7342, %v7340
        %v7420 = vpack.c.bf16 %v7346, %v7344
        %v7421 = vpack.c.bf16 %v7350, %v7348
        %v7422 = vpack.c.bf16 %v7354, %v7352
        %v7423 = vpack.c.bf16 %v7358, %v7356
        %v7424 = vpack.c.bf16 %v7362, %v7360
        %v7425 = vpack.c.bf16 %v7366, %v7364
        %v7426 = vpack.c.bf16 %v7370, %v7368
        %v7427 = vpack.c.bf16 %v2837, %v2833
        %v7428 = vpack.c.bf16 %v2847, %v2843
        %v7429 = vpack.c.bf16 %v2857, %v2853
        %v7430 = vpack.c.bf16 %v2867, %v2863
        %v7431 = vpack.c.bf16 %v2877, %v2873
        %v7432 = vpack.c.bf16 %v2887, %v2883
        %v7433 = vpack.c.bf16 %v2897, %v2893
        %v7434 = vpack.c.bf16 %v2907, %v2903
        %7435 = vmatprep.subr.bf16.mxu0 0
        %7436 = vmatpush1.bf16.msra.mxu0 %v7434
        %7437 = vmatprep.subr.bf16.mxu0 0
        %7438 = vmatpush1.bf16.msra.mxu0 %v7433
        %7439 = vmatprep.subr.bf16.mxu0 0
        %7440 = vmatpush1.bf16.msra.mxu0 %v7432
        %7441 = vmatprep.subr.bf16.mxu0 0
        %7442 = vmatpush1.bf16.msra.mxu0 %v7431
        %7443 = vmatprep.subr.bf16.mxu0 0
        %7444 = vmatpush1.bf16.msra.mxu0 %v7430
        %7445 = vmatprep.subr.bf16.mxu0 0
        %7446 = vmatpush1.bf16.msra.mxu0 %v7429
        %7447 = vmatprep.subr.bf16.mxu0 0
        %7448 = vmatpush1.bf16.msra.mxu0 %v7428
        %7449 = vmatprep.subr.bf16.mxu0 0
        %7450 = vmatpush1.bf16.msra.mxu0 %v7427
        %7451 = vmatprep.subr.bf16.mxu0 0
        %7452 = vmatpush2.bf16.msra.mxu0 0
        %7453 = vmatprep.subr.bf16.mxu0 0
        %7454 = vmatpush2.bf16.msra.mxu0 0
        %7455 = vmatprep.subr.bf16.mxu0 0
        %7456 = vmatpush2.bf16.msra.mxu0 0
        %7457 = vmatprep.subr.bf16.mxu0 0
        %7458 = vmatpush2.bf16.msra.mxu0 0
        %7459 = vmatprep.subr.bf16.mxu0 0
        %7460 = vmatpush2.bf16.msra.mxu0 0
        %7461 = vmatprep.subr.bf16.mxu0 0
        %7462 = vmatpush2.bf16.msra.mxu0 0
        %7463 = vmatprep.subr.bf16.mxu0 0
        %7464 = vmatpush2.bf16.msra.mxu0 0
        %7465 = vmatprep.subr.bf16.mxu0 0
        %7466 = vmatpush2.bf16.msra.mxu0 0
        %7467 = vmatprep.mubr.bf16.mxu0 0
        %7468 = vmatmul.mubr.bf16.gmra.mxu0 %v7419
        %v7469 = vpop.f32.mrf.mxu0
        %v7470 = vadd.f32 0.0, %v7469
        %v7471 = vpop.f32.mrf.mxu0
        %v7472 = vpop.f32.mrf.mxu0
        %v7473 = vadd.f32 0.0, %v7472
        %v7474 = vpop.f32.mrf.mxu0
        %7475 = vmatprep.mubr.bf16.mxu0 0
        %7476 = vmatmul.mubr.bf16.gmra.mxu0 %v7420
        %v7477 = vpop.f32.mrf.mxu0
        %v7478 = vadd.f32 0.0, %v7477
        %v7479 = vpop.f32.mrf.mxu0
        %v7480 = vpop.f32.mrf.mxu0
        %v7481 = vadd.f32 0.0, %v7480
        %v7482 = vpop.f32.mrf.mxu0
        %7483 = vmatprep.mubr.bf16.mxu0 0
        %7484 = vmatmul.mubr.bf16.gmra.mxu0 %v7421
        %v7485 = vpop.f32.mrf.mxu0
        %v7486 = vadd.f32 0.0, %v7485
        %v7487 = vpop.f32.mrf.mxu0
        %v7488 = vpop.f32.mrf.mxu0
        %v7489 = vadd.f32 0.0, %v7488
        %v7490 = vpop.f32.mrf.mxu0
        %7491 = vmatprep.mubr.bf16.mxu0 0
        %7492 = vmatmul.mubr.bf16.gmra.mxu0 %v7422
        %v7493 = vpop.f32.mrf.mxu0
        %v7494 = vadd.f32 0.0, %v7493
        %v7495 = vpop.f32.mrf.mxu0
        %v7496 = vpop.f32.mrf.mxu0
        %v7497 = vadd.f32 0.0, %v7496
        %v7498 = vpop.f32.mrf.mxu0
        %7499 = vmatprep.mubr.bf16.mxu0 0
        %7500 = vmatmul.mubr.bf16.gmra.mxu0 %v7423
        %v7501 = vpop.f32.mrf.mxu0
        %v7502 = vadd.f32 0.0, %v7501
        %v7503 = vpop.f32.mrf.mxu0
        %v7504 = vpop.f32.mrf.mxu0
        %v7505 = vadd.f32 0.0, %v7504
        %v7506 = vpop.f32.mrf.mxu0
        %7507 = vmatprep.mubr.bf16.mxu0 0
        %7508 = vmatmul.mubr.bf16.gmra.mxu0 %v7424
        %v7509 = vpop.f32.mrf.mxu0
        %v7510 = vadd.f32 0.0, %v7509
        %v7511 = vpop.f32.mrf.mxu0
        %v7512 = vpop.f32.mrf.mxu0
        %v7513 = vadd.f32 0.0, %v7512
        %v7514 = vpop.f32.mrf.mxu0
        %7515 = vmatprep.mubr.bf16.mxu0 0
        %7516 = vmatmul.mubr.bf16.gmra.mxu0 %v7425
        %v7517 = vpop.f32.mrf.mxu0
        %v7518 = vadd.f32 0.0, %v7517
        %v7519 = vpop.f32.mrf.mxu0
        %v7520 = vpop.f32.mrf.mxu0
        %v7521 = vadd.f32 0.0, %v7520
        %v7522 = vpop.f32.mrf.mxu0
        %7523 = vmatprep.mubr.bf16.mxu0 0
        %7524 = vmatmul.mubr.bf16.gmra.mxu0 %v7426
        %v7525 = vpop.f32.mrf.mxu0
        %v7526 = vadd.f32 0.0, %v7525
        %v7527 = vpop.f32.mrf.mxu0
        %v7528 = vpop.f32.mrf.mxu0
        %v7529 = vadd.f32 0.0, %v7528
        %v7530 = vpop.f32.mrf.mxu0
        %7531 = vdwg.mxu0
        %v7532 = vmul.f32 %v7470, %v7403
        %v7533 = vmul.f32 %v7473, %v7404
        %v7534 = vmul.f32 %v7478, %v7405
        %v7535 = vmul.f32 %v7481, %v7406
        %v7536 = vmul.f32 %v7486, %v7407
        %v7537 = vmul.f32 %v7489, %v7408
        %v7538 = vmul.f32 %v7494, %v7409
        %v7539 = vmul.f32 %v7497, %v7410
        %v7540 = vmul.f32 %v7502, %v7411
        %v7541 = vmul.f32 %v7505, %v7412
        %v7542 = vmul.f32 %v7510, %v7413
        %v7543 = vmul.f32 %v7513, %v7414
        %v7544 = vmul.f32 %v7518, %v7415
        %v7545 = vmul.f32 %v7521, %v7416
        %v7546 = vmul.f32 %v7526, %v7417
        %v7547 = vmul.f32 %v7529, %v7418
        %7556 = vrot.lane.b32.xlu0 %v7114, 64
        %v7557 = vpop.permute.xlu0 %7556
        %7558 = vrot.lane.b32.xlu0 %v7115, 64
        %v7559 = vpop.permute.xlu0 %7558
        %7560 = vrot.lane.b32.xlu0 %v7116, 64
        %v7561 = vpop.permute.xlu0 %7560
        %7562 = vrot.lane.b32.xlu0 %v7117, 64
        %v7563 = vpop.permute.xlu0 %7562
        %7564 = vrot.lane.b32.xlu0 %v7118, 64
        %v7565 = vpop.permute.xlu0 %7564
        %7566 = vrot.lane.b32.xlu0 %v7119, 64
        %v7567 = vpop.permute.xlu0 %7566
        %7568 = vrot.lane.b32.xlu0 %v7120, 64
        %v7569 = vpop.permute.xlu0 %7568
        %7570 = vrot.lane.b32.xlu0 %v7121, 64
        %v7571 = vpop.permute.xlu0 %7570
        %7580 = vrot.lane.b32.xlu0 %v7122, 64
        %v7581 = vpop.permute.xlu0 %7580
        %7582 = vrot.lane.b32.xlu0 %v7123, 64
        %v7583 = vpop.permute.xlu0 %7582
        %7584 = vrot.lane.b32.xlu0 %v7124, 64
        %v7585 = vpop.permute.xlu0 %7584
        %7586 = vrot.lane.b32.xlu0 %v7125, 64
        %v7587 = vpop.permute.xlu0 %7586
        %7588 = vrot.lane.b32.xlu0 %v7126, 64
        %v7589 = vpop.permute.xlu0 %7588
        %7590 = vrot.lane.b32.xlu0 %v7127, 64
        %v7591 = vpop.permute.xlu0 %7590
        %7592 = vrot.lane.b32.xlu0 %v7128, 64
        %v7593 = vpop.permute.xlu0 %7592
        %7594 = vrot.lane.b32.xlu0 %v7129, 64
        %v7595 = vpop.permute.xlu0 %7594
        %v7597 = vsel %vm4357, %v7557, 0
        %v7600 = vsel %vm4357, %v7559, 0
        %v7603 = vsel %vm4357, %v7561, 0
        %v7606 = vsel %vm4357, %v7563, 0
        %v7609 = vsel %vm4357, %v7565, 0
        %v7612 = vsel %vm4357, %v7567, 0
        %v7615 = vsel %vm4357, %v7569, 0
        %v7618 = vsel %vm4357, %v7571, 0
        %v7621 = vsel %vm4357, %v7581, 0
        %v7624 = vsel %vm4357, %v7583, 0
        %v7627 = vsel %vm4357, %v7585, 0
        %v7630 = vsel %vm4357, %v7587, 0
        %v7633 = vsel %vm4357, %v7589, 0
        %v7636 = vsel %vm4357, %v7591, 0
        %v7639 = vsel %vm4357, %v7593, 0
        %v7642 = vsel %vm4357, %v7595, 0
        %7644 = vmatprep.subr.bf16.mxu0 0
        %7645 = vmatpush1.bf16.xpose.msra.mxu0 %v7642
        %7646 = vmatprep.subr.bf16.mxu0 0
        %7647 = vmatpush1.bf16.xpose.msra.mxu0 %v7639
        %7648 = vmatprep.subr.bf16.mxu0 0
        %7649 = vmatpush1.bf16.xpose.msra.mxu0 %v7636
        %7650 = vmatprep.subr.bf16.mxu0 0
        %7651 = vmatpush1.bf16.xpose.msra.mxu0 %v7633
        %7652 = vmatprep.subr.bf16.mxu0 0
        %7653 = vmatpush1.bf16.xpose.msra.mxu0 %v7630
        %7654 = vmatprep.subr.bf16.mxu0 0
        %7655 = vmatpush1.bf16.xpose.msra.mxu0 %v7627
        %7656 = vmatprep.subr.bf16.mxu0 0
        %7657 = vmatpush1.bf16.xpose.msra.mxu0 %v7624
        %7658 = vmatprep.subr.bf16.mxu0 0
        %7659 = vmatpush1.bf16.xpose.msra.mxu0 %v7621
        %7660 = vmatprep.subr.bf16.mxu0 0
        %7661 = vmatpush2.bf16.xpose.msra.mxu0 0
        %7662 = vmatprep.subr.bf16.mxu0 0
        %7663 = vmatpush2.bf16.xpose.msra.mxu0 0
        %7664 = vmatprep.subr.bf16.mxu0 0
        %7665 = vmatpush2.bf16.xpose.msra.mxu0 0
        %7666 = vmatprep.subr.bf16.mxu0 0
        %7667 = vmatpush2.bf16.xpose.msra.mxu0 0
        %7668 = vmatprep.subr.bf16.mxu0 0
        %7669 = vmatpush2.bf16.xpose.msra.mxu0 0
        %7670 = vmatprep.subr.bf16.mxu0 0
        %7671 = vmatpush2.bf16.xpose.msra.mxu0 0
        %7672 = vmatprep.subr.bf16.mxu0 0
        %7673 = vmatpush2.bf16.xpose.msra.mxu0 0
        %7674 = vmatprep.subr.bf16.mxu0 0
        %7675 = vmatpush2.bf16.xpose.msra.mxu0 0
        %7676 = vmatprep.mubr.bf16.mxu0 0
        %7677 = vmatmul.mubr.bf16.gmra.mxu0 %v7597
        %v7678 = vpop.f32.mrf.mxu0
        %v7679 = vadd.f32 0.0, %v7678
        %v7680 = vpop.f32.mrf.mxu0
        %v7681 = vpop.f32.mrf.mxu0
        %v7682 = vadd.f32 0.0, %v7681
        %v7683 = vpop.f32.mrf.mxu0
        %7684 = vmatprep.mubr.bf16.mxu0 0
        %7685 = vmatmul.mubr.bf16.gmra.mxu0 %v7600
        %v7686 = vpop.f32.mrf.mxu0
        %v7687 = vadd.f32 0.0, %v7686
        %v7688 = vpop.f32.mrf.mxu0
        %v7689 = vpop.f32.mrf.mxu0
        %v7690 = vadd.f32 0.0, %v7689
        %v7691 = vpop.f32.mrf.mxu0
        %7692 = vmatprep.mubr.bf16.mxu0 0
        %7693 = vmatmul.mubr.bf16.gmra.mxu0 %v7603
        %v7694 = vpop.f32.mrf.mxu0
        %v7695 = vadd.f32 0.0, %v7694
        %v7696 = vpop.f32.mrf.mxu0
        %v7697 = vpop.f32.mrf.mxu0
        %v7698 = vadd.f32 0.0, %v7697
        %v7699 = vpop.f32.mrf.mxu0
        %7700 = vmatprep.mubr.bf16.mxu0 0
        %7701 = vmatmul.mubr.bf16.gmra.mxu0 %v7606
        %v7702 = vpop.f32.mrf.mxu0
        %v7703 = vadd.f32 0.0, %v7702
        %v7704 = vpop.f32.mrf.mxu0
        %v7705 = vpop.f32.mrf.mxu0
        %v7706 = vadd.f32 0.0, %v7705
        %v7707 = vpop.f32.mrf.mxu0
        %7708 = vmatprep.mubr.bf16.mxu0 0
        %7709 = vmatmul.mubr.bf16.gmra.mxu0 %v7609
        %v7710 = vpop.f32.mrf.mxu0
        %v7711 = vadd.f32 0.0, %v7710
        %v7712 = vpop.f32.mrf.mxu0
        %v7713 = vpop.f32.mrf.mxu0
        %v7714 = vadd.f32 0.0, %v7713
        %v7715 = vpop.f32.mrf.mxu0
        %7716 = vmatprep.mubr.bf16.mxu0 0
        %7717 = vmatmul.mubr.bf16.gmra.mxu0 %v7612
        %v7718 = vpop.f32.mrf.mxu0
        %v7719 = vadd.f32 0.0, %v7718
        %v7720 = vpop.f32.mrf.mxu0
        %v7721 = vpop.f32.mrf.mxu0
        %v7722 = vadd.f32 0.0, %v7721
        %v7723 = vpop.f32.mrf.mxu0
        %7724 = vmatprep.mubr.bf16.mxu0 0
        %7725 = vmatmul.mubr.bf16.gmra.mxu0 %v7615
        %v7726 = vpop.f32.mrf.mxu0
        %v7727 = vadd.f32 0.0, %v7726
        %v7728 = vpop.f32.mrf.mxu0
        %v7729 = vpop.f32.mrf.mxu0
        %v7730 = vadd.f32 0.0, %v7729
        %v7731 = vpop.f32.mrf.mxu0
        %7732 = vmatprep.mubr.bf16.mxu0 0
        %7733 = vmatmul.mubr.bf16.gmra.mxu0 %v7618
        %v7734 = vpop.f32.mrf.mxu0
        %v7735 = vadd.f32 0.0, %v7734
        %v7736 = vpop.f32.mrf.mxu0
        %v7737 = vpop.f32.mrf.mxu0
        %v7738 = vadd.f32 0.0, %v7737
        %v7739 = vpop.f32.mrf.mxu0
        %7740 = vdwg.mxu0
        %v7741 = vsel %vm4325, %v7679, -1e+30
        %v7742 = vsel %vm4326, %v7682, -1e+30
        %v7743 = vsel %vm4327, %v7687, -1e+30
        %v7744 = vsel %vm4328, %v7690, -1e+30
        %v7745 = vsel %vm4329, %v7695, -1e+30
        %v7746 = vsel %vm4330, %v7698, -1e+30
        %v7747 = vsel %vm4331, %v7703, -1e+30
        %v7748 = vsel %vm4332, %v7706, -1e+30
        %v7749 = vsel %vm4333, %v7711, -1e+30
        %v7750 = vsel %vm4334, %v7714, -1e+30
        %v7751 = vsel %vm4335, %v7719, -1e+30
        %v7752 = vsel %vm4336, %v7722, -1e+30
        %v7753 = vsel %vm4337, %v7727, -1e+30
        %v7754 = vsel %vm4338, %v7730, -1e+30
        %v7755 = vsel %vm4339, %v7735, -1e+30
        %v7756 = vsel %vm4340, %v7738, -1e+30
        %7757 = vmax.xlane.f32.xlu0 %v7741
        %v7758 = vpop.xlane.xlu0 %7757
        %7759 = vmax.xlane.f32.xlu0 %v7742
        %v7760 = vpop.xlane.xlu0 %7759
        %7761 = vmax.xlane.f32.xlu0 %v7743
        %v7762 = vpop.xlane.xlu0 %7761
        %7763 = vmax.xlane.f32.xlu0 %v7744
        %v7764 = vpop.xlane.xlu0 %7763
        %7765 = vmax.xlane.f32.xlu0 %v7745
        %v7766 = vpop.xlane.xlu0 %7765
        %7767 = vmax.xlane.f32.xlu0 %v7746
        %v7768 = vpop.xlane.xlu0 %7767
        %7769 = vmax.xlane.f32.xlu0 %v7747
        %v7770 = vpop.xlane.xlu0 %7769
        %7771 = vmax.xlane.f32.xlu0 %v7748
        %v7772 = vpop.xlane.xlu0 %7771
        %7773 = vmax.xlane.f32.xlu0 %v7749
        %v7774 = vpop.xlane.xlu0 %7773
        %7775 = vmax.xlane.f32.xlu0 %v7750
        %v7776 = vpop.xlane.xlu0 %7775
        %7777 = vmax.xlane.f32.xlu0 %v7751
        %v7778 = vpop.xlane.xlu0 %7777
        %7779 = vmax.xlane.f32.xlu0 %v7752
        %v7780 = vpop.xlane.xlu0 %7779
        %7781 = vmax.xlane.f32.xlu0 %v7753
        %v7782 = vpop.xlane.xlu0 %7781
        %7783 = vmax.xlane.f32.xlu0 %v7754
        %v7784 = vpop.xlane.xlu0 %7783
        %7785 = vmax.xlane.f32.xlu0 %v7755
        %v7786 = vpop.xlane.xlu0 %7785
        %7787 = vmax.xlane.f32.xlu0 %v7756
        %v7788 = vpop.xlane.xlu0 %7787
        %v7789 = vsub.f32 %v7741, %v7758
        %v7790 = vsub.f32 %v7742, %v7760
        %v7791 = vsub.f32 %v7743, %v7762
        %v7792 = vsub.f32 %v7744, %v7764
        %v7793 = vsub.f32 %v7745, %v7766
        %v7794 = vsub.f32 %v7746, %v7768
        %v7795 = vsub.f32 %v7747, %v7770
        %v7796 = vsub.f32 %v7748, %v7772
        %v7797 = vsub.f32 %v7749, %v7774
        %v7798 = vsub.f32 %v7750, %v7776
        %v7799 = vsub.f32 %v7751, %v7778
        %v7800 = vsub.f32 %v7752, %v7780
        %v7801 = vsub.f32 %v7753, %v7782
        %v7802 = vsub.f32 %v7754, %v7784
        %v7803 = vsub.f32 %v7755, %v7786
        %v7804 = vsub.f32 %v7756, %v7788
        %v7805 = vmul.f32 %v7789, 1.442695
        %v7806 = vpow.pop %v7805
        %v7807 = vmul.f32 %v7790, 1.442695
        %v7808 = vpow.pop %v7807
        %v7809 = vmul.f32 %v7791, 1.442695
        %v7810 = vpow.pop %v7809
        %v7811 = vmul.f32 %v7792, 1.442695
        %v7812 = vpow.pop %v7811
        %v7813 = vmul.f32 %v7793, 1.442695
        %v7814 = vpow.pop %v7813
        %v7815 = vmul.f32 %v7794, 1.442695
        %v7816 = vpow.pop %v7815
        %v7817 = vmul.f32 %v7795, 1.442695
        %v7818 = vpow.pop %v7817
        %v7819 = vmul.f32 %v7796, 1.442695
        %v7820 = vpow.pop %v7819
        %v7821 = vmul.f32 %v7797, 1.442695
        %v7822 = vpow.pop %v7821
        %v7823 = vmul.f32 %v7798, 1.442695
        %v7824 = vpow.pop %v7823
        %v7825 = vmul.f32 %v7799, 1.442695
        %v7826 = vpow.pop %v7825
        %v7827 = vmul.f32 %v7800, 1.442695
        %v7828 = vpow.pop %v7827
        %v7829 = vmul.f32 %v7801, 1.442695
        %v7830 = vpow.pop %v7829
        %v7831 = vmul.f32 %v7802, 1.442695
        %v7832 = vpow.pop %v7831
        %v7833 = vmul.f32 %v7803, 1.442695
        %v7834 = vpow.pop %v7833
        %v7835 = vmul.f32 %v7804, 1.442695
        %v7836 = vpow.pop %v7835
        %7837 = vadd.xlane.f32.xlu0 %v7806
        %v7838 = vpop.xlane.xlu0 %7837
        %7839 = vadd.xlane.f32.xlu0 %v7808
        %v7840 = vpop.xlane.xlu0 %7839
        %7841 = vadd.xlane.f32.xlu0 %v7810
        %v7842 = vpop.xlane.xlu0 %7841
        %7843 = vadd.xlane.f32.xlu0 %v7812
        %v7844 = vpop.xlane.xlu0 %7843
        %7845 = vadd.xlane.f32.xlu0 %v7814
        %v7846 = vpop.xlane.xlu0 %7845
        %7847 = vadd.xlane.f32.xlu0 %v7816
        %v7848 = vpop.xlane.xlu0 %7847
        %7849 = vadd.xlane.f32.xlu0 %v7818
        %v7850 = vpop.xlane.xlu0 %7849
        %7851 = vadd.xlane.f32.xlu0 %v7820
        %v7852 = vpop.xlane.xlu0 %7851
        %7853 = vadd.xlane.f32.xlu0 %v7822
        %v7854 = vpop.xlane.xlu0 %7853
        %7855 = vadd.xlane.f32.xlu0 %v7824
        %v7856 = vpop.xlane.xlu0 %7855
        %7857 = vadd.xlane.f32.xlu0 %v7826
        %v7858 = vpop.xlane.xlu0 %7857
        %7859 = vadd.xlane.f32.xlu0 %v7828
        %v7860 = vpop.xlane.xlu0 %7859
        %7861 = vadd.xlane.f32.xlu0 %v7830
        %v7862 = vpop.xlane.xlu0 %7861
        %7863 = vadd.xlane.f32.xlu0 %v7832
        %v7864 = vpop.xlane.xlu0 %7863
        %7865 = vadd.xlane.f32.xlu0 %v7834
        %v7866 = vpop.xlane.xlu0 %7865
        %7867 = vadd.xlane.f32.xlu0 %v7836
        %v7868 = vpop.xlane.xlu0 %7867
        %v7869 = vrcp.pop %v7838
        %v7870 = vrcp.pop %v7840
        %v7871 = vrcp.pop %v7842
        %v7872 = vrcp.pop %v7844
        %v7873 = vrcp.pop %v7846
        %v7874 = vrcp.pop %v7848
        %v7875 = vrcp.pop %v7850
        %v7876 = vrcp.pop %v7852
        %v7877 = vrcp.pop %v7854
        %v7878 = vrcp.pop %v7856
        %v7879 = vrcp.pop %v7858
        %v7880 = vrcp.pop %v7860
        %v7881 = vrcp.pop %v7862
        %v7882 = vrcp.pop %v7864
        %v7883 = vrcp.pop %v7866
        %v7884 = vrcp.pop %v7868
        %v7885 = vpack.c.bf16 %v7808, %v7806
        %v7886 = vpack.c.bf16 %v7812, %v7810
        %v7887 = vpack.c.bf16 %v7816, %v7814
        %v7888 = vpack.c.bf16 %v7820, %v7818
        %v7889 = vpack.c.bf16 %v7824, %v7822
        %v7890 = vpack.c.bf16 %v7828, %v7826
        %v7891 = vpack.c.bf16 %v7832, %v7830
        %v7892 = vpack.c.bf16 %v7836, %v7834
        %7901 = vrot.lane.b32.xlu0 %v7427, 64
        %v7902 = vpop.permute.xlu0 %7901
        %7903 = vrot.lane.b32.xlu0 %v7428, 64
        %v7904 = vpop.permute.xlu0 %7903
        %7905 = vrot.lane.b32.xlu0 %v7429, 64
        %v7906 = vpop.permute.xlu0 %7905
        %7907 = vrot.lane.b32.xlu0 %v7430, 64
        %v7908 = vpop.permute.xlu0 %7907
        %7909 = vrot.lane.b32.xlu0 %v7431, 64
        %v7910 = vpop.permute.xlu0 %7909
        %7911 = vrot.lane.b32.xlu0 %v7432, 64
        %v7912 = vpop.permute.xlu0 %7911
        %7913 = vrot.lane.b32.xlu0 %v7433, 64
        %v7914 = vpop.permute.xlu0 %7913
        %7915 = vrot.lane.b32.xlu0 %v7434, 64
        %v7916 = vpop.permute.xlu0 %7915
        %7925 = vmatprep.subr.bf16.mxu0 0
        %7926 = vmatpush1.bf16.msra.mxu0 %v7916
        %7927 = vmatprep.subr.bf16.mxu0 0
        %7928 = vmatpush1.bf16.msra.mxu0 %v7914
        %7929 = vmatprep.subr.bf16.mxu0 0
        %7930 = vmatpush1.bf16.msra.mxu0 %v7912
        %7931 = vmatprep.subr.bf16.mxu0 0
        %7932 = vmatpush1.bf16.msra.mxu0 %v7910
        %7933 = vmatprep.subr.bf16.mxu0 0
        %7934 = vmatpush1.bf16.msra.mxu0 %v7908
        %7935 = vmatprep.subr.bf16.mxu0 0
        %7936 = vmatpush1.bf16.msra.mxu0 %v7906
        %7937 = vmatprep.subr.bf16.mxu0 0
        %7938 = vmatpush1.bf16.msra.mxu0 %v7904
        %7939 = vmatprep.subr.bf16.mxu0 0
        %7940 = vmatpush1.bf16.msra.mxu0 %v7902
        %7941 = vmatprep.subr.bf16.mxu0 0
        %7942 = vmatpush2.bf16.msra.mxu0 0
        %7943 = vmatprep.subr.bf16.mxu0 0
        %7944 = vmatpush2.bf16.msra.mxu0 0
        %7945 = vmatprep.subr.bf16.mxu0 0
        %7946 = vmatpush2.bf16.msra.mxu0 0
        %7947 = vmatprep.subr.bf16.mxu0 0
        %7948 = vmatpush2.bf16.msra.mxu0 0
        %7949 = vmatprep.subr.bf16.mxu0 0
        %7950 = vmatpush2.bf16.msra.mxu0 0
        %7951 = vmatprep.subr.bf16.mxu0 0
        %7952 = vmatpush2.bf16.msra.mxu0 0
        %7953 = vmatprep.subr.bf16.mxu0 0
        %7954 = vmatpush2.bf16.msra.mxu0 0
        %7955 = vmatprep.subr.bf16.mxu0 0
        %7956 = vmatpush2.bf16.msra.mxu0 0
        %7957 = vmatprep.mubr.bf16.mxu0 0
        %7958 = vmatmul.mubr.bf16.gmra.mxu0 %v7885
        %v7959 = vpop.f32.mrf.mxu0
        %v7960 = vadd.f32 0.0, %v7959
        %v7961 = vpop.f32.mrf.mxu0
        %v7962 = vpop.f32.mrf.mxu0
        %v7963 = vadd.f32 0.0, %v7962
        %v7964 = vpop.f32.mrf.mxu0
        %7965 = vmatprep.mubr.bf16.mxu0 0
        %7966 = vmatmul.mubr.bf16.gmra.mxu0 %v7886
        %v7967 = vpop.f32.mrf.mxu0
        %v7968 = vadd.f32 0.0, %v7967
        %v7969 = vpop.f32.mrf.mxu0
        %v7970 = vpop.f32.mrf.mxu0
        %v7971 = vadd.f32 0.0, %v7970
        %v7972 = vpop.f32.mrf.mxu0
        %7973 = vmatprep.mubr.bf16.mxu0 0
        %7974 = vmatmul.mubr.bf16.gmra.mxu0 %v7887
        %v7975 = vpop.f32.mrf.mxu0
        %v7976 = vadd.f32 0.0, %v7975
        %v7977 = vpop.f32.mrf.mxu0
        %v7978 = vpop.f32.mrf.mxu0
        %v7979 = vadd.f32 0.0, %v7978
        %v7980 = vpop.f32.mrf.mxu0
        %7981 = vmatprep.mubr.bf16.mxu0 0
        %7982 = vmatmul.mubr.bf16.gmra.mxu0 %v7888
        %v7983 = vpop.f32.mrf.mxu0
        %v7984 = vadd.f32 0.0, %v7983
        %v7985 = vpop.f32.mrf.mxu0
        %v7986 = vpop.f32.mrf.mxu0
        %v7987 = vadd.f32 0.0, %v7986
        %v7988 = vpop.f32.mrf.mxu0
        %7989 = vmatprep.mubr.bf16.mxu0 0
        %7990 = vmatmul.mubr.bf16.gmra.mxu0 %v7889
        %v7991 = vpop.f32.mrf.mxu0
        %v7992 = vadd.f32 0.0, %v7991
        %v7993 = vpop.f32.mrf.mxu0
        %v7994 = vpop.f32.mrf.mxu0
        %v7995 = vadd.f32 0.0, %v7994
        %v7996 = vpop.f32.mrf.mxu0
        %7997 = vmatprep.mubr.bf16.mxu0 0
        %7998 = vmatmul.mubr.bf16.gmra.mxu0 %v7890
        %v7999 = vpop.f32.mrf.mxu0
        %v8000 = vadd.f32 0.0, %v7999
        %v8001 = vpop.f32.mrf.mxu0
        %v8002 = vpop.f32.mrf.mxu0
        %v8003 = vadd.f32 0.0, %v8002
        %v8004 = vpop.f32.mrf.mxu0
        %8005 = vmatprep.mubr.bf16.mxu0 0
        %8006 = vmatmul.mubr.bf16.gmra.mxu0 %v7891
        %v8007 = vpop.f32.mrf.mxu0
        %v8008 = vadd.f32 0.0, %v8007
        %v8009 = vpop.f32.mrf.mxu0
        %v8010 = vpop.f32.mrf.mxu0
        %v8011 = vadd.f32 0.0, %v8010
        %v8012 = vpop.f32.mrf.mxu0
        %8013 = vmatprep.mubr.bf16.mxu0 0
        %8014 = vmatmul.mubr.bf16.gmra.mxu0 %v7892
        %v8015 = vpop.f32.mrf.mxu0
        %v8016 = vadd.f32 0.0, %v8015
        %v8017 = vpop.f32.mrf.mxu0
        %v8018 = vpop.f32.mrf.mxu0
        %v8019 = vadd.f32 0.0, %v8018
        %v8020 = vpop.f32.mrf.mxu0
        %8021 = vdwg.mxu0
        %v8022 = vmul.f32 %v7960, %v7869
        %v8023 = vmul.f32 %v7963, %v7870
        %v8024 = vmul.f32 %v7968, %v7871
        %v8025 = vmul.f32 %v7971, %v7872
        %v8026 = vmul.f32 %v7976, %v7873
        %v8027 = vmul.f32 %v7979, %v7874
        %v8028 = vmul.f32 %v7984, %v7875
        %v8029 = vmul.f32 %v7987, %v7876
        %v8030 = vmul.f32 %v7992, %v7877
        %v8031 = vmul.f32 %v7995, %v7878
        %v8032 = vmul.f32 %v8000, %v7879
        %v8033 = vmul.f32 %v8003, %v7880
        %v8034 = vmul.f32 %v8008, %v7881
        %v8035 = vmul.f32 %v8011, %v7882
        %v8036 = vmul.f32 %v8016, %v7883
        %v8037 = vmul.f32 %v8019, %v7884
        %8054 = vrot.lane.b32.xlu0 %v5250, 64
        %v8055 = vpop.permute.xlu0 %8054
        %8056 = vrot.lane.b32.xlu0 %v5251, 64
        %v8057 = vpop.permute.xlu0 %8056
        %8058 = vrot.lane.b32.xlu0 %v5252, 64
        %v8059 = vpop.permute.xlu0 %8058
        %8060 = vrot.lane.b32.xlu0 %v5253, 64
        %v8061 = vpop.permute.xlu0 %8060
        %8062 = vrot.lane.b32.xlu0 %v5254, 64
        %v8063 = vpop.permute.xlu0 %8062
        %8064 = vrot.lane.b32.xlu0 %v5255, 64
        %v8065 = vpop.permute.xlu0 %8064
        %8066 = vrot.lane.b32.xlu0 %v5256, 64
        %v8067 = vpop.permute.xlu0 %8066
        %8068 = vrot.lane.b32.xlu0 %v5257, 64
        %v8069 = vpop.permute.xlu0 %8068
        %8070 = vrot.lane.b32.xlu0 %v5258, 64
        %v8071 = vpop.permute.xlu0 %8070
        %8072 = vrot.lane.b32.xlu0 %v5259, 64
        %v8073 = vpop.permute.xlu0 %8072
        %8074 = vrot.lane.b32.xlu0 %v5260, 64
        %v8075 = vpop.permute.xlu0 %8074
        %8076 = vrot.lane.b32.xlu0 %v5261, 64
        %v8077 = vpop.permute.xlu0 %8076
        %8078 = vrot.lane.b32.xlu0 %v5262, 64
        %v8079 = vpop.permute.xlu0 %8078
        %8080 = vrot.lane.b32.xlu0 %v5263, 64
        %v8081 = vpop.permute.xlu0 %8080
        %8082 = vrot.lane.b32.xlu0 %v5264, 64
        %v8083 = vpop.permute.xlu0 %8082
        %8084 = vrot.lane.b32.xlu0 %v5265, 64
        %v8085 = vpop.permute.xlu0 %8084
        %8118 = vrot.lane.b32.xlu0 %v6174, 64
        %v8119 = vpop.permute.xlu0 %8118
        %8120 = vrot.lane.b32.xlu0 %v6175, 64
        %v8121 = vpop.permute.xlu0 %8120
        %8122 = vrot.lane.b32.xlu0 %v6176, 64
        %v8123 = vpop.permute.xlu0 %8122
        %8124 = vrot.lane.b32.xlu0 %v6177, 64
        %v8125 = vpop.permute.xlu0 %8124
        %8126 = vrot.lane.b32.xlu0 %v6178, 64
        %v8127 = vpop.permute.xlu0 %8126
        %8128 = vrot.lane.b32.xlu0 %v6179, 64
        %v8129 = vpop.permute.xlu0 %8128
        %8130 = vrot.lane.b32.xlu0 %v6180, 64
        %v8131 = vpop.permute.xlu0 %8130
        %8132 = vrot.lane.b32.xlu0 %v6181, 64
        %v8133 = vpop.permute.xlu0 %8132
        %8134 = vrot.lane.b32.xlu0 %v6182, 64
        %v8135 = vpop.permute.xlu0 %8134
        %8136 = vrot.lane.b32.xlu0 %v6183, 64
        %v8137 = vpop.permute.xlu0 %8136
        %8138 = vrot.lane.b32.xlu0 %v6184, 64
        %v8139 = vpop.permute.xlu0 %8138
        %8140 = vrot.lane.b32.xlu0 %v6185, 64
        %v8141 = vpop.permute.xlu0 %8140
        %8142 = vrot.lane.b32.xlu0 %v6186, 64
        %v8143 = vpop.permute.xlu0 %8142
        %8144 = vrot.lane.b32.xlu0 %v6187, 64
        %v8145 = vpop.permute.xlu0 %8144
        %8146 = vrot.lane.b32.xlu0 %v6188, 64
        %v8147 = vpop.permute.xlu0 %8146
        %8148 = vrot.lane.b32.xlu0 %v6189, 64
        %v8149 = vpop.permute.xlu0 %8148
        %8182 = vrot.lane.b32.xlu0 %v7098, 64
        %v8183 = vpop.permute.xlu0 %8182
        %8184 = vrot.lane.b32.xlu0 %v7099, 64
        %v8185 = vpop.permute.xlu0 %8184
        %8186 = vrot.lane.b32.xlu0 %v7100, 64
        %v8187 = vpop.permute.xlu0 %8186
        %8188 = vrot.lane.b32.xlu0 %v7101, 64
        %v8189 = vpop.permute.xlu0 %8188
        %8190 = vrot.lane.b32.xlu0 %v7102, 64
        %v8191 = vpop.permute.xlu0 %8190
        %8192 = vrot.lane.b32.xlu0 %v7103, 64
        %v8193 = vpop.permute.xlu0 %8192
        %8194 = vrot.lane.b32.xlu0 %v7104, 64
        %v8195 = vpop.permute.xlu0 %8194
        %8196 = vrot.lane.b32.xlu0 %v7105, 64
        %v8197 = vpop.permute.xlu0 %8196
        %8198 = vrot.lane.b32.xlu0 %v7106, 64
        %v8199 = vpop.permute.xlu0 %8198
        %8200 = vrot.lane.b32.xlu0 %v7107, 64
        %v8201 = vpop.permute.xlu0 %8200
        %8202 = vrot.lane.b32.xlu0 %v7108, 64
        %v8203 = vpop.permute.xlu0 %8202
        %8204 = vrot.lane.b32.xlu0 %v7109, 64
        %v8205 = vpop.permute.xlu0 %8204
        %8206 = vrot.lane.b32.xlu0 %v7110, 64
        %v8207 = vpop.permute.xlu0 %8206
        %8208 = vrot.lane.b32.xlu0 %v7111, 64
        %v8209 = vpop.permute.xlu0 %8208
        %8210 = vrot.lane.b32.xlu0 %v7112, 64
        %v8211 = vpop.permute.xlu0 %8210
        %8212 = vrot.lane.b32.xlu0 %v7113, 64
        %v8213 = vpop.permute.xlu0 %8212
        %8246 = vrot.lane.b32.xlu0 %v8022, 64
        %v8247 = vpop.permute.xlu0 %8246
        %8248 = vrot.lane.b32.xlu0 %v8023, 64
        %v8249 = vpop.permute.xlu0 %8248
        %8250 = vrot.lane.b32.xlu0 %v8024, 64
        %v8251 = vpop.permute.xlu0 %8250
        %8252 = vrot.lane.b32.xlu0 %v8025, 64
        %v8253 = vpop.permute.xlu0 %8252
        %8254 = vrot.lane.b32.xlu0 %v8026, 64
        %v8255 = vpop.permute.xlu0 %8254
        %8256 = vrot.lane.b32.xlu0 %v8027, 64
        %v8257 = vpop.permute.xlu0 %8256
        %8258 = vrot.lane.b32.xlu0 %v8028, 64
        %v8259 = vpop.permute.xlu0 %8258
        %8260 = vrot.lane.b32.xlu0 %v8029, 64
        %v8261 = vpop.permute.xlu0 %8260
        %8262 = vrot.lane.b32.xlu0 %v8030, 64
        %v8263 = vpop.permute.xlu0 %8262
        %8264 = vrot.lane.b32.xlu0 %v8031, 64
        %v8265 = vpop.permute.xlu0 %8264
        %8266 = vrot.lane.b32.xlu0 %v8032, 64
        %v8267 = vpop.permute.xlu0 %8266
        %8268 = vrot.lane.b32.xlu0 %v8033, 64
        %v8269 = vpop.permute.xlu0 %8268
        %8270 = vrot.lane.b32.xlu0 %v8034, 64
        %v8271 = vpop.permute.xlu0 %8270
        %8272 = vrot.lane.b32.xlu0 %v8035, 64
        %v8273 = vpop.permute.xlu0 %8272
        %8274 = vrot.lane.b32.xlu0 %v8036, 64
        %v8275 = vpop.permute.xlu0 %8274
        %8276 = vrot.lane.b32.xlu0 %v8037, 64
        %v8277 = vpop.permute.xlu0 %8276
        %v8294 = vsel %vm4357, %v4760, %v8055
        %v8295 = vsel %vm4357, %v4761, %v8057
        %v8296 = vsel %vm4357, %v4762, %v8059
        %v8297 = vsel %vm4357, %v4763, %v8061
        %v8298 = vsel %vm4357, %v4764, %v8063
        %v8299 = vsel %vm4357, %v4765, %v8065
        %v8300 = vsel %vm4357, %v4766, %v8067
        %v8301 = vsel %vm4357, %v4767, %v8069
        %v8302 = vsel %vm4357, %v4768, %v8071
        %v8303 = vsel %vm4357, %v4769, %v8073
        %v8304 = vsel %vm4357, %v4770, %v8075
        %v8305 = vsel %vm4357, %v4771, %v8077
        %v8306 = vsel %vm4357, %v4772, %v8079
        %v8307 = vsel %vm4357, %v4773, %v8081
        %v8308 = vsel %vm4357, %v4774, %v8083
        %v8309 = vsel %vm4357, %v4775, %v8085
        %v8310 = vsel %vm4357, %v5684, %v8119
        %v8311 = vsel %vm4357, %v5685, %v8121
        %v8312 = vsel %vm4357, %v5686, %v8123
        %v8313 = vsel %vm4357, %v5687, %v8125
        %v8314 = vsel %vm4357, %v5688, %v8127
        %v8315 = vsel %vm4357, %v5689, %v8129
        %v8316 = vsel %vm4357, %v5690, %v8131
        %v8317 = vsel %vm4357, %v5691, %v8133
        %v8318 = vsel %vm4357, %v5692, %v8135
        %v8319 = vsel %vm4357, %v5693, %v8137
        %v8320 = vsel %vm4357, %v5694, %v8139
        %v8321 = vsel %vm4357, %v5695, %v8141
        %v8322 = vsel %vm4357, %v5696, %v8143
        %v8323 = vsel %vm4357, %v5697, %v8145
        %v8324 = vsel %vm4357, %v5698, %v8147
        %v8325 = vsel %vm4357, %v5699, %v8149
        %v8326 = vsel %vm4357, %v6608, %v8183
        %v8327 = vsel %vm4357, %v6609, %v8185
        %v8328 = vsel %vm4357, %v6610, %v8187
        %v8329 = vsel %vm4357, %v6611, %v8189
        %v8330 = vsel %vm4357, %v6612, %v8191
        %v8331 = vsel %vm4357, %v6613, %v8193
        %v8332 = vsel %vm4357, %v6614, %v8195
        %v8333 = vsel %vm4357, %v6615, %v8197
        %v8334 = vsel %vm4357, %v6616, %v8199
        %v8335 = vsel %vm4357, %v6617, %v8201
        %v8336 = vsel %vm4357, %v6618, %v8203
        %v8337 = vsel %vm4357, %v6619, %v8205
        %v8338 = vsel %vm4357, %v6620, %v8207
        %v8339 = vsel %vm4357, %v6621, %v8209
        %v8340 = vsel %vm4357, %v6622, %v8211
        %v8341 = vsel %vm4357, %v6623, %v8213
        %v8342 = vsel %vm4357, %v7532, %v8247
        %v8343 = vsel %vm4357, %v7533, %v8249
        %v8344 = vsel %vm4357, %v7534, %v8251
        %v8345 = vsel %vm4357, %v7535, %v8253
        %v8346 = vsel %vm4357, %v7536, %v8255
        %v8347 = vsel %vm4357, %v7537, %v8257
        %v8348 = vsel %vm4357, %v7538, %v8259
        %v8349 = vsel %vm4357, %v7539, %v8261
        %v8350 = vsel %vm4357, %v7540, %v8263
        %v8351 = vsel %vm4357, %v7541, %v8265
        %v8352 = vsel %vm4357, %v7542, %v8267
        %v8353 = vsel %vm4357, %v7543, %v8269
        %v8354 = vsel %vm4357, %v7544, %v8271
        %v8355 = vsel %vm4357, %v7545, %v8273
        %v8356 = vsel %vm4357, %v7546, %v8275
        %v8357 = vsel %vm4357, %v7547, %v8277
        %v8358 = vpack.c.bf16 %v8295, %v8294
        %v8359 = vpack.c.bf16 %v8311, %v8310
        %v8360 = vpack.c.bf16 %v8327, %v8326
        %v8361 = vpack.c.bf16 %v8343, %v8342
        %v8362 = vpack.c.bf16 %v8297, %v8296
        %v8363 = vpack.c.bf16 %v8313, %v8312
        %v8364 = vpack.c.bf16 %v8329, %v8328
        %v8365 = vpack.c.bf16 %v8345, %v8344
        %v8366 = vpack.c.bf16 %v8299, %v8298
        %v8367 = vpack.c.bf16 %v8315, %v8314
        %v8368 = vpack.c.bf16 %v8331, %v8330
        %v8369 = vpack.c.bf16 %v8347, %v8346
        %v8370 = vpack.c.bf16 %v8301, %v8300
        %v8371 = vpack.c.bf16 %v8317, %v8316
        %v8372 = vpack.c.bf16 %v8333, %v8332
        %v8373 = vpack.c.bf16 %v8349, %v8348
        %v8374 = vpack.c.bf16 %v8303, %v8302
        %v8375 = vpack.c.bf16 %v8319, %v8318
        %v8376 = vpack.c.bf16 %v8335, %v8334
        %v8377 = vpack.c.bf16 %v8351, %v8350
        %v8378 = vpack.c.bf16 %v8305, %v8304
        %v8379 = vpack.c.bf16 %v8321, %v8320
        %v8380 = vpack.c.bf16 %v8337, %v8336
        %v8381 = vpack.c.bf16 %v8353, %v8352
        %v8382 = vpack.c.bf16 %v8307, %v8306
        %v8383 = vpack.c.bf16 %v8323, %v8322
        %v8384 = vpack.c.bf16 %v8339, %v8338
        %v8385 = vpack.c.bf16 %v8355, %v8354
        %v8386 = vpack.c.bf16 %v8309, %v8308
        %v8387 = vpack.c.bf16 %v8325, %v8324
        %v8388 = vpack.c.bf16 %v8341, %v8340
        %v8389 = vpack.c.bf16 %v8357, %v8356
        %v8390 = vld [vmem:[%s3] sm:$0xff]
        %v8391 = vld [vmem:[%s3 + $0x8] sm:$0xff]
        %v8392 = vld [vmem:[%s3 + $0x10] sm:$0xff]
        %v8393 = vld [vmem:[%s3 + $0x18] sm:$0xff]
        %v8394 = vld [vmem:[%s3 + $0x20] sm:$0xff]
        %v8395 = vld [vmem:[%s3 + $0x28] sm:$0xff]
        %v8396 = vld [vmem:[%s3 + $0x30] sm:$0xff]
        %v8397 = vld [vmem:[%s3 + $0x38] sm:$0xff]
        %v8398 = vld [vmem:[%s3 + $0x40] sm:$0xff]
        %v8399 = vld [vmem:[%s3 + $0x48] sm:$0xff]
        %v8400 = vld [vmem:[%s3 + $0x50] sm:$0xff]
        %v8401 = vld [vmem:[%s3 + $0x58] sm:$0xff]
        %v8402 = vld [vmem:[%s3 + $0x60] sm:$0xff]
        %v8403 = vld [vmem:[%s3 + $0x68] sm:$0xff]
        %v8404 = vld [vmem:[%s3 + $0x70] sm:$0xff]
        %v8405 = vld [vmem:[%s3 + $0x78] sm:$0xff]
        %v8406 = vld [vmem:[%s3 + $0x80] sm:$0xff]
        %v8407 = vld [vmem:[%s3 + $0x88] sm:$0xff]
        %v8408 = vld [vmem:[%s3 + $0x90] sm:$0xff]
        %v8409 = vld [vmem:[%s3 + $0x98] sm:$0xff]
        %v8410 = vld [vmem:[%s3 + $0xa0] sm:$0xff]
        %v8411 = vld [vmem:[%s3 + $0xa8] sm:$0xff]
        %v8412 = vld [vmem:[%s3 + $0xb0] sm:$0xff]
        %v8413 = vld [vmem:[%s3 + $0xb8] sm:$0xff]
        %v8414 = vld [vmem:[%s3 + $0xc0] sm:$0xff]
        %v8415 = vld [vmem:[%s3 + $0xc8] sm:$0xff]
        %v8416 = vld [vmem:[%s3 + $0xd0] sm:$0xff]
        %v8417 = vld [vmem:[%s3 + $0xd8] sm:$0xff]
        %v8418 = vld [vmem:[%s3 + $0xe0] sm:$0xff]
        %v8419 = vld [vmem:[%s3 + $0xe8] sm:$0xff]
        %v8420 = vld [vmem:[%s3 + $0xf0] sm:$0xff]
        %v8421 = vld [vmem:[%s3 + $0xf8] sm:$0xff]
        %v8422 = vld [vmem:[%s3 + $0x100] sm:$0xff]
        %v8423 = vld [vmem:[%s3 + $0x108] sm:$0xff]
        %v8424 = vld [vmem:[%s3 + $0x110] sm:$0xff]
        %v8425 = vld [vmem:[%s3 + $0x118] sm:$0xff]
        %v8426 = vld [vmem:[%s3 + $0x120] sm:$0xff]
        %v8427 = vld [vmem:[%s3 + $0x128] sm:$0xff]
        %v8428 = vld [vmem:[%s3 + $0x130] sm:$0xff]
        %v8429 = vld [vmem:[%s3 + $0x138] sm:$0xff]
        %v8430 = vld [vmem:[%s3 + $0x140] sm:$0xff]
        %v8431 = vld [vmem:[%s3 + $0x148] sm:$0xff]
        %v8432 = vld [vmem:[%s3 + $0x150] sm:$0xff]
        %v8433 = vld [vmem:[%s3 + $0x158] sm:$0xff]
        %v8434 = vld [vmem:[%s3 + $0x160] sm:$0xff]
        %v8435 = vld [vmem:[%s3 + $0x168] sm:$0xff]
        %v8436 = vld [vmem:[%s3 + $0x170] sm:$0xff]
        %v8437 = vld [vmem:[%s3 + $0x178] sm:$0xff]
        %v8438 = vld [vmem:[%s3 + $0x180] sm:$0xff]
        %v8439 = vld [vmem:[%s3 + $0x188] sm:$0xff]
        %v8440 = vld [vmem:[%s3 + $0x190] sm:$0xff]
        %v8441 = vld [vmem:[%s3 + $0x198] sm:$0xff]
        %v8442 = vld [vmem:[%s3 + $0x1a0] sm:$0xff]
        %v8443 = vld [vmem:[%s3 + $0x1a8] sm:$0xff]
        %v8444 = vld [vmem:[%s3 + $0x1b0] sm:$0xff]
        %v8445 = vld [vmem:[%s3 + $0x1b8] sm:$0xff]
        %v8446 = vld [vmem:[%s3 + $0x1c0] sm:$0xff]
        %v8447 = vld [vmem:[%s3 + $0x1c8] sm:$0xff]
        %v8448 = vld [vmem:[%s3 + $0x1d0] sm:$0xff]
        %v8449 = vld [vmem:[%s3 + $0x1d8] sm:$0xff]
        %v8450 = vld [vmem:[%s3 + $0x1e0] sm:$0xff]
        %v8451 = vld [vmem:[%s3 + $0x1e8] sm:$0xff]
        %v8452 = vld [vmem:[%s3 + $0x1f0] sm:$0xff]
        %v8453 = vld [vmem:[%s3 + $0x1f8] sm:$0xff]
        %v8454 = vld [vmem:[%s3 + $0x200] sm:$0xff]
        %v8455 = vld [vmem:[%s3 + $0x208] sm:$0xff]
        %v8456 = vld [vmem:[%s3 + $0x210] sm:$0xff]
        %v8457 = vld [vmem:[%s3 + $0x218] sm:$0xff]
        %v8458 = vld [vmem:[%s3 + $0x220] sm:$0xff]
        %v8459 = vld [vmem:[%s3 + $0x228] sm:$0xff]
        %v8460 = vld [vmem:[%s3 + $0x230] sm:$0xff]
        %v8461 = vld [vmem:[%s3 + $0x238] sm:$0xff]
        %v8462 = vld [vmem:[%s3 + $0x240] sm:$0xff]
        %v8463 = vld [vmem:[%s3 + $0x248] sm:$0xff]
        %v8464 = vld [vmem:[%s3 + $0x250] sm:$0xff]
        %v8465 = vld [vmem:[%s3 + $0x258] sm:$0xff]
        %v8466 = vld [vmem:[%s3 + $0x260] sm:$0xff]
        %v8467 = vld [vmem:[%s3 + $0x268] sm:$0xff]
        %v8468 = vld [vmem:[%s3 + $0x270] sm:$0xff]
        %v8469 = vld [vmem:[%s3 + $0x278] sm:$0xff]
        %v8470 = vld [vmem:[%s3 + $0x280] sm:$0xff]
        %v8471 = vld [vmem:[%s3 + $0x288] sm:$0xff]
        %v8472 = vld [vmem:[%s3 + $0x290] sm:$0xff]
        %v8473 = vld [vmem:[%s3 + $0x298] sm:$0xff]
        %v8474 = vld [vmem:[%s3 + $0x2a0] sm:$0xff]
        %v8475 = vld [vmem:[%s3 + $0x2a8] sm:$0xff]
        %v8476 = vld [vmem:[%s3 + $0x2b0] sm:$0xff]
        %v8477 = vld [vmem:[%s3 + $0x2b8] sm:$0xff]
        %v8478 = vld [vmem:[%s3 + $0x2c0] sm:$0xff]
        %v8479 = vld [vmem:[%s3 + $0x2c8] sm:$0xff]
        %v8480 = vld [vmem:[%s3 + $0x2d0] sm:$0xff]
        %v8481 = vld [vmem:[%s3 + $0x2d8] sm:$0xff]
        %v8482 = vld [vmem:[%s3 + $0x2e0] sm:$0xff]
        %v8483 = vld [vmem:[%s3 + $0x2e8] sm:$0xff]
        %v8484 = vld [vmem:[%s3 + $0x2f0] sm:$0xff]
        %v8485 = vld [vmem:[%s3 + $0x2f8] sm:$0xff]
        %v8486 = vld [vmem:[%s3 + $0x300] sm:$0xff]
        %v8487 = vld [vmem:[%s3 + $0x308] sm:$0xff]
        %v8488 = vld [vmem:[%s3 + $0x310] sm:$0xff]
        %v8489 = vld [vmem:[%s3 + $0x318] sm:$0xff]
        %v8490 = vld [vmem:[%s3 + $0x320] sm:$0xff]
        %v8491 = vld [vmem:[%s3 + $0x328] sm:$0xff]
        %v8492 = vld [vmem:[%s3 + $0x330] sm:$0xff]
        %v8493 = vld [vmem:[%s3 + $0x338] sm:$0xff]
        %v8494 = vld [vmem:[%s3 + $0x340] sm:$0xff]
        %v8495 = vld [vmem:[%s3 + $0x348] sm:$0xff]
        %v8496 = vld [vmem:[%s3 + $0x350] sm:$0xff]
        %v8497 = vld [vmem:[%s3 + $0x358] sm:$0xff]
        %v8498 = vld [vmem:[%s3 + $0x360] sm:$0xff]
        %v8499 = vld [vmem:[%s3 + $0x368] sm:$0xff]
        %v8500 = vld [vmem:[%s3 + $0x370] sm:$0xff]
        %v8501 = vld [vmem:[%s3 + $0x378] sm:$0xff]
        %v8502 = vld [vmem:[%s3 + $0x380] sm:$0xff]
        %v8503 = vld [vmem:[%s3 + $0x388] sm:$0xff]
        %v8504 = vld [vmem:[%s3 + $0x390] sm:$0xff]
        %v8505 = vld [vmem:[%s3 + $0x398] sm:$0xff]
        %v8506 = vld [vmem:[%s3 + $0x3a0] sm:$0xff]
        %v8507 = vld [vmem:[%s3 + $0x3a8] sm:$0xff]
        %v8508 = vld [vmem:[%s3 + $0x3b0] sm:$0xff]
        %v8509 = vld [vmem:[%s3 + $0x3b8] sm:$0xff]
        %v8510 = vld [vmem:[%s3 + $0x3c0] sm:$0xff]
        %v8511 = vld [vmem:[%s3 + $0x3c8] sm:$0xff]
        %v8512 = vld [vmem:[%s3 + $0x3d0] sm:$0xff]
        %v8513 = vld [vmem:[%s3 + $0x3d8] sm:$0xff]
        %v8514 = vld [vmem:[%s3 + $0x3e0] sm:$0xff]
        %v8515 = vld [vmem:[%s3 + $0x3e8] sm:$0xff]
        %v8516 = vld [vmem:[%s3 + $0x3f0] sm:$0xff]
        %v8517 = vld [vmem:[%s3 + $0x3f8] sm:$0xff]
        %v8518 = vld [vmem:[%s4] sm:$0xf]
        %v8520 = vlaneseq
        %v8521 = vshrl.u32 %v8520, 7
        %v8522 = vsub.s32 0, %v8521
        %v8523 = vrot.slane %v8518, %v8522
        %v8524 = vlaneseq
        %v8525 = vshrl.u32 %v8524, 7
        %v8526 = vsub.s32 1, %v8525
        %v8527 = vrot.slane %v8518, %v8526
        %v8528 = vlaneseq
        %v8529 = vshrl.u32 %v8528, 7
        %v8530 = vsub.s32 2, %v8529
        %v8531 = vrot.slane %v8518, %v8530
        %v8532 = vlaneseq
        %v8533 = vshrl.u32 %v8532, 7
        %v8534 = vsub.s32 3, %v8533
        %v8535 = vrot.slane %v8518, %v8534
        %v8668 = vunpack.c.l.b16 %v8390
        %v8669 = vunpack.c.h.b16 %v8390
        %v8670 = vunpack.c.l.b16 %v8391
        %v8671 = vunpack.c.h.b16 %v8391
        %v8672 = vunpack.c.l.b16 %v8392
        %v8673 = vunpack.c.h.b16 %v8392
        %v8674 = vunpack.c.l.b16 %v8393
        %v8675 = vunpack.c.h.b16 %v8393
        %v8676 = vunpack.c.l.b16 %v8394
        %v8677 = vunpack.c.h.b16 %v8394
        %v8678 = vunpack.c.l.b16 %v8395
        %v8679 = vunpack.c.h.b16 %v8395
        %v8680 = vunpack.c.l.b16 %v8396
        %v8681 = vunpack.c.h.b16 %v8396
        %v8682 = vunpack.c.l.b16 %v8397
        %v8683 = vunpack.c.h.b16 %v8397
        %v8684 = vunpack.c.l.b16 %v8398
        %v8685 = vunpack.c.h.b16 %v8398
        %v8686 = vunpack.c.l.b16 %v8399
        %v8687 = vunpack.c.h.b16 %v8399
        %v8688 = vunpack.c.l.b16 %v8400
        %v8689 = vunpack.c.h.b16 %v8400
        %v8690 = vunpack.c.l.b16 %v8401
        %v8691 = vunpack.c.h.b16 %v8401
        %v8692 = vunpack.c.l.b16 %v8402
        %v8693 = vunpack.c.h.b16 %v8402
        %v8694 = vunpack.c.l.b16 %v8403
        %v8695 = vunpack.c.h.b16 %v8403
        %v8696 = vunpack.c.l.b16 %v8404
        %v8697 = vunpack.c.h.b16 %v8404
        %v8698 = vunpack.c.l.b16 %v8405
        %v8699 = vunpack.c.h.b16 %v8405
        %v8700 = vunpack.c.l.b16 %v8406
        %v8701 = vunpack.c.h.b16 %v8406
        %v8702 = vunpack.c.l.b16 %v8407
        %v8703 = vunpack.c.h.b16 %v8407
        %v8704 = vunpack.c.l.b16 %v8408
        %v8705 = vunpack.c.h.b16 %v8408
        %v8706 = vunpack.c.l.b16 %v8409
        %v8707 = vunpack.c.h.b16 %v8409
        %v8708 = vunpack.c.l.b16 %v8410
        %v8709 = vunpack.c.h.b16 %v8410
        %v8710 = vunpack.c.l.b16 %v8411
        %v8711 = vunpack.c.h.b16 %v8411
        %v8712 = vunpack.c.l.b16 %v8412
        %v8713 = vunpack.c.h.b16 %v8412
        %v8714 = vunpack.c.l.b16 %v8413
        %v8715 = vunpack.c.h.b16 %v8413
        %v8716 = vunpack.c.l.b16 %v8414
        %v8717 = vunpack.c.h.b16 %v8414
        %v8718 = vunpack.c.l.b16 %v8415
        %v8719 = vunpack.c.h.b16 %v8415
        %v8720 = vunpack.c.l.b16 %v8416
        %v8721 = vunpack.c.h.b16 %v8416
        %v8722 = vunpack.c.l.b16 %v8417
        %v8723 = vunpack.c.h.b16 %v8417
        %v8724 = vunpack.c.l.b16 %v8418
        %v8725 = vunpack.c.h.b16 %v8418
        %v8726 = vunpack.c.l.b16 %v8419
        %v8727 = vunpack.c.h.b16 %v8419
        %v8728 = vunpack.c.l.b16 %v8420
        %v8729 = vunpack.c.h.b16 %v8420
        %v8730 = vunpack.c.l.b16 %v8421
        %v8731 = vunpack.c.h.b16 %v8421
        %v8732 = vunpack.c.l.b16 %v8422
        %v8733 = vunpack.c.h.b16 %v8422
        %v8734 = vunpack.c.l.b16 %v8423
        %v8735 = vunpack.c.h.b16 %v8423
        %v8736 = vunpack.c.l.b16 %v8424
        %v8737 = vunpack.c.h.b16 %v8424
        %v8738 = vunpack.c.l.b16 %v8425
        %v8739 = vunpack.c.h.b16 %v8425
        %v8740 = vunpack.c.l.b16 %v8426
        %v8741 = vunpack.c.h.b16 %v8426
        %v8742 = vunpack.c.l.b16 %v8427
        %v8743 = vunpack.c.h.b16 %v8427
        %v8744 = vunpack.c.l.b16 %v8428
        %v8745 = vunpack.c.h.b16 %v8428
        %v8746 = vunpack.c.l.b16 %v8429
        %v8747 = vunpack.c.h.b16 %v8429
        %v8748 = vunpack.c.l.b16 %v8430
        %v8749 = vunpack.c.h.b16 %v8430
        %v8750 = vunpack.c.l.b16 %v8431
        %v8751 = vunpack.c.h.b16 %v8431
        %v8752 = vunpack.c.l.b16 %v8432
        %v8753 = vunpack.c.h.b16 %v8432
        %v8754 = vunpack.c.l.b16 %v8433
        %v8755 = vunpack.c.h.b16 %v8433
        %v8756 = vunpack.c.l.b16 %v8434
        %v8757 = vunpack.c.h.b16 %v8434
        %v8758 = vunpack.c.l.b16 %v8435
        %v8759 = vunpack.c.h.b16 %v8435
        %v8760 = vunpack.c.l.b16 %v8436
        %v8761 = vunpack.c.h.b16 %v8436
        %v8762 = vunpack.c.l.b16 %v8437
        %v8763 = vunpack.c.h.b16 %v8437
        %v8764 = vunpack.c.l.b16 %v8438
        %v8765 = vunpack.c.h.b16 %v8438
        %v8766 = vunpack.c.l.b16 %v8439
        %v8767 = vunpack.c.h.b16 %v8439
        %v8768 = vunpack.c.l.b16 %v8440
        %v8769 = vunpack.c.h.b16 %v8440
        %v8770 = vunpack.c.l.b16 %v8441
        %v8771 = vunpack.c.h.b16 %v8441
        %v8772 = vunpack.c.l.b16 %v8442
        %v8773 = vunpack.c.h.b16 %v8442
        %v8774 = vunpack.c.l.b16 %v8443
        %v8775 = vunpack.c.h.b16 %v8443
        %v8776 = vunpack.c.l.b16 %v8444
        %v8777 = vunpack.c.h.b16 %v8444
        %v8778 = vunpack.c.l.b16 %v8445
        %v8779 = vunpack.c.h.b16 %v8445
        %v8780 = vunpack.c.l.b16 %v8446
        %v8781 = vunpack.c.h.b16 %v8446
        %v8782 = vunpack.c.l.b16 %v8447
        %v8783 = vunpack.c.h.b16 %v8447
        %v8784 = vunpack.c.l.b16 %v8448
        %v8785 = vunpack.c.h.b16 %v8448
        %v8786 = vunpack.c.l.b16 %v8449
        %v8787 = vunpack.c.h.b16 %v8449
        %v8788 = vunpack.c.l.b16 %v8450
        %v8789 = vunpack.c.h.b16 %v8450
        %v8790 = vunpack.c.l.b16 %v8451
        %v8791 = vunpack.c.h.b16 %v8451
        %v8792 = vunpack.c.l.b16 %v8452
        %v8793 = vunpack.c.h.b16 %v8452
        %v8794 = vunpack.c.l.b16 %v8453
        %v8795 = vunpack.c.h.b16 %v8453
        %v8796 = vunpack.c.l.b16 %v8454
        %v8797 = vunpack.c.h.b16 %v8454
        %v8798 = vunpack.c.l.b16 %v8455
        %v8799 = vunpack.c.h.b16 %v8455
        %v8800 = vunpack.c.l.b16 %v8456
        %v8801 = vunpack.c.h.b16 %v8456
        %v8802 = vunpack.c.l.b16 %v8457
        %v8803 = vunpack.c.h.b16 %v8457
        %v8804 = vunpack.c.l.b16 %v8458
        %v8805 = vunpack.c.h.b16 %v8458
        %v8806 = vunpack.c.l.b16 %v8459
        %v8807 = vunpack.c.h.b16 %v8459
        %v8808 = vunpack.c.l.b16 %v8460
        %v8809 = vunpack.c.h.b16 %v8460
        %v8810 = vunpack.c.l.b16 %v8461
        %v8811 = vunpack.c.h.b16 %v8461
        %v8812 = vunpack.c.l.b16 %v8462
        %v8813 = vunpack.c.h.b16 %v8462
        %v8814 = vunpack.c.l.b16 %v8463
        %v8815 = vunpack.c.h.b16 %v8463
        %v8816 = vunpack.c.l.b16 %v8464
        %v8817 = vunpack.c.h.b16 %v8464
        %v8818 = vunpack.c.l.b16 %v8465
        %v8819 = vunpack.c.h.b16 %v8465
        %v8820 = vunpack.c.l.b16 %v8466
        %v8821 = vunpack.c.h.b16 %v8466
        %v8822 = vunpack.c.l.b16 %v8467
        %v8823 = vunpack.c.h.b16 %v8467
        %v8824 = vunpack.c.l.b16 %v8468
        %v8825 = vunpack.c.h.b16 %v8468
        %v8826 = vunpack.c.l.b16 %v8469
        %v8827 = vunpack.c.h.b16 %v8469
        %v8828 = vunpack.c.l.b16 %v8470
        %v8829 = vunpack.c.h.b16 %v8470
        %v8830 = vunpack.c.l.b16 %v8471
        %v8831 = vunpack.c.h.b16 %v8471
        %v8832 = vunpack.c.l.b16 %v8472
        %v8833 = vunpack.c.h.b16 %v8472
        %v8834 = vunpack.c.l.b16 %v8473
        %v8835 = vunpack.c.h.b16 %v8473
        %v8836 = vunpack.c.l.b16 %v8474
        %v8837 = vunpack.c.h.b16 %v8474
        %v8838 = vunpack.c.l.b16 %v8475
        %v8839 = vunpack.c.h.b16 %v8475
        %v8840 = vunpack.c.l.b16 %v8476
        %v8841 = vunpack.c.h.b16 %v8476
        %v8842 = vunpack.c.l.b16 %v8477
        %v8843 = vunpack.c.h.b16 %v8477
        %v8844 = vunpack.c.l.b16 %v8478
        %v8845 = vunpack.c.h.b16 %v8478
        %v8846 = vunpack.c.l.b16 %v8479
        %v8847 = vunpack.c.h.b16 %v8479
        %v8848 = vunpack.c.l.b16 %v8480
        %v8849 = vunpack.c.h.b16 %v8480
        %v8850 = vunpack.c.l.b16 %v8481
        %v8851 = vunpack.c.h.b16 %v8481
        %v8852 = vunpack.c.l.b16 %v8482
        %v8853 = vunpack.c.h.b16 %v8482
        %v8854 = vunpack.c.l.b16 %v8483
        %v8855 = vunpack.c.h.b16 %v8483
        %v8856 = vunpack.c.l.b16 %v8484
        %v8857 = vunpack.c.h.b16 %v8484
        %v8858 = vunpack.c.l.b16 %v8485
        %v8859 = vunpack.c.h.b16 %v8485
        %v8860 = vunpack.c.l.b16 %v8486
        %v8861 = vunpack.c.h.b16 %v8486
        %v8862 = vunpack.c.l.b16 %v8487
        %v8863 = vunpack.c.h.b16 %v8487
        %v8864 = vunpack.c.l.b16 %v8488
        %v8865 = vunpack.c.h.b16 %v8488
        %v8866 = vunpack.c.l.b16 %v8489
        %v8867 = vunpack.c.h.b16 %v8489
        %v8868 = vunpack.c.l.b16 %v8490
        %v8869 = vunpack.c.h.b16 %v8490
        %v8870 = vunpack.c.l.b16 %v8491
        %v8871 = vunpack.c.h.b16 %v8491
        %v8872 = vunpack.c.l.b16 %v8492
        %v8873 = vunpack.c.h.b16 %v8492
        %v8874 = vunpack.c.l.b16 %v8493
        %v8875 = vunpack.c.h.b16 %v8493
        %v8876 = vunpack.c.l.b16 %v8494
        %v8877 = vunpack.c.h.b16 %v8494
        %v8878 = vunpack.c.l.b16 %v8495
        %v8879 = vunpack.c.h.b16 %v8495
        %v8880 = vunpack.c.l.b16 %v8496
        %v8881 = vunpack.c.h.b16 %v8496
        %v8882 = vunpack.c.l.b16 %v8497
        %v8883 = vunpack.c.h.b16 %v8497
        %v8884 = vunpack.c.l.b16 %v8498
        %v8885 = vunpack.c.h.b16 %v8498
        %v8886 = vunpack.c.l.b16 %v8499
        %v8887 = vunpack.c.h.b16 %v8499
        %v8888 = vunpack.c.l.b16 %v8500
        %v8889 = vunpack.c.h.b16 %v8500
        %v8890 = vunpack.c.l.b16 %v8501
        %v8891 = vunpack.c.h.b16 %v8501
        %v8892 = vunpack.c.l.b16 %v8502
        %v8893 = vunpack.c.h.b16 %v8502
        %v8894 = vunpack.c.l.b16 %v8503
        %v8895 = vunpack.c.h.b16 %v8503
        %v8896 = vunpack.c.l.b16 %v8504
        %v8897 = vunpack.c.h.b16 %v8504
        %v8898 = vunpack.c.l.b16 %v8505
        %v8899 = vunpack.c.h.b16 %v8505
        %v8900 = vunpack.c.l.b16 %v8506
        %v8901 = vunpack.c.h.b16 %v8506
        %v8902 = vunpack.c.l.b16 %v8507
        %v8903 = vunpack.c.h.b16 %v8507
        %v8904 = vunpack.c.l.b16 %v8508
        %v8905 = vunpack.c.h.b16 %v8508
        %v8906 = vunpack.c.l.b16 %v8509
        %v8907 = vunpack.c.h.b16 %v8509
        %v8908 = vunpack.c.l.b16 %v8510
        %v8909 = vunpack.c.h.b16 %v8510
        %v8910 = vunpack.c.l.b16 %v8511
        %v8911 = vunpack.c.h.b16 %v8511
        %v8912 = vunpack.c.l.b16 %v8512
        %v8913 = vunpack.c.h.b16 %v8512
        %v8914 = vunpack.c.l.b16 %v8513
        %v8915 = vunpack.c.h.b16 %v8513
        %v8916 = vunpack.c.l.b16 %v8514
        %v8917 = vunpack.c.h.b16 %v8514
        %v8918 = vunpack.c.l.b16 %v8515
        %v8919 = vunpack.c.h.b16 %v8515
        %v8920 = vunpack.c.l.b16 %v8516
        %v8921 = vunpack.c.h.b16 %v8516
        %v8922 = vunpack.c.l.b16 %v8517
        %v8923 = vunpack.c.h.b16 %v8517
        %v8924 = vpack.c.b16 %v8672, %v8668
        %v8925 = vpack.c.b16 %v8673, %v8669
        %v8926 = vpack.c.b16 %v8674, %v8670
        %v8927 = vpack.c.b16 %v8675, %v8671
        %v8928 = vpack.c.b16 %v8680, %v8676
        %v8929 = vpack.c.b16 %v8681, %v8677
        %v8930 = vpack.c.b16 %v8682, %v8678
        %v8931 = vpack.c.b16 %v8683, %v8679
        %v8932 = vpack.c.b16 %v8688, %v8684
        %v8933 = vpack.c.b16 %v8689, %v8685
        %v8934 = vpack.c.b16 %v8690, %v8686
        %v8935 = vpack.c.b16 %v8691, %v8687
        %v8936 = vpack.c.b16 %v8696, %v8692
        %v8937 = vpack.c.b16 %v8697, %v8693
        %v8938 = vpack.c.b16 %v8698, %v8694
        %v8939 = vpack.c.b16 %v8699, %v8695
        %v8940 = vpack.c.b16 %v8704, %v8700
        %v8941 = vpack.c.b16 %v8705, %v8701
        %v8942 = vpack.c.b16 %v8706, %v8702
        %v8943 = vpack.c.b16 %v8707, %v8703
        %v8944 = vpack.c.b16 %v8712, %v8708
        %v8945 = vpack.c.b16 %v8713, %v8709
        %v8946 = vpack.c.b16 %v8714, %v8710
        %v8947 = vpack.c.b16 %v8715, %v8711
        %v8948 = vpack.c.b16 %v8720, %v8716
        %v8949 = vpack.c.b16 %v8721, %v8717
        %v8950 = vpack.c.b16 %v8722, %v8718
        %v8951 = vpack.c.b16 %v8723, %v8719
        %v8952 = vpack.c.b16 %v8728, %v8724
        %v8953 = vpack.c.b16 %v8729, %v8725
        %v8954 = vpack.c.b16 %v8730, %v8726
        %v8955 = vpack.c.b16 %v8731, %v8727
        %v8956 = vpack.c.b16 %v8736, %v8732
        %v8957 = vpack.c.b16 %v8737, %v8733
        %v8958 = vpack.c.b16 %v8738, %v8734
        %v8959 = vpack.c.b16 %v8739, %v8735
        %v8960 = vpack.c.b16 %v8744, %v8740
        %v8961 = vpack.c.b16 %v8745, %v8741
        %v8962 = vpack.c.b16 %v8746, %v8742
        %v8963 = vpack.c.b16 %v8747, %v8743
        %v8964 = vpack.c.b16 %v8752, %v8748
        %v8965 = vpack.c.b16 %v8753, %v8749
        %v8966 = vpack.c.b16 %v8754, %v8750
        %v8967 = vpack.c.b16 %v8755, %v8751
        %v8968 = vpack.c.b16 %v8760, %v8756
        %v8969 = vpack.c.b16 %v8761, %v8757
        %v8970 = vpack.c.b16 %v8762, %v8758
        %v8971 = vpack.c.b16 %v8763, %v8759
        %v8972 = vpack.c.b16 %v8768, %v8764
        %v8973 = vpack.c.b16 %v8769, %v8765
        %v8974 = vpack.c.b16 %v8770, %v8766
        %v8975 = vpack.c.b16 %v8771, %v8767
        %v8976 = vpack.c.b16 %v8776, %v8772
        %v8977 = vpack.c.b16 %v8777, %v8773
        %v8978 = vpack.c.b16 %v8778, %v8774
        %v8979 = vpack.c.b16 %v8779, %v8775
        %v8980 = vpack.c.b16 %v8784, %v8780
        %v8981 = vpack.c.b16 %v8785, %v8781
        %v8982 = vpack.c.b16 %v8786, %v8782
        %v8983 = vpack.c.b16 %v8787, %v8783
        %v8984 = vpack.c.b16 %v8792, %v8788
        %v8985 = vpack.c.b16 %v8793, %v8789
        %v8986 = vpack.c.b16 %v8794, %v8790
        %v8987 = vpack.c.b16 %v8795, %v8791
        %v8988 = vpack.c.b16 %v8800, %v8796
        %v8989 = vpack.c.b16 %v8801, %v8797
        %v8990 = vpack.c.b16 %v8802, %v8798
        %v8991 = vpack.c.b16 %v8803, %v8799
        %v8992 = vpack.c.b16 %v8808, %v8804
        %v8993 = vpack.c.b16 %v8809, %v8805
        %v8994 = vpack.c.b16 %v8810, %v8806
        %v8995 = vpack.c.b16 %v8811, %v8807
        %v8996 = vpack.c.b16 %v8816, %v8812
        %v8997 = vpack.c.b16 %v8817, %v8813
        %v8998 = vpack.c.b16 %v8818, %v8814
        %v8999 = vpack.c.b16 %v8819, %v8815
        %v9000 = vpack.c.b16 %v8824, %v8820
        %v9001 = vpack.c.b16 %v8825, %v8821
        %v9002 = vpack.c.b16 %v8826, %v8822
        %v9003 = vpack.c.b16 %v8827, %v8823
        %v9004 = vpack.c.b16 %v8832, %v8828
        %v9005 = vpack.c.b16 %v8833, %v8829
        %v9006 = vpack.c.b16 %v8834, %v8830
        %v9007 = vpack.c.b16 %v8835, %v8831
        %v9008 = vpack.c.b16 %v8840, %v8836
        %v9009 = vpack.c.b16 %v8841, %v8837
        %v9010 = vpack.c.b16 %v8842, %v8838
        %v9011 = vpack.c.b16 %v8843, %v8839
        %v9012 = vpack.c.b16 %v8848, %v8844
        %v9013 = vpack.c.b16 %v8849, %v8845
        %v9014 = vpack.c.b16 %v8850, %v8846
        %v9015 = vpack.c.b16 %v8851, %v8847
        %v9016 = vpack.c.b16 %v8856, %v8852
        %v9017 = vpack.c.b16 %v8857, %v8853
        %v9018 = vpack.c.b16 %v8858, %v8854
        %v9019 = vpack.c.b16 %v8859, %v8855
        %v9020 = vpack.c.b16 %v8864, %v8860
        %v9021 = vpack.c.b16 %v8865, %v8861
        %v9022 = vpack.c.b16 %v8866, %v8862
        %v9023 = vpack.c.b16 %v8867, %v8863
        %v9024 = vpack.c.b16 %v8872, %v8868
        %v9025 = vpack.c.b16 %v8873, %v8869
        %v9026 = vpack.c.b16 %v8874, %v8870
        %v9027 = vpack.c.b16 %v8875, %v8871
        %v9028 = vpack.c.b16 %v8880, %v8876
        %v9029 = vpack.c.b16 %v8881, %v8877
        %v9030 = vpack.c.b16 %v8882, %v8878
        %v9031 = vpack.c.b16 %v8883, %v8879
        %v9032 = vpack.c.b16 %v8888, %v8884
        %v9033 = vpack.c.b16 %v8889, %v8885
        %v9034 = vpack.c.b16 %v8890, %v8886
        %v9035 = vpack.c.b16 %v8891, %v8887
        %v9036 = vpack.c.b16 %v8896, %v8892
        %v9037 = vpack.c.b16 %v8897, %v8893
        %v9038 = vpack.c.b16 %v8898, %v8894
        %v9039 = vpack.c.b16 %v8899, %v8895
        %v9040 = vpack.c.b16 %v8904, %v8900
        %v9041 = vpack.c.b16 %v8905, %v8901
        %v9042 = vpack.c.b16 %v8906, %v8902
        %v9043 = vpack.c.b16 %v8907, %v8903
        %v9044 = vpack.c.b16 %v8912, %v8908
        %v9045 = vpack.c.b16 %v8913, %v8909
        %v9046 = vpack.c.b16 %v8914, %v8910
        %v9047 = vpack.c.b16 %v8915, %v8911
        %v9048 = vpack.c.b16 %v8920, %v8916
        %v9049 = vpack.c.b16 %v8921, %v8917
        %v9050 = vpack.c.b16 %v8922, %v8918
        %v9051 = vpack.c.b16 %v8923, %v8919
        %9180 = vmatprep.subr.bf16.mxu0 %v8953
        %9181 = vmatpush1.bf16.msra.mxu0 %v8952
        %9182 = vmatprep.subr.bf16.mxu0 %v8949
        %9183 = vmatpush1.bf16.msra.mxu0 %v8948
        %9184 = vmatprep.subr.bf16.mxu0 %v8945
        %9185 = vmatpush1.bf16.msra.mxu0 %v8944
        %9186 = vmatprep.subr.bf16.mxu0 %v8941
        %9187 = vmatpush1.bf16.msra.mxu0 %v8940
        %9188 = vmatprep.subr.bf16.mxu0 %v8937
        %9189 = vmatpush1.bf16.msra.mxu0 %v8936
        %9190 = vmatprep.subr.bf16.mxu0 %v8933
        %9191 = vmatpush1.bf16.msra.mxu0 %v8932
        %9192 = vmatprep.subr.bf16.mxu0 %v8929
        %9193 = vmatpush1.bf16.msra.mxu0 %v8928
        %9194 = vmatprep.subr.bf16.mxu0 %v8925
        %9195 = vmatpush1.bf16.msra.mxu0 %v8924
        %9196 = vmatprep.subr.bf16.mxu0 %v8985
        %9197 = vmatpush2.bf16.msra.mxu0 %v8984
        %9198 = vmatprep.subr.bf16.mxu0 %v8981
        %9199 = vmatpush2.bf16.msra.mxu0 %v8980
        %9200 = vmatprep.subr.bf16.mxu0 %v8977
        %9201 = vmatpush2.bf16.msra.mxu0 %v8976
        %9202 = vmatprep.subr.bf16.mxu0 %v8973
        %9203 = vmatpush2.bf16.msra.mxu0 %v8972
        %9204 = vmatprep.subr.bf16.mxu0 %v8969
        %9205 = vmatpush2.bf16.msra.mxu0 %v8968
        %9206 = vmatprep.subr.bf16.mxu0 %v8965
        %9207 = vmatpush2.bf16.msra.mxu0 %v8964
        %9208 = vmatprep.subr.bf16.mxu0 %v8961
        %9209 = vmatpush2.bf16.msra.mxu0 %v8960
        %9210 = vmatprep.subr.bf16.mxu0 %v8957
        %9211 = vmatpush2.bf16.msra.mxu0 %v8956
        %9212 = vmatprep.mubr.bf16.mxu0 %v8359
        %9213 = vmatmul.mubr.bf16.gmra.mxu0 %v8358
        %v9214 = vpop.f32.mrf.mxu0
        %v9215 = vadd.f32 %v8523, %v9214
        %v9216 = vpop.f32.mrf.mxu0
        %v9217 = vadd.f32 %v8527, %v9216
        %v9218 = vpop.f32.mrf.mxu0
        %v9219 = vadd.f32 %v8523, %v9218
        %v9220 = vpop.f32.mrf.mxu0
        %v9221 = vadd.f32 %v8527, %v9220
        %9222 = vmatprep.mubr.bf16.mxu0 %v8363
        %9223 = vmatmul.mubr.bf16.gmra.mxu0 %v8362
        %v9224 = vpop.f32.mrf.mxu0
        %v9225 = vadd.f32 %v8523, %v9224
        %v9226 = vpop.f32.mrf.mxu0
        %v9227 = vadd.f32 %v8527, %v9226
        %v9228 = vpop.f32.mrf.mxu0
        %v9229 = vadd.f32 %v8523, %v9228
        %v9230 = vpop.f32.mrf.mxu0
        %v9231 = vadd.f32 %v8527, %v9230
        %9232 = vmatprep.mubr.bf16.mxu0 %v8367
        %9233 = vmatmul.mubr.bf16.gmra.mxu0 %v8366
        %v9234 = vpop.f32.mrf.mxu0
        %v9235 = vadd.f32 %v8523, %v9234
        %v9236 = vpop.f32.mrf.mxu0
        %v9237 = vadd.f32 %v8527, %v9236
        %v9238 = vpop.f32.mrf.mxu0
        %v9239 = vadd.f32 %v8523, %v9238
        %v9240 = vpop.f32.mrf.mxu0
        %v9241 = vadd.f32 %v8527, %v9240
        %9242 = vmatprep.mubr.bf16.mxu0 %v8371
        %9243 = vmatmul.mubr.bf16.gmra.mxu0 %v8370
        %v9244 = vpop.f32.mrf.mxu0
        %v9245 = vadd.f32 %v8523, %v9244
        %v9246 = vpop.f32.mrf.mxu0
        %v9247 = vadd.f32 %v8527, %v9246
        %v9248 = vpop.f32.mrf.mxu0
        %v9249 = vadd.f32 %v8523, %v9248
        %v9250 = vpop.f32.mrf.mxu0
        %v9251 = vadd.f32 %v8527, %v9250
        %9252 = vmatprep.mubr.bf16.mxu0 %v8375
        %9253 = vmatmul.mubr.bf16.gmra.mxu0 %v8374
        %v9254 = vpop.f32.mrf.mxu0
        %v9255 = vadd.f32 %v8523, %v9254
        %v9256 = vpop.f32.mrf.mxu0
        %v9257 = vadd.f32 %v8527, %v9256
        %v9258 = vpop.f32.mrf.mxu0
        %v9259 = vadd.f32 %v8523, %v9258
        %v9260 = vpop.f32.mrf.mxu0
        %v9261 = vadd.f32 %v8527, %v9260
        %9262 = vmatprep.mubr.bf16.mxu0 %v8379
        %9263 = vmatmul.mubr.bf16.gmra.mxu0 %v8378
        %v9264 = vpop.f32.mrf.mxu0
        %v9265 = vadd.f32 %v8523, %v9264
        %v9266 = vpop.f32.mrf.mxu0
        %v9267 = vadd.f32 %v8527, %v9266
        %v9268 = vpop.f32.mrf.mxu0
        %v9269 = vadd.f32 %v8523, %v9268
        %v9270 = vpop.f32.mrf.mxu0
        %v9271 = vadd.f32 %v8527, %v9270
        %9272 = vmatprep.mubr.bf16.mxu0 %v8383
        %9273 = vmatmul.mubr.bf16.gmra.mxu0 %v8382
        %v9274 = vpop.f32.mrf.mxu0
        %v9275 = vadd.f32 %v8523, %v9274
        %v9276 = vpop.f32.mrf.mxu0
        %v9277 = vadd.f32 %v8527, %v9276
        %v9278 = vpop.f32.mrf.mxu0
        %v9279 = vadd.f32 %v8523, %v9278
        %v9280 = vpop.f32.mrf.mxu0
        %v9281 = vadd.f32 %v8527, %v9280
        %9282 = vmatprep.mubr.bf16.mxu0 %v8387
        %9283 = vmatmul.mubr.bf16.gmra.mxu0 %v8386
        %v9284 = vpop.f32.mrf.mxu0
        %v9285 = vadd.f32 %v8523, %v9284
        %v9286 = vpop.f32.mrf.mxu0
        %v9287 = vadd.f32 %v8527, %v9286
        %v9288 = vpop.f32.mrf.mxu0
        %v9289 = vadd.f32 %v8523, %v9288
        %v9290 = vpop.f32.mrf.mxu0
        %v9291 = vadd.f32 %v8527, %v9290
        %9292 = vdwg.mxu0
        %9293 = vmatprep.subr.bf16.mxu0 %v9017
        %9294 = vmatpush1.bf16.msra.mxu0 %v9016
        %9295 = vmatprep.subr.bf16.mxu0 %v9013
        %9296 = vmatpush1.bf16.msra.mxu0 %v9012
        %9297 = vmatprep.subr.bf16.mxu0 %v9009
        %9298 = vmatpush1.bf16.msra.mxu0 %v9008
        %9299 = vmatprep.subr.bf16.mxu0 %v9005
        %9300 = vmatpush1.bf16.msra.mxu0 %v9004
        %9301 = vmatprep.subr.bf16.mxu0 %v9001
        %9302 = vmatpush1.bf16.msra.mxu0 %v9000
        %9303 = vmatprep.subr.bf16.mxu0 %v8997
        %9304 = vmatpush1.bf16.msra.mxu0 %v8996
        %9305 = vmatprep.subr.bf16.mxu0 %v8993
        %9306 = vmatpush1.bf16.msra.mxu0 %v8992
        %9307 = vmatprep.subr.bf16.mxu0 %v8989
        %9308 = vmatpush1.bf16.msra.mxu0 %v8988
        %9309 = vmatprep.subr.bf16.mxu0 %v9049
        %9310 = vmatpush2.bf16.msra.mxu0 %v9048
        %9311 = vmatprep.subr.bf16.mxu0 %v9045
        %9312 = vmatpush2.bf16.msra.mxu0 %v9044
        %9313 = vmatprep.subr.bf16.mxu0 %v9041
        %9314 = vmatpush2.bf16.msra.mxu0 %v9040
        %9315 = vmatprep.subr.bf16.mxu0 %v9037
        %9316 = vmatpush2.bf16.msra.mxu0 %v9036
        %9317 = vmatprep.subr.bf16.mxu0 %v9033
        %9318 = vmatpush2.bf16.msra.mxu0 %v9032
        %9319 = vmatprep.subr.bf16.mxu0 %v9029
        %9320 = vmatpush2.bf16.msra.mxu0 %v9028
        %9321 = vmatprep.subr.bf16.mxu0 %v9025
        %9322 = vmatpush2.bf16.msra.mxu0 %v9024
        %9323 = vmatprep.subr.bf16.mxu0 %v9021
        %9324 = vmatpush2.bf16.msra.mxu0 %v9020
        %9325 = vmatprep.mubr.bf16.mxu0 %v8361
        %9326 = vmatmul.mubr.bf16.gmra.mxu0 %v8360
        %v9327 = vpop.f32.mrf.mxu0
        %v9328 = vadd.f32 %v9215, %v9327
        %v9329 = vpop.f32.mrf.mxu0
        %v9330 = vadd.f32 %v9217, %v9329
        %v9331 = vpop.f32.mrf.mxu0
        %v9332 = vadd.f32 %v9219, %v9331
        %v9333 = vpop.f32.mrf.mxu0
        %v9334 = vadd.f32 %v9221, %v9333
        %9335 = vmatprep.mubr.bf16.mxu0 %v8365
        %9336 = vmatmul.mubr.bf16.gmra.mxu0 %v8364
        %v9337 = vpop.f32.mrf.mxu0
        %v9338 = vadd.f32 %v9225, %v9337
        %v9339 = vpop.f32.mrf.mxu0
        %v9340 = vadd.f32 %v9227, %v9339
        %v9341 = vpop.f32.mrf.mxu0
        %v9342 = vadd.f32 %v9229, %v9341
        %v9343 = vpop.f32.mrf.mxu0
        %v9344 = vadd.f32 %v9231, %v9343
        %9345 = vmatprep.mubr.bf16.mxu0 %v8369
        %9346 = vmatmul.mubr.bf16.gmra.mxu0 %v8368
        %v9347 = vpop.f32.mrf.mxu0
        %v9348 = vadd.f32 %v9235, %v9347
        %v9349 = vpop.f32.mrf.mxu0
        %v9350 = vadd.f32 %v9237, %v9349
        %v9351 = vpop.f32.mrf.mxu0
        %v9352 = vadd.f32 %v9239, %v9351
        %v9353 = vpop.f32.mrf.mxu0
        %v9354 = vadd.f32 %v9241, %v9353
        %9355 = vmatprep.mubr.bf16.mxu0 %v8373
        %9356 = vmatmul.mubr.bf16.gmra.mxu0 %v8372
        %v9357 = vpop.f32.mrf.mxu0
        %v9358 = vadd.f32 %v9245, %v9357
        %v9359 = vpop.f32.mrf.mxu0
        %v9360 = vadd.f32 %v9247, %v9359
        %v9361 = vpop.f32.mrf.mxu0
        %v9362 = vadd.f32 %v9249, %v9361
        %v9363 = vpop.f32.mrf.mxu0
        %v9364 = vadd.f32 %v9251, %v9363
        %9365 = vmatprep.mubr.bf16.mxu0 %v8377
        %9366 = vmatmul.mubr.bf16.gmra.mxu0 %v8376
        %v9367 = vpop.f32.mrf.mxu0
        %v9368 = vadd.f32 %v9255, %v9367
        %v9369 = vpop.f32.mrf.mxu0
        %v9370 = vadd.f32 %v9257, %v9369
        %v9371 = vpop.f32.mrf.mxu0
        %v9372 = vadd.f32 %v9259, %v9371
        %v9373 = vpop.f32.mrf.mxu0
        %v9374 = vadd.f32 %v9261, %v9373
        %9375 = vmatprep.mubr.bf16.mxu0 %v8381
        %9376 = vmatmul.mubr.bf16.gmra.mxu0 %v8380
        %v9377 = vpop.f32.mrf.mxu0
        %v9378 = vadd.f32 %v9265, %v9377
        %v9379 = vpop.f32.mrf.mxu0
        %v9380 = vadd.f32 %v9267, %v9379
        %v9381 = vpop.f32.mrf.mxu0
        %v9382 = vadd.f32 %v9269, %v9381
        %v9383 = vpop.f32.mrf.mxu0
        %v9384 = vadd.f32 %v9271, %v9383
        %9385 = vmatprep.mubr.bf16.mxu0 %v8385
        %9386 = vmatmul.mubr.bf16.gmra.mxu0 %v8384
        %v9387 = vpop.f32.mrf.mxu0
        %v9388 = vadd.f32 %v9275, %v9387
        %v9389 = vpop.f32.mrf.mxu0
        %v9390 = vadd.f32 %v9277, %v9389
        %v9391 = vpop.f32.mrf.mxu0
        %v9392 = vadd.f32 %v9279, %v9391
        %v9393 = vpop.f32.mrf.mxu0
        %v9394 = vadd.f32 %v9281, %v9393
        %9395 = vmatprep.mubr.bf16.mxu0 %v8389
        %9396 = vmatmul.mubr.bf16.gmra.mxu0 %v8388
        %v9397 = vpop.f32.mrf.mxu0
        %v9398 = vadd.f32 %v9285, %v9397
        %v9399 = vpop.f32.mrf.mxu0
        %v9400 = vadd.f32 %v9287, %v9399
        %v9401 = vpop.f32.mrf.mxu0
        %v9402 = vadd.f32 %v9289, %v9401
        %v9403 = vpop.f32.mrf.mxu0
        %v9404 = vadd.f32 %v9291, %v9403
        %9405 = vdwg.mxu0
        %9406 = vmatprep.subr.bf16.mxu0 %v8955
        %9407 = vmatpush1.bf16.msra.mxu0 %v8954
        %9408 = vmatprep.subr.bf16.mxu0 %v8951
        %9409 = vmatpush1.bf16.msra.mxu0 %v8950
        %9410 = vmatprep.subr.bf16.mxu0 %v8947
        %9411 = vmatpush1.bf16.msra.mxu0 %v8946
        %9412 = vmatprep.subr.bf16.mxu0 %v8943
        %9413 = vmatpush1.bf16.msra.mxu0 %v8942
        %9414 = vmatprep.subr.bf16.mxu0 %v8939
        %9415 = vmatpush1.bf16.msra.mxu0 %v8938
        %9416 = vmatprep.subr.bf16.mxu0 %v8935
        %9417 = vmatpush1.bf16.msra.mxu0 %v8934
        %9418 = vmatprep.subr.bf16.mxu0 %v8931
        %9419 = vmatpush1.bf16.msra.mxu0 %v8930
        %9420 = vmatprep.subr.bf16.mxu0 %v8927
        %9421 = vmatpush1.bf16.msra.mxu0 %v8926
        %9422 = vmatprep.subr.bf16.mxu0 %v8987
        %9423 = vmatpush2.bf16.msra.mxu0 %v8986
        %9424 = vmatprep.subr.bf16.mxu0 %v8983
        %9425 = vmatpush2.bf16.msra.mxu0 %v8982
        %9426 = vmatprep.subr.bf16.mxu0 %v8979
        %9427 = vmatpush2.bf16.msra.mxu0 %v8978
        %9428 = vmatprep.subr.bf16.mxu0 %v8975
        %9429 = vmatpush2.bf16.msra.mxu0 %v8974
        %9430 = vmatprep.subr.bf16.mxu0 %v8971
        %9431 = vmatpush2.bf16.msra.mxu0 %v8970
        %9432 = vmatprep.subr.bf16.mxu0 %v8967
        %9433 = vmatpush2.bf16.msra.mxu0 %v8966
        %9434 = vmatprep.subr.bf16.mxu0 %v8963
        %9435 = vmatpush2.bf16.msra.mxu0 %v8962
        %9436 = vmatprep.subr.bf16.mxu0 %v8959
        %9437 = vmatpush2.bf16.msra.mxu0 %v8958
        %9438 = vmatprep.mubr.bf16.mxu0 %v8359
        %9439 = vmatmul.mubr.bf16.gmra.mxu0 %v8358
        %v9440 = vpop.f32.mrf.mxu0
        %v9441 = vadd.f32 %v8531, %v9440
        %v9442 = vpop.f32.mrf.mxu0
        %v9443 = vadd.f32 %v8535, %v9442
        %v9444 = vpop.f32.mrf.mxu0
        %v9445 = vadd.f32 %v8531, %v9444
        %v9446 = vpop.f32.mrf.mxu0
        %v9447 = vadd.f32 %v8535, %v9446
        %9448 = vmatprep.mubr.bf16.mxu0 %v8363
        %9449 = vmatmul.mubr.bf16.gmra.mxu0 %v8362
        %v9450 = vpop.f32.mrf.mxu0
        %v9451 = vadd.f32 %v8531, %v9450
        %v9452 = vpop.f32.mrf.mxu0
        %v9453 = vadd.f32 %v8535, %v9452
        %v9454 = vpop.f32.mrf.mxu0
        %v9455 = vadd.f32 %v8531, %v9454
        %v9456 = vpop.f32.mrf.mxu0
        %v9457 = vadd.f32 %v8535, %v9456
        %9458 = vmatprep.mubr.bf16.mxu0 %v8367
        %9459 = vmatmul.mubr.bf16.gmra.mxu0 %v8366
        %v9460 = vpop.f32.mrf.mxu0
        %v9461 = vadd.f32 %v8531, %v9460
        %v9462 = vpop.f32.mrf.mxu0
        %v9463 = vadd.f32 %v8535, %v9462
        %v9464 = vpop.f32.mrf.mxu0
        %v9465 = vadd.f32 %v8531, %v9464
        %v9466 = vpop.f32.mrf.mxu0
        %v9467 = vadd.f32 %v8535, %v9466
        %9468 = vmatprep.mubr.bf16.mxu0 %v8371
        %9469 = vmatmul.mubr.bf16.gmra.mxu0 %v8370
        %v9470 = vpop.f32.mrf.mxu0
        %v9471 = vadd.f32 %v8531, %v9470
        %v9472 = vpop.f32.mrf.mxu0
        %v9473 = vadd.f32 %v8535, %v9472
        %v9474 = vpop.f32.mrf.mxu0
        %v9475 = vadd.f32 %v8531, %v9474
        %v9476 = vpop.f32.mrf.mxu0
        %v9477 = vadd.f32 %v8535, %v9476
        %9478 = vmatprep.mubr.bf16.mxu0 %v8375
        %9479 = vmatmul.mubr.bf16.gmra.mxu0 %v8374
        %v9480 = vpop.f32.mrf.mxu0
        %v9481 = vadd.f32 %v8531, %v9480
        %v9482 = vpop.f32.mrf.mxu0
        %v9483 = vadd.f32 %v8535, %v9482
        %v9484 = vpop.f32.mrf.mxu0
        %v9485 = vadd.f32 %v8531, %v9484
        %v9486 = vpop.f32.mrf.mxu0
        %v9487 = vadd.f32 %v8535, %v9486
        %9488 = vmatprep.mubr.bf16.mxu0 %v8379
        %9489 = vmatmul.mubr.bf16.gmra.mxu0 %v8378
        %v9490 = vpop.f32.mrf.mxu0
        %v9491 = vadd.f32 %v8531, %v9490
        %v9492 = vpop.f32.mrf.mxu0
        %v9493 = vadd.f32 %v8535, %v9492
        %v9494 = vpop.f32.mrf.mxu0
        %v9495 = vadd.f32 %v8531, %v9494
        %v9496 = vpop.f32.mrf.mxu0
        %v9497 = vadd.f32 %v8535, %v9496
        %9498 = vmatprep.mubr.bf16.mxu0 %v8383
        %9499 = vmatmul.mubr.bf16.gmra.mxu0 %v8382
        %v9500 = vpop.f32.mrf.mxu0
        %v9501 = vadd.f32 %v8531, %v9500
        %v9502 = vpop.f32.mrf.mxu0
        %v9503 = vadd.f32 %v8535, %v9502
        %v9504 = vpop.f32.mrf.mxu0
        %v9505 = vadd.f32 %v8531, %v9504
        %v9506 = vpop.f32.mrf.mxu0
        %v9507 = vadd.f32 %v8535, %v9506
        %9508 = vmatprep.mubr.bf16.mxu0 %v8387
        %9509 = vmatmul.mubr.bf16.gmra.mxu0 %v8386
        %v9510 = vpop.f32.mrf.mxu0
        %v9511 = vadd.f32 %v8531, %v9510
        %v9512 = vpop.f32.mrf.mxu0
        %v9513 = vadd.f32 %v8535, %v9512
        %v9514 = vpop.f32.mrf.mxu0
        %v9515 = vadd.f32 %v8531, %v9514
        %v9516 = vpop.f32.mrf.mxu0
        %v9517 = vadd.f32 %v8535, %v9516
        %9518 = vdwg.mxu0
        %9519 = vmatprep.subr.bf16.mxu0 %v9019
        %9520 = vmatpush1.bf16.msra.mxu0 %v9018
        %9521 = vmatprep.subr.bf16.mxu0 %v9015
        %9522 = vmatpush1.bf16.msra.mxu0 %v9014
        %9523 = vmatprep.subr.bf16.mxu0 %v9011
        %9524 = vmatpush1.bf16.msra.mxu0 %v9010
        %9525 = vmatprep.subr.bf16.mxu0 %v9007
        %9526 = vmatpush1.bf16.msra.mxu0 %v9006
        %9527 = vmatprep.subr.bf16.mxu0 %v9003
        %9528 = vmatpush1.bf16.msra.mxu0 %v9002
        %9529 = vmatprep.subr.bf16.mxu0 %v8999
        %9530 = vmatpush1.bf16.msra.mxu0 %v8998
        %9531 = vmatprep.subr.bf16.mxu0 %v8995
        %9532 = vmatpush1.bf16.msra.mxu0 %v8994
        %9533 = vmatprep.subr.bf16.mxu0 %v8991
        %9534 = vmatpush1.bf16.msra.mxu0 %v8990
        %9535 = vmatprep.subr.bf16.mxu0 %v9051
        %9536 = vmatpush2.bf16.msra.mxu0 %v9050
        %9537 = vmatprep.subr.bf16.mxu0 %v9047
        %9538 = vmatpush2.bf16.msra.mxu0 %v9046
        %9539 = vmatprep.subr.bf16.mxu0 %v9043
        %9540 = vmatpush2.bf16.msra.mxu0 %v9042
        %9541 = vmatprep.subr.bf16.mxu0 %v9039
        %9542 = vmatpush2.bf16.msra.mxu0 %v9038
        %9543 = vmatprep.subr.bf16.mxu0 %v9035
        %9544 = vmatpush2.bf16.msra.mxu0 %v9034
        %9545 = vmatprep.subr.bf16.mxu0 %v9031
        %9546 = vmatpush2.bf16.msra.mxu0 %v9030
        %9547 = vmatprep.subr.bf16.mxu0 %v9027
        %9548 = vmatpush2.bf16.msra.mxu0 %v9026
        %9549 = vmatprep.subr.bf16.mxu0 %v9023
        %9550 = vmatpush2.bf16.msra.mxu0 %v9022
        %9551 = vmatprep.mubr.bf16.mxu0 %v8361
        %9552 = vmatmul.mubr.bf16.gmra.mxu0 %v8360
        %v9553 = vpop.f32.mrf.mxu0
        %v9554 = vadd.f32 %v9441, %v9553
        %v9555 = vpop.f32.mrf.mxu0
        %v9556 = vadd.f32 %v9443, %v9555
        %v9557 = vpop.f32.mrf.mxu0
        %v9558 = vadd.f32 %v9445, %v9557
        %v9559 = vpop.f32.mrf.mxu0
        %v9560 = vadd.f32 %v9447, %v9559
        %9561 = vmatprep.mubr.bf16.mxu0 %v8365
        %9562 = vmatmul.mubr.bf16.gmra.mxu0 %v8364
        %v9563 = vpop.f32.mrf.mxu0
        %v9564 = vadd.f32 %v9451, %v9563
        %v9565 = vpop.f32.mrf.mxu0
        %v9566 = vadd.f32 %v9453, %v9565
        %v9567 = vpop.f32.mrf.mxu0
        %v9568 = vadd.f32 %v9455, %v9567
        %v9569 = vpop.f32.mrf.mxu0
        %v9570 = vadd.f32 %v9457, %v9569
        %9571 = vmatprep.mubr.bf16.mxu0 %v8369
        %9572 = vmatmul.mubr.bf16.gmra.mxu0 %v8368
        %v9573 = vpop.f32.mrf.mxu0
        %v9574 = vadd.f32 %v9461, %v9573
        %v9575 = vpop.f32.mrf.mxu0
        %v9576 = vadd.f32 %v9463, %v9575
        %v9577 = vpop.f32.mrf.mxu0
        %v9578 = vadd.f32 %v9465, %v9577
        %v9579 = vpop.f32.mrf.mxu0
        %v9580 = vadd.f32 %v9467, %v9579
        %9581 = vmatprep.mubr.bf16.mxu0 %v8373
        %9582 = vmatmul.mubr.bf16.gmra.mxu0 %v8372
        %v9583 = vpop.f32.mrf.mxu0
        %v9584 = vadd.f32 %v9471, %v9583
        %v9585 = vpop.f32.mrf.mxu0
        %v9586 = vadd.f32 %v9473, %v9585
        %v9587 = vpop.f32.mrf.mxu0
        %v9588 = vadd.f32 %v9475, %v9587
        %v9589 = vpop.f32.mrf.mxu0
        %v9590 = vadd.f32 %v9477, %v9589
        %9591 = vmatprep.mubr.bf16.mxu0 %v8377
        %9592 = vmatmul.mubr.bf16.gmra.mxu0 %v8376
        %v9593 = vpop.f32.mrf.mxu0
        %v9594 = vadd.f32 %v9481, %v9593
        %v9595 = vpop.f32.mrf.mxu0
        %v9596 = vadd.f32 %v9483, %v9595
        %v9597 = vpop.f32.mrf.mxu0
        %v9598 = vadd.f32 %v9485, %v9597
        %v9599 = vpop.f32.mrf.mxu0
        %v9600 = vadd.f32 %v9487, %v9599
        %9601 = vmatprep.mubr.bf16.mxu0 %v8381
        %9602 = vmatmul.mubr.bf16.gmra.mxu0 %v8380
        %v9603 = vpop.f32.mrf.mxu0
        %v9604 = vadd.f32 %v9491, %v9603
        %v9605 = vpop.f32.mrf.mxu0
        %v9606 = vadd.f32 %v9493, %v9605
        %v9607 = vpop.f32.mrf.mxu0
        %v9608 = vadd.f32 %v9495, %v9607
        %v9609 = vpop.f32.mrf.mxu0
        %v9610 = vadd.f32 %v9497, %v9609
        %9611 = vmatprep.mubr.bf16.mxu0 %v8385
        %9612 = vmatmul.mubr.bf16.gmra.mxu0 %v8384
        %v9613 = vpop.f32.mrf.mxu0
        %v9614 = vadd.f32 %v9501, %v9613
        %v9615 = vpop.f32.mrf.mxu0
        %v9616 = vadd.f32 %v9503, %v9615
        %v9617 = vpop.f32.mrf.mxu0
        %v9618 = vadd.f32 %v9505, %v9617
        %v9619 = vpop.f32.mrf.mxu0
        %v9620 = vadd.f32 %v9507, %v9619
        %9621 = vmatprep.mubr.bf16.mxu0 %v8389
        %9622 = vmatmul.mubr.bf16.gmra.mxu0 %v8388
        %v9623 = vpop.f32.mrf.mxu0
        %v9624 = vadd.f32 %v9511, %v9623
        %v9625 = vpop.f32.mrf.mxu0
        %v9626 = vadd.f32 %v9513, %v9625
        %v9627 = vpop.f32.mrf.mxu0
        %v9628 = vadd.f32 %v9515, %v9627
        %v9629 = vpop.f32.mrf.mxu0
        %v9630 = vadd.f32 %v9517, %v9629
        %9631 = vdwg.mxu0
        %9632 = vst [vmem:[%s231] sm:$0xff] %v9328
        %9633 = vst [vmem:[%s231 + $0x8] sm:$0xff] %v9330
        %9634 = vst [vmem:[%s231 + $0x10] sm:$0xff] %v9554
        %9635 = vst [vmem:[%s231 + $0x18] sm:$0xff] %v9556
        %9636 = vst [vmem:[%s231 + $0x20] sm:$0xff] %v9332
        %9637 = vst [vmem:[%s231 + $0x28] sm:$0xff] %v9334
        %9638 = vst [vmem:[%s231 + $0x30] sm:$0xff] %v9558
        %9639 = vst [vmem:[%s231 + $0x38] sm:$0xff] %v9560
        %9640 = vst [vmem:[%s231 + $0x40] sm:$0xff] %v9338
        %9641 = vst [vmem:[%s231 + $0x48] sm:$0xff] %v9340
        %9642 = vst [vmem:[%s231 + $0x50] sm:$0xff] %v9564
        %9643 = vst [vmem:[%s231 + $0x58] sm:$0xff] %v9566
        %9644 = vst [vmem:[%s231 + $0x60] sm:$0xff] %v9342
        %9645 = vst [vmem:[%s231 + $0x68] sm:$0xff] %v9344
        %9646 = vst [vmem:[%s231 + $0x70] sm:$0xff] %v9568
        %9647 = vst [vmem:[%s231 + $0x78] sm:$0xff] %v9570
        %9648 = vst [vmem:[%s231 + $0x80] sm:$0xff] %v9348
        %9649 = vst [vmem:[%s231 + $0x88] sm:$0xff] %v9350
        %9650 = vst [vmem:[%s231 + $0x90] sm:$0xff] %v9574
        %9651 = vst [vmem:[%s231 + $0x98] sm:$0xff] %v9576
        %9652 = vst [vmem:[%s231 + $0xa0] sm:$0xff] %v9352
        %9653 = vst [vmem:[%s231 + $0xa8] sm:$0xff] %v9354
        %9654 = vst [vmem:[%s231 + $0xb0] sm:$0xff] %v9578
        %9655 = vst [vmem:[%s231 + $0xb8] sm:$0xff] %v9580
        %9656 = vst [vmem:[%s231 + $0xc0] sm:$0xff] %v9358
        %9657 = vst [vmem:[%s231 + $0xc8] sm:$0xff] %v9360
        %9658 = vst [vmem:[%s231 + $0xd0] sm:$0xff] %v9584
        %9659 = vst [vmem:[%s231 + $0xd8] sm:$0xff] %v9586
        %9660 = vst [vmem:[%s231 + $0xe0] sm:$0xff] %v9362
        %9661 = vst [vmem:[%s231 + $0xe8] sm:$0xff] %v9364
        %9662 = vst [vmem:[%s231 + $0xf0] sm:$0xff] %v9588
        %9663 = vst [vmem:[%s231 + $0xf8] sm:$0xff] %v9590
        %9664 = vst [vmem:[%s231 + $0x100] sm:$0xff] %v9368
        %9665 = vst [vmem:[%s231 + $0x108] sm:$0xff] %v9370
        %9666 = vst [vmem:[%s231 + $0x110] sm:$0xff] %v9594
        %9667 = vst [vmem:[%s231 + $0x118] sm:$0xff] %v9596
        %9668 = vst [vmem:[%s231 + $0x120] sm:$0xff] %v9372
        %9669 = vst [vmem:[%s231 + $0x128] sm:$0xff] %v9374
        %9670 = vst [vmem:[%s231 + $0x130] sm:$0xff] %v9598
        %9671 = vst [vmem:[%s231 + $0x138] sm:$0xff] %v9600
        %9672 = vst [vmem:[%s231 + $0x140] sm:$0xff] %v9378
        %9673 = vst [vmem:[%s231 + $0x148] sm:$0xff] %v9380
        %9674 = vst [vmem:[%s231 + $0x150] sm:$0xff] %v9604
        %9675 = vst [vmem:[%s231 + $0x158] sm:$0xff] %v9606
        %9676 = vst [vmem:[%s231 + $0x160] sm:$0xff] %v9382
        %9677 = vst [vmem:[%s231 + $0x168] sm:$0xff] %v9384
        %9678 = vst [vmem:[%s231 + $0x170] sm:$0xff] %v9608
        %9679 = vst [vmem:[%s231 + $0x178] sm:$0xff] %v9610
        %9680 = vst [vmem:[%s231 + $0x180] sm:$0xff] %v9388
        %9681 = vst [vmem:[%s231 + $0x188] sm:$0xff] %v9390
        %9682 = vst [vmem:[%s231 + $0x190] sm:$0xff] %v9614
        %9683 = vst [vmem:[%s231 + $0x198] sm:$0xff] %v9616
        %9684 = vst [vmem:[%s231 + $0x1a0] sm:$0xff] %v9392
        %9685 = vst [vmem:[%s231 + $0x1a8] sm:$0xff] %v9394
        %9686 = vst [vmem:[%s231 + $0x1b0] sm:$0xff] %v9618
        %9687 = vst [vmem:[%s231 + $0x1b8] sm:$0xff] %v9620
        %9688 = vst [vmem:[%s231 + $0x1c0] sm:$0xff] %v9398
        %9689 = vst [vmem:[%s231 + $0x1c8] sm:$0xff] %v9400
        %9690 = vst [vmem:[%s231 + $0x1d0] sm:$0xff] %v9624
        %9691 = vst [vmem:[%s231 + $0x1d8] sm:$0xff] %v9626
        %9692 = vst [vmem:[%s231 + $0x1e0] sm:$0xff] %v9402
        %9693 = vst [vmem:[%s231 + $0x1e8] sm:$0xff] %v9404
        %9694 = vst [vmem:[%s231 + $0x1f0] sm:$0xff] %v9628
        %9695 = vst [vmem:[%s231 + $0x1f8] sm:$0xff] %v9630
        %s9696 = sand.u32 %s151, 1
        %s9697 = scalar_lea.sflag [#allocation3], %s9696
        %s9698 = sand.u32 %s151, 1
        %s9699 = smul.addr %s9698, 512
        %s9700 = scalar_lea.vmem [#allocation2], %s9699
        // Predicated region
        $region41: #{multi_head_attention.1} parent=39 // pred_check
          %p9701 = pneg %p161
        $region42: #{multi_head_attention.1} parent=39 // pred_check_branch
          %9703 = sbr.rel (%p9701) target = $region44
        $region43: #{multi_head_attention.1} parent=39 // pred_region
          %s9704 = smul.u32 16, %s24
          %s9706 = ssub.s32 8192, 8192
          %9707 = vsyncadd %s9697, %s9706
          %s9708 = smul.addr %s9704, 4
          %s9709 = smul.addr %s23, 64
          %s9710 = sadd.s32 %s9708, %s9709
          %s9711 = smul.addr %s9710, 128
          %s9712 = scalar_lea.hbm %s5, %s9711
          %s9713 = sshll.u32 %s9700, 4
          %s9714 = int_to_ptr.vmem [resolvable:$true] %s9713
          %9719 = dma.vmem_to_hbm [thread:$0]  %s9714, 8192, %s9712, %s9697, 512, 512, 32
        $region44: #{multi_head_attention.1} parent=39 // pred_fallthru
          _
      $region40: #{multi_head_attention.1} parent=5 // pred_fallthru
        _
      %p9720 = scmp.le.s32.totalorder 2, %s14
      // Predicated region
      $region45: #{multi_head_attention.1} parent=5 // pred_check
        %p9721 = pneg %p9720
      $region46: #{multi_head_attention.1} parent=5 // pred_check_branch
        %9723 = sbr.rel (%p9721) target = $region48
      $region47: #{multi_head_attention.1} parent=5 // pred_region
        %s9724 = ssub.s32 %s14, 2
        // Predicated region
        $region49: #{multi_head_attention.1} parent=47 // pred_check
          %p9725 = pneg %p167
        $region50: #{multi_head_attention.1} parent=47 // pred_check_branch
          %9727 = sbr.rel (%p9725) target = $region52
        $region51: #{multi_head_attention.1} parent=47 // pred_region
          %s9728 = sand.u32 %s152, 1
          %s9729 = scalar_lea.sflag [#allocation3], %s9728
          %s9730 = sand.u32 %s152, 1
          %s9731 = smul.addr %s9730, 512
          %s9732 = scalar_lea.vmem [#allocation2], %s9731
          %9733 = dma.done %s9729, 8192
        $region52: #{multi_head_attention.1} parent=47 // pred_fallthru
          _
      $region48: #{multi_head_attention.1} parent=5 // pred_fallthru
        _
    $region6: #{multi_head_attention.1} parent=1 // loop_footer
      %s18 = sadd.s32 1, %s14
    $region7: #{multi_head_attention.1} parent=1 // loop_footer_branch
      %13 = sbr.rel target = $region3
    $region8: #{multi_head_attention.1} parent=1 // loop_exit
      _
    %9734 = vsyncpa [#allocation3], 1
    %s9735 = scalar_lea.sflag [#allocation3], 1
    %9736 = vsyncpa %s9735, 1

</llo_original>
